<compile_context>
chip_gen: v6e
topology: v6e:2x2x1
jax: 0.10.0
libtpu: 0.0.40
codegen_flags: <defaults>
</compile_context>

<pallas_src>
import jax
import jax.numpy as jnp
from jax import lax
from jax.experimental import pallas as pl
from jax.experimental.pallas import tpu as pltpu


IMG = 32
M = IMG * IMG                              # 1024 lanes per image (i*32 + j)
TAIL = pl.cdiv(264, 128) * 128             # >= largest shifted-read offset (conv2: 264)
MP = M + TAIL                              # padded lane extent of staged activations


# ---------------------------------------------------------------------------
# Fused forward kernel (one image per grid step)
# ---------------------------------------------------------------------------
def _lenet_fused_kernel(
    # inputs
    x_ref,                      # (3, 1024) f32   one image, lane = i*32 + j
    w1_ref, b1_ref,             # (6, 200) bf16, (6, 1) f32
    w2_ref, b2_ref,             # (16, 200) bf16, (16, 1) f32
    fc1w_ref, fc1b_ref,         # (120, 400) bf16, (120, 1) f32
    fc2w_ref, fc2b_ref,         # (84, 120) bf16, (84, 1) f32
    fc3w_ref, fc3b_ref,         # (10, 84) bf16, (10, 1) f32
    # output
    out_ref,                    # (10, 1) f32 logits for this image
    # scratch
    xp_ref,                     # (3, MP)  bf16  staged + tail-padded input
    patch_ref,                  # (200, M) bf16  im2col patches (shared conv1/conv2)
    a1_ref, p1_ref,             # (6, MP) f32 / (6, MP) bf16
    a2_ref, p2_ref,             # (16, MP) f32 / (16, M) bf16
    fcin_ref,                   # (400, 1) bf16  gathered fc1 input
):
    f32 = jnp.float32
    bf16 = jnp.bfloat16

    # ---- stage input in VMEM (single bf16 cast), zero only the lane tail ----
    xp_ref[:, :M] = x_ref[...].astype(bf16)
    xp_ref[:, M:] = jnp.zeros((3, MP - M), bf16)

    # ---- minimal zero-init (perf review item 2) ----------------------------
    # Patch pad rows t*8+3..t*8+7 MUST be finite before each conv matmul (their
    # weight columns are zero, but 0 * stale-NaN = NaN).  Rows 3..5 are later
    # overwritten by conv2's 6-channel taps; rows 6..7 stay zero for conv2.
    zpad5 = jnp.zeros((5, M), bf16)          # hoisted (broadcasts are not CSE'd)
    for t in range(25):
        patch_ref[t * 8 + 3:t * 8 + 8, :] = zpad5
    # Lane tails [M:MP) are deliberately read by the shifted pool/conv slices.
    a1_ref[:, M:] = jnp.zeros((6, MP - M), f32)
    p1_ref[:, M:] = jnp.zeros((6, MP - M), bf16)
    a2_ref[:, M:] = jnp.zeros((16, MP - M), f32)
    # p2 needs no init: fully written below and never read past column M.

    # ---- conv1 (3->6, 5x5, valid) + ReLU  [f32 accumulate, f32 epilogue] ----
    for ki in range(5):
        for kj in range(5):
            t = ki * 5 + kj
            d = ki * 32 + kj
            patch_ref[t * 8:t * 8 + 3, :] = xp_ref[:, d:d + M]
    y = jnp.dot(w1_ref[...], patch_ref[...], preferred_element_type=f32)
    a1_ref[:, :M] = jnp.maximum(y + b1_ref[...], 0.0)

    # ---- pool1: 2x2/2 max; stride-2 subsampling folded into later offsets ---
    p1_ref[:, :M] = jnp.maximum(
        jnp.maximum(a1_ref[:, 0:M], a1_ref[:, 1:1 + M]),
        jnp.maximum(a1_ref[:, 32:32 + M], a1_ref[:, 33:33 + M]),
    ).astype(bf16)

    # ---- conv2 (6->16, 5x5 on the pooled grid) + ReLU -----------------------
    for ki in range(5):
        for kj in range(5):
            t = ki * 5 + kj
            d = 64 * ki + 2 * kj            # dilated by the pool-1 stride
            patch_ref[t * 8:t * 8 + 6, :] = p1_ref[:, d:d + M]
    y = jnp.dot(w2_ref[...], patch_ref[...], preferred_element_type=f32)
    a2_ref[:, :M] = jnp.maximum(y + b2_ref[...], 0.0)

    # ---- pool2 --------------------------------------------------------------
    p2_ref[...] = jnp.maximum(
        jnp.maximum(a2_ref[:, 0:M], a2_ref[:, 2:2 + M]),
        jnp.maximum(a2_ref[:, 64:64 + M], a2_ref[:, 66:66 + M]),
    ).astype(bf16)

    # ---- gather the 16*5*5 valid features into (400, 1) ---------------------
    for i3 in range(5):
        for j3 in range(5):
            t = i3 * 5 + j3
            q = 128 * i3 + 4 * j3
            fcin_ref[t * 16:(t + 1) * 16, :] = p2_ref[:, q:q + 1]

    # ---- fc1 -> ReLU -> fc2 -> ReLU -> fc3 (bf16 operands, f32 accumulate) --
    z = jnp.dot(fc1w_ref[...], fcin_ref[...], preferred_element_type=f32)
    z = jnp.maximum(z + fc1b_ref[...], 0.0).astype(bf16)
    z = jnp.dot(fc2w_ref[...], z, preferred_element_type=f32)
    z = jnp.maximum(z + fc2b_ref[...], 0.0).astype(bf16)
    z = jnp.dot(fc3w_ref[...], z, preferred_element_type=f32) + fc3b_ref[...]
    out_ref[...] = z.astype(out_ref.dtype)       # (10, 1)


# ---------------------------------------------------------------------------
# Wrapper
# ---------------------------------------------------------------------------
def _wspec(shape):
    return pl.BlockSpec(shape, lambda b: (0,) * len(shape))   # VMEM-resident weight


def lenet_pallas_forward(x, kp):
    """x: (B, 3, 32, 32) float32, kp: prepared params -> (B, 10) float32 logits."""
    B = x.shape[0]
    x_r = x.reshape(B, 3, M)                 # contiguous reshape: no HBM relayout

    out = pl.pallas_call(
        _lenet_fused_kernel,
        out_shape=jax.ShapeDtypeStruct((B, 10, 1), jnp.float32),
        grid=(B,),
        in_specs=[
            pl.BlockSpec((None, 3, M), lambda b: (b, 0, 0)),
            _wspec((6, 200)), _wspec((6, 1)),
            _wspec((16, 200)), _wspec((16, 1)),
            _wspec((120, 400)), _wspec((120, 1)),
            _wspec((84, 120)), _wspec((84, 1)),
            _wspec((10, 84)), _wspec((10, 1)),
        ],
        out_specs=pl.BlockSpec((None, 10, 1), lambda b: (b, 0, 0)),
        scratch_shapes=[
            pltpu.VMEM((3, MP), jnp.bfloat16),      # staged input
            pltpu.VMEM((200, M), jnp.bfloat16),     # im2col patches
            pltpu.VMEM((6, MP), jnp.float32),       # conv1 + relu
            pltpu.VMEM((6, MP), jnp.bfloat16),      # pool1
            pltpu.VMEM((16, MP), jnp.float32),      # conv2 + relu
            pltpu.VMEM((16, M), jnp.bfloat16),      # pool2
            pltpu.VMEM((400, 1), jnp.bfloat16),     # fc1 input gather
        ],
        # One image per step: disjoint output blocks -> "parallel" lets v7x's
        # two TensorCores split the batch; on v5e/v6e it's a plain loop.
        compiler_params=pltpu.CompilerParams(dimension_semantics=("parallel",)),
    )(x_r, kp["w1"], kp["b1"], kp["w2"], kp["b2"],
      kp["fc1_w"], kp["fc1_b"], kp["fc2_w"], kp["fc2_b"],
      kp["fc3_w"], kp["fc3_b"])
    return out.reshape(B, 10)


# ---------------------------------------------------------------------------
# Parameters (PyTorch-native shapes) + one-time kernel repack
# ---------------------------------------------------------------------------
def init_params(key):
    def uni(k, shape, fan_in):
        bound = 1.0 / jnp.sqrt(jnp.float32(fan_in))
        return jax.random.uniform(k, shape, jnp.float32, -bound, bound)

    ks = jax.random.split(key, 10)
    l1, l2 = 120, 84
    return {
        "conv1_w": uni(ks[0], (6, 3, 5, 5), 75), "conv1_b": uni(ks[1], (6,), 75),
        "conv2_w": uni(ks[2], (16, 6, 5, 5), 150), "conv2_b": uni(ks[3], (16,), 150),
        "fc1_w": uni(ks[4], (l1, 400), 400), "fc1_b": uni(ks[5], (l1,), 400),
        "fc2_w": uni(ks[6], (l2, l1), l1), "fc2_b": uni(ks[7], (l2,), l1),
        "fc3_w": uni(ks[8], (10, l2), l2), "fc3_b": uni(ks[9], (10,), l2),
    }


def prepare_params(params):
    """One-time repack: kernel-ready matrices; matmul operands cast to bf16."""
    bf16 = jnp.bfloat16

    def conv_mat(w):   # (O, C, 5, 5) -> (O, 25*8): column = tap*8 + c, zero pad c..7
        o, c, kh, kw = w.shape
        wt = jnp.transpose(w, (0, 2, 3, 1)).reshape(o, kh * kw, c)
        wt = jnp.pad(wt, ((0, 0), (0, 0), (0, 8 - c)))
        return wt.reshape(o, kh * kw * 8).astype(bf16)

    def col(v):
        return v.reshape(-1, 1).astype(jnp.float32)

    # Fold torch's NCHW .view(-1, 400) order (c*25 + tap) into fc1's weight so
    # it matches the kernel's (tap*16 + c) gather order exactly.
    fc1 = params["fc1_w"]
    fc1 = fc1.reshape(fc1.shape[0], 16, 25).transpose(0, 2, 1).reshape(fc1.shape[0], 400)
    return {
        "w1": conv_mat(params["conv1_w"]), "b1": col(params["conv1_b"]),
        "w2": conv_mat(params["conv2_w"]), "b2": col(params["conv2_b"]),
        "fc1_w": fc1.astype(bf16), "fc1_b": col(params["fc1_b"]),
        "fc2_w": params["fc2_w"].astype(bf16), "fc2_b": col(params["fc2_b"]),
        "fc3_w": params["fc3_w"].astype(bf16), "fc3_b": col(params["fc3_b"]),
    }


# ---------------------------------------------------------------------------
# Pure-JAX reference (identical semantics to Net.forward) for verification
# ---------------------------------------------------------------------------
def net_forward_reference(x, params):
    hp = lax.Precision.HIGHEST

    def conv(a, w, b):
        y = lax.conv_general_dilated(
            a, w, window_strides=(1, 1), padding="VALID",
            dimension_numbers=("NCHW", "OIHW", "NCHW"), precision=hp)
        return y + b[None, :, None, None]

    def pool(a):
        return lax.reduce_window(a, -jnp.inf, lax.max,
                                 (1, 1, 2, 2), (1, 1, 2, 2), "VALID")

    a = pool(jax.nn.relu(conv(x, params["conv1_w"], params["conv1_b"])))
    a = pool(jax.nn.relu(conv(a, params["conv2_w"], params["conv2_b"])))
    a = a.reshape(a.shape[0], -1)
    a = jax.nn.relu(jnp.dot(a, params["fc1_w"].T, precision=hp) + params["fc1_b"])
    a = jax.nn.relu(jnp.dot(a, params["fc2_w"].T, precision=hp) + params["fc2_b"])
    return jnp.dot(a, params["fc3_w"].T, precision=hp) + params["fc3_b"]


if __name__ == "__main__":
    key = jax.random.PRNGKey(0)
    k_x, k_p = jax.random.split(key)
    # The architecture implies 3x32x32 inputs (16*5*5 flatten). Small batch = 2.
    x = jax.random.normal(k_x, (2, 3, 32, 32), dtype=jnp.float32)
    params = init_params(k_p)
    kparams = prepare_params(params)

    fwd = jax.jit(lenet_pallas_forward)
    out = jax.block_until_ready(fwd(x, kparams))

    assert out.shape == (2, 10) and out.dtype == jnp.float32
    assert bool(jnp.all(jnp.isfinite(out)))

    ref = jax.block_until_ready(jax.jit(net_forward_reference)(x, params))
    # bf16 matmul operands (f32 accumulate) -> ~1e-2 relative error budget.
    assert bool(jnp.allclose(out, ref, atol=3e-2, rtol=3e-2)), (out, ref)

    print("KERNEL_OK")
</pallas_src>

<mosaic_0001>
module attributes {stable_mosaic.version = 11 : i64} {
  func.func @_lenet_fused_kernel(%arg0: i32, %arg1: memref<1x3x1024xf32, #tpu.memory_space<vmem>>, %arg2: memref<6x200xbf16, #tpu.memory_space<vmem>>, %arg3: memref<6x1xf32, #tpu.memory_space<vmem>>, %arg4: memref<16x200xbf16, #tpu.memory_space<vmem>>, %arg5: memref<16x1xf32, #tpu.memory_space<vmem>>, %arg6: memref<120x400xbf16, #tpu.memory_space<vmem>>, %arg7: memref<120x1xf32, #tpu.memory_space<vmem>>, %arg8: memref<84x120xbf16, #tpu.memory_space<vmem>>, %arg9: memref<84x1xf32, #tpu.memory_space<vmem>>, %arg10: memref<10x84xbf16, #tpu.memory_space<vmem>>, %arg11: memref<10x1xf32, #tpu.memory_space<vmem>>, %arg12: memref<1x10x1xf32, #tpu.memory_space<vmem>>, %arg13: memref<3x1408xbf16, #tpu.memory_space<vmem>>, %arg14: memref<200x1024xbf16, #tpu.memory_space<vmem>>, %arg15: memref<6x1408xf32, #tpu.memory_space<vmem>>, %arg16: memref<6x1408xbf16, #tpu.memory_space<vmem>>, %arg17: memref<16x1408xf32, #tpu.memory_space<vmem>>, %arg18: memref<16x1024xbf16, #tpu.memory_space<vmem>>, %arg19: memref<400x1xbf16, #tpu.memory_space<vmem>>) attributes {dimension_semantics = [#tpu.dimension_semantics<parallel>], iteration_bounds = array<i64: 2>, scalar_prefetch = 0 : i64, scratch_operands = 7 : i64, tpu.core_type = #tpu.core_type<tc>, window_params = [{transform_indices = @transform_0, window_bounds = array<i64: 1, 3, 1024>}, {pipeline_mode = #tpu.pipeline_mode<synchronous>, transform_indices = @transform_1, window_bounds = array<i64: 6, 200>}, {pipeline_mode = #tpu.pipeline_mode<synchronous>, transform_indices = @transform_2, window_bounds = array<i64: 6, 1>}, {pipeline_mode = #tpu.pipeline_mode<synchronous>, transform_indices = @transform_3, window_bounds = array<i64: 16, 200>}, {pipeline_mode = #tpu.pipeline_mode<synchronous>, transform_indices = @transform_4, window_bounds = array<i64: 16, 1>}, {pipeline_mode = #tpu.pipeline_mode<synchronous>, transform_indices = @transform_5, window_bounds = array<i64: 120, 400>}, {pipeline_mode = #tpu.pipeline_mode<synchronous>, transform_indices = @transform_6, window_bounds = array<i64: 120, 1>}, {pipeline_mode = #tpu.pipeline_mode<synchronous>, transform_indices = @transform_7, window_bounds = array<i64: 84, 120>}, {pipeline_mode = #tpu.pipeline_mode<synchronous>, transform_indices = @transform_8, window_bounds = array<i64: 84, 1>}, {pipeline_mode = #tpu.pipeline_mode<synchronous>, transform_indices = @transform_9, window_bounds = array<i64: 10, 84>}, {pipeline_mode = #tpu.pipeline_mode<synchronous>, transform_indices = @transform_10, window_bounds = array<i64: 10, 1>}, {transform_indices = @transform_11, window_bounds = array<i64: 1, 10, 1>}]} {
    %c0 = arith.constant 0 : index
    %c0_0 = arith.constant 0 : index
    %c0_1 = arith.constant 0 : index
    %0 = vector.load %arg1[%c0, %c0_0, %c0_1] : memref<1x3x1024xf32, #tpu.memory_space<vmem>>, vector<1x3x1024xf32>
    %1 = vector.shape_cast %0 : vector<1x3x1024xf32> to vector<3x1024xf32>
    %2 = arith.truncf %1 : vector<3x1024xf32> to vector<3x1024xbf16>
    %c0_2 = arith.constant 0 : index
    %c0_3 = arith.constant 0 : index
    %3 = vector.load %arg13[%c0_2, %c0_3] : memref<3x1408xbf16, #tpu.memory_space<vmem>>, vector<3x1024xbf16>
    tpu.vector_store %arg13[%c0_2, %c0_3], %2 {strides = array<i32>} : memref<3x1408xbf16, #tpu.memory_space<vmem>>, vector<3x1024xbf16>,
    %cst = arith.constant 0.000000e+00 : bf16
    %4 = vector.broadcast %cst : bf16 to vector<3x384xbf16>
    %c0_4 = arith.constant 0 : index
    %c1024 = arith.constant 1024 : index
    %5 = vector.load %arg13[%c0_4, %c1024] : memref<3x1408xbf16, #tpu.memory_space<vmem>>, vector<3x384xbf16>
    tpu.vector_store %arg13[%c0_4, %c1024], %4 {strides = array<i32>} : memref<3x1408xbf16, #tpu.memory_space<vmem>>, vector<3x384xbf16>,
    %cst_5 = arith.constant 0.000000e+00 : bf16
    %6 = vector.broadcast %cst_5 : bf16 to vector<5x1024xbf16>
    %c3 = arith.constant 3 : index
    %c0_6 = arith.constant 0 : index
    %7 = vector.load %arg14[%c3, %c0_6] : memref<200x1024xbf16, #tpu.memory_space<vmem>>, vector<5x1024xbf16>
    tpu.vector_store %arg14[%c3, %c0_6], %6 {strides = array<i32>} : memref<200x1024xbf16, #tpu.memory_space<vmem>>, vector<5x1024xbf16>,
    %c11 = arith.constant 11 : index
    %c0_7 = arith.constant 0 : index
    %8 = vector.load %arg14[%c11, %c0_7] : memref<200x1024xbf16, #tpu.memory_space<vmem>>, vector<5x1024xbf16>
    tpu.vector_store %arg14[%c11, %c0_7], %6 {strides = array<i32>} : memref<200x1024xbf16, #tpu.memory_space<vmem>>, vector<5x1024xbf16>,
    %c19 = arith.constant 19 : index
    %c0_8 = arith.constant 0 : index
    %9 = vector.load %arg14[%c19, %c0_8] : memref<200x1024xbf16, #tpu.memory_space<vmem>>, vector<5x1024xbf16>
    tpu.vector_store %arg14[%c19, %c0_8], %6 {strides = array<i32>} : memref<200x1024xbf16, #tpu.memory_space<vmem>>, vector<5x1024xbf16>,
    %c27 = arith.constant 27 : index
    %c0_9 = arith.constant 0 : index
    %10 = vector.load %arg14[%c27, %c0_9] : memref<200x1024xbf16, #tpu.memory_space<vmem>>, vector<5x1024xbf16>
    tpu.vector_store %arg14[%c27, %c0_9], %6 {strides = array<i32>} : memref<200x1024xbf16, #tpu.memory_space<vmem>>, vector<5x1024xbf16>,
    %c35 = arith.constant 35 : index
    %c0_10 = arith.constant 0 : index
    %11 = vector.load %arg14[%c35, %c0_10] : memref<200x1024xbf16, #tpu.memory_space<vmem>>, vector<5x1024xbf16>
    tpu.vector_store %arg14[%c35, %c0_10], %6 {strides = array<i32>} : memref<200x1024xbf16, #tpu.memory_space<vmem>>, vector<5x1024xbf16>,
    %c43 = arith.constant 43 : index
    %c0_11 = arith.constant 0 : index
    %12 = vector.load %arg14[%c43, %c0_11] : memref<200x1024xbf16, #tpu.memory_space<vmem>>, vector<5x1024xbf16>
    tpu.vector_store %arg14[%c43, %c0_11], %6 {strides = array<i32>} : memref<200x1024xbf16, #tpu.memory_space<vmem>>, vector<5x1024xbf16>,
    %c51 = arith.constant 51 : index
    %c0_12 = arith.constant 0 : index
    %13 = vector.load %arg14[%c51, %c0_12] : memref<200x1024xbf16, #tpu.memory_space<vmem>>, vector<5x1024xbf16>
    tpu.vector_store %arg14[%c51, %c0_12], %6 {strides = array<i32>} : memref<200x1024xbf16, #tpu.memory_space<vmem>>, vector<5x1024xbf16>,
    %c59 = arith.constant 59 : index
    %c0_13 = arith.constant 0 : index
    %14 = vector.load %arg14[%c59, %c0_13] : memref<200x1024xbf16, #tpu.memory_space<vmem>>, vector<5x1024xbf16>
    tpu.vector_store %arg14[%c59, %c0_13], %6 {strides = array<i32>} : memref<200x1024xbf16, #tpu.memory_space<vmem>>, vector<5x1024xbf16>,
    %c67 = arith.constant 67 : index
    %c0_14 = arith.constant 0 : index
    %15 = vector.load %arg14[%c67, %c0_14] : memref<200x1024xbf16, #tpu.memory_space<vmem>>, vector<5x1024xbf16>
    tpu.vector_store %arg14[%c67, %c0_14], %6 {strides = array<i32>} : memref<200x1024xbf16, #tpu.memory_space<vmem>>, vector<5x1024xbf16>,
    %c75 = arith.constant 75 : index
    %c0_15 = arith.constant 0 : index
    %16 = vector.load %arg14[%c75, %c0_15] : memref<200x1024xbf16, #tpu.memory_space<vmem>>, vector<5x1024xbf16>
    tpu.vector_store %arg14[%c75, %c0_15], %6 {strides = array<i32>} : memref<200x1024xbf16, #tpu.memory_space<vmem>>, vector<5x1024xbf16>,
    %c83 = arith.constant 83 : index
    %c0_16 = arith.constant 0 : index
    %17 = vector.load %arg14[%c83, %c0_16] : memref<200x1024xbf16, #tpu.memory_space<vmem>>, vector<5x1024xbf16>
    tpu.vector_store %arg14[%c83, %c0_16], %6 {strides = array<i32>} : memref<200x1024xbf16, #tpu.memory_space<vmem>>, vector<5x1024xbf16>,
    %c91 = arith.constant 91 : index
    %c0_17 = arith.constant 0 : index
    %18 = vector.load %arg14[%c91, %c0_17] : memref<200x1024xbf16, #tpu.memory_space<vmem>>, vector<5x1024xbf16>
    tpu.vector_store %arg14[%c91, %c0_17], %6 {strides = array<i32>} : memref<200x1024xbf16, #tpu.memory_space<vmem>>, vector<5x1024xbf16>,
    %c99 = arith.constant 99 : index
    %c0_18 = arith.constant 0 : index
    %19 = vector.load %arg14[%c99, %c0_18] : memref<200x1024xbf16, #tpu.memory_space<vmem>>, vector<5x1024xbf16>
    tpu.vector_store %arg14[%c99, %c0_18], %6 {strides = array<i32>} : memref<200x1024xbf16, #tpu.memory_space<vmem>>, vector<5x1024xbf16>,
    %c107 = arith.constant 107 : index
    %c0_19 = arith.constant 0 : index
    %20 = vector.load %arg14[%c107, %c0_19] : memref<200x1024xbf16, #tpu.memory_space<vmem>>, vector<5x1024xbf16>
    tpu.vector_store %arg14[%c107, %c0_19], %6 {strides = array<i32>} : memref<200x1024xbf16, #tpu.memory_space<vmem>>, vector<5x1024xbf16>,
    %c115 = arith.constant 115 : index
    %c0_20 = arith.constant 0 : index
    %21 = vector.load %arg14[%c115, %c0_20] : memref<200x1024xbf16, #tpu.memory_space<vmem>>, vector<5x1024xbf16>
    tpu.vector_store %arg14[%c115, %c0_20], %6 {strides = array<i32>} : memref<200x1024xbf16, #tpu.memory_space<vmem>>, vector<5x1024xbf16>,
    %c123 = arith.constant 123 : index
    %c0_21 = arith.constant 0 : index
    %22 = vector.load %arg14[%c123, %c0_21] : memref<200x1024xbf16, #tpu.memory_space<vmem>>, vector<5x1024xbf16>
    tpu.vector_store %arg14[%c123, %c0_21], %6 {strides = array<i32>} : memref<200x1024xbf16, #tpu.memory_space<vmem>>, vector<5x1024xbf16>,
    %c131 = arith.constant 131 : index
    %c0_22 = arith.constant 0 : index
    %23 = vector.load %arg14[%c131, %c0_22] : memref<200x1024xbf16, #tpu.memory_space<vmem>>, vector<5x1024xbf16>
    tpu.vector_store %arg14[%c131, %c0_22], %6 {strides = array<i32>} : memref<200x1024xbf16, #tpu.memory_space<vmem>>, vector<5x1024xbf16>,
    %c139 = arith.constant 139 : index
    %c0_23 = arith.constant 0 : index
    %24 = vector.load %arg14[%c139, %c0_23] : memref<200x1024xbf16, #tpu.memory_space<vmem>>, vector<5x1024xbf16>
    tpu.vector_store %arg14[%c139, %c0_23], %6 {strides = array<i32>} : memref<200x1024xbf16, #tpu.memory_space<vmem>>, vector<5x1024xbf16>,
    %c147 = arith.constant 147 : index
    %c0_24 = arith.constant 0 : index
    %25 = vector.load %arg14[%c147, %c0_24] : memref<200x1024xbf16, #tpu.memory_space<vmem>>, vector<5x1024xbf16>
    tpu.vector_store %arg14[%c147, %c0_24], %6 {strides = array<i32>} : memref<200x1024xbf16, #tpu.memory_space<vmem>>, vector<5x1024xbf16>,
    %c155 = arith.constant 155 : index
    %c0_25 = arith.constant 0 : index
    %26 = vector.load %arg14[%c155, %c0_25] : memref<200x1024xbf16, #tpu.memory_space<vmem>>, vector<5x1024xbf16>
    tpu.vector_store %arg14[%c155, %c0_25], %6 {strides = array<i32>} : memref<200x1024xbf16, #tpu.memory_space<vmem>>, vector<5x1024xbf16>,
    %c163 = arith.constant 163 : index
    %c0_26 = arith.constant 0 : index
    %27 = vector.load %arg14[%c163, %c0_26] : memref<200x1024xbf16, #tpu.memory_space<vmem>>, vector<5x1024xbf16>
    tpu.vector_store %arg14[%c163, %c0_26], %6 {strides = array<i32>} : memref<200x1024xbf16, #tpu.memory_space<vmem>>, vector<5x1024xbf16>,
    %c171 = arith.constant 171 : index
    %c0_27 = arith.constant 0 : index
    %28 = vector.load %arg14[%c171, %c0_27] : memref<200x1024xbf16, #tpu.memory_space<vmem>>, vector<5x1024xbf16>
    tpu.vector_store %arg14[%c171, %c0_27], %6 {strides = array<i32>} : memref<200x1024xbf16, #tpu.memory_space<vmem>>, vector<5x1024xbf16>,
    %c179 = arith.constant 179 : index
    %c0_28 = arith.constant 0 : index
    %29 = vector.load %arg14[%c179, %c0_28] : memref<200x1024xbf16, #tpu.memory_space<vmem>>, vector<5x1024xbf16>
    tpu.vector_store %arg14[%c179, %c0_28], %6 {strides = array<i32>} : memref<200x1024xbf16, #tpu.memory_space<vmem>>, vector<5x1024xbf16>,
    %c187 = arith.constant 187 : index
    %c0_29 = arith.constant 0 : index
    %30 = vector.load %arg14[%c187, %c0_29] : memref<200x1024xbf16, #tpu.memory_space<vmem>>, vector<5x1024xbf16>
    tpu.vector_store %arg14[%c187, %c0_29], %6 {strides = array<i32>} : memref<200x1024xbf16, #tpu.memory_space<vmem>>, vector<5x1024xbf16>,
    %c195 = arith.constant 195 : index
    %c0_30 = arith.constant 0 : index
    %31 = vector.load %arg14[%c195, %c0_30] : memref<200x1024xbf16, #tpu.memory_space<vmem>>, vector<5x1024xbf16>
    tpu.vector_store %arg14[%c195, %c0_30], %6 {strides = array<i32>} : memref<200x1024xbf16, #tpu.memory_space<vmem>>, vector<5x1024xbf16>,
    %cst_31 = arith.constant 0.000000e+00 : f32
    %32 = vector.broadcast %cst_31 : f32 to vector<6x384xf32>
    %c0_32 = arith.constant 0 : index
    %c1024_33 = arith.constant 1024 : index
    %33 = vector.load %arg15[%c0_32, %c1024_33] : memref<6x1408xf32, #tpu.memory_space<vmem>>, vector<6x384xf32>
    tpu.vector_store %arg15[%c0_32, %c1024_33], %32 {strides = array<i32>} : memref<6x1408xf32, #tpu.memory_space<vmem>>, vector<6x384xf32>,
    %cst_34 = arith.constant 0.000000e+00 : bf16
    %34 = vector.broadcast %cst_34 : bf16 to vector<6x384xbf16>
    %c0_35 = arith.constant 0 : index
    %c1024_36 = arith.constant 1024 : index
    %35 = vector.load %arg16[%c0_35, %c1024_36] : memref<6x1408xbf16, #tpu.memory_space<vmem>>, vector<6x384xbf16>
    tpu.vector_store %arg16[%c0_35, %c1024_36], %34 {strides = array<i32>} : memref<6x1408xbf16, #tpu.memory_space<vmem>>, vector<6x384xbf16>,
    %cst_37 = arith.constant 0.000000e+00 : f32
    %36 = vector.broadcast %cst_37 : f32 to vector<16x384xf32>
    %c0_38 = arith.constant 0 : index
    %c1024_39 = arith.constant 1024 : index
    %37 = vector.load %arg17[%c0_38, %c1024_39] : memref<16x1408xf32, #tpu.memory_space<vmem>>, vector<16x384xf32>
    tpu.vector_store %arg17[%c0_38, %c1024_39], %36 {strides = array<i32>} : memref<16x1408xf32, #tpu.memory_space<vmem>>, vector<16x384xf32>,
    %c0_40 = arith.constant 0 : index
    %c0_41 = arith.constant 0 : index
    %38 = vector.load %arg13[%c0_40, %c0_41] : memref<3x1408xbf16, #tpu.memory_space<vmem>>, vector<3x1024xbf16>
    %c0_42 = arith.constant 0 : index
    %c0_43 = arith.constant 0 : index
    %39 = vector.load %arg14[%c0_42, %c0_43] : memref<200x1024xbf16, #tpu.memory_space<vmem>>, vector<3x1024xbf16>
    tpu.vector_store %arg14[%c0_42, %c0_43], %38 {strides = array<i32>} : memref<200x1024xbf16, #tpu.memory_space<vmem>>, vector<3x1024xbf16>,
    %c0_44 = arith.constant 0 : index
    %c1 = arith.constant 1 : index
    %40 = vector.load %arg13[%c0_44, %c1] : memref<3x1408xbf16, #tpu.memory_space<vmem>>, vector<3x1024xbf16>
    %c8 = arith.constant 8 : index
    %c0_45 = arith.constant 0 : index
    %41 = vector.load %arg14[%c8, %c0_45] : memref<200x1024xbf16, #tpu.memory_space<vmem>>, vector<3x1024xbf16>
    tpu.vector_store %arg14[%c8, %c0_45], %40 {strides = array<i32>} : memref<200x1024xbf16, #tpu.memory_space<vmem>>, vector<3x1024xbf16>,
    %c0_46 = arith.constant 0 : index
    %c2 = arith.constant 2 : index
    %42 = vector.load %arg13[%c0_46, %c2] : memref<3x1408xbf16, #tpu.memory_space<vmem>>, vector<3x1024xbf16>
    %c16 = arith.constant 16 : index
    %c0_47 = arith.constant 0 : index
    %43 = vector.load %arg14[%c16, %c0_47] : memref<200x1024xbf16, #tpu.memory_space<vmem>>, vector<3x1024xbf16>
    tpu.vector_store %arg14[%c16, %c0_47], %42 {strides = array<i32>} : memref<200x1024xbf16, #tpu.memory_space<vmem>>, vector<3x1024xbf16>,
    %c0_48 = arith.constant 0 : index
    %c3_49 = arith.constant 3 : index
    %44 = vector.load %arg13[%c0_48, %c3_49] : memref<3x1408xbf16, #tpu.memory_space<vmem>>, vector<3x1024xbf16>
    %c24 = arith.constant 24 : index
    %c0_50 = arith.constant 0 : index
    %45 = vector.load %arg14[%c24, %c0_50] : memref<200x1024xbf16, #tpu.memory_space<vmem>>, vector<3x1024xbf16>
    tpu.vector_store %arg14[%c24, %c0_50], %44 {strides = array<i32>} : memref<200x1024xbf16, #tpu.memory_space<vmem>>, vector<3x1024xbf16>,
    %c0_51 = arith.constant 0 : index
    %c4 = arith.constant 4 : index
    %46 = vector.load %arg13[%c0_51, %c4] : memref<3x1408xbf16, #tpu.memory_space<vmem>>, vector<3x1024xbf16>
    %c32 = arith.constant 32 : index
    %c0_52 = arith.constant 0 : index
    %47 = vector.load %arg14[%c32, %c0_52] : memref<200x1024xbf16, #tpu.memory_space<vmem>>, vector<3x1024xbf16>
    tpu.vector_store %arg14[%c32, %c0_52], %46 {strides = array<i32>} : memref<200x1024xbf16, #tpu.memory_space<vmem>>, vector<3x1024xbf16>,
    %c0_53 = arith.constant 0 : index
    %c32_54 = arith.constant 32 : index
    %48 = vector.load %arg13[%c0_53, %c32_54] : memref<3x1408xbf16, #tpu.memory_space<vmem>>, vector<3x1024xbf16>
    %c40 = arith.constant 40 : index
    %c0_55 = arith.constant 0 : index
    %49 = vector.load %arg14[%c40, %c0_55] : memref<200x1024xbf16, #tpu.memory_space<vmem>>, vector<3x1024xbf16>
    tpu.vector_store %arg14[%c40, %c0_55], %48 {strides = array<i32>} : memref<200x1024xbf16, #tpu.memory_space<vmem>>, vector<3x1024xbf16>,
    %c0_56 = arith.constant 0 : index
    %c33 = arith.constant 33 : index
    %50 = vector.load %arg13[%c0_56, %c33] : memref<3x1408xbf16, #tpu.memory_space<vmem>>, vector<3x1024xbf16>
    %c48 = arith.constant 48 : index
    %c0_57 = arith.constant 0 : index
    %51 = vector.load %arg14[%c48, %c0_57] : memref<200x1024xbf16, #tpu.memory_space<vmem>>, vector<3x1024xbf16>
    tpu.vector_store %arg14[%c48, %c0_57], %50 {strides = array<i32>} : memref<200x1024xbf16, #tpu.memory_space<vmem>>, vector<3x1024xbf16>,
    %c0_58 = arith.constant 0 : index
    %c34 = arith.constant 34 : index
    %52 = vector.load %arg13[%c0_58, %c34] : memref<3x1408xbf16, #tpu.memory_space<vmem>>, vector<3x1024xbf16>
    %c56 = arith.constant 56 : index
    %c0_59 = arith.constant 0 : index
    %53 = vector.load %arg14[%c56, %c0_59] : memref<200x1024xbf16, #tpu.memory_space<vmem>>, vector<3x1024xbf16>
    tpu.vector_store %arg14[%c56, %c0_59], %52 {strides = array<i32>} : memref<200x1024xbf16, #tpu.memory_space<vmem>>, vector<3x1024xbf16>,
    %c0_60 = arith.constant 0 : index
    %c35_61 = arith.constant 35 : index
    %54 = vector.load %arg13[%c0_60, %c35_61] : memref<3x1408xbf16, #tpu.memory_space<vmem>>, vector<3x1024xbf16>
    %c64 = arith.constant 64 : index
    %c0_62 = arith.constant 0 : index
    %55 = vector.load %arg14[%c64, %c0_62] : memref<200x1024xbf16, #tpu.memory_space<vmem>>, vector<3x1024xbf16>
    tpu.vector_store %arg14[%c64, %c0_62], %54 {strides = array<i32>} : memref<200x1024xbf16, #tpu.memory_space<vmem>>, vector<3x1024xbf16>,
    %c0_63 = arith.constant 0 : index
    %c36 = arith.constant 36 : index
    %56 = vector.load %arg13[%c0_63, %c36] : memref<3x1408xbf16, #tpu.memory_space<vmem>>, vector<3x1024xbf16>
    %c72 = arith.constant 72 : index
    %c0_64 = arith.constant 0 : index
    %57 = vector.load %arg14[%c72, %c0_64] : memref<200x1024xbf16, #tpu.memory_space<vmem>>, vector<3x1024xbf16>
    tpu.vector_store %arg14[%c72, %c0_64], %56 {strides = array<i32>} : memref<200x1024xbf16, #tpu.memory_space<vmem>>, vector<3x1024xbf16>,
    %c0_65 = arith.constant 0 : index
    %c64_66 = arith.constant 64 : index
    %58 = vector.load %arg13[%c0_65, %c64_66] : memref<3x1408xbf16, #tpu.memory_space<vmem>>, vector<3x1024xbf16>
    %c80 = arith.constant 80 : index
    %c0_67 = arith.constant 0 : index
    %59 = vector.load %arg14[%c80, %c0_67] : memref<200x1024xbf16, #tpu.memory_space<vmem>>, vector<3x1024xbf16>
    tpu.vector_store %arg14[%c80, %c0_67], %58 {strides = array<i32>} : memref<200x1024xbf16, #tpu.memory_space<vmem>>, vector<3x1024xbf16>,
    %c0_68 = arith.constant 0 : index
    %c65 = arith.constant 65 : index
    %60 = vector.load %arg13[%c0_68, %c65] : memref<3x1408xbf16, #tpu.memory_space<vmem>>, vector<3x1024xbf16>
    %c88 = arith.constant 88 : index
    %c0_69 = arith.constant 0 : index
    %61 = vector.load %arg14[%c88, %c0_69] : memref<200x1024xbf16, #tpu.memory_space<vmem>>, vector<3x1024xbf16>
    tpu.vector_store %arg14[%c88, %c0_69], %60 {strides = array<i32>} : memref<200x1024xbf16, #tpu.memory_space<vmem>>, vector<3x1024xbf16>,
    %c0_70 = arith.constant 0 : index
    %c66 = arith.constant 66 : index
    %62 = vector.load %arg13[%c0_70, %c66] : memref<3x1408xbf16, #tpu.memory_space<vmem>>, vector<3x1024xbf16>
    %c96 = arith.constant 96 : index
    %c0_71 = arith.constant 0 : index
    %63 = vector.load %arg14[%c96, %c0_71] : memref<200x1024xbf16, #tpu.memory_space<vmem>>, vector<3x1024xbf16>
    tpu.vector_store %arg14[%c96, %c0_71], %62 {strides = array<i32>} : memref<200x1024xbf16, #tpu.memory_space<vmem>>, vector<3x1024xbf16>,
    %c0_72 = arith.constant 0 : index
    %c67_73 = arith.constant 67 : index
    %64 = vector.load %arg13[%c0_72, %c67_73] : memref<3x1408xbf16, #tpu.memory_space<vmem>>, vector<3x1024xbf16>
    %c104 = arith.constant 104 : index
    %c0_74 = arith.constant 0 : index
    %65 = vector.load %arg14[%c104, %c0_74] : memref<200x1024xbf16, #tpu.memory_space<vmem>>, vector<3x1024xbf16>
    tpu.vector_store %arg14[%c104, %c0_74], %64 {strides = array<i32>} : memref<200x1024xbf16, #tpu.memory_space<vmem>>, vector<3x1024xbf16>,
    %c0_75 = arith.constant 0 : index
    %c68 = arith.constant 68 : index
    %66 = vector.load %arg13[%c0_75, %c68] : memref<3x1408xbf16, #tpu.memory_space<vmem>>, vector<3x1024xbf16>
    %c112 = arith.constant 112 : index
    %c0_76 = arith.constant 0 : index
    %67 = vector.load %arg14[%c112, %c0_76] : memref<200x1024xbf16, #tpu.memory_space<vmem>>, vector<3x1024xbf16>
    tpu.vector_store %arg14[%c112, %c0_76], %66 {strides = array<i32>} : memref<200x1024xbf16, #tpu.memory_space<vmem>>, vector<3x1024xbf16>,
    %c0_77 = arith.constant 0 : index
    %c96_78 = arith.constant 96 : index
    %68 = vector.load %arg13[%c0_77, %c96_78] : memref<3x1408xbf16, #tpu.memory_space<vmem>>, vector<3x1024xbf16>
    %c120 = arith.constant 120 : index
    %c0_79 = arith.constant 0 : index
    %69 = vector.load %arg14[%c120, %c0_79] : memref<200x1024xbf16, #tpu.memory_space<vmem>>, vector<3x1024xbf16>
    tpu.vector_store %arg14[%c120, %c0_79], %68 {strides = array<i32>} : memref<200x1024xbf16, #tpu.memory_space<vmem>>, vector<3x1024xbf16>,
    %c0_80 = arith.constant 0 : index
    %c97 = arith.constant 97 : index
    %70 = vector.load %arg13[%c0_80, %c97] : memref<3x1408xbf16, #tpu.memory_space<vmem>>, vector<3x1024xbf16>
    %c128 = arith.constant 128 : index
    %c0_81 = arith.constant 0 : index
    %71 = vector.load %arg14[%c128, %c0_81] : memref<200x1024xbf16, #tpu.memory_space<vmem>>, vector<3x1024xbf16>
    tpu.vector_store %arg14[%c128, %c0_81], %70 {strides = array<i32>} : memref<200x1024xbf16, #tpu.memory_space<vmem>>, vector<3x1024xbf16>,
    %c0_82 = arith.constant 0 : index
    %c98 = arith.constant 98 : index
    %72 = vector.load %arg13[%c0_82, %c98] : memref<3x1408xbf16, #tpu.memory_space<vmem>>, vector<3x1024xbf16>
    %c136 = arith.constant 136 : index
    %c0_83 = arith.constant 0 : index
    %73 = vector.load %arg14[%c136, %c0_83] : memref<200x1024xbf16, #tpu.memory_space<vmem>>, vector<3x1024xbf16>
    tpu.vector_store %arg14[%c136, %c0_83], %72 {strides = array<i32>} : memref<200x1024xbf16, #tpu.memory_space<vmem>>, vector<3x1024xbf16>,
    %c0_84 = arith.constant 0 : index
    %c99_85 = arith.constant 99 : index
    %74 = vector.load %arg13[%c0_84, %c99_85] : memref<3x1408xbf16, #tpu.memory_space<vmem>>, vector<3x1024xbf16>
    %c144 = arith.constant 144 : index
    %c0_86 = arith.constant 0 : index
    %75 = vector.load %arg14[%c144, %c0_86] : memref<200x1024xbf16, #tpu.memory_space<vmem>>, vector<3x1024xbf16>
    tpu.vector_store %arg14[%c144, %c0_86], %74 {strides = array<i32>} : memref<200x1024xbf16, #tpu.memory_space<vmem>>, vector<3x1024xbf16>,
    %c0_87 = arith.constant 0 : index
    %c100 = arith.constant 100 : index
    %76 = vector.load %arg13[%c0_87, %c100] : memref<3x1408xbf16, #tpu.memory_space<vmem>>, vector<3x1024xbf16>
    %c152 = arith.constant 152 : index
    %c0_88 = arith.constant 0 : index
    %77 = vector.load %arg14[%c152, %c0_88] : memref<200x1024xbf16, #tpu.memory_space<vmem>>, vector<3x1024xbf16>
    tpu.vector_store %arg14[%c152, %c0_88], %76 {strides = array<i32>} : memref<200x1024xbf16, #tpu.memory_space<vmem>>, vector<3x1024xbf16>,
    %c0_89 = arith.constant 0 : index
    %c128_90 = arith.constant 128 : index
    %78 = vector.load %arg13[%c0_89, %c128_90] : memref<3x1408xbf16, #tpu.memory_space<vmem>>, vector<3x1024xbf16>
    %c160 = arith.constant 160 : index
    %c0_91 = arith.constant 0 : index
    %79 = vector.load %arg14[%c160, %c0_91] : memref<200x1024xbf16, #tpu.memory_space<vmem>>, vector<3x1024xbf16>
    tpu.vector_store %arg14[%c160, %c0_91], %78 {strides = array<i32>} : memref<200x1024xbf16, #tpu.memory_space<vmem>>, vector<3x1024xbf16>,
    %c0_92 = arith.constant 0 : index
    %c129 = arith.constant 129 : index
    %80 = vector.load %arg13[%c0_92, %c129] : memref<3x1408xbf16, #tpu.memory_space<vmem>>, vector<3x1024xbf16>
    %c168 = arith.constant 168 : index
    %c0_93 = arith.constant 0 : index
    %81 = vector.load %arg14[%c168, %c0_93] : memref<200x1024xbf16, #tpu.memory_space<vmem>>, vector<3x1024xbf16>
    tpu.vector_store %arg14[%c168, %c0_93], %80 {strides = array<i32>} : memref<200x1024xbf16, #tpu.memory_space<vmem>>, vector<3x1024xbf16>,
    %c0_94 = arith.constant 0 : index
    %c130 = arith.constant 130 : index
    %82 = vector.load %arg13[%c0_94, %c130] : memref<3x1408xbf16, #tpu.memory_space<vmem>>, vector<3x1024xbf16>
    %c176 = arith.constant 176 : index
    %c0_95 = arith.constant 0 : index
    %83 = vector.load %arg14[%c176, %c0_95] : memref<200x1024xbf16, #tpu.memory_space<vmem>>, vector<3x1024xbf16>
    tpu.vector_store %arg14[%c176, %c0_95], %82 {strides = array<i32>} : memref<200x1024xbf16, #tpu.memory_space<vmem>>, vector<3x1024xbf16>,
    %c0_96 = arith.constant 0 : index
    %c131_97 = arith.constant 131 : index
    %84 = vector.load %arg13[%c0_96, %c131_97] : memref<3x1408xbf16, #tpu.memory_space<vmem>>, vector<3x1024xbf16>
    %c184 = arith.constant 184 : index
    %c0_98 = arith.constant 0 : index
    %85 = vector.load %arg14[%c184, %c0_98] : memref<200x1024xbf16, #tpu.memory_space<vmem>>, vector<3x1024xbf16>
    tpu.vector_store %arg14[%c184, %c0_98], %84 {strides = array<i32>} : memref<200x1024xbf16, #tpu.memory_space<vmem>>, vector<3x1024xbf16>,
    %c0_99 = arith.constant 0 : index
    %c132 = arith.constant 132 : index
    %86 = vector.load %arg13[%c0_99, %c132] : memref<3x1408xbf16, #tpu.memory_space<vmem>>, vector<3x1024xbf16>
    %c192 = arith.constant 192 : index
    %c0_100 = arith.constant 0 : index
    %87 = vector.load %arg14[%c192, %c0_100] : memref<200x1024xbf16, #tpu.memory_space<vmem>>, vector<3x1024xbf16>
    tpu.vector_store %arg14[%c192, %c0_100], %86 {strides = array<i32>} : memref<200x1024xbf16, #tpu.memory_space<vmem>>, vector<3x1024xbf16>,
    %c0_101 = arith.constant 0 : index
    %c0_102 = arith.constant 0 : index
    %88 = vector.load %arg2[%c0_101, %c0_102] : memref<6x200xbf16, #tpu.memory_space<vmem>>, vector<6x200xbf16>
    %c0_103 = arith.constant 0 : index
    %c0_104 = arith.constant 0 : index
    %89 = vector.load %arg14[%c0_103, %c0_104] : memref<200x1024xbf16, #tpu.memory_space<vmem>>, vector<200x1024xbf16>
    %cst_105 = arith.constant dense<0.000000e+00> : vector<6x1024xf32>
    %90 = tpu.matmul %88, %89, %cst_105 {dimension_numbers = #tpu.dot_dimension_numbers<[1], [0], [0], [1], [0, 0, 1, 1], [], []>} : vector<6x200xbf16>, vector<200x1024xbf16>, vector<6x1024xf32> -> vector<6x1024xf32>
    %c0_106 = arith.constant 0 : index
    %c0_107 = arith.constant 0 : index
    %91 = vector.load %arg3[%c0_106, %c0_107] : memref<6x1xf32, #tpu.memory_space<vmem>>, vector<6x1xf32>
    %92 = vector.broadcast %91 : vector<6x1xf32> to vector<6x1024xf32>
    %93 = arith.addf %90, %92 : vector<6x1024xf32>
    %cst_108 = arith.constant 0.000000e+00 : f32
    %94 = vector.broadcast %cst_108 : f32 to vector<6x1024xf32>
    %95 = arith.maximumf %93, %94 : vector<6x1024xf32>
    %c0_109 = arith.constant 0 : index
    %c0_110 = arith.constant 0 : index
    %96 = vector.load %arg15[%c0_109, %c0_110] : memref<6x1408xf32, #tpu.memory_space<vmem>>, vector<6x1024xf32>
    tpu.vector_store %arg15[%c0_109, %c0_110], %95 {strides = array<i32>} : memref<6x1408xf32, #tpu.memory_space<vmem>>, vector<6x1024xf32>,
    %c0_111 = arith.constant 0 : index
    %c0_112 = arith.constant 0 : index
    %97 = vector.load %arg15[%c0_111, %c0_112] : memref<6x1408xf32, #tpu.memory_space<vmem>>, vector<6x1024xf32>
    %c0_113 = arith.constant 0 : index
    %c1_114 = arith.constant 1 : index
    %98 = vector.load %arg15[%c0_113, %c1_114] : memref<6x1408xf32, #tpu.memory_space<vmem>>, vector<6x1024xf32>
    %99 = arith.maximumf %97, %98 : vector<6x1024xf32>
    %c0_115 = arith.constant 0 : index
    %c32_116 = arith.constant 32 : index
    %100 = vector.load %arg15[%c0_115, %c32_116] : memref<6x1408xf32, #tpu.memory_space<vmem>>, vector<6x1024xf32>
    %c0_117 = arith.constant 0 : index
    %c33_118 = arith.constant 33 : index
    %101 = vector.load %arg15[%c0_117, %c33_118] : memref<6x1408xf32, #tpu.memory_space<vmem>>, vector<6x1024xf32>
    %102 = arith.maximumf %100, %101 : vector<6x1024xf32>
    %103 = arith.maximumf %99, %102 : vector<6x1024xf32>
    %104 = arith.truncf %103 : vector<6x1024xf32> to vector<6x1024xbf16>
    %c0_119 = arith.constant 0 : index
    %c0_120 = arith.constant 0 : index
    %105 = vector.load %arg16[%c0_119, %c0_120] : memref<6x1408xbf16, #tpu.memory_space<vmem>>, vector<6x1024xbf16>
    tpu.vector_store %arg16[%c0_119, %c0_120], %104 {strides = array<i32>} : memref<6x1408xbf16, #tpu.memory_space<vmem>>, vector<6x1024xbf16>,
    %c0_121 = arith.constant 0 : index
    %c0_122 = arith.constant 0 : index
    %106 = vector.load %arg16[%c0_121, %c0_122] : memref<6x1408xbf16, #tpu.memory_space<vmem>>, vector<6x1024xbf16>
    %c0_123 = arith.constant 0 : index
    %c0_124 = arith.constant 0 : index
    %107 = vector.load %arg14[%c0_123, %c0_124] : memref<200x1024xbf16, #tpu.memory_space<vmem>>, vector<6x1024xbf16>
    tpu.vector_store %arg14[%c0_123, %c0_124], %106 {strides = array<i32>} : memref<200x1024xbf16, #tpu.memory_space<vmem>>, vector<6x1024xbf16>,
    %c0_125 = arith.constant 0 : index
    %c2_126 = arith.constant 2 : index
    %108 = vector.load %arg16[%c0_125, %c2_126] : memref<6x1408xbf16, #tpu.memory_space<vmem>>, vector<6x1024xbf16>
    %c8_127 = arith.constant 8 : index
    %c0_128 = arith.constant 0 : index
    %109 = vector.load %arg14[%c8_127, %c0_128] : memref<200x1024xbf16, #tpu.memory_space<vmem>>, vector<6x1024xbf16>
    tpu.vector_store %arg14[%c8_127, %c0_128], %108 {strides = array<i32>} : memref<200x1024xbf16, #tpu.memory_space<vmem>>, vector<6x1024xbf16>,
    %c0_129 = arith.constant 0 : index
    %c4_130 = arith.constant 4 : index
    %110 = vector.load %arg16[%c0_129, %c4_130] : memref<6x1408xbf16, #tpu.memory_space<vmem>>, vector<6x1024xbf16>
    %c16_131 = arith.constant 16 : index
    %c0_132 = arith.constant 0 : index
    %111 = vector.load %arg14[%c16_131, %c0_132] : memref<200x1024xbf16, #tpu.memory_space<vmem>>, vector<6x1024xbf16>
    tpu.vector_store %arg14[%c16_131, %c0_132], %110 {strides = array<i32>} : memref<200x1024xbf16, #tpu.memory_space<vmem>>, vector<6x1024xbf16>,
    %c0_133 = arith.constant 0 : index
    %c6 = arith.constant 6 : index
    %112 = vector.load %arg16[%c0_133, %c6] : memref<6x1408xbf16, #tpu.memory_space<vmem>>, vector<6x1024xbf16>
    %c24_134 = arith.constant 24 : index
    %c0_135 = arith.constant 0 : index
    %113 = vector.load %arg14[%c24_134, %c0_135] : memref<200x1024xbf16, #tpu.memory_space<vmem>>, vector<6x1024xbf16>
    tpu.vector_store %arg14[%c24_134, %c0_135], %112 {strides = array<i32>} : memref<200x1024xbf16, #tpu.memory_space<vmem>>, vector<6x1024xbf16>,
    %c0_136 = arith.constant 0 : index
    %c8_137 = arith.constant 8 : index
    %114 = vector.load %arg16[%c0_136, %c8_137] : memref<6x1408xbf16, #tpu.memory_space<vmem>>, vector<6x1024xbf16>
    %c32_138 = arith.constant 32 : index
    %c0_139 = arith.constant 0 : index
    %115 = vector.load %arg14[%c32_138, %c0_139] : memref<200x1024xbf16, #tpu.memory_space<vmem>>, vector<6x1024xbf16>
    tpu.vector_store %arg14[%c32_138, %c0_139], %114 {strides = array<i32>} : memref<200x1024xbf16, #tpu.memory_space<vmem>>, vector<6x1024xbf16>,
    %c0_140 = arith.constant 0 : index
    %c64_141 = arith.constant 64 : index
    %116 = vector.load %arg16[%c0_140, %c64_141] : memref<6x1408xbf16, #tpu.memory_space<vmem>>, vector<6x1024xbf16>
    %c40_142 = arith.constant 40 : index
    %c0_143 = arith.constant 0 : index
    %117 = vector.load %arg14[%c40_142, %c0_143] : memref<200x1024xbf16, #tpu.memory_space<vmem>>, vector<6x1024xbf16>
    tpu.vector_store %arg14[%c40_142, %c0_143], %116 {strides = array<i32>} : memref<200x1024xbf16, #tpu.memory_space<vmem>>, vector<6x1024xbf16>,
    %c0_144 = arith.constant 0 : index
    %c66_145 = arith.constant 66 : index
    %118 = vector.load %arg16[%c0_144, %c66_145] : memref<6x1408xbf16, #tpu.memory_space<vmem>>, vector<6x1024xbf16>
    %c48_146 = arith.constant 48 : index
    %c0_147 = arith.constant 0 : index
    %119 = vector.load %arg14[%c48_146, %c0_147] : memref<200x1024xbf16, #tpu.memory_space<vmem>>, vector<6x1024xbf16>
    tpu.vector_store %arg14[%c48_146, %c0_147], %118 {strides = array<i32>} : memref<200x1024xbf16, #tpu.memory_space<vmem>>, vector<6x1024xbf16>,
    %c0_148 = arith.constant 0 : index
    %c68_149 = arith.constant 68 : index
    %120 = vector.load %arg16[%c0_148, %c68_149] : memref<6x1408xbf16, #tpu.memory_space<vmem>>, vector<6x1024xbf16>
    %c56_150 = arith.constant 56 : index
    %c0_151 = arith.constant 0 : index
    %121 = vector.load %arg14[%c56_150, %c0_151] : memref<200x1024xbf16, #tpu.memory_space<vmem>>, vector<6x1024xbf16>
    tpu.vector_store %arg14[%c56_150, %c0_151], %120 {strides = array<i32>} : memref<200x1024xbf16, #tpu.memory_space<vmem>>, vector<6x1024xbf16>,
    %c0_152 = arith.constant 0 : index
    %c70 = arith.constant 70 : index
    %122 = vector.load %arg16[%c0_152, %c70] : memref<6x1408xbf16, #tpu.memory_space<vmem>>, vector<6x1024xbf16>
    %c64_153 = arith.constant 64 : index
    %c0_154 = arith.constant 0 : index
    %123 = vector.load %arg14[%c64_153, %c0_154] : memref<200x1024xbf16, #tpu.memory_space<vmem>>, vector<6x1024xbf16>
    tpu.vector_store %arg14[%c64_153, %c0_154], %122 {strides = array<i32>} : memref<200x1024xbf16, #tpu.memory_space<vmem>>, vector<6x1024xbf16>,
    %c0_155 = arith.constant 0 : index
    %c72_156 = arith.constant 72 : index
    %124 = vector.load %arg16[%c0_155, %c72_156] : memref<6x1408xbf16, #tpu.memory_space<vmem>>, vector<6x1024xbf16>
    %c72_157 = arith.constant 72 : index
    %c0_158 = arith.constant 0 : index
    %125 = vector.load %arg14[%c72_157, %c0_158] : memref<200x1024xbf16, #tpu.memory_space<vmem>>, vector<6x1024xbf16>
    tpu.vector_store %arg14[%c72_157, %c0_158], %124 {strides = array<i32>} : memref<200x1024xbf16, #tpu.memory_space<vmem>>, vector<6x1024xbf16>,
    %c0_159 = arith.constant 0 : index
    %c128_160 = arith.constant 128 : index
    %126 = vector.load %arg16[%c0_159, %c128_160] : memref<6x1408xbf16, #tpu.memory_space<vmem>>, vector<6x1024xbf16>
    %c80_161 = arith.constant 80 : index
    %c0_162 = arith.constant 0 : index
    %127 = vector.load %arg14[%c80_161, %c0_162] : memref<200x1024xbf16, #tpu.memory_space<vmem>>, vector<6x1024xbf16>
    tpu.vector_store %arg14[%c80_161, %c0_162], %126 {strides = array<i32>} : memref<200x1024xbf16, #tpu.memory_space<vmem>>, vector<6x1024xbf16>,
    %c0_163 = arith.constant 0 : index
    %c130_164 = arith.constant 130 : index
    %128 = vector.load %arg16[%c0_163, %c130_164] : memref<6x1408xbf16, #tpu.memory_space<vmem>>, vector<6x1024xbf16>
    %c88_165 = arith.constant 88 : index
    %c0_166 = arith.constant 0 : index
    %129 = vector.load %arg14[%c88_165, %c0_166] : memref<200x1024xbf16, #tpu.memory_space<vmem>>, vector<6x1024xbf16>
    tpu.vector_store %arg14[%c88_165, %c0_166], %128 {strides = array<i32>} : memref<200x1024xbf16, #tpu.memory_space<vmem>>, vector<6x1024xbf16>,
    %c0_167 = arith.constant 0 : index
    %c132_168 = arith.constant 132 : index
    %130 = vector.load %arg16[%c0_167, %c132_168] : memref<6x1408xbf16, #tpu.memory_space<vmem>>, vector<6x1024xbf16>
    %c96_169 = arith.constant 96 : index
    %c0_170 = arith.constant 0 : index
    %131 = vector.load %arg14[%c96_169, %c0_170] : memref<200x1024xbf16, #tpu.memory_space<vmem>>, vector<6x1024xbf16>
    tpu.vector_store %arg14[%c96_169, %c0_170], %130 {strides = array<i32>} : memref<200x1024xbf16, #tpu.memory_space<vmem>>, vector<6x1024xbf16>,
    %c0_171 = arith.constant 0 : index
    %c134 = arith.constant 134 : index
    %132 = vector.load %arg16[%c0_171, %c134] : memref<6x1408xbf16, #tpu.memory_space<vmem>>, vector<6x1024xbf16>
    %c104_172 = arith.constant 104 : index
    %c0_173 = arith.constant 0 : index
    %133 = vector.load %arg14[%c104_172, %c0_173] : memref<200x1024xbf16, #tpu.memory_space<vmem>>, vector<6x1024xbf16>
    tpu.vector_store %arg14[%c104_172, %c0_173], %132 {strides = array<i32>} : memref<200x1024xbf16, #tpu.memory_space<vmem>>, vector<6x1024xbf16>,
    %c0_174 = arith.constant 0 : index
    %c136_175 = arith.constant 136 : index
    %134 = vector.load %arg16[%c0_174, %c136_175] : memref<6x1408xbf16, #tpu.memory_space<vmem>>, vector<6x1024xbf16>
    %c112_176 = arith.constant 112 : index
    %c0_177 = arith.constant 0 : index
    %135 = vector.load %arg14[%c112_176, %c0_177] : memref<200x1024xbf16, #tpu.memory_space<vmem>>, vector<6x1024xbf16>
    tpu.vector_store %arg14[%c112_176, %c0_177], %134 {strides = array<i32>} : memref<200x1024xbf16, #tpu.memory_space<vmem>>, vector<6x1024xbf16>,
    %c0_178 = arith.constant 0 : index
    %c192_179 = arith.constant 192 : index
    %136 = vector.load %arg16[%c0_178, %c192_179] : memref<6x1408xbf16, #tpu.memory_space<vmem>>, vector<6x1024xbf16>
    %c120_180 = arith.constant 120 : index
    %c0_181 = arith.constant 0 : index
    %137 = vector.load %arg14[%c120_180, %c0_181] : memref<200x1024xbf16, #tpu.memory_space<vmem>>, vector<6x1024xbf16>
    tpu.vector_store %arg14[%c120_180, %c0_181], %136 {strides = array<i32>} : memref<200x1024xbf16, #tpu.memory_space<vmem>>, vector<6x1024xbf16>,
    %c0_182 = arith.constant 0 : index
    %c194 = arith.constant 194 : index
    %138 = vector.load %arg16[%c0_182, %c194] : memref<6x1408xbf16, #tpu.memory_space<vmem>>, vector<6x1024xbf16>
    %c128_183 = arith.constant 128 : index
    %c0_184 = arith.constant 0 : index
    %139 = vector.load %arg14[%c128_183, %c0_184] : memref<200x1024xbf16, #tpu.memory_space<vmem>>, vector<6x1024xbf16>
    tpu.vector_store %arg14[%c128_183, %c0_184], %138 {strides = array<i32>} : memref<200x1024xbf16, #tpu.memory_space<vmem>>, vector<6x1024xbf16>,
    %c0_185 = arith.constant 0 : index
    %c196 = arith.constant 196 : index
    %140 = vector.load %arg16[%c0_185, %c196] : memref<6x1408xbf16, #tpu.memory_space<vmem>>, vector<6x1024xbf16>
    %c136_186 = arith.constant 136 : index
    %c0_187 = arith.constant 0 : index
    %141 = vector.load %arg14[%c136_186, %c0_187] : memref<200x1024xbf16, #tpu.memory_space<vmem>>, vector<6x1024xbf16>
    tpu.vector_store %arg14[%c136_186, %c0_187], %140 {strides = array<i32>} : memref<200x1024xbf16, #tpu.memory_space<vmem>>, vector<6x1024xbf16>,
    %c0_188 = arith.constant 0 : index
    %c198 = arith.constant 198 : index
    %142 = vector.load %arg16[%c0_188, %c198] : memref<6x1408xbf16, #tpu.memory_space<vmem>>, vector<6x1024xbf16>
    %c144_189 = arith.constant 144 : index
    %c0_190 = arith.constant 0 : index
    %143 = vector.load %arg14[%c144_189, %c0_190] : memref<200x1024xbf16, #tpu.memory_space<vmem>>, vector<6x1024xbf16>
    tpu.vector_store %arg14[%c144_189, %c0_190], %142 {strides = array<i32>} : memref<200x1024xbf16, #tpu.memory_space<vmem>>, vector<6x1024xbf16>,
    %c0_191 = arith.constant 0 : index
    %c200 = arith.constant 200 : index
    %144 = vector.load %arg16[%c0_191, %c200] : memref<6x1408xbf16, #tpu.memory_space<vmem>>, vector<6x1024xbf16>
    %c152_192 = arith.constant 152 : index
    %c0_193 = arith.constant 0 : index
    %145 = vector.load %arg14[%c152_192, %c0_193] : memref<200x1024xbf16, #tpu.memory_space<vmem>>, vector<6x1024xbf16>
    tpu.vector_store %arg14[%c152_192, %c0_193], %144 {strides = array<i32>} : memref<200x1024xbf16, #tpu.memory_space<vmem>>, vector<6x1024xbf16>,
    %c0_194 = arith.constant 0 : index
    %c256 = arith.constant 256 : index
    %146 = vector.load %arg16[%c0_194, %c256] : memref<6x1408xbf16, #tpu.memory_space<vmem>>, vector<6x1024xbf16>
    %c160_195 = arith.constant 160 : index
    %c0_196 = arith.constant 0 : index
    %147 = vector.load %arg14[%c160_195, %c0_196] : memref<200x1024xbf16, #tpu.memory_space<vmem>>, vector<6x1024xbf16>
    tpu.vector_store %arg14[%c160_195, %c0_196], %146 {strides = array<i32>} : memref<200x1024xbf16, #tpu.memory_space<vmem>>, vector<6x1024xbf16>,
    %c0_197 = arith.constant 0 : index
    %c258 = arith.constant 258 : index
    %148 = vector.load %arg16[%c0_197, %c258] : memref<6x1408xbf16, #tpu.memory_space<vmem>>, vector<6x1024xbf16>
    %c168_198 = arith.constant 168 : index
    %c0_199 = arith.constant 0 : index
    %149 = vector.load %arg14[%c168_198, %c0_199] : memref<200x1024xbf16, #tpu.memory_space<vmem>>, vector<6x1024xbf16>
    tpu.vector_store %arg14[%c168_198, %c0_199], %148 {strides = array<i32>} : memref<200x1024xbf16, #tpu.memory_space<vmem>>, vector<6x1024xbf16>,
    %c0_200 = arith.constant 0 : index
    %c260 = arith.constant 260 : index
    %150 = vector.load %arg16[%c0_200, %c260] : memref<6x1408xbf16, #tpu.memory_space<vmem>>, vector<6x1024xbf16>
    %c176_201 = arith.constant 176 : index
    %c0_202 = arith.constant 0 : index
    %151 = vector.load %arg14[%c176_201, %c0_202] : memref<200x1024xbf16, #tpu.memory_space<vmem>>, vector<6x1024xbf16>
    tpu.vector_store %arg14[%c176_201, %c0_202], %150 {strides = array<i32>} : memref<200x1024xbf16, #tpu.memory_space<vmem>>, vector<6x1024xbf16>,
    %c0_203 = arith.constant 0 : index
    %c262 = arith.constant 262 : index
    %152 = vector.load %arg16[%c0_203, %c262] : memref<6x1408xbf16, #tpu.memory_space<vmem>>, vector<6x1024xbf16>
    %c184_204 = arith.constant 184 : index
    %c0_205 = arith.constant 0 : index
    %153 = vector.load %arg14[%c184_204, %c0_205] : memref<200x1024xbf16, #tpu.memory_space<vmem>>, vector<6x1024xbf16>
    tpu.vector_store %arg14[%c184_204, %c0_205], %152 {strides = array<i32>} : memref<200x1024xbf16, #tpu.memory_space<vmem>>, vector<6x1024xbf16>,
    %c0_206 = arith.constant 0 : index
    %c264 = arith.constant 264 : index
    %154 = vector.load %arg16[%c0_206, %c264] : memref<6x1408xbf16, #tpu.memory_space<vmem>>, vector<6x1024xbf16>
    %c192_207 = arith.constant 192 : index
    %c0_208 = arith.constant 0 : index
    %155 = vector.load %arg14[%c192_207, %c0_208] : memref<200x1024xbf16, #tpu.memory_space<vmem>>, vector<6x1024xbf16>
    tpu.vector_store %arg14[%c192_207, %c0_208], %154 {strides = array<i32>} : memref<200x1024xbf16, #tpu.memory_space<vmem>>, vector<6x1024xbf16>,
    %c0_209 = arith.constant 0 : index
    %c0_210 = arith.constant 0 : index
    %156 = vector.load %arg4[%c0_209, %c0_210] : memref<16x200xbf16, #tpu.memory_space<vmem>>, vector<16x200xbf16>
    %c0_211 = arith.constant 0 : index
    %c0_212 = arith.constant 0 : index
    %157 = vector.load %arg14[%c0_211, %c0_212] : memref<200x1024xbf16, #tpu.memory_space<vmem>>, vector<200x1024xbf16>
    %cst_213 = arith.constant dense<0.000000e+00> : vector<16x1024xf32>
    %158 = tpu.matmul %156, %157, %cst_213 {dimension_numbers = #tpu.dot_dimension_numbers<[1], [0], [0], [1], [0, 0, 1, 1], [], []>} : vector<16x200xbf16>, vector<200x1024xbf16>, vector<16x1024xf32> -> vector<16x1024xf32>
    %c0_214 = arith.constant 0 : index
    %c0_215 = arith.constant 0 : index
    %159 = vector.load %arg5[%c0_214, %c0_215] : memref<16x1xf32, #tpu.memory_space<vmem>>, vector<16x1xf32>
    %160 = vector.broadcast %159 : vector<16x1xf32> to vector<16x1024xf32>
    %161 = arith.addf %158, %160 : vector<16x1024xf32>
    %cst_216 = arith.constant 0.000000e+00 : f32
    %162 = vector.broadcast %cst_216 : f32 to vector<16x1024xf32>
    %163 = arith.maximumf %161, %162 : vector<16x1024xf32>
    %c0_217 = arith.constant 0 : index
    %c0_218 = arith.constant 0 : index
    %164 = vector.load %arg17[%c0_217, %c0_218] : memref<16x1408xf32, #tpu.memory_space<vmem>>, vector<16x1024xf32>
    tpu.vector_store %arg17[%c0_217, %c0_218], %163 {strides = array<i32>} : memref<16x1408xf32, #tpu.memory_space<vmem>>, vector<16x1024xf32>,
    %c0_219 = arith.constant 0 : index
    %c0_220 = arith.constant 0 : index
    %165 = vector.load %arg17[%c0_219, %c0_220] : memref<16x1408xf32, #tpu.memory_space<vmem>>, vector<16x1024xf32>
    %c0_221 = arith.constant 0 : index
    %c2_222 = arith.constant 2 : index
    %166 = vector.load %arg17[%c0_221, %c2_222] : memref<16x1408xf32, #tpu.memory_space<vmem>>, vector<16x1024xf32>
    %167 = arith.maximumf %165, %166 : vector<16x1024xf32>
    %c0_223 = arith.constant 0 : index
    %c64_224 = arith.constant 64 : index
    %168 = vector.load %arg17[%c0_223, %c64_224] : memref<16x1408xf32, #tpu.memory_space<vmem>>, vector<16x1024xf32>
    %c0_225 = arith.constant 0 : index
    %c66_226 = arith.constant 66 : index
    %169 = vector.load %arg17[%c0_225, %c66_226] : memref<16x1408xf32, #tpu.memory_space<vmem>>, vector<16x1024xf32>
    %170 = arith.maximumf %168, %169 : vector<16x1024xf32>
    %171 = arith.maximumf %167, %170 : vector<16x1024xf32>
    %172 = arith.truncf %171 : vector<16x1024xf32> to vector<16x1024xbf16>
    %c0_227 = arith.constant 0 : index
    %c0_228 = arith.constant 0 : index
    %173 = vector.load %arg18[%c0_227, %c0_228] : memref<16x1024xbf16, #tpu.memory_space<vmem>>, vector<16x1024xbf16>
    tpu.vector_store %arg18[%c0_227, %c0_228], %172 {strides = array<i32>} : memref<16x1024xbf16, #tpu.memory_space<vmem>>, vector<16x1024xbf16>,
    %c0_229 = arith.constant 0 : index
    %c0_230 = arith.constant 0 : index
    %174 = vector.load %arg18[%c0_229, %c0_230] : memref<16x1024xbf16, #tpu.memory_space<vmem>>, vector<16x1xbf16>
    %c0_231 = arith.constant 0 : index
    %c0_232 = arith.constant 0 : index
    %175 = vector.load %arg19[%c0_231, %c0_232] : memref<400x1xbf16, #tpu.memory_space<vmem>>, vector<16x1xbf16>
    tpu.vector_store %arg19[%c0_231, %c0_232], %174 {strides = array<i32>} : memref<400x1xbf16, #tpu.memory_space<vmem>>, vector<16x1xbf16>,
    %c0_233 = arith.constant 0 : index
    %c4_234 = arith.constant 4 : index
    %176 = vector.load %arg18[%c0_233, %c4_234] : memref<16x1024xbf16, #tpu.memory_space<vmem>>, vector<16x1xbf16>
    %c16_235 = arith.constant 16 : index
    %c0_236 = arith.constant 0 : index
    %177 = vector.load %arg19[%c16_235, %c0_236] : memref<400x1xbf16, #tpu.memory_space<vmem>>, vector<16x1xbf16>
    tpu.vector_store %arg19[%c16_235, %c0_236], %176 {strides = array<i32>} : memref<400x1xbf16, #tpu.memory_space<vmem>>, vector<16x1xbf16>,
    %c0_237 = arith.constant 0 : index
    %c8_238 = arith.constant 8 : index
    %178 = vector.load %arg18[%c0_237, %c8_238] : memref<16x1024xbf16, #tpu.memory_space<vmem>>, vector<16x1xbf16>
    %c32_239 = arith.constant 32 : index
    %c0_240 = arith.constant 0 : index
    %179 = vector.load %arg19[%c32_239, %c0_240] : memref<400x1xbf16, #tpu.memory_space<vmem>>, vector<16x1xbf16>
    tpu.vector_store %arg19[%c32_239, %c0_240], %178 {strides = array<i32>} : memref<400x1xbf16, #tpu.memory_space<vmem>>, vector<16x1xbf16>,
    %c0_241 = arith.constant 0 : index
    %c12 = arith.constant 12 : index
    %180 = vector.load %arg18[%c0_241, %c12] : memref<16x1024xbf16, #tpu.memory_space<vmem>>, vector<16x1xbf16>
    %c48_242 = arith.constant 48 : index
    %c0_243 = arith.constant 0 : index
    %181 = vector.load %arg19[%c48_242, %c0_243] : memref<400x1xbf16, #tpu.memory_space<vmem>>, vector<16x1xbf16>
    tpu.vector_store %arg19[%c48_242, %c0_243], %180 {strides = array<i32>} : memref<400x1xbf16, #tpu.memory_space<vmem>>, vector<16x1xbf16>,
    %c0_244 = arith.constant 0 : index
    %c16_245 = arith.constant 16 : index
    %182 = vector.load %arg18[%c0_244, %c16_245] : memref<16x1024xbf16, #tpu.memory_space<vmem>>, vector<16x1xbf16>
    %c64_246 = arith.constant 64 : index
    %c0_247 = arith.constant 0 : index
    %183 = vector.load %arg19[%c64_246, %c0_247] : memref<400x1xbf16, #tpu.memory_space<vmem>>, vector<16x1xbf16>
    tpu.vector_store %arg19[%c64_246, %c0_247], %182 {strides = array<i32>} : memref<400x1xbf16, #tpu.memory_space<vmem>>, vector<16x1xbf16>,
    %c0_248 = arith.constant 0 : index
    %c128_249 = arith.constant 128 : index
    %184 = vector.load %arg18[%c0_248, %c128_249] : memref<16x1024xbf16, #tpu.memory_space<vmem>>, vector<16x1xbf16>
    %c80_250 = arith.constant 80 : index
    %c0_251 = arith.constant 0 : index
    %185 = vector.load %arg19[%c80_250, %c0_251] : memref<400x1xbf16, #tpu.memory_space<vmem>>, vector<16x1xbf16>
    tpu.vector_store %arg19[%c80_250, %c0_251], %184 {strides = array<i32>} : memref<400x1xbf16, #tpu.memory_space<vmem>>, vector<16x1xbf16>,
    %c0_252 = arith.constant 0 : index
    %c132_253 = arith.constant 132 : index
    %186 = vector.load %arg18[%c0_252, %c132_253] : memref<16x1024xbf16, #tpu.memory_space<vmem>>, vector<16x1xbf16>
    %c96_254 = arith.constant 96 : index
    %c0_255 = arith.constant 0 : index
    %187 = vector.load %arg19[%c96_254, %c0_255] : memref<400x1xbf16, #tpu.memory_space<vmem>>, vector<16x1xbf16>
    tpu.vector_store %arg19[%c96_254, %c0_255], %186 {strides = array<i32>} : memref<400x1xbf16, #tpu.memory_space<vmem>>, vector<16x1xbf16>,
    %c0_256 = arith.constant 0 : index
    %c136_257 = arith.constant 136 : index
    %188 = vector.load %arg18[%c0_256, %c136_257] : memref<16x1024xbf16, #tpu.memory_space<vmem>>, vector<16x1xbf16>
    %c112_258 = arith.constant 112 : index
    %c0_259 = arith.constant 0 : index
    %189 = vector.load %arg19[%c112_258, %c0_259] : memref<400x1xbf16, #tpu.memory_space<vmem>>, vector<16x1xbf16>
    tpu.vector_store %arg19[%c112_258, %c0_259], %188 {strides = array<i32>} : memref<400x1xbf16, #tpu.memory_space<vmem>>, vector<16x1xbf16>,
    %c0_260 = arith.constant 0 : index
    %c140 = arith.constant 140 : index
    %190 = vector.load %arg18[%c0_260, %c140] : memref<16x1024xbf16, #tpu.memory_space<vmem>>, vector<16x1xbf16>
    %c128_261 = arith.constant 128 : index
    %c0_262 = arith.constant 0 : index
    %191 = vector.load %arg19[%c128_261, %c0_262] : memref<400x1xbf16, #tpu.memory_space<vmem>>, vector<16x1xbf16>
    tpu.vector_store %arg19[%c128_261, %c0_262], %190 {strides = array<i32>} : memref<400x1xbf16, #tpu.memory_space<vmem>>, vector<16x1xbf16>,
    %c0_263 = arith.constant 0 : index
    %c144_264 = arith.constant 144 : index
    %192 = vector.load %arg18[%c0_263, %c144_264] : memref<16x1024xbf16, #tpu.memory_space<vmem>>, vector<16x1xbf16>
    %c144_265 = arith.constant 144 : index
    %c0_266 = arith.constant 0 : index
    %193 = vector.load %arg19[%c144_265, %c0_266] : memref<400x1xbf16, #tpu.memory_space<vmem>>, vector<16x1xbf16>
    tpu.vector_store %arg19[%c144_265, %c0_266], %192 {strides = array<i32>} : memref<400x1xbf16, #tpu.memory_space<vmem>>, vector<16x1xbf16>,
    %c0_267 = arith.constant 0 : index
    %c256_268 = arith.constant 256 : index
    %194 = vector.load %arg18[%c0_267, %c256_268] : memref<16x1024xbf16, #tpu.memory_space<vmem>>, vector<16x1xbf16>
    %c160_269 = arith.constant 160 : index
    %c0_270 = arith.constant 0 : index
    %195 = vector.load %arg19[%c160_269, %c0_270] : memref<400x1xbf16, #tpu.memory_space<vmem>>, vector<16x1xbf16>
    tpu.vector_store %arg19[%c160_269, %c0_270], %194 {strides = array<i32>} : memref<400x1xbf16, #tpu.memory_space<vmem>>, vector<16x1xbf16>,
    %c0_271 = arith.constant 0 : index
    %c260_272 = arith.constant 260 : index
    %196 = vector.load %arg18[%c0_271, %c260_272] : memref<16x1024xbf16, #tpu.memory_space<vmem>>, vector<16x1xbf16>
    %c176_273 = arith.constant 176 : index
    %c0_274 = arith.constant 0 : index
    %197 = vector.load %arg19[%c176_273, %c0_274] : memref<400x1xbf16, #tpu.memory_space<vmem>>, vector<16x1xbf16>
    tpu.vector_store %arg19[%c176_273, %c0_274], %196 {strides = array<i32>} : memref<400x1xbf16, #tpu.memory_space<vmem>>, vector<16x1xbf16>,
    %c0_275 = arith.constant 0 : index
    %c264_276 = arith.constant 264 : index
    %198 = vector.load %arg18[%c0_275, %c264_276] : memref<16x1024xbf16, #tpu.memory_space<vmem>>, vector<16x1xbf16>
    %c192_277 = arith.constant 192 : index
    %c0_278 = arith.constant 0 : index
    %199 = vector.load %arg19[%c192_277, %c0_278] : memref<400x1xbf16, #tpu.memory_space<vmem>>, vector<16x1xbf16>
    tpu.vector_store %arg19[%c192_277, %c0_278], %198 {strides = array<i32>} : memref<400x1xbf16, #tpu.memory_space<vmem>>, vector<16x1xbf16>,
    %c0_279 = arith.constant 0 : index
    %c268 = arith.constant 268 : index
    %200 = vector.load %arg18[%c0_279, %c268] : memref<16x1024xbf16, #tpu.memory_space<vmem>>, vector<16x1xbf16>
    %c208 = arith.constant 208 : index
    %c0_280 = arith.constant 0 : index
    %201 = vector.load %arg19[%c208, %c0_280] : memref<400x1xbf16, #tpu.memory_space<vmem>>, vector<16x1xbf16>
    tpu.vector_store %arg19[%c208, %c0_280], %200 {strides = array<i32>} : memref<400x1xbf16, #tpu.memory_space<vmem>>, vector<16x1xbf16>,
    %c0_281 = arith.constant 0 : index
    %c272 = arith.constant 272 : index
    %202 = vector.load %arg18[%c0_281, %c272] : memref<16x1024xbf16, #tpu.memory_space<vmem>>, vector<16x1xbf16>
    %c224 = arith.constant 224 : index
    %c0_282 = arith.constant 0 : index
    %203 = vector.load %arg19[%c224, %c0_282] : memref<400x1xbf16, #tpu.memory_space<vmem>>, vector<16x1xbf16>
    tpu.vector_store %arg19[%c224, %c0_282], %202 {strides = array<i32>} : memref<400x1xbf16, #tpu.memory_space<vmem>>, vector<16x1xbf16>,
    %c0_283 = arith.constant 0 : index
    %c384 = arith.constant 384 : index
    %204 = vector.load %arg18[%c0_283, %c384] : memref<16x1024xbf16, #tpu.memory_space<vmem>>, vector<16x1xbf16>
    %c240 = arith.constant 240 : index
    %c0_284 = arith.constant 0 : index
    %205 = vector.load %arg19[%c240, %c0_284] : memref<400x1xbf16, #tpu.memory_space<vmem>>, vector<16x1xbf16>
    tpu.vector_store %arg19[%c240, %c0_284], %204 {strides = array<i32>} : memref<400x1xbf16, #tpu.memory_space<vmem>>, vector<16x1xbf16>,
    %c0_285 = arith.constant 0 : index
    %c388 = arith.constant 388 : index
    %206 = vector.load %arg18[%c0_285, %c388] : memref<16x1024xbf16, #tpu.memory_space<vmem>>, vector<16x1xbf16>
    %c256_286 = arith.constant 256 : index
    %c0_287 = arith.constant 0 : index
    %207 = vector.load %arg19[%c256_286, %c0_287] : memref<400x1xbf16, #tpu.memory_space<vmem>>, vector<16x1xbf16>
    tpu.vector_store %arg19[%c256_286, %c0_287], %206 {strides = array<i32>} : memref<400x1xbf16, #tpu.memory_space<vmem>>, vector<16x1xbf16>,
    %c0_288 = arith.constant 0 : index
    %c392 = arith.constant 392 : index
    %208 = vector.load %arg18[%c0_288, %c392] : memref<16x1024xbf16, #tpu.memory_space<vmem>>, vector<16x1xbf16>
    %c272_289 = arith.constant 272 : index
    %c0_290 = arith.constant 0 : index
    %209 = vector.load %arg19[%c272_289, %c0_290] : memref<400x1xbf16, #tpu.memory_space<vmem>>, vector<16x1xbf16>
    tpu.vector_store %arg19[%c272_289, %c0_290], %208 {strides = array<i32>} : memref<400x1xbf16, #tpu.memory_space<vmem>>, vector<16x1xbf16>,
    %c0_291 = arith.constant 0 : index
    %c396 = arith.constant 396 : index
    %210 = vector.load %arg18[%c0_291, %c396] : memref<16x1024xbf16, #tpu.memory_space<vmem>>, vector<16x1xbf16>
    %c288 = arith.constant 288 : index
    %c0_292 = arith.constant 0 : index
    %211 = vector.load %arg19[%c288, %c0_292] : memref<400x1xbf16, #tpu.memory_space<vmem>>, vector<16x1xbf16>
    tpu.vector_store %arg19[%c288, %c0_292], %210 {strides = array<i32>} : memref<400x1xbf16, #tpu.memory_space<vmem>>, vector<16x1xbf16>,
    %c0_293 = arith.constant 0 : index
    %c400 = arith.constant 400 : index
    %212 = vector.load %arg18[%c0_293, %c400] : memref<16x1024xbf16, #tpu.memory_space<vmem>>, vector<16x1xbf16>
    %c304 = arith.constant 304 : index
    %c0_294 = arith.constant 0 : index
    %213 = vector.load %arg19[%c304, %c0_294] : memref<400x1xbf16, #tpu.memory_space<vmem>>, vector<16x1xbf16>
    tpu.vector_store %arg19[%c304, %c0_294], %212 {strides = array<i32>} : memref<400x1xbf16, #tpu.memory_space<vmem>>, vector<16x1xbf16>,
    %c0_295 = arith.constant 0 : index
    %c512 = arith.constant 512 : index
    %214 = vector.load %arg18[%c0_295, %c512] : memref<16x1024xbf16, #tpu.memory_space<vmem>>, vector<16x1xbf16>
    %c320 = arith.constant 320 : index
    %c0_296 = arith.constant 0 : index
    %215 = vector.load %arg19[%c320, %c0_296] : memref<400x1xbf16, #tpu.memory_space<vmem>>, vector<16x1xbf16>
    tpu.vector_store %arg19[%c320, %c0_296], %214 {strides = array<i32>} : memref<400x1xbf16, #tpu.memory_space<vmem>>, vector<16x1xbf16>,
    %c0_297 = arith.constant 0 : index
    %c516 = arith.constant 516 : index
    %216 = vector.load %arg18[%c0_297, %c516] : memref<16x1024xbf16, #tpu.memory_space<vmem>>, vector<16x1xbf16>
    %c336 = arith.constant 336 : index
    %c0_298 = arith.constant 0 : index
    %217 = vector.load %arg19[%c336, %c0_298] : memref<400x1xbf16, #tpu.memory_space<vmem>>, vector<16x1xbf16>
    tpu.vector_store %arg19[%c336, %c0_298], %216 {strides = array<i32>} : memref<400x1xbf16, #tpu.memory_space<vmem>>, vector<16x1xbf16>,
    %c0_299 = arith.constant 0 : index
    %c520 = arith.constant 520 : index
    %218 = vector.load %arg18[%c0_299, %c520] : memref<16x1024xbf16, #tpu.memory_space<vmem>>, vector<16x1xbf16>
    %c352 = arith.constant 352 : index
    %c0_300 = arith.constant 0 : index
    %219 = vector.load %arg19[%c352, %c0_300] : memref<400x1xbf16, #tpu.memory_space<vmem>>, vector<16x1xbf16>
    tpu.vector_store %arg19[%c352, %c0_300], %218 {strides = array<i32>} : memref<400x1xbf16, #tpu.memory_space<vmem>>, vector<16x1xbf16>,
    %c0_301 = arith.constant 0 : index
    %c524 = arith.constant 524 : index
    %220 = vector.load %arg18[%c0_301, %c524] : memref<16x1024xbf16, #tpu.memory_space<vmem>>, vector<16x1xbf16>
    %c368 = arith.constant 368 : index
    %c0_302 = arith.constant 0 : index
    %221 = vector.load %arg19[%c368, %c0_302] : memref<400x1xbf16, #tpu.memory_space<vmem>>, vector<16x1xbf16>
    tpu.vector_store %arg19[%c368, %c0_302], %220 {strides = array<i32>} : memref<400x1xbf16, #tpu.memory_space<vmem>>, vector<16x1xbf16>,
    %c0_303 = arith.constant 0 : index
    %c528 = arith.constant 528 : index
    %222 = vector.load %arg18[%c0_303, %c528] : memref<16x1024xbf16, #tpu.memory_space<vmem>>, vector<16x1xbf16>
    %c384_304 = arith.constant 384 : index
    %c0_305 = arith.constant 0 : index
    %223 = vector.load %arg19[%c384_304, %c0_305] : memref<400x1xbf16, #tpu.memory_space<vmem>>, vector<16x1xbf16>
    tpu.vector_store %arg19[%c384_304, %c0_305], %222 {strides = array<i32>} : memref<400x1xbf16, #tpu.memory_space<vmem>>, vector<16x1xbf16>,
    %c0_306 = arith.constant 0 : index
    %c0_307 = arith.constant 0 : index
    %224 = vector.load %arg6[%c0_306, %c0_307] : memref<120x400xbf16, #tpu.memory_space<vmem>>, vector<120x400xbf16>
    %c0_308 = arith.constant 0 : index
    %c0_309 = arith.constant 0 : index
    %225 = vector.load %arg19[%c0_308, %c0_309] : memref<400x1xbf16, #tpu.memory_space<vmem>>, vector<400x1xbf16>
    %cst_310 = arith.constant dense<0.000000e+00> : vector<120x1xf32>
    %226 = tpu.matmul %224, %225, %cst_310 {dimension_numbers = #tpu.dot_dimension_numbers<[1], [0], [0], [1], [0, 0, 1, 1], [], []>} : vector<120x400xbf16>, vector<400x1xbf16>, vector<120x1xf32> -> vector<120x1xf32>
    %c0_311 = arith.constant 0 : index
    %c0_312 = arith.constant 0 : index
    %227 = vector.load %arg7[%c0_311, %c0_312] : memref<120x1xf32, #tpu.memory_space<vmem>>, vector<120x1xf32>
    %228 = arith.addf %226, %227 : vector<120x1xf32>
    %cst_313 = arith.constant 0.000000e+00 : f32
    %229 = vector.broadcast %cst_313 : f32 to vector<120x1xf32>
    %230 = arith.maximumf %228, %229 : vector<120x1xf32>
    %231 = arith.truncf %230 : vector<120x1xf32> to vector<120x1xbf16>
    %c0_314 = arith.constant 0 : index
    %c0_315 = arith.constant 0 : index
    %232 = vector.load %arg8[%c0_314, %c0_315] : memref<84x120xbf16, #tpu.memory_space<vmem>>, vector<84x120xbf16>
    %cst_316 = arith.constant dense<0.000000e+00> : vector<84x1xf32>
    %233 = tpu.matmul %232, %231, %cst_316 {dimension_numbers = #tpu.dot_dimension_numbers<[1], [0], [0], [1], [0, 0, 1, 1], [], []>} : vector<84x120xbf16>, vector<120x1xbf16>, vector<84x1xf32> -> vector<84x1xf32>
    %c0_317 = arith.constant 0 : index
    %c0_318 = arith.constant 0 : index
    %234 = vector.load %arg9[%c0_317, %c0_318] : memref<84x1xf32, #tpu.memory_space<vmem>>, vector<84x1xf32>
    %235 = arith.addf %233, %234 : vector<84x1xf32>
    %cst_319 = arith.constant 0.000000e+00 : f32
    %236 = vector.broadcast %cst_319 : f32 to vector<84x1xf32>
    %237 = arith.maximumf %235, %236 : vector<84x1xf32>
    %238 = arith.truncf %237 : vector<84x1xf32> to vector<84x1xbf16>
    %c0_320 = arith.constant 0 : index
    %c0_321 = arith.constant 0 : index
    %239 = vector.load %arg10[%c0_320, %c0_321] : memref<10x84xbf16, #tpu.memory_space<vmem>>, vector<10x84xbf16>
    %cst_322 = arith.constant dense<0.000000e+00> : vector<10x1xf32>
    %240 = tpu.matmul %239, %238, %cst_322 {dimension_numbers = #tpu.dot_dimension_numbers<[1], [0], [0], [1], [0, 0, 1, 1], [], []>} : vector<10x84xbf16>, vector<84x1xbf16>, vector<10x1xf32> -> vector<10x1xf32>
    %c0_323 = arith.constant 0 : index
    %c0_324 = arith.constant 0 : index
    %241 = vector.load %arg11[%c0_323, %c0_324] : memref<10x1xf32, #tpu.memory_space<vmem>>, vector<10x1xf32>
    %242 = arith.addf %240, %241 : vector<10x1xf32>
    %c0_325 = arith.constant 0 : index
    %c0_326 = arith.constant 0 : index
    %c0_327 = arith.constant 0 : index
    %243 = vector.load %arg12[%c0_325, %c0_326, %c0_327] : memref<1x10x1xf32, #tpu.memory_space<vmem>>, vector<1x10x1xf32>
    %244 = vector.shape_cast %243 : vector<1x10x1xf32> to vector<10x1xf32>
    %245 = vector.shape_cast %242 : vector<10x1xf32> to vector<1x10x1xf32>
    tpu.vector_store %arg12[%c0_325, %c0_326, %c0_327], %245 {strides = array<i32>} : memref<1x10x1xf32, #tpu.memory_space<vmem>>, vector<1x10x1xf32>,
    return
  }
  func.func @transform_0(%arg0: i32) -> (i32, i32, i32) {
    %c0_i32 = arith.constant 0 : i32
    %c0_i32_0 = arith.constant 0 : i32
    %c0_i32_1 = arith.constant 0 : i32
    return %arg0, %c0_i32, %c0_i32_0 : i32, i32, i32
  }
  func.func @transform_1(%arg0: i32) -> (i32, i32) {
    %c0_i32 = arith.constant 0 : i32
    %c0_i32_0 = arith.constant 0 : i32
    %c0_i32_1 = arith.constant 0 : i32
    return %c0_i32, %c0_i32_0 : i32, i32
  }
  func.func @transform_2(%arg0: i32) -> (i32, i32) {
    %c0_i32 = arith.constant 0 : i32
    %c0_i32_0 = arith.constant 0 : i32
    %c0_i32_1 = arith.constant 0 : i32
    return %c0_i32, %c0_i32_0 : i32, i32
  }
  func.func @transform_3(%arg0: i32) -> (i32, i32) {
    %c0_i32 = arith.constant 0 : i32
    %c0_i32_0 = arith.constant 0 : i32
    %c0_i32_1 = arith.constant 0 : i32
    return %c0_i32, %c0_i32_0 : i32, i32
  }
  func.func @transform_4(%arg0: i32) -> (i32, i32) {
    %c0_i32 = arith.constant 0 : i32
    %c0_i32_0 = arith.constant 0 : i32
    %c0_i32_1 = arith.constant 0 : i32
    return %c0_i32, %c0_i32_0 : i32, i32
  }
  func.func @transform_5(%arg0: i32) -> (i32, i32) {
    %c0_i32 = arith.constant 0 : i32
    %c0_i32_0 = arith.constant 0 : i32
    %c0_i32_1 = arith.constant 0 : i32
    return %c0_i32, %c0_i32_0 : i32, i32
  }
  func.func @transform_6(%arg0: i32) -> (i32, i32) {
    %c0_i32 = arith.constant 0 : i32
    %c0_i32_0 = arith.constant 0 : i32
    %c0_i32_1 = arith.constant 0 : i32
    return %c0_i32, %c0_i32_0 : i32, i32
  }
  func.func @transform_7(%arg0: i32) -> (i32, i32) {
    %c0_i32 = arith.constant 0 : i32
    %c0_i32_0 = arith.constant 0 : i32
    %c0_i32_1 = arith.constant 0 : i32
    return %c0_i32, %c0_i32_0 : i32, i32
  }
  func.func @transform_8(%arg0: i32) -> (i32, i32) {
    %c0_i32 = arith.constant 0 : i32
    %c0_i32_0 = arith.constant 0 : i32
    %c0_i32_1 = arith.constant 0 : i32
    return %c0_i32, %c0_i32_0 : i32, i32
  }
  func.func @transform_9(%arg0: i32) -> (i32, i32) {
    %c0_i32 = arith.constant 0 : i32
    %c0_i32_0 = arith.constant 0 : i32
    %c0_i32_1 = arith.constant 0 : i32
    return %c0_i32, %c0_i32_0 : i32, i32
  }
  func.func @transform_10(%arg0: i32) -> (i32, i32) {
    %c0_i32 = arith.constant 0 : i32
    %c0_i32_0 = arith.constant 0 : i32
    %c0_i32_1 = arith.constant 0 : i32
    return %c0_i32, %c0_i32_0 : i32, i32
  }
  func.func @transform_11(%arg0: i32) -> (i32, i32, i32) {
    %c0_i32 = arith.constant 0 : i32
    %c0_i32_0 = arith.constant 0 : i32
    %c0_i32_1 = arith.constant 0 : i32
    return %arg0, %c0_i32, %c0_i32_0 : i32, i32, i32
  }
}

</mosaic_0001>

<llo_original>
// kernel: lenet_pallas_forward.1
$region0: #{lenet_pallas_forward.1}
  #allocation0 [shape = 'u32[]', space=smem, size = 0x4, offset = 0x4, fixed_abs, tag = 'smem constant byte address 0x4 - core index']
  #allocation1 [shape = 'u32[144,128]{1,0:T(1,128)}', space=vmem, size = 0x12000, scoped, tag = 'internal scratch']
  #allocation2 [shape = 'bf16[3,1408]{1,0:T(4,128)(2,1)}', space=vmem, size = 0x2c00, scoped, tag = 'scratch operand']
  #allocation3 [shape = 'bf16[200,1024]{1,0:T(8,128)(2,1)}', space=vmem, size = 0x64000, scoped, tag = 'scratch operand']
  #allocation4 [shape = 'f32[6,1408]{1,0:T(8,128)}', space=vmem, size = 0xb000, scoped, tag = 'scratch operand']
  #allocation5 [shape = 'bf16[6,1408]{1,0:T(8,128)(2,1)}', space=vmem, size = 0x5800, scoped, tag = 'scratch operand']
  #allocation6 [shape = 'f32[16,1408]{1,0:T(8,128)}', space=vmem, size = 0x16000, scoped, tag = 'scratch operand']
  #allocation7 [shape = 'bf16[16,1024]{1,0:T(8,128)(2,1)}', space=vmem, size = 0x8000, scoped, tag = 'scratch operand']
  #allocation8 [shape = 'bf16[400,1]{1,0:T(8,128)(2,1)}', space=vmem, size = 0x19000, scoped, tag = 'scratch operand']
  %s0 = inlined_call_operand.vmem [shape: f32[2,3,1024], index: 0, kind: input, shape index: {}]
  %s1 = inlined_call_operand.vmem [shape: bf16[6,200], index: 1, kind: input, shape index: {}]
  %s2 = inlined_call_operand.vmem [shape: f32[6,1], index: 2, kind: input, shape index: {}]
  %s3 = inlined_call_operand.vmem [shape: bf16[16,200], index: 3, kind: input, shape index: {}]
  %s4 = inlined_call_operand.vmem [shape: f32[16,1], index: 4, kind: input, shape index: {}]
  %s5 = inlined_call_operand.vmem [shape: bf16[120,400], index: 5, kind: input, shape index: {}]
  %s6 = inlined_call_operand.vmem [shape: f32[120,1], index: 6, kind: input, shape index: {}]
  %s7 = inlined_call_operand.vmem [shape: bf16[84,120], index: 7, kind: input, shape index: {}]
  %s8 = inlined_call_operand.vmem [shape: f32[84,1], index: 8, kind: input, shape index: {}]
  %s9 = inlined_call_operand.vmem [shape: bf16[10,84], index: 9, kind: input, shape index: {}]
  %s10 = inlined_call_operand.vmem [shape: f32[10,1], index: 10, kind: input, shape index: {}]
  %s11 = inlined_call_operand.vmem [shape: f32[2,10,1], index: 11, kind: output, shape index: {}]
  %s12 = sld [smem:[#allocation0]]
  $region77: #{lenet_pallas_forward.1} parent=0
    _
  %s14 = ssub.s32 1, %s12
  %s15 = scalar_select 0, %s14, %s12
  loop: start=0, step=1, limit=4
  $region2: #{lenet_pallas_forward.1} parent=0 // loop_pre_header
    _
  $region3: #{lenet_pallas_forward.1} parent=0 // loop_header
    %s17 = sphi 0, %s21
    %p18 = scmp.ge.s32.totalorder %s17, 4
    %s27 = sphi 0, %s29
    %s30 = sphi 0, %s27
    %s31 = sphi 0, %s30
    %s47 = sphi 0, %s31
    %s51 = sphi 0, %s51
    %s53 = sphi 0, %s51
    %s54 = sphi 0, %s53
    %s68 = sphi 0, %s54
    %s72 = sphi 0, %s72
    %s74 = sphi 0, %s72
    %s75 = sphi 0, %s74
    %s89 = sphi 0, %s75
    %s93 = sphi 0, %s93
    %s95 = sphi 0, %s93
    %s96 = sphi 0, %s95
    %s110 = sphi 0, %s96
    %s114 = sphi 0, %s114
    %s116 = sphi 0, %s114
    %s117 = sphi 0, %s116
    %s131 = sphi 0, %s117
    %s135 = sphi 0, %s135
    %s137 = sphi 0, %s135
    %s138 = sphi 0, %s137
    %s152 = sphi 0, %s138
    %s156 = sphi 0, %s156
    %s158 = sphi 0, %s156
    %s159 = sphi 0, %s158
    %s173 = sphi 0, %s159
    %s177 = sphi 0, %s177
    %s179 = sphi 0, %s177
    %s180 = sphi 0, %s179
    %s194 = sphi 0, %s180
    %s198 = sphi 0, %s198
    %s200 = sphi 0, %s198
    %s201 = sphi 0, %s200
    %s215 = sphi 0, %s201
    %s219 = sphi 0, %s219
    %s221 = sphi 0, %s219
    %s222 = sphi 0, %s221
    %s236 = sphi 0, %s222
    %s240 = sphi 0, %s240
    %s242 = sphi 0, %s240
    %s243 = sphi 0, %s242
    %s257 = sphi 0, %s243
    %s263 = sphi 0, %s265
    %s266 = sphi 0, %s263
    %s267 = sphi 0, %s266
    %s283 = sphi 0, %s267
  $region4: #{lenet_pallas_forward.1} parent=0 // loop_header_branch
    %20 = sbr.rel (%p18) target = $region8
  $region5: #{lenet_pallas_forward.1} parent=0 // loop_body
    %s22 = ssub.s32 %s17, 1
    %s23 = ssub.s32 %s17, 2
    %s24 = sadd.s32 %s17, 1
    %s25 = ssub.s32 %s17, %s24
    %p26 = scmp.eq.s32.totalorder %s25, 0
    %s28 = sadd.s32 %s27, 1
    %s29 = scalar_select %p26, %s27, %s28
    %p32 = pneg %p26
    %p33 = scmp.eq.s32.totalorder %s17, 1
    %p34 = por %p32, %p33
    %p35 = scmp.ne.s32.totalorder %s27, %s30
    %p36 = scmp.eq.s32.totalorder %s17, 0
    %p37 = por %p35, %p36
    %p38 = scmp.ne.s32.totalorder %s27, %s30
    %p39 = scmp.eq.s32.totalorder %s22, 1
    %p40 = por %p38, %p39
    %p41 = scmp.ne.s32.totalorder %s30, %s31
    %p42 = scmp.eq.s32.totalorder %s22, 0
    %p43 = por %p41, %p42
    %p44 = scmp.ne.s32.totalorder %s30, %s31
    %p45 = scmp.eq.s32.totalorder %s23, 1
    %p46 = por %p44, %p45
    %p48 = scmp.ne.s32.totalorder %s31, %s47
    %p49 = scmp.eq.s32.totalorder %s23, 0
    %p50 = por %p48, %p49
    %s52 = sadd.s32 %s51, 1
    %p55 = scmp.eq.s32.totalorder %s17, 1
    %p56 = scmp.ne.s32.totalorder %s51, %s53
    %p57 = scmp.eq.s32.totalorder %s17, 0
    %p58 = por %p56, %p57
    %p59 = scmp.ne.s32.totalorder %s51, %s53
    %p60 = scmp.eq.s32.totalorder %s22, 1
    %p61 = por %p59, %p60
    %p62 = scmp.ne.s32.totalorder %s53, %s54
    %p63 = scmp.eq.s32.totalorder %s22, 0
    %p64 = por %p62, %p63
    %p65 = scmp.ne.s32.totalorder %s53, %s54
    %p66 = scmp.eq.s32.totalorder %s23, 1
    %p67 = por %p65, %p66
    %p69 = scmp.ne.s32.totalorder %s54, %s68
    %p70 = scmp.eq.s32.totalorder %s23, 0
    %p71 = por %p69, %p70
    %s73 = sadd.s32 %s72, 1
    %p76 = scmp.eq.s32.totalorder %s17, 1
    %p77 = scmp.ne.s32.totalorder %s72, %s74
    %p78 = scmp.eq.s32.totalorder %s17, 0
    %p79 = por %p77, %p78
    %p80 = scmp.ne.s32.totalorder %s72, %s74
    %p81 = scmp.eq.s32.totalorder %s22, 1
    %p82 = por %p80, %p81
    %p83 = scmp.ne.s32.totalorder %s74, %s75
    %p84 = scmp.eq.s32.totalorder %s22, 0
    %p85 = por %p83, %p84
    %p86 = scmp.ne.s32.totalorder %s74, %s75
    %p87 = scmp.eq.s32.totalorder %s23, 1
    %p88 = por %p86, %p87
    %p90 = scmp.ne.s32.totalorder %s75, %s89
    %p91 = scmp.eq.s32.totalorder %s23, 0
    %p92 = por %p90, %p91
    %s94 = sadd.s32 %s93, 1
    %p97 = scmp.eq.s32.totalorder %s17, 1
    %p98 = scmp.ne.s32.totalorder %s93, %s95
    %p99 = scmp.eq.s32.totalorder %s17, 0
    %p100 = por %p98, %p99
    %p101 = scmp.ne.s32.totalorder %s93, %s95
    %p102 = scmp.eq.s32.totalorder %s22, 1
    %p103 = por %p101, %p102
    %p104 = scmp.ne.s32.totalorder %s95, %s96
    %p105 = scmp.eq.s32.totalorder %s22, 0
    %p106 = por %p104, %p105
    %p107 = scmp.ne.s32.totalorder %s95, %s96
    %p108 = scmp.eq.s32.totalorder %s23, 1
    %p109 = por %p107, %p108
    %p111 = scmp.ne.s32.totalorder %s96, %s110
    %p112 = scmp.eq.s32.totalorder %s23, 0
    %p113 = por %p111, %p112
    %s115 = sadd.s32 %s114, 1
    %p118 = scmp.eq.s32.totalorder %s17, 1
    %p119 = scmp.ne.s32.totalorder %s114, %s116
    %p120 = scmp.eq.s32.totalorder %s17, 0
    %p121 = por %p119, %p120
    %p122 = scmp.ne.s32.totalorder %s114, %s116
    %p123 = scmp.eq.s32.totalorder %s22, 1
    %p124 = por %p122, %p123
    %p125 = scmp.ne.s32.totalorder %s116, %s117
    %p126 = scmp.eq.s32.totalorder %s22, 0
    %p127 = por %p125, %p126
    %p128 = scmp.ne.s32.totalorder %s116, %s117
    %p129 = scmp.eq.s32.totalorder %s23, 1
    %p130 = por %p128, %p129
    %p132 = scmp.ne.s32.totalorder %s117, %s131
    %p133 = scmp.eq.s32.totalorder %s23, 0
    %p134 = por %p132, %p133
    %s136 = sadd.s32 %s135, 1
    %p139 = scmp.eq.s32.totalorder %s17, 1
    %p140 = scmp.ne.s32.totalorder %s135, %s137
    %p141 = scmp.eq.s32.totalorder %s17, 0
    %p142 = por %p140, %p141
    %p143 = scmp.ne.s32.totalorder %s135, %s137
    %p144 = scmp.eq.s32.totalorder %s22, 1
    %p145 = por %p143, %p144
    %p146 = scmp.ne.s32.totalorder %s137, %s138
    %p147 = scmp.eq.s32.totalorder %s22, 0
    %p148 = por %p146, %p147
    %p149 = scmp.ne.s32.totalorder %s137, %s138
    %p150 = scmp.eq.s32.totalorder %s23, 1
    %p151 = por %p149, %p150
    %p153 = scmp.ne.s32.totalorder %s138, %s152
    %p154 = scmp.eq.s32.totalorder %s23, 0
    %p155 = por %p153, %p154
    %s157 = sadd.s32 %s156, 1
    %p160 = scmp.eq.s32.totalorder %s17, 1
    %p161 = scmp.ne.s32.totalorder %s156, %s158
    %p162 = scmp.eq.s32.totalorder %s17, 0
    %p163 = por %p161, %p162
    %p164 = scmp.ne.s32.totalorder %s156, %s158
    %p165 = scmp.eq.s32.totalorder %s22, 1
    %p166 = por %p164, %p165
    %p167 = scmp.ne.s32.totalorder %s158, %s159
    %p168 = scmp.eq.s32.totalorder %s22, 0
    %p169 = por %p167, %p168
    %p170 = scmp.ne.s32.totalorder %s158, %s159
    %p171 = scmp.eq.s32.totalorder %s23, 1
    %p172 = por %p170, %p171
    %p174 = scmp.ne.s32.totalorder %s159, %s173
    %p175 = scmp.eq.s32.totalorder %s23, 0
    %p176 = por %p174, %p175
    %s178 = sadd.s32 %s177, 1
    %p181 = scmp.eq.s32.totalorder %s17, 1
    %p182 = scmp.ne.s32.totalorder %s177, %s179
    %p183 = scmp.eq.s32.totalorder %s17, 0
    %p184 = por %p182, %p183
    %p185 = scmp.ne.s32.totalorder %s177, %s179
    %p186 = scmp.eq.s32.totalorder %s22, 1
    %p187 = por %p185, %p186
    %p188 = scmp.ne.s32.totalorder %s179, %s180
    %p189 = scmp.eq.s32.totalorder %s22, 0
    %p190 = por %p188, %p189
    %p191 = scmp.ne.s32.totalorder %s179, %s180
    %p192 = scmp.eq.s32.totalorder %s23, 1
    %p193 = por %p191, %p192
    %p195 = scmp.ne.s32.totalorder %s180, %s194
    %p196 = scmp.eq.s32.totalorder %s23, 0
    %p197 = por %p195, %p196
    %s199 = sadd.s32 %s198, 1
    %p202 = scmp.eq.s32.totalorder %s17, 1
    %p203 = scmp.ne.s32.totalorder %s198, %s200
    %p204 = scmp.eq.s32.totalorder %s17, 0
    %p205 = por %p203, %p204
    %p206 = scmp.ne.s32.totalorder %s198, %s200
    %p207 = scmp.eq.s32.totalorder %s22, 1
    %p208 = por %p206, %p207
    %p209 = scmp.ne.s32.totalorder %s200, %s201
    %p210 = scmp.eq.s32.totalorder %s22, 0
    %p211 = por %p209, %p210
    %p212 = scmp.ne.s32.totalorder %s200, %s201
    %p213 = scmp.eq.s32.totalorder %s23, 1
    %p214 = por %p212, %p213
    %p216 = scmp.ne.s32.totalorder %s201, %s215
    %p217 = scmp.eq.s32.totalorder %s23, 0
    %p218 = por %p216, %p217
    %s220 = sadd.s32 %s219, 1
    %p223 = scmp.eq.s32.totalorder %s17, 1
    %p224 = scmp.ne.s32.totalorder %s219, %s221
    %p225 = scmp.eq.s32.totalorder %s17, 0
    %p226 = por %p224, %p225
    %p227 = scmp.ne.s32.totalorder %s219, %s221
    %p228 = scmp.eq.s32.totalorder %s22, 1
    %p229 = por %p227, %p228
    %p230 = scmp.ne.s32.totalorder %s221, %s222
    %p231 = scmp.eq.s32.totalorder %s22, 0
    %p232 = por %p230, %p231
    %p233 = scmp.ne.s32.totalorder %s221, %s222
    %p234 = scmp.eq.s32.totalorder %s23, 1
    %p235 = por %p233, %p234
    %p237 = scmp.ne.s32.totalorder %s222, %s236
    %p238 = scmp.eq.s32.totalorder %s23, 0
    %p239 = por %p237, %p238
    %s241 = sadd.s32 %s240, 1
    %p244 = scmp.eq.s32.totalorder %s17, 1
    %p245 = scmp.ne.s32.totalorder %s240, %s242
    %p246 = scmp.eq.s32.totalorder %s17, 0
    %p247 = por %p245, %p246
    %p248 = scmp.ne.s32.totalorder %s240, %s242
    %p249 = scmp.eq.s32.totalorder %s22, 1
    %p250 = por %p248, %p249
    %p251 = scmp.ne.s32.totalorder %s242, %s243
    %p252 = scmp.eq.s32.totalorder %s22, 0
    %p253 = por %p251, %p252
    %p254 = scmp.ne.s32.totalorder %s242, %s243
    %p255 = scmp.eq.s32.totalorder %s23, 1
    %p256 = por %p254, %p255
    %p258 = scmp.ne.s32.totalorder %s243, %s257
    %p259 = scmp.eq.s32.totalorder %s23, 0
    %p260 = por %p258, %p259
    %s261 = ssub.s32 %s17, %s24
    %p262 = scmp.eq.s32.totalorder %s261, 0
    %s264 = sadd.s32 %s263, 1
    %s265 = scalar_select %p262, %s263, %s264
    %p268 = pneg %p262
    %p269 = scmp.eq.s32.totalorder %s17, 1
    %p270 = por %p268, %p269
    %p271 = scmp.ne.s32.totalorder %s263, %s266
    %p272 = scmp.eq.s32.totalorder %s17, 0
    %p273 = por %p271, %p272
    %p274 = scmp.ne.s32.totalorder %s263, %s266
    %p275 = scmp.eq.s32.totalorder %s22, 1
    %p276 = por %p274, %p275
    %p277 = scmp.ne.s32.totalorder %s266, %s267
    %p278 = scmp.eq.s32.totalorder %s22, 0
    %p279 = por %p277, %p278
    %p280 = scmp.ne.s32.totalorder %s266, %s267
    %p281 = scmp.eq.s32.totalorder %s23, 1
    %p282 = por %p280, %p281
    %p284 = scmp.ne.s32.totalorder %s267, %s283
    %p285 = scmp.eq.s32.totalorder %s23, 0
    %p286 = por %p284, %p285
    %p287 = scmp.le.s32.totalorder 1, %s17
    %p288 = scmp.lt.s32.totalorder %s17, 3
    %p289 = pnand %p287, %p288
    %p290 = pneg %p289
    // Predicated region
    $region9: #{lenet_pallas_forward.1} parent=5 // pred_check
      _
    $region10: #{lenet_pallas_forward.1} parent=5 // pred_check_branch
      %292 = sbr.rel (%p289) target = $region12
    $region11: #{lenet_pallas_forward.1} parent=5 // pred_region
      %s293 = ssub.s32 %s17, 1
      // Predicated region
      $region13: #{lenet_pallas_forward.1} parent=11 // pred_check
        %p294 = pneg %p64
      $region14: #{lenet_pallas_forward.1} parent=11 // pred_check_branch
        %296 = sbr.rel (%p294) target = $region16
      $region15: #{lenet_pallas_forward.1} parent=11 // pred_region
        _
      $region16: #{lenet_pallas_forward.1} parent=11 // pred_fallthru
        _
      // Predicated region
      $region17: #{lenet_pallas_forward.1} parent=11 // pred_check
        %p297 = pneg %p85
      $region18: #{lenet_pallas_forward.1} parent=11 // pred_check_branch
        %299 = sbr.rel (%p297) target = $region20
      $region19: #{lenet_pallas_forward.1} parent=11 // pred_region
        _
      $region20: #{lenet_pallas_forward.1} parent=11 // pred_fallthru
        _
      // Predicated region
      $region21: #{lenet_pallas_forward.1} parent=11 // pred_check
        %p300 = pneg %p106
      $region22: #{lenet_pallas_forward.1} parent=11 // pred_check_branch
        %302 = sbr.rel (%p300) target = $region24
      $region23: #{lenet_pallas_forward.1} parent=11 // pred_region
        _
      $region24: #{lenet_pallas_forward.1} parent=11 // pred_fallthru
        _
      // Predicated region
      $region25: #{lenet_pallas_forward.1} parent=11 // pred_check
        %p303 = pneg %p127
      $region26: #{lenet_pallas_forward.1} parent=11 // pred_check_branch
        %305 = sbr.rel (%p303) target = $region28
      $region27: #{lenet_pallas_forward.1} parent=11 // pred_region
        _
      $region28: #{lenet_pallas_forward.1} parent=11 // pred_fallthru
        _
      // Predicated region
      $region29: #{lenet_pallas_forward.1} parent=11 // pred_check
        %p306 = pneg %p148
      $region30: #{lenet_pallas_forward.1} parent=11 // pred_check_branch
        %308 = sbr.rel (%p306) target = $region32
      $region31: #{lenet_pallas_forward.1} parent=11 // pred_region
        _
      $region32: #{lenet_pallas_forward.1} parent=11 // pred_fallthru
        _
      // Predicated region
      $region33: #{lenet_pallas_forward.1} parent=11 // pred_check
        %p309 = pneg %p169
      $region34: #{lenet_pallas_forward.1} parent=11 // pred_check_branch
        %311 = sbr.rel (%p309) target = $region36
      $region35: #{lenet_pallas_forward.1} parent=11 // pred_region
        _
      $region36: #{lenet_pallas_forward.1} parent=11 // pred_fallthru
        _
      // Predicated region
      $region37: #{lenet_pallas_forward.1} parent=11 // pred_check
        %p312 = pneg %p190
      $region38: #{lenet_pallas_forward.1} parent=11 // pred_check_branch
        %314 = sbr.rel (%p312) target = $region40
      $region39: #{lenet_pallas_forward.1} parent=11 // pred_region
        _
      $region40: #{lenet_pallas_forward.1} parent=11 // pred_fallthru
        _
      // Predicated region
      $region41: #{lenet_pallas_forward.1} parent=11 // pred_check
        %p315 = pneg %p211
      $region42: #{lenet_pallas_forward.1} parent=11 // pred_check_branch
        %317 = sbr.rel (%p315) target = $region44
      $region43: #{lenet_pallas_forward.1} parent=11 // pred_region
        _
      $region44: #{lenet_pallas_forward.1} parent=11 // pred_fallthru
        _
      // Predicated region
      $region45: #{lenet_pallas_forward.1} parent=11 // pred_check
        %p318 = pneg %p232
      $region46: #{lenet_pallas_forward.1} parent=11 // pred_check_branch
        %320 = sbr.rel (%p318) target = $region48
      $region47: #{lenet_pallas_forward.1} parent=11 // pred_region
        _
      $region48: #{lenet_pallas_forward.1} parent=11 // pred_fallthru
        _
      // Predicated region
      $region49: #{lenet_pallas_forward.1} parent=11 // pred_check
        %p321 = pneg %p253
      $region50: #{lenet_pallas_forward.1} parent=11 // pred_check_branch
        %323 = sbr.rel (%p321) target = $region52
      $region51: #{lenet_pallas_forward.1} parent=11 // pred_region
        _
      $region52: #{lenet_pallas_forward.1} parent=11 // pred_fallthru
        _
    $region12: #{lenet_pallas_forward.1} parent=5 // pred_fallthru
      _
    %p324 = scmp.lt.s32.totalorder %s17, 2
    // Predicated region
    $region53: #{lenet_pallas_forward.1} parent=5 // pred_check
      %p325 = pneg %p324
    $region54: #{lenet_pallas_forward.1} parent=5 // pred_check_branch
      %327 = sbr.rel (%p325) target = $region56
    $region55: #{lenet_pallas_forward.1} parent=5 // pred_region
      // Predicated region
      $region57: #{lenet_pallas_forward.1} parent=55 // pred_check
        %p328 = pneg %p37
      $region58: #{lenet_pallas_forward.1} parent=55 // pred_check_branch
        %330 = sbr.rel (%p328) target = $region60
      $region59: #{lenet_pallas_forward.1} parent=55 // pred_region
        %p331 = scmp.lt.s32.totalorder %s17, 1
        %s332 = scalar_select %p331, %s17, 1
        %s333 = smul.addr %s332, 8
        %s334 = smul.addr %s333, 4
        %s335 = scalar_lea.vmem %s0, %s334
      $region60: #{lenet_pallas_forward.1} parent=55 // pred_fallthru
        _
    $region56: #{lenet_pallas_forward.1} parent=5 // pred_fallthru
      _
    %p336 = scmp.le.s32.totalorder 1, %s17
    %p337 = scmp.lt.s32.totalorder %s17, 3
    %p338 = pnand %p336, %p337
    %p339 = pneg %p338
    // Predicated region
    $region61: #{lenet_pallas_forward.1} parent=5 // pred_check
      _
    $region62: #{lenet_pallas_forward.1} parent=5 // pred_check_branch
      %341 = sbr.rel (%p338) target = $region64
    $region63: #{lenet_pallas_forward.1} parent=5 // pred_region
      %s342 = ssub.s32 %s17, 1
      %p343 = scmp.lt.s32.totalorder %s22, 1
      %s344 = scalar_select %p343, %s22, 1
      %s345 = smul.addr %s344, 8
      %s346 = smul.addr %s345, 4
      %s347 = scalar_lea.vmem %s0, %s346
      %p348 = pneg %p43
      %p349 = pneg %p40
      %p350 = pneg %p64
      %p351 = pneg %p61
      %p352 = pneg %p85
      %p353 = pneg %p82
      %p354 = pneg %p106
      %p355 = pneg %p103
      %p356 = pneg %p127
      %p357 = pneg %p124
      %p358 = pneg %p148
      %p359 = pneg %p145
      %p360 = pneg %p169
      %p361 = pneg %p166
      %p362 = pneg %p190
      %p363 = pneg %p187
      %p364 = pneg %p211
      %p365 = pneg %p208
      %p366 = pneg %p232
      %p367 = pneg %p229
      %p368 = pneg %p253
      %p369 = pneg %p250
      %p370 = pneg %p279
      %p371 = pneg %p276
      %p372 = scmp.lt.s32.totalorder %s22, 1
      %s373 = scalar_select %p372, %s22, 1
      %s374 = smul.addr %s373, 2
      %s375 = smul.addr %s374, 8
      %s376 = scalar_lea.vmem %s11, %s375
      %p377 = scmp.lt.s32.totalorder %s22, 1
      %s378 = scalar_select %p377, %s22, 1
      %s379 = smul.addr %s378, 8
      %s380 = smul.addr %s379, 4
      %s381 = scalar_lea.vmem %s0, %s380
      %p382 = scmp.lt.s32.totalorder %s22, 1
      %s383 = scalar_select %p382, %s22, 1
      %s384 = smul.addr %s383, 2
      %s385 = smul.addr %s384, 8
      %s386 = scalar_lea.vmem %s11, %s385
      %v388 = vld [vmem:[%s381] sm:$0x77]
      %v389 = vld [vmem:[%s381 + $0x8] sm:$0x77]
      %v390 = vld [vmem:[%s381 + $0x10] sm:$0x77]
      %v391 = vld [vmem:[%s381 + $0x18] sm:$0x77]
      %v396 = vcombine.high %v388, %v388
      %v397 = vcombine.high %v389, %v389
      %v398 = vcombine.high %v390, %v390
      %v399 = vcombine.high %v391, %v391
      %v404 = vpack.c.bf16 %v388, %v388
      %v405 = vpack.c.bf16 %v396, %v396
      %v406 = vpack.c.bf16 %v389, %v389
      %v407 = vpack.c.bf16 %v397, %v397
      %v408 = vpack.c.bf16 %v390, %v390
      %v409 = vpack.c.bf16 %v398, %v398
      %v410 = vpack.c.bf16 %v391, %v391
      %v411 = vpack.c.bf16 %v399, %v399
      %v420 = vcombine.low %v404, %v405
      %v421 = vcombine.low %v406, %v407
      %v423 = vunpack.c.l.s4 1983009808
      %v424 = vunpack.c.0.s8 %v423
      %v425 = vlaneseq
      %v426 = vshrl.u32 %v425, 7
      %v427 = vsub.s32 %v424, %v426
      %v428 = vrot.slane %v420, %v427
      %v430 = vunpack.c.l.s4 1983009808
      %v431 = vunpack.c.0.s8 %v430
      %v432 = vlaneseq
      %v433 = vshrl.u32 %v432, 7
      %v434 = vsub.s32 %v431, %v433
      %v435 = vrot.slane %v421, %v434
      %v436 = vcombine.low %v428, %v435
      %v437 = vcombine.low %v408, %v409
      %v438 = vcombine.low %v410, %v411
      %v440 = vunpack.c.l.s4 1983009808
      %v441 = vunpack.c.0.s8 %v440
      %v442 = vlaneseq
      %v443 = vshrl.u32 %v442, 7
      %v444 = vsub.s32 %v441, %v443
      %v445 = vrot.slane %v437, %v444
      %v447 = vunpack.c.l.s4 1983009808
      %v448 = vunpack.c.0.s8 %v447
      %v449 = vlaneseq
      %v450 = vshrl.u32 %v449, 7
      %v451 = vsub.s32 %v448, %v450
      %v452 = vrot.slane %v438, %v451
      %v453 = vcombine.low %v445, %v452
      %vm456 = vcmask 1041408
      %vm457 = vsmask.f32 1280
      %vm458 = vmand %vm456, %vm457
      %vm459 = vcmask 1043458
      %vm460 = vsmask.f32 3328
      %vm461 = vmand %vm459, %vm460
      %vm462 = vmor %vm461, %vm458
      %vm463 = vcmask 1045508
      %vm464 = vsmask.f32 5376
      %vm465 = vmand %vm463, %vm464
      %vm466 = vmor %vm465, %vm462
      %vm467 = vcmask 1047558
      %vm468 = vsmask.f32 7424
      %vm469 = vmand %vm467, %vm468
      %vm470 = vmor %vm469, %vm466
      %v471 = vld [vmem:[#allocation2] sm:$0xff]
      %v472 = vsel %vm470, %v436, %v471
      %473 = vst [vmem:[#allocation2] sm:$0xff] %v472
      %v474 = vld [vmem:[#allocation2 + $0x8] sm:$0xff]
      %v475 = vsel %vm470, %v453, %v474
      %476 = vst [vmem:[#allocation2 + $0x8] sm:$0xff] %v475
      %v477 = vld [vmem:[#allocation2 + $0x10] sm:$0x3f]
      %v478 = vsel %vm466, 0, %v477
      %479 = vst [vmem:[#allocation2 + $0x10] sm:$0x3f] %v478
      %vm480 = vcmask 1043457
      %vm481 = vsmask.f32 7942
      %vm482 = vmand %vm480, %vm481
      %vm483 = vcmask 1047557
      %vm484 = vsmask.f32 7958
      %vm485 = vmand %vm483, %vm484
      %vm486 = vmor %vm485, %vm482
      %v487 = vld [vmem:[#allocation3] sm:$0xee]
      %v488 = vsel %vm486, 0, %v487
      %489 = vst [vmem:[#allocation3] sm:$0xee] %v488
      %v490 = vld [vmem:[#allocation3 + $0x8] sm:$0xee]
      %v491 = vsel %vm486, 0, %v490
      %492 = vst [vmem:[#allocation3 + $0x8] sm:$0xee] %v491
      %v493 = vld [vmem:[#allocation3 + $0x10] sm:$0xee]
      %v494 = vsel %vm486, 0, %v493
      %495 = vst [vmem:[#allocation3 + $0x10] sm:$0xee] %v494
      %v496 = vld [vmem:[#allocation3 + $0x18] sm:$0xee]
      %v497 = vsel %vm486, 0, %v496
      %498 = vst [vmem:[#allocation3 + $0x18] sm:$0xee] %v497
      %v499 = vld [vmem:[#allocation3 + $0x20] sm:$0xee]
      %v500 = vsel %vm486, 0, %v499
      %501 = vst [vmem:[#allocation3 + $0x20] sm:$0xee] %v500
      %v502 = vld [vmem:[#allocation3 + $0x28] sm:$0xee]
      %v503 = vsel %vm486, 0, %v502
      %504 = vst [vmem:[#allocation3 + $0x28] sm:$0xee] %v503
      %v505 = vld [vmem:[#allocation3 + $0x30] sm:$0xee]
      %v506 = vsel %vm486, 0, %v505
      %507 = vst [vmem:[#allocation3 + $0x30] sm:$0xee] %v506
      %v508 = vld [vmem:[#allocation3 + $0x38] sm:$0xee]
      %v509 = vsel %vm486, 0, %v508
      %510 = vst [vmem:[#allocation3 + $0x38] sm:$0xee] %v509
      %v511 = vld [vmem:[#allocation3 + $0x40] sm:$0xee]
      %v512 = vsel %vm486, 0, %v511
      %513 = vst [vmem:[#allocation3 + $0x40] sm:$0xee] %v512
      %v514 = vld [vmem:[#allocation3 + $0x48] sm:$0xee]
      %v515 = vsel %vm486, 0, %v514
      %516 = vst [vmem:[#allocation3 + $0x48] sm:$0xee] %v515
      %v517 = vld [vmem:[#allocation3 + $0x50] sm:$0xee]
      %v518 = vsel %vm486, 0, %v517
      %519 = vst [vmem:[#allocation3 + $0x50] sm:$0xee] %v518
      %v520 = vld [vmem:[#allocation3 + $0x58] sm:$0xee]
      %v521 = vsel %vm486, 0, %v520
      %522 = vst [vmem:[#allocation3 + $0x58] sm:$0xee] %v521
      %v523 = vld [vmem:[#allocation3 + $0x60] sm:$0xee]
      %v524 = vsel %vm486, 0, %v523
      %525 = vst [vmem:[#allocation3 + $0x60] sm:$0xee] %v524
      %v526 = vld [vmem:[#allocation3 + $0x68] sm:$0xee]
      %v527 = vsel %vm486, 0, %v526
      %528 = vst [vmem:[#allocation3 + $0x68] sm:$0xee] %v527
      %v529 = vld [vmem:[#allocation3 + $0x70] sm:$0xee]
      %v530 = vsel %vm486, 0, %v529
      %531 = vst [vmem:[#allocation3 + $0x70] sm:$0xee] %v530
      %v532 = vld [vmem:[#allocation3 + $0x78] sm:$0xee]
      %v533 = vsel %vm486, 0, %v532
      %534 = vst [vmem:[#allocation3 + $0x78] sm:$0xee] %v533
      %v535 = vld [vmem:[#allocation3 + $0x80] sm:$0xee]
      %v536 = vsel %vm486, 0, %v535
      %537 = vst [vmem:[#allocation3 + $0x80] sm:$0xee] %v536
      %v538 = vld [vmem:[#allocation3 + $0x88] sm:$0xee]
      %v539 = vsel %vm486, 0, %v538
      %540 = vst [vmem:[#allocation3 + $0x88] sm:$0xee] %v539
      %v541 = vld [vmem:[#allocation3 + $0x90] sm:$0xee]
      %v542 = vsel %vm486, 0, %v541
      %543 = vst [vmem:[#allocation3 + $0x90] sm:$0xee] %v542
      %v544 = vld [vmem:[#allocation3 + $0x98] sm:$0xee]
      %v545 = vsel %vm486, 0, %v544
      %546 = vst [vmem:[#allocation3 + $0x98] sm:$0xee] %v545
      %v547 = vld [vmem:[#allocation3 + $0xa0] sm:$0xee]
      %v548 = vsel %vm486, 0, %v547
      %549 = vst [vmem:[#allocation3 + $0xa0] sm:$0xee] %v548
      %v550 = vld [vmem:[#allocation3 + $0xa8] sm:$0xee]
      %v551 = vsel %vm486, 0, %v550
      %552 = vst [vmem:[#allocation3 + $0xa8] sm:$0xee] %v551
      %v553 = vld [vmem:[#allocation3 + $0xb0] sm:$0xee]
      %v554 = vsel %vm486, 0, %v553
      %555 = vst [vmem:[#allocation3 + $0xb0] sm:$0xee] %v554
      %v556 = vld [vmem:[#allocation3 + $0xb8] sm:$0xee]
      %v557 = vsel %vm486, 0, %v556
      %558 = vst [vmem:[#allocation3 + $0xb8] sm:$0xee] %v557
      %v559 = vld [vmem:[#allocation3 + $0xc0] sm:$0xee]
      %v560 = vsel %vm486, 0, %v559
      %561 = vst [vmem:[#allocation3 + $0xc0] sm:$0xee] %v560
      %v562 = vld [vmem:[#allocation3 + $0xc8] sm:$0xee]
      %v563 = vsel %vm486, 0, %v562
      %564 = vst [vmem:[#allocation3 + $0xc8] sm:$0xee] %v563
      %v565 = vld [vmem:[#allocation3 + $0xd0] sm:$0xee]
      %v566 = vsel %vm486, 0, %v565
      %567 = vst [vmem:[#allocation3 + $0xd0] sm:$0xee] %v566
      %v568 = vld [vmem:[#allocation3 + $0xd8] sm:$0xee]
      %v569 = vsel %vm486, 0, %v568
      %570 = vst [vmem:[#allocation3 + $0xd8] sm:$0xee] %v569
      %v571 = vld [vmem:[#allocation3 + $0xe0] sm:$0xee]
      %v572 = vsel %vm486, 0, %v571
      %573 = vst [vmem:[#allocation3 + $0xe0] sm:$0xee] %v572
      %v574 = vld [vmem:[#allocation3 + $0xe8] sm:$0xee]
      %v575 = vsel %vm486, 0, %v574
      %576 = vst [vmem:[#allocation3 + $0xe8] sm:$0xee] %v575
      %v577 = vld [vmem:[#allocation3 + $0xf0] sm:$0xee]
      %v578 = vsel %vm486, 0, %v577
      %579 = vst [vmem:[#allocation3 + $0xf0] sm:$0xee] %v578
      %v580 = vld [vmem:[#allocation3 + $0xf8] sm:$0xee]
      %v581 = vsel %vm486, 0, %v580
      %582 = vst [vmem:[#allocation3 + $0xf8] sm:$0xee] %v581
      %v583 = vld [vmem:[#allocation3 + $0x100] sm:$0xee]
      %v584 = vsel %vm486, 0, %v583
      %585 = vst [vmem:[#allocation3 + $0x100] sm:$0xee] %v584
      %v586 = vld [vmem:[#allocation3 + $0x108] sm:$0xee]
      %v587 = vsel %vm486, 0, %v586
      %588 = vst [vmem:[#allocation3 + $0x108] sm:$0xee] %v587
      %v589 = vld [vmem:[#allocation3 + $0x110] sm:$0xee]
      %v590 = vsel %vm486, 0, %v589
      %591 = vst [vmem:[#allocation3 + $0x110] sm:$0xee] %v590
      %v592 = vld [vmem:[#allocation3 + $0x118] sm:$0xee]
      %v593 = vsel %vm486, 0, %v592
      %594 = vst [vmem:[#allocation3 + $0x118] sm:$0xee] %v593
      %v595 = vld [vmem:[#allocation3 + $0x120] sm:$0xee]
      %v596 = vsel %vm486, 0, %v595
      %597 = vst [vmem:[#allocation3 + $0x120] sm:$0xee] %v596
      %v598 = vld [vmem:[#allocation3 + $0x128] sm:$0xee]
      %v599 = vsel %vm486, 0, %v598
      %600 = vst [vmem:[#allocation3 + $0x128] sm:$0xee] %v599
      %v601 = vld [vmem:[#allocation3 + $0x130] sm:$0xee]
      %v602 = vsel %vm486, 0, %v601
      %603 = vst [vmem:[#allocation3 + $0x130] sm:$0xee] %v602
      %v604 = vld [vmem:[#allocation3 + $0x138] sm:$0xee]
      %v605 = vsel %vm486, 0, %v604
      %606 = vst [vmem:[#allocation3 + $0x138] sm:$0xee] %v605
      %v607 = vld [vmem:[#allocation3 + $0x140] sm:$0xee]
      %v608 = vsel %vm486, 0, %v607
      %609 = vst [vmem:[#allocation3 + $0x140] sm:$0xee] %v608
      %v610 = vld [vmem:[#allocation3 + $0x148] sm:$0xee]
      %v611 = vsel %vm486, 0, %v610
      %612 = vst [vmem:[#allocation3 + $0x148] sm:$0xee] %v611
      %v613 = vld [vmem:[#allocation3 + $0x150] sm:$0xee]
      %v614 = vsel %vm486, 0, %v613
      %615 = vst [vmem:[#allocation3 + $0x150] sm:$0xee] %v614
      %v616 = vld [vmem:[#allocation3 + $0x158] sm:$0xee]
      %v617 = vsel %vm486, 0, %v616
      %618 = vst [vmem:[#allocation3 + $0x158] sm:$0xee] %v617
      %v619 = vld [vmem:[#allocation3 + $0x160] sm:$0xee]
      %v620 = vsel %vm486, 0, %v619
      %621 = vst [vmem:[#allocation3 + $0x160] sm:$0xee] %v620
      %v622 = vld [vmem:[#allocation3 + $0x168] sm:$0xee]
      %v623 = vsel %vm486, 0, %v622
      %624 = vst [vmem:[#allocation3 + $0x168] sm:$0xee] %v623
      %v625 = vld [vmem:[#allocation3 + $0x170] sm:$0xee]
      %v626 = vsel %vm486, 0, %v625
      %627 = vst [vmem:[#allocation3 + $0x170] sm:$0xee] %v626
      %v628 = vld [vmem:[#allocation3 + $0x178] sm:$0xee]
      %v629 = vsel %vm486, 0, %v628
      %630 = vst [vmem:[#allocation3 + $0x178] sm:$0xee] %v629
      %v631 = vld [vmem:[#allocation3 + $0x180] sm:$0xee]
      %v632 = vsel %vm486, 0, %v631
      %633 = vst [vmem:[#allocation3 + $0x180] sm:$0xee] %v632
      %v634 = vld [vmem:[#allocation3 + $0x188] sm:$0xee]
      %v635 = vsel %vm486, 0, %v634
      %636 = vst [vmem:[#allocation3 + $0x188] sm:$0xee] %v635
      %v637 = vld [vmem:[#allocation3 + $0x190] sm:$0xee]
      %v638 = vsel %vm486, 0, %v637
      %639 = vst [vmem:[#allocation3 + $0x190] sm:$0xee] %v638
      %v640 = vld [vmem:[#allocation3 + $0x198] sm:$0xee]
      %v641 = vsel %vm486, 0, %v640
      %642 = vst [vmem:[#allocation3 + $0x198] sm:$0xee] %v641
      %v643 = vld [vmem:[#allocation3 + $0x1a0] sm:$0xee]
      %v644 = vsel %vm486, 0, %v643
      %645 = vst [vmem:[#allocation3 + $0x1a0] sm:$0xee] %v644
      %v646 = vld [vmem:[#allocation3 + $0x1a8] sm:$0xee]
      %v647 = vsel %vm486, 0, %v646
      %648 = vst [vmem:[#allocation3 + $0x1a8] sm:$0xee] %v647
      %v649 = vld [vmem:[#allocation3 + $0x1b0] sm:$0xee]
      %v650 = vsel %vm486, 0, %v649
      %651 = vst [vmem:[#allocation3 + $0x1b0] sm:$0xee] %v650
      %v652 = vld [vmem:[#allocation3 + $0x1b8] sm:$0xee]
      %v653 = vsel %vm486, 0, %v652
      %654 = vst [vmem:[#allocation3 + $0x1b8] sm:$0xee] %v653
      %v655 = vld [vmem:[#allocation3 + $0x1c0] sm:$0xee]
      %v656 = vsel %vm486, 0, %v655
      %657 = vst [vmem:[#allocation3 + $0x1c0] sm:$0xee] %v656
      %v658 = vld [vmem:[#allocation3 + $0x1c8] sm:$0xee]
      %v659 = vsel %vm486, 0, %v658
      %660 = vst [vmem:[#allocation3 + $0x1c8] sm:$0xee] %v659
      %v661 = vld [vmem:[#allocation3 + $0x1d0] sm:$0xee]
      %v662 = vsel %vm486, 0, %v661
      %663 = vst [vmem:[#allocation3 + $0x1d0] sm:$0xee] %v662
      %v664 = vld [vmem:[#allocation3 + $0x1d8] sm:$0xee]
      %v665 = vsel %vm486, 0, %v664
      %666 = vst [vmem:[#allocation3 + $0x1d8] sm:$0xee] %v665
      %v667 = vld [vmem:[#allocation3 + $0x1e0] sm:$0xee]
      %v668 = vsel %vm486, 0, %v667
      %669 = vst [vmem:[#allocation3 + $0x1e0] sm:$0xee] %v668
      %v670 = vld [vmem:[#allocation3 + $0x1e8] sm:$0xee]
      %v671 = vsel %vm486, 0, %v670
      %672 = vst [vmem:[#allocation3 + $0x1e8] sm:$0xee] %v671
      %v673 = vld [vmem:[#allocation3 + $0x1f0] sm:$0xee]
      %v674 = vsel %vm486, 0, %v673
      %675 = vst [vmem:[#allocation3 + $0x1f0] sm:$0xee] %v674
      %v676 = vld [vmem:[#allocation3 + $0x1f8] sm:$0xee]
      %v677 = vsel %vm486, 0, %v676
      %678 = vst [vmem:[#allocation3 + $0x1f8] sm:$0xee] %v677
      %v679 = vld [vmem:[#allocation3 + $0x200] sm:$0xee]
      %v680 = vsel %vm486, 0, %v679
      %681 = vst [vmem:[#allocation3 + $0x200] sm:$0xee] %v680
      %v682 = vld [vmem:[#allocation3 + $0x208] sm:$0xee]
      %v683 = vsel %vm486, 0, %v682
      %684 = vst [vmem:[#allocation3 + $0x208] sm:$0xee] %v683
      %v685 = vld [vmem:[#allocation3 + $0x210] sm:$0xee]
      %v686 = vsel %vm486, 0, %v685
      %687 = vst [vmem:[#allocation3 + $0x210] sm:$0xee] %v686
      %v688 = vld [vmem:[#allocation3 + $0x218] sm:$0xee]
      %v689 = vsel %vm486, 0, %v688
      %690 = vst [vmem:[#allocation3 + $0x218] sm:$0xee] %v689
      %v691 = vld [vmem:[#allocation3 + $0x220] sm:$0xee]
      %v692 = vsel %vm486, 0, %v691
      %693 = vst [vmem:[#allocation3 + $0x220] sm:$0xee] %v692
      %v694 = vld [vmem:[#allocation3 + $0x228] sm:$0xee]
      %v695 = vsel %vm486, 0, %v694
      %696 = vst [vmem:[#allocation3 + $0x228] sm:$0xee] %v695
      %v697 = vld [vmem:[#allocation3 + $0x230] sm:$0xee]
      %v698 = vsel %vm486, 0, %v697
      %699 = vst [vmem:[#allocation3 + $0x230] sm:$0xee] %v698
      %v700 = vld [vmem:[#allocation3 + $0x238] sm:$0xee]
      %v701 = vsel %vm486, 0, %v700
      %702 = vst [vmem:[#allocation3 + $0x238] sm:$0xee] %v701
      %v703 = vld [vmem:[#allocation3 + $0x240] sm:$0xee]
      %v704 = vsel %vm486, 0, %v703
      %705 = vst [vmem:[#allocation3 + $0x240] sm:$0xee] %v704
      %v706 = vld [vmem:[#allocation3 + $0x248] sm:$0xee]
      %v707 = vsel %vm486, 0, %v706
      %708 = vst [vmem:[#allocation3 + $0x248] sm:$0xee] %v707
      %v709 = vld [vmem:[#allocation3 + $0x250] sm:$0xee]
      %v710 = vsel %vm486, 0, %v709
      %711 = vst [vmem:[#allocation3 + $0x250] sm:$0xee] %v710
      %v712 = vld [vmem:[#allocation3 + $0x258] sm:$0xee]
      %v713 = vsel %vm486, 0, %v712
      %714 = vst [vmem:[#allocation3 + $0x258] sm:$0xee] %v713
      %v715 = vld [vmem:[#allocation3 + $0x260] sm:$0xee]
      %v716 = vsel %vm486, 0, %v715
      %717 = vst [vmem:[#allocation3 + $0x260] sm:$0xee] %v716
      %v718 = vld [vmem:[#allocation3 + $0x268] sm:$0xee]
      %v719 = vsel %vm486, 0, %v718
      %720 = vst [vmem:[#allocation3 + $0x268] sm:$0xee] %v719
      %v721 = vld [vmem:[#allocation3 + $0x270] sm:$0xee]
      %v722 = vsel %vm486, 0, %v721
      %723 = vst [vmem:[#allocation3 + $0x270] sm:$0xee] %v722
      %v724 = vld [vmem:[#allocation3 + $0x278] sm:$0xee]
      %v725 = vsel %vm486, 0, %v724
      %726 = vst [vmem:[#allocation3 + $0x278] sm:$0xee] %v725
      %v727 = vld [vmem:[#allocation3 + $0x280] sm:$0xee]
      %v728 = vsel %vm486, 0, %v727
      %729 = vst [vmem:[#allocation3 + $0x280] sm:$0xee] %v728
      %v730 = vld [vmem:[#allocation3 + $0x288] sm:$0xee]
      %v731 = vsel %vm486, 0, %v730
      %732 = vst [vmem:[#allocation3 + $0x288] sm:$0xee] %v731
      %v733 = vld [vmem:[#allocation3 + $0x290] sm:$0xee]
      %v734 = vsel %vm486, 0, %v733
      %735 = vst [vmem:[#allocation3 + $0x290] sm:$0xee] %v734
      %v736 = vld [vmem:[#allocation3 + $0x298] sm:$0xee]
      %v737 = vsel %vm486, 0, %v736
      %738 = vst [vmem:[#allocation3 + $0x298] sm:$0xee] %v737
      %v739 = vld [vmem:[#allocation3 + $0x2a0] sm:$0xee]
      %v740 = vsel %vm486, 0, %v739
      %741 = vst [vmem:[#allocation3 + $0x2a0] sm:$0xee] %v740
      %v742 = vld [vmem:[#allocation3 + $0x2a8] sm:$0xee]
      %v743 = vsel %vm486, 0, %v742
      %744 = vst [vmem:[#allocation3 + $0x2a8] sm:$0xee] %v743
      %v745 = vld [vmem:[#allocation3 + $0x2b0] sm:$0xee]
      %v746 = vsel %vm486, 0, %v745
      %747 = vst [vmem:[#allocation3 + $0x2b0] sm:$0xee] %v746
      %v748 = vld [vmem:[#allocation3 + $0x2b8] sm:$0xee]
      %v749 = vsel %vm486, 0, %v748
      %750 = vst [vmem:[#allocation3 + $0x2b8] sm:$0xee] %v749
      %v751 = vld [vmem:[#allocation3 + $0x2c0] sm:$0xee]
      %v752 = vsel %vm486, 0, %v751
      %753 = vst [vmem:[#allocation3 + $0x2c0] sm:$0xee] %v752
      %v754 = vld [vmem:[#allocation3 + $0x2c8] sm:$0xee]
      %v755 = vsel %vm486, 0, %v754
      %756 = vst [vmem:[#allocation3 + $0x2c8] sm:$0xee] %v755
      %v757 = vld [vmem:[#allocation3 + $0x2d0] sm:$0xee]
      %v758 = vsel %vm486, 0, %v757
      %759 = vst [vmem:[#allocation3 + $0x2d0] sm:$0xee] %v758
      %v760 = vld [vmem:[#allocation3 + $0x2d8] sm:$0xee]
      %v761 = vsel %vm486, 0, %v760
      %762 = vst [vmem:[#allocation3 + $0x2d8] sm:$0xee] %v761
      %v763 = vld [vmem:[#allocation3 + $0x2e0] sm:$0xee]
      %v764 = vsel %vm486, 0, %v763
      %765 = vst [vmem:[#allocation3 + $0x2e0] sm:$0xee] %v764
      %v766 = vld [vmem:[#allocation3 + $0x2e8] sm:$0xee]
      %v767 = vsel %vm486, 0, %v766
      %768 = vst [vmem:[#allocation3 + $0x2e8] sm:$0xee] %v767
      %v769 = vld [vmem:[#allocation3 + $0x2f0] sm:$0xee]
      %v770 = vsel %vm486, 0, %v769
      %771 = vst [vmem:[#allocation3 + $0x2f0] sm:$0xee] %v770
      %v772 = vld [vmem:[#allocation3 + $0x2f8] sm:$0xee]
      %v773 = vsel %vm486, 0, %v772
      %774 = vst [vmem:[#allocation3 + $0x2f8] sm:$0xee] %v773
      %v775 = vld [vmem:[#allocation3 + $0x300] sm:$0xee]
      %v776 = vsel %vm486, 0, %v775
      %777 = vst [vmem:[#allocation3 + $0x300] sm:$0xee] %v776
      %v778 = vld [vmem:[#allocation3 + $0x308] sm:$0xee]
      %v779 = vsel %vm486, 0, %v778
      %780 = vst [vmem:[#allocation3 + $0x308] sm:$0xee] %v779
      %v781 = vld [vmem:[#allocation3 + $0x310] sm:$0xee]
      %v782 = vsel %vm486, 0, %v781
      %783 = vst [vmem:[#allocation3 + $0x310] sm:$0xee] %v782
      %v784 = vld [vmem:[#allocation3 + $0x318] sm:$0xee]
      %v785 = vsel %vm486, 0, %v784
      %786 = vst [vmem:[#allocation3 + $0x318] sm:$0xee] %v785
      %787 = vst [vmem:[#allocation4 + $0x40] sm:$0x3f] 0.0
      %788 = vst [vmem:[#allocation4 + $0x48] sm:$0x3f] 0.0
      %789 = vst [vmem:[#allocation4 + $0x50] sm:$0x3f] 0.0
      %790 = vst [vmem:[#allocation5 + $0x20] sm:$0x77] 0
      %791 = vst [vmem:[#allocation5 + $0x28] sm:$0x7] 0
      %792 = vst [vmem:[#allocation6 + $0x40] sm:$0xff] 0.0
      %793 = vst [vmem:[#allocation6 + $0x48] sm:$0xff] 0.0
      %794 = vst [vmem:[#allocation6 + $0x50] sm:$0xff] 0.0
      %795 = vst [vmem:[#allocation6 + $0x98] sm:$0xff] 0.0
      %796 = vst [vmem:[#allocation6 + $0xa0] sm:$0xff] 0.0
      %797 = vst [vmem:[#allocation6 + $0xa8] sm:$0xff] 0.0
      %v798 = vld [vmem:[#allocation2] sm:$0xff]
      %v799 = vld [vmem:[#allocation2 + $0x8] sm:$0xff]
      %v802 = vcombine.high %v798, %v798
      %v804 = vunpack.c.l.s4 1983009808
      %v805 = vunpack.c.0.s8 %v804
      %v806 = vlaneseq
      %v807 = vshrl.u32 %v806, 7
      %v808 = vsub.s32 %v805, %v807
      %v809 = vrot.slane %v798, %v808
      %v811 = vunpack.c.l.s4 1983009808
      %v812 = vunpack.c.0.s8 %v811
      %v813 = vlaneseq
      %v814 = vshrl.u32 %v813, 7
      %v815 = vsub.s32 %v812, %v814
      %v816 = vrot.slane %v802, %v815
      %v817 = vcombine.high %v799, %v799
      %v819 = vunpack.c.l.s4 1983009808
      %v820 = vunpack.c.0.s8 %v819
      %v821 = vlaneseq
      %v822 = vshrl.u32 %v821, 7
      %v823 = vsub.s32 %v820, %v822
      %v824 = vrot.slane %v799, %v823
      %v826 = vunpack.c.l.s4 1983009808
      %v827 = vunpack.c.0.s8 %v826
      %v828 = vlaneseq
      %v829 = vshrl.u32 %v828, 7
      %v830 = vsub.s32 %v827, %v829
      %v831 = vrot.slane %v817, %v830
      %vm836 = vmor %vm465, %vm458
      %v837 = vld [vmem:[#allocation3] sm:$0x33]
      %v838 = vsel %vm836, %v809, %v837
      %839 = vst [vmem:[#allocation3] sm:$0x33] %v838
      %v840 = vld [vmem:[#allocation3 + $0x8] sm:$0x33]
      %v841 = vsel %vm836, %v816, %v840
      %842 = vst [vmem:[#allocation3 + $0x8] sm:$0x33] %v841
      %v843 = vld [vmem:[#allocation3 + $0x10] sm:$0x33]
      %v844 = vsel %vm836, %v824, %v843
      %845 = vst [vmem:[#allocation3 + $0x10] sm:$0x33] %v844
      %v846 = vld [vmem:[#allocation3 + $0x18] sm:$0x33]
      %v847 = vsel %vm836, %v831, %v846
      %848 = vst [vmem:[#allocation3 + $0x18] sm:$0x33] %v847
      %v849 = vld [vmem:[#allocation2] sm:$0xff]
      %v850 = vld [vmem:[#allocation2 + $0x8] sm:$0xff]
      %v851 = vld [vmem:[#allocation2 + $0x10] sm:$0x3]
      %v855 = vcombine.high %v849, %v849
      %v857 = vunpack.c.l.s4 1983009808
      %v858 = vunpack.c.0.s8 %v857
      %v859 = vlaneseq
      %v860 = vshrl.u32 %v859, 7
      %v861 = vsub.s32 %v858, %v860
      %v862 = vrot.slane %v849, %v861
      %v864 = vunpack.c.l.s4 1983009808
      %v865 = vunpack.c.0.s8 %v864
      %v866 = vlaneseq
      %v867 = vshrl.u32 %v866, 7
      %v868 = vsub.s32 %v865, %v867
      %v869 = vrot.slane %v855, %v868
      %v870 = vcombine.high %v850, %v850
      %v872 = vunpack.c.l.s4 1983009808
      %v873 = vunpack.c.0.s8 %v872
      %v874 = vlaneseq
      %v875 = vshrl.u32 %v874, 7
      %v876 = vsub.s32 %v873, %v875
      %v877 = vrot.slane %v850, %v876
      %v879 = vunpack.c.l.s4 1983009808
      %v880 = vunpack.c.0.s8 %v879
      %v881 = vlaneseq
      %v882 = vshrl.u32 %v881, 7
      %v883 = vsub.s32 %v880, %v882
      %v884 = vrot.slane %v870, %v883
      %v886 = vunpack.c.l.s4 1983009808
      %v887 = vunpack.c.0.s8 %v886
      %v888 = vlaneseq
      %v889 = vshrl.u32 %v888, 7
      %v890 = vsub.s32 %v887, %v889
      %v891 = vrot.slane %v851, %v890
      %892 = vrot.lane.b32.xlu0 %v862, 127
      %v893 = vpop.permute.xlu0 %892
      %894 = vrot.lane.b32.xlu0 %v869, 127
      %v895 = vpop.permute.xlu0 %894
      %896 = vrot.lane.b32.xlu0 %v877, 127
      %v897 = vpop.permute.xlu0 %896
      %898 = vrot.lane.b32.xlu0 %v884, 127
      %v899 = vpop.permute.xlu0 %898
      %900 = vrot.lane.b32.xlu0 %v891, 127
      %v901 = vpop.permute.xlu0 %900
      %v902 = vrot.slane %v893, 4
      %v903 = vrot.slane %v895, 4
      %v904 = vrot.slane %v897, 4
      %v905 = vrot.slane %v899, 4
      %v906 = vrot.slane %v901, 4
      %vm907 = vcmask 1043456
      %v908 = vsel %vm907, %v902, %v903
      %vm909 = vcmask 1039360
      %v910 = vsel %vm909, %v893, %v908
      %v911 = vsel %vm907, %v903, %v904
      %v912 = vsel %vm909, %v895, %v911
      %v913 = vsel %vm907, %v904, %v905
      %v914 = vsel %vm909, %v897, %v913
      %v915 = vsel %vm907, %v905, %v906
      %v916 = vsel %vm909, %v899, %v915
      %v921 = vld [vmem:[#allocation3 + $0x20] sm:$0x33]
      %v922 = vsel %vm836, %v910, %v921
      %923 = vst [vmem:[#allocation3 + $0x20] sm:$0x33] %v922
      %v924 = vld [vmem:[#allocation3 + $0x28] sm:$0x33]
      %v925 = vsel %vm836, %v912, %v924
      %926 = vst [vmem:[#allocation3 + $0x28] sm:$0x33] %v925
      %v927 = vld [vmem:[#allocation3 + $0x30] sm:$0x33]
      %v928 = vsel %vm836, %v914, %v927
      %929 = vst [vmem:[#allocation3 + $0x30] sm:$0x33] %v928
      %v930 = vld [vmem:[#allocation3 + $0x38] sm:$0x33]
      %v931 = vsel %vm836, %v916, %v930
      %932 = vst [vmem:[#allocation3 + $0x38] sm:$0x33] %v931
      %v933 = vld [vmem:[#allocation2] sm:$0xff]
      %v934 = vld [vmem:[#allocation2 + $0x8] sm:$0xff]
      %v935 = vld [vmem:[#allocation2 + $0x10] sm:$0x3]
      %v939 = vcombine.high %v933, %v933
      %v941 = vunpack.c.l.s4 1983009808
      %v942 = vunpack.c.0.s8 %v941
      %v943 = vlaneseq
      %v944 = vshrl.u32 %v943, 7
      %v945 = vsub.s32 %v942, %v944
      %v946 = vrot.slane %v933, %v945
      %v948 = vunpack.c.l.s4 1983009808
      %v949 = vunpack.c.0.s8 %v948
      %v950 = vlaneseq
      %v951 = vshrl.u32 %v950, 7
      %v952 = vsub.s32 %v949, %v951
      %v953 = vrot.slane %v939, %v952
      %v954 = vcombine.high %v934, %v934
      %v956 = vunpack.c.l.s4 1983009808
      %v957 = vunpack.c.0.s8 %v956
      %v958 = vlaneseq
      %v959 = vshrl.u32 %v958, 7
      %v960 = vsub.s32 %v957, %v959
      %v961 = vrot.slane %v934, %v960
      %v963 = vunpack.c.l.s4 1983009808
      %v964 = vunpack.c.0.s8 %v963
      %v965 = vlaneseq
      %v966 = vshrl.u32 %v965, 7
      %v967 = vsub.s32 %v964, %v966
      %v968 = vrot.slane %v954, %v967
      %v970 = vunpack.c.l.s4 1983009808
      %v971 = vunpack.c.0.s8 %v970
      %v972 = vlaneseq
      %v973 = vshrl.u32 %v972, 7
      %v974 = vsub.s32 %v971, %v973
      %v975 = vrot.slane %v935, %v974
      %976 = vrot.lane.b32.xlu0 %v946, 126
      %v977 = vpop.permute.xlu0 %976
      %978 = vrot.lane.b32.xlu0 %v953, 126
      %v979 = vpop.permute.xlu0 %978
      %980 = vrot.lane.b32.xlu0 %v961, 126
      %v981 = vpop.permute.xlu0 %980
      %982 = vrot.lane.b32.xlu0 %v968, 126
      %v983 = vpop.permute.xlu0 %982
      %984 = vrot.lane.b32.xlu0 %v975, 126
      %v985 = vpop.permute.xlu0 %984
      %v986 = vrot.slane %v977, 4
      %v987 = vrot.slane %v979, 4
      %v988 = vrot.slane %v981, 4
      %v989 = vrot.slane %v983, 4
      %v990 = vrot.slane %v985, 4
      %v991 = vsel %vm907, %v986, %v987
      %vm992 = vcmask 1031168
      %v993 = vsel %vm992, %v977, %v991
      %v994 = vsel %vm907, %v987, %v988
      %v995 = vsel %vm992, %v979, %v994
      %v996 = vsel %vm907, %v988, %v989
      %v997 = vsel %vm992, %v981, %v996
      %v998 = vsel %vm907, %v989, %v990
      %v999 = vsel %vm992, %v983, %v998
      %v1004 = vld [vmem:[#allocation3 + $0x40] sm:$0x33]
      %v1005 = vsel %vm836, %v993, %v1004
      %1006 = vst [vmem:[#allocation3 + $0x40] sm:$0x33] %v1005
      %v1007 = vld [vmem:[#allocation3 + $0x48] sm:$0x33]
      %v1008 = vsel %vm836, %v995, %v1007
      %1009 = vst [vmem:[#allocation3 + $0x48] sm:$0x33] %v1008
      %v1010 = vld [vmem:[#allocation3 + $0x50] sm:$0x33]
      %v1011 = vsel %vm836, %v997, %v1010
      %1012 = vst [vmem:[#allocation3 + $0x50] sm:$0x33] %v1011
      %v1013 = vld [vmem:[#allocation3 + $0x58] sm:$0x33]
      %v1014 = vsel %vm836, %v999, %v1013
      %1015 = vst [vmem:[#allocation3 + $0x58] sm:$0x33] %v1014
      %v1016 = vld [vmem:[#allocation2] sm:$0xff]
      %v1017 = vld [vmem:[#allocation2 + $0x8] sm:$0xff]
      %v1018 = vld [vmem:[#allocation2 + $0x10] sm:$0x3]
      %v1022 = vcombine.high %v1016, %v1016
      %v1024 = vunpack.c.l.s4 1983009808
      %v1025 = vunpack.c.0.s8 %v1024
      %v1026 = vlaneseq
      %v1027 = vshrl.u32 %v1026, 7
      %v1028 = vsub.s32 %v1025, %v1027
      %v1029 = vrot.slane %v1016, %v1028
      %v1031 = vunpack.c.l.s4 1983009808
      %v1032 = vunpack.c.0.s8 %v1031
      %v1033 = vlaneseq
      %v1034 = vshrl.u32 %v1033, 7
      %v1035 = vsub.s32 %v1032, %v1034
      %v1036 = vrot.slane %v1022, %v1035
      %v1037 = vcombine.high %v1017, %v1017
      %v1039 = vunpack.c.l.s4 1983009808
      %v1040 = vunpack.c.0.s8 %v1039
      %v1041 = vlaneseq
      %v1042 = vshrl.u32 %v1041, 7
      %v1043 = vsub.s32 %v1040, %v1042
      %v1044 = vrot.slane %v1017, %v1043
      %v1046 = vunpack.c.l.s4 1983009808
      %v1047 = vunpack.c.0.s8 %v1046
      %v1048 = vlaneseq
      %v1049 = vshrl.u32 %v1048, 7
      %v1050 = vsub.s32 %v1047, %v1049
      %v1051 = vrot.slane %v1037, %v1050
      %v1053 = vunpack.c.l.s4 1983009808
      %v1054 = vunpack.c.0.s8 %v1053
      %v1055 = vlaneseq
      %v1056 = vshrl.u32 %v1055, 7
      %v1057 = vsub.s32 %v1054, %v1056
      %v1058 = vrot.slane %v1018, %v1057
      %1059 = vrot.lane.b32.xlu0 %v1029, 125
      %v1060 = vpop.permute.xlu0 %1059
      %1061 = vrot.lane.b32.xlu0 %v1036, 125
      %v1062 = vpop.permute.xlu0 %1061
      %1063 = vrot.lane.b32.xlu0 %v1044, 125
      %v1064 = vpop.permute.xlu0 %1063
      %1065 = vrot.lane.b32.xlu0 %v1051, 125
      %v1066 = vpop.permute.xlu0 %1065
      %1067 = vrot.lane.b32.xlu0 %v1058, 125
      %v1068 = vpop.permute.xlu0 %1067
      %v1069 = vrot.slane %v1060, 4
      %v1070 = vrot.slane %v1062, 4
      %v1071 = vrot.slane %v1064, 4
      %v1072 = vrot.slane %v1066, 4
      %v1073 = vrot.slane %v1068, 4
      %v1074 = vsel %vm907, %v1069, %v1070
      %vm1075 = vcmask 1022976
      %v1076 = vsel %vm1075, %v1060, %v1074
      %v1077 = vsel %vm907, %v1070, %v1071
      %v1078 = vsel %vm1075, %v1062, %v1077
      %v1079 = vsel %vm907, %v1071, %v1072
      %v1080 = vsel %vm1075, %v1064, %v1079
      %v1081 = vsel %vm907, %v1072, %v1073
      %v1082 = vsel %vm1075, %v1066, %v1081
      %v1087 = vld [vmem:[#allocation3 + $0x60] sm:$0x33]
      %v1088 = vsel %vm836, %v1076, %v1087
      %1089 = vst [vmem:[#allocation3 + $0x60] sm:$0x33] %v1088
      %v1090 = vld [vmem:[#allocation3 + $0x68] sm:$0x33]
      %v1091 = vsel %vm836, %v1078, %v1090
      %1092 = vst [vmem:[#allocation3 + $0x68] sm:$0x33] %v1091
      %v1093 = vld [vmem:[#allocation3 + $0x70] sm:$0x33]
      %v1094 = vsel %vm836, %v1080, %v1093
      %1095 = vst [vmem:[#allocation3 + $0x70] sm:$0x33] %v1094
      %v1096 = vld [vmem:[#allocation3 + $0x78] sm:$0x33]
      %v1097 = vsel %vm836, %v1082, %v1096
      %1098 = vst [vmem:[#allocation3 + $0x78] sm:$0x33] %v1097
      %v1099 = vld [vmem:[#allocation2] sm:$0xff]
      %v1100 = vld [vmem:[#allocation2 + $0x8] sm:$0xff]
      %v1101 = vld [vmem:[#allocation2 + $0x10] sm:$0x3]
      %v1105 = vcombine.high %v1099, %v1099
      %v1107 = vunpack.c.l.s4 1983009808
      %v1108 = vunpack.c.0.s8 %v1107
      %v1109 = vlaneseq
      %v1110 = vshrl.u32 %v1109, 7
      %v1111 = vsub.s32 %v1108, %v1110
      %v1112 = vrot.slane %v1099, %v1111
      %v1114 = vunpack.c.l.s4 1983009808
      %v1115 = vunpack.c.0.s8 %v1114
      %v1116 = vlaneseq
      %v1117 = vshrl.u32 %v1116, 7
      %v1118 = vsub.s32 %v1115, %v1117
      %v1119 = vrot.slane %v1105, %v1118
      %v1120 = vcombine.high %v1100, %v1100
      %v1122 = vunpack.c.l.s4 1983009808
      %v1123 = vunpack.c.0.s8 %v1122
      %v1124 = vlaneseq
      %v1125 = vshrl.u32 %v1124, 7
      %v1126 = vsub.s32 %v1123, %v1125
      %v1127 = vrot.slane %v1100, %v1126
      %v1129 = vunpack.c.l.s4 1983009808
      %v1130 = vunpack.c.0.s8 %v1129
      %v1131 = vlaneseq
      %v1132 = vshrl.u32 %v1131, 7
      %v1133 = vsub.s32 %v1130, %v1132
      %v1134 = vrot.slane %v1120, %v1133
      %v1136 = vunpack.c.l.s4 1983009808
      %v1137 = vunpack.c.0.s8 %v1136
      %v1138 = vlaneseq
      %v1139 = vshrl.u32 %v1138, 7
      %v1140 = vsub.s32 %v1137, %v1139
      %v1141 = vrot.slane %v1101, %v1140
      %1142 = vrot.lane.b32.xlu0 %v1112, 124
      %v1143 = vpop.permute.xlu0 %1142
      %1144 = vrot.lane.b32.xlu0 %v1119, 124
      %v1145 = vpop.permute.xlu0 %1144
      %1146 = vrot.lane.b32.xlu0 %v1127, 124
      %v1147 = vpop.permute.xlu0 %1146
      %1148 = vrot.lane.b32.xlu0 %v1134, 124
      %v1149 = vpop.permute.xlu0 %1148
      %1150 = vrot.lane.b32.xlu0 %v1141, 124
      %v1151 = vpop.permute.xlu0 %1150
      %v1152 = vrot.slane %v1143, 4
      %v1153 = vrot.slane %v1145, 4
      %v1154 = vrot.slane %v1147, 4
      %v1155 = vrot.slane %v1149, 4
      %v1156 = vrot.slane %v1151, 4
      %v1157 = vsel %vm907, %v1152, %v1153
      %vm1158 = vcmask 1014784
      %v1159 = vsel %vm1158, %v1143, %v1157
      %v1160 = vsel %vm907, %v1153, %v1154
      %v1161 = vsel %vm1158, %v1145, %v1160
      %v1162 = vsel %vm907, %v1154, %v1155
      %v1163 = vsel %vm1158, %v1147, %v1162
      %v1164 = vsel %vm907, %v1155, %v1156
      %v1165 = vsel %vm1158, %v1149, %v1164
      %v1170 = vld [vmem:[#allocation3 + $0x80] sm:$0x33]
      %v1171 = vsel %vm836, %v1159, %v1170
      %1172 = vst [vmem:[#allocation3 + $0x80] sm:$0x33] %v1171
      %v1173 = vld [vmem:[#allocation3 + $0x88] sm:$0x33]
      %v1174 = vsel %vm836, %v1161, %v1173
      %1175 = vst [vmem:[#allocation3 + $0x88] sm:$0x33] %v1174
      %v1176 = vld [vmem:[#allocation3 + $0x90] sm:$0x33]
      %v1177 = vsel %vm836, %v1163, %v1176
      %1178 = vst [vmem:[#allocation3 + $0x90] sm:$0x33] %v1177
      %v1179 = vld [vmem:[#allocation3 + $0x98] sm:$0x33]
      %v1180 = vsel %vm836, %v1165, %v1179
      %1181 = vst [vmem:[#allocation3 + $0x98] sm:$0x33] %v1180
      %v1182 = vld [vmem:[#allocation2] sm:$0xff]
      %v1183 = vld [vmem:[#allocation2 + $0x8] sm:$0xff]
      %v1184 = vld [vmem:[#allocation2 + $0x10] sm:$0x3]
      %v1188 = vcombine.high %v1182, %v1182
      %v1190 = vunpack.c.l.s4 1983009808
      %v1191 = vunpack.c.0.s8 %v1190
      %v1192 = vlaneseq
      %v1193 = vshrl.u32 %v1192, 7
      %v1194 = vsub.s32 %v1191, %v1193
      %v1195 = vrot.slane %v1182, %v1194
      %v1197 = vunpack.c.l.s4 1983009808
      %v1198 = vunpack.c.0.s8 %v1197
      %v1199 = vlaneseq
      %v1200 = vshrl.u32 %v1199, 7
      %v1201 = vsub.s32 %v1198, %v1200
      %v1202 = vrot.slane %v1188, %v1201
      %v1203 = vcombine.high %v1183, %v1183
      %v1205 = vunpack.c.l.s4 1983009808
      %v1206 = vunpack.c.0.s8 %v1205
      %v1207 = vlaneseq
      %v1208 = vshrl.u32 %v1207, 7
      %v1209 = vsub.s32 %v1206, %v1208
      %v1210 = vrot.slane %v1183, %v1209
      %v1212 = vunpack.c.l.s4 1983009808
      %v1213 = vunpack.c.0.s8 %v1212
      %v1214 = vlaneseq
      %v1215 = vshrl.u32 %v1214, 7
      %v1216 = vsub.s32 %v1213, %v1215
      %v1217 = vrot.slane %v1203, %v1216
      %v1219 = vunpack.c.l.s4 1983009808
      %v1220 = vunpack.c.0.s8 %v1219
      %v1221 = vlaneseq
      %v1222 = vshrl.u32 %v1221, 7
      %v1223 = vsub.s32 %v1220, %v1222
      %v1224 = vrot.slane %v1184, %v1223
      %1225 = vrot.lane.b32.xlu0 %v1195, 96
      %v1226 = vpop.permute.xlu0 %1225
      %1227 = vrot.lane.b32.xlu0 %v1202, 96
      %v1228 = vpop.permute.xlu0 %1227
      %1229 = vrot.lane.b32.xlu0 %v1210, 96
      %v1230 = vpop.permute.xlu0 %1229
      %1231 = vrot.lane.b32.xlu0 %v1217, 96
      %v1232 = vpop.permute.xlu0 %1231
      %1233 = vrot.lane.b32.xlu0 %v1224, 96
      %v1234 = vpop.permute.xlu0 %1233
      %v1235 = vrot.slane %v1226, 4
      %v1236 = vrot.slane %v1228, 4
      %v1237 = vrot.slane %v1230, 4
      %v1238 = vrot.slane %v1232, 4
      %v1239 = vrot.slane %v1234, 4
      %v1240 = vsel %vm907, %v1235, %v1236
      %vm1241 = vcmask 785408
      %v1242 = vsel %vm1241, %v1226, %v1240
      %v1243 = vsel %vm907, %v1236, %v1237
      %v1244 = vsel %vm1241, %v1228, %v1243
      %v1245 = vsel %vm907, %v1237, %v1238
      %v1246 = vsel %vm1241, %v1230, %v1245
      %v1247 = vsel %vm907, %v1238, %v1239
      %v1248 = vsel %vm1241, %v1232, %v1247
      %v1253 = vld [vmem:[#allocation3 + $0xa0] sm:$0x33]
      %v1254 = vsel %vm836, %v1242, %v1253
      %1255 = vst [vmem:[#allocation3 + $0xa0] sm:$0x33] %v1254
      %v1256 = vld [vmem:[#allocation3 + $0xa8] sm:$0x33]
      %v1257 = vsel %vm836, %v1244, %v1256
      %1258 = vst [vmem:[#allocation3 + $0xa8] sm:$0x33] %v1257
      %v1259 = vld [vmem:[#allocation3 + $0xb0] sm:$0x33]
      %v1260 = vsel %vm836, %v1246, %v1259
      %1261 = vst [vmem:[#allocation3 + $0xb0] sm:$0x33] %v1260
      %v1262 = vld [vmem:[#allocation3 + $0xb8] sm:$0x33]
      %v1263 = vsel %vm836, %v1248, %v1262
      %1264 = vst [vmem:[#allocation3 + $0xb8] sm:$0x33] %v1263
      %v1265 = vld [vmem:[#allocation2] sm:$0xff]
      %v1266 = vld [vmem:[#allocation2 + $0x8] sm:$0xff]
      %v1267 = vld [vmem:[#allocation2 + $0x10] sm:$0x3]
      %v1271 = vcombine.high %v1265, %v1265
      %v1273 = vunpack.c.l.s4 1983009808
      %v1274 = vunpack.c.0.s8 %v1273
      %v1275 = vlaneseq
      %v1276 = vshrl.u32 %v1275, 7
      %v1277 = vsub.s32 %v1274, %v1276
      %v1278 = vrot.slane %v1265, %v1277
      %v1280 = vunpack.c.l.s4 1983009808
      %v1281 = vunpack.c.0.s8 %v1280
      %v1282 = vlaneseq
      %v1283 = vshrl.u32 %v1282, 7
      %v1284 = vsub.s32 %v1281, %v1283
      %v1285 = vrot.slane %v1271, %v1284
      %v1286 = vcombine.high %v1266, %v1266
      %v1288 = vunpack.c.l.s4 1983009808
      %v1289 = vunpack.c.0.s8 %v1288
      %v1290 = vlaneseq
      %v1291 = vshrl.u32 %v1290, 7
      %v1292 = vsub.s32 %v1289, %v1291
      %v1293 = vrot.slane %v1266, %v1292
      %v1295 = vunpack.c.l.s4 1983009808
      %v1296 = vunpack.c.0.s8 %v1295
      %v1297 = vlaneseq
      %v1298 = vshrl.u32 %v1297, 7
      %v1299 = vsub.s32 %v1296, %v1298
      %v1300 = vrot.slane %v1286, %v1299
      %v1302 = vunpack.c.l.s4 1983009808
      %v1303 = vunpack.c.0.s8 %v1302
      %v1304 = vlaneseq
      %v1305 = vshrl.u32 %v1304, 7
      %v1306 = vsub.s32 %v1303, %v1305
      %v1307 = vrot.slane %v1267, %v1306
      %1308 = vrot.lane.b32.xlu0 %v1278, 95
      %v1309 = vpop.permute.xlu0 %1308
      %1310 = vrot.lane.b32.xlu0 %v1285, 95
      %v1311 = vpop.permute.xlu0 %1310
      %1312 = vrot.lane.b32.xlu0 %v1293, 95
      %v1313 = vpop.permute.xlu0 %1312
      %1314 = vrot.lane.b32.xlu0 %v1300, 95
      %v1315 = vpop.permute.xlu0 %1314
      %1316 = vrot.lane.b32.xlu0 %v1307, 95
      %v1317 = vpop.permute.xlu0 %1316
      %v1318 = vrot.slane %v1309, 4
      %v1319 = vrot.slane %v1311, 4
      %v1320 = vrot.slane %v1313, 4
      %v1321 = vrot.slane %v1315, 4
      %v1322 = vrot.slane %v1317, 4
      %v1323 = vsel %vm907, %v1318, %v1319
      %vm1324 = vcmask 777216
      %v1325 = vsel %vm1324, %v1309, %v1323
      %v1326 = vsel %vm907, %v1319, %v1320
      %v1327 = vsel %vm1324, %v1311, %v1326
      %v1328 = vsel %vm907, %v1320, %v1321
      %v1329 = vsel %vm1324, %v1313, %v1328
      %v1330 = vsel %vm907, %v1321, %v1322
      %v1331 = vsel %vm1324, %v1315, %v1330
      %v1336 = vld [vmem:[#allocation3 + $0xc0] sm:$0x33]
      %v1337 = vsel %vm836, %v1325, %v1336
      %1338 = vst [vmem:[#allocation3 + $0xc0] sm:$0x33] %v1337
      %v1339 = vld [vmem:[#allocation3 + $0xc8] sm:$0x33]
      %v1340 = vsel %vm836, %v1327, %v1339
      %1341 = vst [vmem:[#allocation3 + $0xc8] sm:$0x33] %v1340
      %v1342 = vld [vmem:[#allocation3 + $0xd0] sm:$0x33]
      %v1343 = vsel %vm836, %v1329, %v1342
      %1344 = vst [vmem:[#allocation3 + $0xd0] sm:$0x33] %v1343
      %v1345 = vld [vmem:[#allocation3 + $0xd8] sm:$0x33]
      %v1346 = vsel %vm836, %v1331, %v1345
      %1347 = vst [vmem:[#allocation3 + $0xd8] sm:$0x33] %v1346
      %v1348 = vld [vmem:[#allocation2] sm:$0xff]
      %v1349 = vld [vmem:[#allocation2 + $0x8] sm:$0xff]
      %v1350 = vld [vmem:[#allocation2 + $0x10] sm:$0x3]
      %v1354 = vcombine.high %v1348, %v1348
      %v1356 = vunpack.c.l.s4 1983009808
      %v1357 = vunpack.c.0.s8 %v1356
      %v1358 = vlaneseq
      %v1359 = vshrl.u32 %v1358, 7
      %v1360 = vsub.s32 %v1357, %v1359
      %v1361 = vrot.slane %v1348, %v1360
      %v1363 = vunpack.c.l.s4 1983009808
      %v1364 = vunpack.c.0.s8 %v1363
      %v1365 = vlaneseq
      %v1366 = vshrl.u32 %v1365, 7
      %v1367 = vsub.s32 %v1364, %v1366
      %v1368 = vrot.slane %v1354, %v1367
      %v1369 = vcombine.high %v1349, %v1349
      %v1371 = vunpack.c.l.s4 1983009808
      %v1372 = vunpack.c.0.s8 %v1371
      %v1373 = vlaneseq
      %v1374 = vshrl.u32 %v1373, 7
      %v1375 = vsub.s32 %v1372, %v1374
      %v1376 = vrot.slane %v1349, %v1375
      %v1378 = vunpack.c.l.s4 1983009808
      %v1379 = vunpack.c.0.s8 %v1378
      %v1380 = vlaneseq
      %v1381 = vshrl.u32 %v1380, 7
      %v1382 = vsub.s32 %v1379, %v1381
      %v1383 = vrot.slane %v1369, %v1382
      %v1385 = vunpack.c.l.s4 1983009808
      %v1386 = vunpack.c.0.s8 %v1385
      %v1387 = vlaneseq
      %v1388 = vshrl.u32 %v1387, 7
      %v1389 = vsub.s32 %v1386, %v1388
      %v1390 = vrot.slane %v1350, %v1389
      %1391 = vrot.lane.b32.xlu0 %v1361, 94
      %v1392 = vpop.permute.xlu0 %1391
      %1393 = vrot.lane.b32.xlu0 %v1368, 94
      %v1394 = vpop.permute.xlu0 %1393
      %1395 = vrot.lane.b32.xlu0 %v1376, 94
      %v1396 = vpop.permute.xlu0 %1395
      %1397 = vrot.lane.b32.xlu0 %v1383, 94
      %v1398 = vpop.permute.xlu0 %1397
      %1399 = vrot.lane.b32.xlu0 %v1390, 94
      %v1400 = vpop.permute.xlu0 %1399
      %v1401 = vrot.slane %v1392, 4
      %v1402 = vrot.slane %v1394, 4
      %v1403 = vrot.slane %v1396, 4
      %v1404 = vrot.slane %v1398, 4
      %v1405 = vrot.slane %v1400, 4
      %v1406 = vsel %vm907, %v1401, %v1402
      %vm1407 = vcmask 769024
      %v1408 = vsel %vm1407, %v1392, %v1406
      %v1409 = vsel %vm907, %v1402, %v1403
      %v1410 = vsel %vm1407, %v1394, %v1409
      %v1411 = vsel %vm907, %v1403, %v1404
      %v1412 = vsel %vm1407, %v1396, %v1411
      %v1413 = vsel %vm907, %v1404, %v1405
      %v1414 = vsel %vm1407, %v1398, %v1413
      %v1419 = vld [vmem:[#allocation3 + $0xe0] sm:$0x33]
      %v1420 = vsel %vm836, %v1408, %v1419
      %1421 = vst [vmem:[#allocation3 + $0xe0] sm:$0x33] %v1420
      %v1422 = vld [vmem:[#allocation3 + $0xe8] sm:$0x33]
      %v1423 = vsel %vm836, %v1410, %v1422
      %1424 = vst [vmem:[#allocation3 + $0xe8] sm:$0x33] %v1423
      %v1425 = vld [vmem:[#allocation3 + $0xf0] sm:$0x33]
      %v1426 = vsel %vm836, %v1412, %v1425
      %1427 = vst [vmem:[#allocation3 + $0xf0] sm:$0x33] %v1426
      %v1428 = vld [vmem:[#allocation3 + $0xf8] sm:$0x33]
      %v1429 = vsel %vm836, %v1414, %v1428
      %1430 = vst [vmem:[#allocation3 + $0xf8] sm:$0x33] %v1429
      %v1431 = vld [vmem:[#allocation2] sm:$0xff]
      %v1432 = vld [vmem:[#allocation2 + $0x8] sm:$0xff]
      %v1433 = vld [vmem:[#allocation2 + $0x10] sm:$0x3]
      %v1437 = vcombine.high %v1431, %v1431
      %v1439 = vunpack.c.l.s4 1983009808
      %v1440 = vunpack.c.0.s8 %v1439
      %v1441 = vlaneseq
      %v1442 = vshrl.u32 %v1441, 7
      %v1443 = vsub.s32 %v1440, %v1442
      %v1444 = vrot.slane %v1431, %v1443
      %v1446 = vunpack.c.l.s4 1983009808
      %v1447 = vunpack.c.0.s8 %v1446
      %v1448 = vlaneseq
      %v1449 = vshrl.u32 %v1448, 7
      %v1450 = vsub.s32 %v1447, %v1449
      %v1451 = vrot.slane %v1437, %v1450
      %v1452 = vcombine.high %v1432, %v1432
      %v1454 = vunpack.c.l.s4 1983009808
      %v1455 = vunpack.c.0.s8 %v1454
      %v1456 = vlaneseq
      %v1457 = vshrl.u32 %v1456, 7
      %v1458 = vsub.s32 %v1455, %v1457
      %v1459 = vrot.slane %v1432, %v1458
      %v1461 = vunpack.c.l.s4 1983009808
      %v1462 = vunpack.c.0.s8 %v1461
      %v1463 = vlaneseq
      %v1464 = vshrl.u32 %v1463, 7
      %v1465 = vsub.s32 %v1462, %v1464
      %v1466 = vrot.slane %v1452, %v1465
      %v1468 = vunpack.c.l.s4 1983009808
      %v1469 = vunpack.c.0.s8 %v1468
      %v1470 = vlaneseq
      %v1471 = vshrl.u32 %v1470, 7
      %v1472 = vsub.s32 %v1469, %v1471
      %v1473 = vrot.slane %v1433, %v1472
      %1474 = vrot.lane.b32.xlu0 %v1444, 93
      %v1475 = vpop.permute.xlu0 %1474
      %1476 = vrot.lane.b32.xlu0 %v1451, 93
      %v1477 = vpop.permute.xlu0 %1476
      %1478 = vrot.lane.b32.xlu0 %v1459, 93
      %v1479 = vpop.permute.xlu0 %1478
      %1480 = vrot.lane.b32.xlu0 %v1466, 93
      %v1481 = vpop.permute.xlu0 %1480
      %1482 = vrot.lane.b32.xlu0 %v1473, 93
      %v1483 = vpop.permute.xlu0 %1482
      %v1484 = vrot.slane %v1475, 4
      %v1485 = vrot.slane %v1477, 4
      %v1486 = vrot.slane %v1479, 4
      %v1487 = vrot.slane %v1481, 4
      %v1488 = vrot.slane %v1483, 4
      %v1489 = vsel %vm907, %v1484, %v1485
      %vm1490 = vcmask 760832
      %v1491 = vsel %vm1490, %v1475, %v1489
      %v1492 = vsel %vm907, %v1485, %v1486
      %v1493 = vsel %vm1490, %v1477, %v1492
      %v1494 = vsel %vm907, %v1486, %v1487
      %v1495 = vsel %vm1490, %v1479, %v1494
      %v1496 = vsel %vm907, %v1487, %v1488
      %v1497 = vsel %vm1490, %v1481, %v1496
      %v1502 = vld [vmem:[#allocation3 + $0x100] sm:$0x33]
      %v1503 = vsel %vm836, %v1491, %v1502
      %1504 = vst [vmem:[#allocation3 + $0x100] sm:$0x33] %v1503
      %v1505 = vld [vmem:[#allocation3 + $0x108] sm:$0x33]
      %v1506 = vsel %vm836, %v1493, %v1505
      %1507 = vst [vmem:[#allocation3 + $0x108] sm:$0x33] %v1506
      %v1508 = vld [vmem:[#allocation3 + $0x110] sm:$0x33]
      %v1509 = vsel %vm836, %v1495, %v1508
      %1510 = vst [vmem:[#allocation3 + $0x110] sm:$0x33] %v1509
      %v1511 = vld [vmem:[#allocation3 + $0x118] sm:$0x33]
      %v1512 = vsel %vm836, %v1497, %v1511
      %1513 = vst [vmem:[#allocation3 + $0x118] sm:$0x33] %v1512
      %v1514 = vld [vmem:[#allocation2] sm:$0xff]
      %v1515 = vld [vmem:[#allocation2 + $0x8] sm:$0xff]
      %v1516 = vld [vmem:[#allocation2 + $0x10] sm:$0x3]
      %v1520 = vcombine.high %v1514, %v1514
      %v1522 = vunpack.c.l.s4 1983009808
      %v1523 = vunpack.c.0.s8 %v1522
      %v1524 = vlaneseq
      %v1525 = vshrl.u32 %v1524, 7
      %v1526 = vsub.s32 %v1523, %v1525
      %v1527 = vrot.slane %v1514, %v1526
      %v1529 = vunpack.c.l.s4 1983009808
      %v1530 = vunpack.c.0.s8 %v1529
      %v1531 = vlaneseq
      %v1532 = vshrl.u32 %v1531, 7
      %v1533 = vsub.s32 %v1530, %v1532
      %v1534 = vrot.slane %v1520, %v1533
      %v1535 = vcombine.high %v1515, %v1515
      %v1537 = vunpack.c.l.s4 1983009808
      %v1538 = vunpack.c.0.s8 %v1537
      %v1539 = vlaneseq
      %v1540 = vshrl.u32 %v1539, 7
      %v1541 = vsub.s32 %v1538, %v1540
      %v1542 = vrot.slane %v1515, %v1541
      %v1544 = vunpack.c.l.s4 1983009808
      %v1545 = vunpack.c.0.s8 %v1544
      %v1546 = vlaneseq
      %v1547 = vshrl.u32 %v1546, 7
      %v1548 = vsub.s32 %v1545, %v1547
      %v1549 = vrot.slane %v1535, %v1548
      %v1551 = vunpack.c.l.s4 1983009808
      %v1552 = vunpack.c.0.s8 %v1551
      %v1553 = vlaneseq
      %v1554 = vshrl.u32 %v1553, 7
      %v1555 = vsub.s32 %v1552, %v1554
      %v1556 = vrot.slane %v1516, %v1555
      %1557 = vrot.lane.b32.xlu0 %v1527, 92
      %v1558 = vpop.permute.xlu0 %1557
      %1559 = vrot.lane.b32.xlu0 %v1534, 92
      %v1560 = vpop.permute.xlu0 %1559
      %1561 = vrot.lane.b32.xlu0 %v1542, 92
      %v1562 = vpop.permute.xlu0 %1561
      %1563 = vrot.lane.b32.xlu0 %v1549, 92
      %v1564 = vpop.permute.xlu0 %1563
      %1565 = vrot.lane.b32.xlu0 %v1556, 92
      %v1566 = vpop.permute.xlu0 %1565
      %v1567 = vrot.slane %v1558, 4
      %v1568 = vrot.slane %v1560, 4
      %v1569 = vrot.slane %v1562, 4
      %v1570 = vrot.slane %v1564, 4
      %v1571 = vrot.slane %v1566, 4
      %v1572 = vsel %vm907, %v1567, %v1568
      %vm1573 = vcmask 752640
      %v1574 = vsel %vm1573, %v1558, %v1572
      %v1575 = vsel %vm907, %v1568, %v1569
      %v1576 = vsel %vm1573, %v1560, %v1575
      %v1577 = vsel %vm907, %v1569, %v1570
      %v1578 = vsel %vm1573, %v1562, %v1577
      %v1579 = vsel %vm907, %v1570, %v1571
      %v1580 = vsel %vm1573, %v1564, %v1579
      %v1585 = vld [vmem:[#allocation3 + $0x120] sm:$0x33]
      %v1586 = vsel %vm836, %v1574, %v1585
      %1587 = vst [vmem:[#allocation3 + $0x120] sm:$0x33] %v1586
      %v1588 = vld [vmem:[#allocation3 + $0x128] sm:$0x33]
      %v1589 = vsel %vm836, %v1576, %v1588
      %1590 = vst [vmem:[#allocation3 + $0x128] sm:$0x33] %v1589
      %v1591 = vld [vmem:[#allocation3 + $0x130] sm:$0x33]
      %v1592 = vsel %vm836, %v1578, %v1591
      %1593 = vst [vmem:[#allocation3 + $0x130] sm:$0x33] %v1592
      %v1594 = vld [vmem:[#allocation3 + $0x138] sm:$0x33]
      %v1595 = vsel %vm836, %v1580, %v1594
      %1596 = vst [vmem:[#allocation3 + $0x138] sm:$0x33] %v1595
      %v1597 = vld [vmem:[#allocation2] sm:$0xff]
      %v1598 = vld [vmem:[#allocation2 + $0x8] sm:$0xff]
      %v1599 = vld [vmem:[#allocation2 + $0x10] sm:$0x3]
      %v1603 = vcombine.high %v1597, %v1597
      %v1605 = vunpack.c.l.s4 1983009808
      %v1606 = vunpack.c.0.s8 %v1605
      %v1607 = vlaneseq
      %v1608 = vshrl.u32 %v1607, 7
      %v1609 = vsub.s32 %v1606, %v1608
      %v1610 = vrot.slane %v1597, %v1609
      %v1612 = vunpack.c.l.s4 1983009808
      %v1613 = vunpack.c.0.s8 %v1612
      %v1614 = vlaneseq
      %v1615 = vshrl.u32 %v1614, 7
      %v1616 = vsub.s32 %v1613, %v1615
      %v1617 = vrot.slane %v1603, %v1616
      %v1618 = vcombine.high %v1598, %v1598
      %v1620 = vunpack.c.l.s4 1983009808
      %v1621 = vunpack.c.0.s8 %v1620
      %v1622 = vlaneseq
      %v1623 = vshrl.u32 %v1622, 7
      %v1624 = vsub.s32 %v1621, %v1623
      %v1625 = vrot.slane %v1598, %v1624
      %v1627 = vunpack.c.l.s4 1983009808
      %v1628 = vunpack.c.0.s8 %v1627
      %v1629 = vlaneseq
      %v1630 = vshrl.u32 %v1629, 7
      %v1631 = vsub.s32 %v1628, %v1630
      %v1632 = vrot.slane %v1618, %v1631
      %v1634 = vunpack.c.l.s4 1983009808
      %v1635 = vunpack.c.0.s8 %v1634
      %v1636 = vlaneseq
      %v1637 = vshrl.u32 %v1636, 7
      %v1638 = vsub.s32 %v1635, %v1637
      %v1639 = vrot.slane %v1599, %v1638
      %1640 = vrot.lane.b32.xlu0 %v1610, 64
      %v1641 = vpop.permute.xlu0 %1640
      %1642 = vrot.lane.b32.xlu0 %v1617, 64
      %v1643 = vpop.permute.xlu0 %1642
      %1644 = vrot.lane.b32.xlu0 %v1625, 64
      %v1645 = vpop.permute.xlu0 %1644
      %1646 = vrot.lane.b32.xlu0 %v1632, 64
      %v1647 = vpop.permute.xlu0 %1646
      %1648 = vrot.lane.b32.xlu0 %v1639, 64
      %v1649 = vpop.permute.xlu0 %1648
      %v1650 = vrot.slane %v1641, 4
      %v1651 = vrot.slane %v1643, 4
      %v1652 = vrot.slane %v1645, 4
      %v1653 = vrot.slane %v1647, 4
      %v1654 = vrot.slane %v1649, 4
      %v1655 = vsel %vm907, %v1650, %v1651
      %vm1656 = vcmask 523264
      %v1657 = vsel %vm1656, %v1641, %v1655
      %v1658 = vsel %vm907, %v1651, %v1652
      %v1659 = vsel %vm1656, %v1643, %v1658
      %v1660 = vsel %vm907, %v1652, %v1653
      %v1661 = vsel %vm1656, %v1645, %v1660
      %v1662 = vsel %vm907, %v1653, %v1654
      %v1663 = vsel %vm1656, %v1647, %v1662
      %v1668 = vld [vmem:[#allocation3 + $0x140] sm:$0x33]
      %v1669 = vsel %vm836, %v1657, %v1668
      %1670 = vst [vmem:[#allocation3 + $0x140] sm:$0x33] %v1669
      %v1671 = vld [vmem:[#allocation3 + $0x148] sm:$0x33]
      %v1672 = vsel %vm836, %v1659, %v1671
      %1673 = vst [vmem:[#allocation3 + $0x148] sm:$0x33] %v1672
      %v1674 = vld [vmem:[#allocation3 + $0x150] sm:$0x33]
      %v1675 = vsel %vm836, %v1661, %v1674
      %1676 = vst [vmem:[#allocation3 + $0x150] sm:$0x33] %v1675
      %v1677 = vld [vmem:[#allocation3 + $0x158] sm:$0x33]
      %v1678 = vsel %vm836, %v1663, %v1677
      %1679 = vst [vmem:[#allocation3 + $0x158] sm:$0x33] %v1678
      %v1680 = vld [vmem:[#allocation2] sm:$0xff]
      %v1681 = vld [vmem:[#allocation2 + $0x8] sm:$0xff]
      %v1682 = vld [vmem:[#allocation2 + $0x10] sm:$0x3]
      %v1686 = vcombine.high %v1680, %v1680
      %v1688 = vunpack.c.l.s4 1983009808
      %v1689 = vunpack.c.0.s8 %v1688
      %v1690 = vlaneseq
      %v1691 = vshrl.u32 %v1690, 7
      %v1692 = vsub.s32 %v1689, %v1691
      %v1693 = vrot.slane %v1680, %v1692
      %v1695 = vunpack.c.l.s4 1983009808
      %v1696 = vunpack.c.0.s8 %v1695
      %v1697 = vlaneseq
      %v1698 = vshrl.u32 %v1697, 7
      %v1699 = vsub.s32 %v1696, %v1698
      %v1700 = vrot.slane %v1686, %v1699
      %v1701 = vcombine.high %v1681, %v1681
      %v1703 = vunpack.c.l.s4 1983009808
      %v1704 = vunpack.c.0.s8 %v1703
      %v1705 = vlaneseq
      %v1706 = vshrl.u32 %v1705, 7
      %v1707 = vsub.s32 %v1704, %v1706
      %v1708 = vrot.slane %v1681, %v1707
      %v1710 = vunpack.c.l.s4 1983009808
      %v1711 = vunpack.c.0.s8 %v1710
      %v1712 = vlaneseq
      %v1713 = vshrl.u32 %v1712, 7
      %v1714 = vsub.s32 %v1711, %v1713
      %v1715 = vrot.slane %v1701, %v1714
      %v1717 = vunpack.c.l.s4 1983009808
      %v1718 = vunpack.c.0.s8 %v1717
      %v1719 = vlaneseq
      %v1720 = vshrl.u32 %v1719, 7
      %v1721 = vsub.s32 %v1718, %v1720
      %v1722 = vrot.slane %v1682, %v1721
      %1723 = vrot.lane.b32.xlu0 %v1693, 63
      %v1724 = vpop.permute.xlu0 %1723
      %1725 = vrot.lane.b32.xlu0 %v1700, 63
      %v1726 = vpop.permute.xlu0 %1725
      %1727 = vrot.lane.b32.xlu0 %v1708, 63
      %v1728 = vpop.permute.xlu0 %1727
      %1729 = vrot.lane.b32.xlu0 %v1715, 63
      %v1730 = vpop.permute.xlu0 %1729
      %1731 = vrot.lane.b32.xlu0 %v1722, 63
      %v1732 = vpop.permute.xlu0 %1731
      %v1733 = vrot.slane %v1724, 4
      %v1734 = vrot.slane %v1726, 4
      %v1735 = vrot.slane %v1728, 4
      %v1736 = vrot.slane %v1730, 4
      %v1737 = vrot.slane %v1732, 4
      %v1738 = vsel %vm907, %v1733, %v1734
      %vm1739 = vcmask 515072
      %v1740 = vsel %vm1739, %v1724, %v1738
      %v1741 = vsel %vm907, %v1734, %v1735
      %v1742 = vsel %vm1739, %v1726, %v1741
      %v1743 = vsel %vm907, %v1735, %v1736
      %v1744 = vsel %vm1739, %v1728, %v1743
      %v1745 = vsel %vm907, %v1736, %v1737
      %v1746 = vsel %vm1739, %v1730, %v1745
      %v1751 = vld [vmem:[#allocation3 + $0x160] sm:$0x33]
      %v1752 = vsel %vm836, %v1740, %v1751
      %1753 = vst [vmem:[#allocation3 + $0x160] sm:$0x33] %v1752
      %v1754 = vld [vmem:[#allocation3 + $0x168] sm:$0x33]
      %v1755 = vsel %vm836, %v1742, %v1754
      %1756 = vst [vmem:[#allocation3 + $0x168] sm:$0x33] %v1755
      %v1757 = vld [vmem:[#allocation3 + $0x170] sm:$0x33]
      %v1758 = vsel %vm836, %v1744, %v1757
      %1759 = vst [vmem:[#allocation3 + $0x170] sm:$0x33] %v1758
      %v1760 = vld [vmem:[#allocation3 + $0x178] sm:$0x33]
      %v1761 = vsel %vm836, %v1746, %v1760
      %1762 = vst [vmem:[#allocation3 + $0x178] sm:$0x33] %v1761
      %v1763 = vld [vmem:[#allocation2] sm:$0xff]
      %v1764 = vld [vmem:[#allocation2 + $0x8] sm:$0xff]
      %v1765 = vld [vmem:[#allocation2 + $0x10] sm:$0x3]
      %v1769 = vcombine.high %v1763, %v1763
      %v1771 = vunpack.c.l.s4 1983009808
      %v1772 = vunpack.c.0.s8 %v1771
      %v1773 = vlaneseq
      %v1774 = vshrl.u32 %v1773, 7
      %v1775 = vsub.s32 %v1772, %v1774
      %v1776 = vrot.slane %v1763, %v1775
      %v1778 = vunpack.c.l.s4 1983009808
      %v1779 = vunpack.c.0.s8 %v1778
      %v1780 = vlaneseq
      %v1781 = vshrl.u32 %v1780, 7
      %v1782 = vsub.s32 %v1779, %v1781
      %v1783 = vrot.slane %v1769, %v1782
      %v1784 = vcombine.high %v1764, %v1764
      %v1786 = vunpack.c.l.s4 1983009808
      %v1787 = vunpack.c.0.s8 %v1786
      %v1788 = vlaneseq
      %v1789 = vshrl.u32 %v1788, 7
      %v1790 = vsub.s32 %v1787, %v1789
      %v1791 = vrot.slane %v1764, %v1790
      %v1793 = vunpack.c.l.s4 1983009808
      %v1794 = vunpack.c.0.s8 %v1793
      %v1795 = vlaneseq
      %v1796 = vshrl.u32 %v1795, 7
      %v1797 = vsub.s32 %v1794, %v1796
      %v1798 = vrot.slane %v1784, %v1797
      %v1800 = vunpack.c.l.s4 1983009808
      %v1801 = vunpack.c.0.s8 %v1800
      %v1802 = vlaneseq
      %v1803 = vshrl.u32 %v1802, 7
      %v1804 = vsub.s32 %v1801, %v1803
      %v1805 = vrot.slane %v1765, %v1804
      %1806 = vrot.lane.b32.xlu0 %v1776, 62
      %v1807 = vpop.permute.xlu0 %1806
      %1808 = vrot.lane.b32.xlu0 %v1783, 62
      %v1809 = vpop.permute.xlu0 %1808
      %1810 = vrot.lane.b32.xlu0 %v1791, 62
      %v1811 = vpop.permute.xlu0 %1810
      %1812 = vrot.lane.b32.xlu0 %v1798, 62
      %v1813 = vpop.permute.xlu0 %1812
      %1814 = vrot.lane.b32.xlu0 %v1805, 62
      %v1815 = vpop.permute.xlu0 %1814
      %v1816 = vrot.slane %v1807, 4
      %v1817 = vrot.slane %v1809, 4
      %v1818 = vrot.slane %v1811, 4
      %v1819 = vrot.slane %v1813, 4
      %v1820 = vrot.slane %v1815, 4
      %v1821 = vsel %vm907, %v1816, %v1817
      %vm1822 = vcmask 506880
      %v1823 = vsel %vm1822, %v1807, %v1821
      %v1824 = vsel %vm907, %v1817, %v1818
      %v1825 = vsel %vm1822, %v1809, %v1824
      %v1826 = vsel %vm907, %v1818, %v1819
      %v1827 = vsel %vm1822, %v1811, %v1826
      %v1828 = vsel %vm907, %v1819, %v1820
      %v1829 = vsel %vm1822, %v1813, %v1828
      %v1834 = vld [vmem:[#allocation3 + $0x180] sm:$0x33]
      %v1835 = vsel %vm836, %v1823, %v1834
      %1836 = vst [vmem:[#allocation3 + $0x180] sm:$0x33] %v1835
      %v1837 = vld [vmem:[#allocation3 + $0x188] sm:$0x33]
      %v1838 = vsel %vm836, %v1825, %v1837
      %1839 = vst [vmem:[#allocation3 + $0x188] sm:$0x33] %v1838
      %v1840 = vld [vmem:[#allocation3 + $0x190] sm:$0x33]
      %v1841 = vsel %vm836, %v1827, %v1840
      %1842 = vst [vmem:[#allocation3 + $0x190] sm:$0x33] %v1841
      %v1843 = vld [vmem:[#allocation3 + $0x198] sm:$0x33]
      %v1844 = vsel %vm836, %v1829, %v1843
      %1845 = vst [vmem:[#allocation3 + $0x198] sm:$0x33] %v1844
      %v1846 = vld [vmem:[#allocation2] sm:$0xff]
      %v1847 = vld [vmem:[#allocation2 + $0x8] sm:$0xff]
      %v1848 = vld [vmem:[#allocation2 + $0x10] sm:$0x3]
      %v1852 = vcombine.high %v1846, %v1846
      %v1854 = vunpack.c.l.s4 1983009808
      %v1855 = vunpack.c.0.s8 %v1854
      %v1856 = vlaneseq
      %v1857 = vshrl.u32 %v1856, 7
      %v1858 = vsub.s32 %v1855, %v1857
      %v1859 = vrot.slane %v1846, %v1858
      %v1861 = vunpack.c.l.s4 1983009808
      %v1862 = vunpack.c.0.s8 %v1861
      %v1863 = vlaneseq
      %v1864 = vshrl.u32 %v1863, 7
      %v1865 = vsub.s32 %v1862, %v1864
      %v1866 = vrot.slane %v1852, %v1865
      %v1867 = vcombine.high %v1847, %v1847
      %v1869 = vunpack.c.l.s4 1983009808
      %v1870 = vunpack.c.0.s8 %v1869
      %v1871 = vlaneseq
      %v1872 = vshrl.u32 %v1871, 7
      %v1873 = vsub.s32 %v1870, %v1872
      %v1874 = vrot.slane %v1847, %v1873
      %v1876 = vunpack.c.l.s4 1983009808
      %v1877 = vunpack.c.0.s8 %v1876
      %v1878 = vlaneseq
      %v1879 = vshrl.u32 %v1878, 7
      %v1880 = vsub.s32 %v1877, %v1879
      %v1881 = vrot.slane %v1867, %v1880
      %v1883 = vunpack.c.l.s4 1983009808
      %v1884 = vunpack.c.0.s8 %v1883
      %v1885 = vlaneseq
      %v1886 = vshrl.u32 %v1885, 7
      %v1887 = vsub.s32 %v1884, %v1886
      %v1888 = vrot.slane %v1848, %v1887
      %1889 = vrot.lane.b32.xlu0 %v1859, 61
      %v1890 = vpop.permute.xlu0 %1889
      %1891 = vrot.lane.b32.xlu0 %v1866, 61
      %v1892 = vpop.permute.xlu0 %1891
      %1893 = vrot.lane.b32.xlu0 %v1874, 61
      %v1894 = vpop.permute.xlu0 %1893
      %1895 = vrot.lane.b32.xlu0 %v1881, 61
      %v1896 = vpop.permute.xlu0 %1895
      %1897 = vrot.lane.b32.xlu0 %v1888, 61
      %v1898 = vpop.permute.xlu0 %1897
      %v1899 = vrot.slane %v1890, 4
      %v1900 = vrot.slane %v1892, 4
      %v1901 = vrot.slane %v1894, 4
      %v1902 = vrot.slane %v1896, 4
      %v1903 = vrot.slane %v1898, 4
      %v1904 = vsel %vm907, %v1899, %v1900
      %vm1905 = vcmask 498688
      %v1906 = vsel %vm1905, %v1890, %v1904
      %v1907 = vsel %vm907, %v1900, %v1901
      %v1908 = vsel %vm1905, %v1892, %v1907
      %v1909 = vsel %vm907, %v1901, %v1902
      %v1910 = vsel %vm1905, %v1894, %v1909
      %v1911 = vsel %vm907, %v1902, %v1903
      %v1912 = vsel %vm1905, %v1896, %v1911
      %v1917 = vld [vmem:[#allocation3 + $0x1a0] sm:$0x33]
      %v1918 = vsel %vm836, %v1906, %v1917
      %1919 = vst [vmem:[#allocation3 + $0x1a0] sm:$0x33] %v1918
      %v1920 = vld [vmem:[#allocation3 + $0x1a8] sm:$0x33]
      %v1921 = vsel %vm836, %v1908, %v1920
      %1922 = vst [vmem:[#allocation3 + $0x1a8] sm:$0x33] %v1921
      %v1923 = vld [vmem:[#allocation3 + $0x1b0] sm:$0x33]
      %v1924 = vsel %vm836, %v1910, %v1923
      %1925 = vst [vmem:[#allocation3 + $0x1b0] sm:$0x33] %v1924
      %v1926 = vld [vmem:[#allocation3 + $0x1b8] sm:$0x33]
      %v1927 = vsel %vm836, %v1912, %v1926
      %1928 = vst [vmem:[#allocation3 + $0x1b8] sm:$0x33] %v1927
      %v1929 = vld [vmem:[#allocation2] sm:$0xff]
      %v1930 = vld [vmem:[#allocation2 + $0x8] sm:$0xff]
      %v1931 = vld [vmem:[#allocation2 + $0x10] sm:$0x3]
      %v1935 = vcombine.high %v1929, %v1929
      %v1937 = vunpack.c.l.s4 1983009808
      %v1938 = vunpack.c.0.s8 %v1937
      %v1939 = vlaneseq
      %v1940 = vshrl.u32 %v1939, 7
      %v1941 = vsub.s32 %v1938, %v1940
      %v1942 = vrot.slane %v1929, %v1941
      %v1944 = vunpack.c.l.s4 1983009808
      %v1945 = vunpack.c.0.s8 %v1944
      %v1946 = vlaneseq
      %v1947 = vshrl.u32 %v1946, 7
      %v1948 = vsub.s32 %v1945, %v1947
      %v1949 = vrot.slane %v1935, %v1948
      %v1950 = vcombine.high %v1930, %v1930
      %v1952 = vunpack.c.l.s4 1983009808
      %v1953 = vunpack.c.0.s8 %v1952
      %v1954 = vlaneseq
      %v1955 = vshrl.u32 %v1954, 7
      %v1956 = vsub.s32 %v1953, %v1955
      %v1957 = vrot.slane %v1930, %v1956
      %v1959 = vunpack.c.l.s4 1983009808
      %v1960 = vunpack.c.0.s8 %v1959
      %v1961 = vlaneseq
      %v1962 = vshrl.u32 %v1961, 7
      %v1963 = vsub.s32 %v1960, %v1962
      %v1964 = vrot.slane %v1950, %v1963
      %v1966 = vunpack.c.l.s4 1983009808
      %v1967 = vunpack.c.0.s8 %v1966
      %v1968 = vlaneseq
      %v1969 = vshrl.u32 %v1968, 7
      %v1970 = vsub.s32 %v1967, %v1969
      %v1971 = vrot.slane %v1931, %v1970
      %1972 = vrot.lane.b32.xlu0 %v1942, 60
      %v1973 = vpop.permute.xlu0 %1972
      %1974 = vrot.lane.b32.xlu0 %v1949, 60
      %v1975 = vpop.permute.xlu0 %1974
      %1976 = vrot.lane.b32.xlu0 %v1957, 60
      %v1977 = vpop.permute.xlu0 %1976
      %1978 = vrot.lane.b32.xlu0 %v1964, 60
      %v1979 = vpop.permute.xlu0 %1978
      %1980 = vrot.lane.b32.xlu0 %v1971, 60
      %v1981 = vpop.permute.xlu0 %1980
      %v1982 = vrot.slane %v1973, 4
      %v1983 = vrot.slane %v1975, 4
      %v1984 = vrot.slane %v1977, 4
      %v1985 = vrot.slane %v1979, 4
      %v1986 = vrot.slane %v1981, 4
      %v1987 = vsel %vm907, %v1982, %v1983
      %vm1988 = vcmask 490496
      %v1989 = vsel %vm1988, %v1973, %v1987
      %v1990 = vsel %vm907, %v1983, %v1984
      %v1991 = vsel %vm1988, %v1975, %v1990
      %v1992 = vsel %vm907, %v1984, %v1985
      %v1993 = vsel %vm1988, %v1977, %v1992
      %v1994 = vsel %vm907, %v1985, %v1986
      %v1995 = vsel %vm1988, %v1979, %v1994
      %v2000 = vld [vmem:[#allocation3 + $0x1c0] sm:$0x33]
      %v2001 = vsel %vm836, %v1989, %v2000
      %2002 = vst [vmem:[#allocation3 + $0x1c0] sm:$0x33] %v2001
      %v2003 = vld [vmem:[#allocation3 + $0x1c8] sm:$0x33]
      %v2004 = vsel %vm836, %v1991, %v2003
      %2005 = vst [vmem:[#allocation3 + $0x1c8] sm:$0x33] %v2004
      %v2006 = vld [vmem:[#allocation3 + $0x1d0] sm:$0x33]
      %v2007 = vsel %vm836, %v1993, %v2006
      %2008 = vst [vmem:[#allocation3 + $0x1d0] sm:$0x33] %v2007
      %v2009 = vld [vmem:[#allocation3 + $0x1d8] sm:$0x33]
      %v2010 = vsel %vm836, %v1995, %v2009
      %2011 = vst [vmem:[#allocation3 + $0x1d8] sm:$0x33] %v2010
      %v2012 = vld [vmem:[#allocation2] sm:$0xff]
      %v2013 = vld [vmem:[#allocation2 + $0x8] sm:$0xff]
      %v2014 = vld [vmem:[#allocation2 + $0x10] sm:$0x3]
      %v2018 = vcombine.high %v2012, %v2012
      %v2020 = vunpack.c.l.s4 1983009808
      %v2021 = vunpack.c.0.s8 %v2020
      %v2022 = vlaneseq
      %v2023 = vshrl.u32 %v2022, 7
      %v2024 = vsub.s32 %v2021, %v2023
      %v2025 = vrot.slane %v2012, %v2024
      %v2027 = vunpack.c.l.s4 1983009808
      %v2028 = vunpack.c.0.s8 %v2027
      %v2029 = vlaneseq
      %v2030 = vshrl.u32 %v2029, 7
      %v2031 = vsub.s32 %v2028, %v2030
      %v2032 = vrot.slane %v2018, %v2031
      %v2033 = vcombine.high %v2013, %v2013
      %v2035 = vunpack.c.l.s4 1983009808
      %v2036 = vunpack.c.0.s8 %v2035
      %v2037 = vlaneseq
      %v2038 = vshrl.u32 %v2037, 7
      %v2039 = vsub.s32 %v2036, %v2038
      %v2040 = vrot.slane %v2013, %v2039
      %v2042 = vunpack.c.l.s4 1983009808
      %v2043 = vunpack.c.0.s8 %v2042
      %v2044 = vlaneseq
      %v2045 = vshrl.u32 %v2044, 7
      %v2046 = vsub.s32 %v2043, %v2045
      %v2047 = vrot.slane %v2033, %v2046
      %v2049 = vunpack.c.l.s4 1983009808
      %v2050 = vunpack.c.0.s8 %v2049
      %v2051 = vlaneseq
      %v2052 = vshrl.u32 %v2051, 7
      %v2053 = vsub.s32 %v2050, %v2052
      %v2054 = vrot.slane %v2014, %v2053
      %2055 = vrot.lane.b32.xlu0 %v2025, 32
      %v2056 = vpop.permute.xlu0 %2055
      %2057 = vrot.lane.b32.xlu0 %v2032, 32
      %v2058 = vpop.permute.xlu0 %2057
      %2059 = vrot.lane.b32.xlu0 %v2040, 32
      %v2060 = vpop.permute.xlu0 %2059
      %2061 = vrot.lane.b32.xlu0 %v2047, 32
      %v2062 = vpop.permute.xlu0 %2061
      %2063 = vrot.lane.b32.xlu0 %v2054, 32
      %v2064 = vpop.permute.xlu0 %2063
      %v2065 = vrot.slane %v2056, 4
      %v2066 = vrot.slane %v2058, 4
      %v2067 = vrot.slane %v2060, 4
      %v2068 = vrot.slane %v2062, 4
      %v2069 = vrot.slane %v2064, 4
      %v2070 = vsel %vm907, %v2065, %v2066
      %vm2071 = vcmask 261120
      %v2072 = vsel %vm2071, %v2056, %v2070
      %v2073 = vsel %vm907, %v2066, %v2067
      %v2074 = vsel %vm2071, %v2058, %v2073
      %v2075 = vsel %vm907, %v2067, %v2068
      %v2076 = vsel %vm2071, %v2060, %v2075
      %v2077 = vsel %vm907, %v2068, %v2069
      %v2078 = vsel %vm2071, %v2062, %v2077
      %v2083 = vld [vmem:[#allocation3 + $0x1e0] sm:$0x33]
      %v2084 = vsel %vm836, %v2072, %v2083
      %2085 = vst [vmem:[#allocation3 + $0x1e0] sm:$0x33] %v2084
      %v2086 = vld [vmem:[#allocation3 + $0x1e8] sm:$0x33]
      %v2087 = vsel %vm836, %v2074, %v2086
      %2088 = vst [vmem:[#allocation3 + $0x1e8] sm:$0x33] %v2087
      %v2089 = vld [vmem:[#allocation3 + $0x1f0] sm:$0x33]
      %v2090 = vsel %vm836, %v2076, %v2089
      %2091 = vst [vmem:[#allocation3 + $0x1f0] sm:$0x33] %v2090
      %v2092 = vld [vmem:[#allocation3 + $0x1f8] sm:$0x33]
      %v2093 = vsel %vm836, %v2078, %v2092
      %2094 = vst [vmem:[#allocation3 + $0x1f8] sm:$0x33] %v2093
      %v2095 = vld [vmem:[#allocation2] sm:$0xff]
      %v2096 = vld [vmem:[#allocation2 + $0x8] sm:$0xff]
      %v2097 = vld [vmem:[#allocation2 + $0x10] sm:$0x3]
      %v2101 = vcombine.high %v2095, %v2095
      %v2103 = vunpack.c.l.s4 1983009808
      %v2104 = vunpack.c.0.s8 %v2103
      %v2105 = vlaneseq
      %v2106 = vshrl.u32 %v2105, 7
      %v2107 = vsub.s32 %v2104, %v2106
      %v2108 = vrot.slane %v2095, %v2107
      %v2110 = vunpack.c.l.s4 1983009808
      %v2111 = vunpack.c.0.s8 %v2110
      %v2112 = vlaneseq
      %v2113 = vshrl.u32 %v2112, 7
      %v2114 = vsub.s32 %v2111, %v2113
      %v2115 = vrot.slane %v2101, %v2114
      %v2116 = vcombine.high %v2096, %v2096
      %v2118 = vunpack.c.l.s4 1983009808
      %v2119 = vunpack.c.0.s8 %v2118
      %v2120 = vlaneseq
      %v2121 = vshrl.u32 %v2120, 7
      %v2122 = vsub.s32 %v2119, %v2121
      %v2123 = vrot.slane %v2096, %v2122
      %v2125 = vunpack.c.l.s4 1983009808
      %v2126 = vunpack.c.0.s8 %v2125
      %v2127 = vlaneseq
      %v2128 = vshrl.u32 %v2127, 7
      %v2129 = vsub.s32 %v2126, %v2128
      %v2130 = vrot.slane %v2116, %v2129
      %v2132 = vunpack.c.l.s4 1983009808
      %v2133 = vunpack.c.0.s8 %v2132
      %v2134 = vlaneseq
      %v2135 = vshrl.u32 %v2134, 7
      %v2136 = vsub.s32 %v2133, %v2135
      %v2137 = vrot.slane %v2097, %v2136
      %2138 = vrot.lane.b32.xlu0 %v2108, 31
      %v2139 = vpop.permute.xlu0 %2138
      %2140 = vrot.lane.b32.xlu0 %v2115, 31
      %v2141 = vpop.permute.xlu0 %2140
      %2142 = vrot.lane.b32.xlu0 %v2123, 31
      %v2143 = vpop.permute.xlu0 %2142
      %2144 = vrot.lane.b32.xlu0 %v2130, 31
      %v2145 = vpop.permute.xlu0 %2144
      %2146 = vrot.lane.b32.xlu0 %v2137, 31
      %v2147 = vpop.permute.xlu0 %2146
      %v2148 = vrot.slane %v2139, 4
      %v2149 = vrot.slane %v2141, 4
      %v2150 = vrot.slane %v2143, 4
      %v2151 = vrot.slane %v2145, 4
      %v2152 = vrot.slane %v2147, 4
      %v2153 = vsel %vm907, %v2148, %v2149
      %vm2154 = vcmask 252928
      %v2155 = vsel %vm2154, %v2139, %v2153
      %v2156 = vsel %vm907, %v2149, %v2150
      %v2157 = vsel %vm2154, %v2141, %v2156
      %v2158 = vsel %vm907, %v2150, %v2151
      %v2159 = vsel %vm2154, %v2143, %v2158
      %v2160 = vsel %vm907, %v2151, %v2152
      %v2161 = vsel %vm2154, %v2145, %v2160
      %v2166 = vld [vmem:[#allocation3 + $0x200] sm:$0x33]
      %v2167 = vsel %vm836, %v2155, %v2166
      %2168 = vst [vmem:[#allocation3 + $0x200] sm:$0x33] %v2167
      %v2169 = vld [vmem:[#allocation3 + $0x208] sm:$0x33]
      %v2170 = vsel %vm836, %v2157, %v2169
      %2171 = vst [vmem:[#allocation3 + $0x208] sm:$0x33] %v2170
      %v2172 = vld [vmem:[#allocation3 + $0x210] sm:$0x33]
      %v2173 = vsel %vm836, %v2159, %v2172
      %2174 = vst [vmem:[#allocation3 + $0x210] sm:$0x33] %v2173
      %v2175 = vld [vmem:[#allocation3 + $0x218] sm:$0x33]
      %v2176 = vsel %vm836, %v2161, %v2175
      %2177 = vst [vmem:[#allocation3 + $0x218] sm:$0x33] %v2176
      %v2178 = vld [vmem:[#allocation2] sm:$0xff]
      %v2179 = vld [vmem:[#allocation2 + $0x8] sm:$0xff]
      %v2180 = vld [vmem:[#allocation2 + $0x10] sm:$0x3]
      %v2184 = vcombine.high %v2178, %v2178
      %v2186 = vunpack.c.l.s4 1983009808
      %v2187 = vunpack.c.0.s8 %v2186
      %v2188 = vlaneseq
      %v2189 = vshrl.u32 %v2188, 7
      %v2190 = vsub.s32 %v2187, %v2189
      %v2191 = vrot.slane %v2178, %v2190
      %v2193 = vunpack.c.l.s4 1983009808
      %v2194 = vunpack.c.0.s8 %v2193
      %v2195 = vlaneseq
      %v2196 = vshrl.u32 %v2195, 7
      %v2197 = vsub.s32 %v2194, %v2196
      %v2198 = vrot.slane %v2184, %v2197
      %v2199 = vcombine.high %v2179, %v2179
      %v2201 = vunpack.c.l.s4 1983009808
      %v2202 = vunpack.c.0.s8 %v2201
      %v2203 = vlaneseq
      %v2204 = vshrl.u32 %v2203, 7
      %v2205 = vsub.s32 %v2202, %v2204
      %v2206 = vrot.slane %v2179, %v2205
      %v2208 = vunpack.c.l.s4 1983009808
      %v2209 = vunpack.c.0.s8 %v2208
      %v2210 = vlaneseq
      %v2211 = vshrl.u32 %v2210, 7
      %v2212 = vsub.s32 %v2209, %v2211
      %v2213 = vrot.slane %v2199, %v2212
      %v2215 = vunpack.c.l.s4 1983009808
      %v2216 = vunpack.c.0.s8 %v2215
      %v2217 = vlaneseq
      %v2218 = vshrl.u32 %v2217, 7
      %v2219 = vsub.s32 %v2216, %v2218
      %v2220 = vrot.slane %v2180, %v2219
      %2221 = vrot.lane.b32.xlu0 %v2191, 30
      %v2222 = vpop.permute.xlu0 %2221
      %2223 = vrot.lane.b32.xlu0 %v2198, 30
      %v2224 = vpop.permute.xlu0 %2223
      %2225 = vrot.lane.b32.xlu0 %v2206, 30
      %v2226 = vpop.permute.xlu0 %2225
      %2227 = vrot.lane.b32.xlu0 %v2213, 30
      %v2228 = vpop.permute.xlu0 %2227
      %2229 = vrot.lane.b32.xlu0 %v2220, 30
      %v2230 = vpop.permute.xlu0 %2229
      %v2231 = vrot.slane %v2222, 4
      %v2232 = vrot.slane %v2224, 4
      %v2233 = vrot.slane %v2226, 4
      %v2234 = vrot.slane %v2228, 4
      %v2235 = vrot.slane %v2230, 4
      %v2236 = vsel %vm907, %v2231, %v2232
      %vm2237 = vcmask 244736
      %v2238 = vsel %vm2237, %v2222, %v2236
      %v2239 = vsel %vm907, %v2232, %v2233
      %v2240 = vsel %vm2237, %v2224, %v2239
      %v2241 = vsel %vm907, %v2233, %v2234
      %v2242 = vsel %vm2237, %v2226, %v2241
      %v2243 = vsel %vm907, %v2234, %v2235
      %v2244 = vsel %vm2237, %v2228, %v2243
      %v2249 = vld [vmem:[#allocation3 + $0x220] sm:$0x33]
      %v2250 = vsel %vm836, %v2238, %v2249
      %2251 = vst [vmem:[#allocation3 + $0x220] sm:$0x33] %v2250
      %v2252 = vld [vmem:[#allocation3 + $0x228] sm:$0x33]
      %v2253 = vsel %vm836, %v2240, %v2252
      %2254 = vst [vmem:[#allocation3 + $0x228] sm:$0x33] %v2253
      %v2255 = vld [vmem:[#allocation3 + $0x230] sm:$0x33]
      %v2256 = vsel %vm836, %v2242, %v2255
      %2257 = vst [vmem:[#allocation3 + $0x230] sm:$0x33] %v2256
      %v2258 = vld [vmem:[#allocation3 + $0x238] sm:$0x33]
      %v2259 = vsel %vm836, %v2244, %v2258
      %2260 = vst [vmem:[#allocation3 + $0x238] sm:$0x33] %v2259
      %v2261 = vld [vmem:[#allocation2] sm:$0xff]
      %v2262 = vld [vmem:[#allocation2 + $0x8] sm:$0xff]
      %v2263 = vld [vmem:[#allocation2 + $0x10] sm:$0x3]
      %v2267 = vcombine.high %v2261, %v2261
      %v2269 = vunpack.c.l.s4 1983009808
      %v2270 = vunpack.c.0.s8 %v2269
      %v2271 = vlaneseq
      %v2272 = vshrl.u32 %v2271, 7
      %v2273 = vsub.s32 %v2270, %v2272
      %v2274 = vrot.slane %v2261, %v2273
      %v2276 = vunpack.c.l.s4 1983009808
      %v2277 = vunpack.c.0.s8 %v2276
      %v2278 = vlaneseq
      %v2279 = vshrl.u32 %v2278, 7
      %v2280 = vsub.s32 %v2277, %v2279
      %v2281 = vrot.slane %v2267, %v2280
      %v2282 = vcombine.high %v2262, %v2262
      %v2284 = vunpack.c.l.s4 1983009808
      %v2285 = vunpack.c.0.s8 %v2284
      %v2286 = vlaneseq
      %v2287 = vshrl.u32 %v2286, 7
      %v2288 = vsub.s32 %v2285, %v2287
      %v2289 = vrot.slane %v2262, %v2288
      %v2291 = vunpack.c.l.s4 1983009808
      %v2292 = vunpack.c.0.s8 %v2291
      %v2293 = vlaneseq
      %v2294 = vshrl.u32 %v2293, 7
      %v2295 = vsub.s32 %v2292, %v2294
      %v2296 = vrot.slane %v2282, %v2295
      %v2298 = vunpack.c.l.s4 1983009808
      %v2299 = vunpack.c.0.s8 %v2298
      %v2300 = vlaneseq
      %v2301 = vshrl.u32 %v2300, 7
      %v2302 = vsub.s32 %v2299, %v2301
      %v2303 = vrot.slane %v2263, %v2302
      %2304 = vrot.lane.b32.xlu0 %v2274, 29
      %v2305 = vpop.permute.xlu0 %2304
      %2306 = vrot.lane.b32.xlu0 %v2281, 29
      %v2307 = vpop.permute.xlu0 %2306
      %2308 = vrot.lane.b32.xlu0 %v2289, 29
      %v2309 = vpop.permute.xlu0 %2308
      %2310 = vrot.lane.b32.xlu0 %v2296, 29
      %v2311 = vpop.permute.xlu0 %2310
      %2312 = vrot.lane.b32.xlu0 %v2303, 29
      %v2313 = vpop.permute.xlu0 %2312
      %v2314 = vrot.slane %v2305, 4
      %v2315 = vrot.slane %v2307, 4
      %v2316 = vrot.slane %v2309, 4
      %v2317 = vrot.slane %v2311, 4
      %v2318 = vrot.slane %v2313, 4
      %v2319 = vsel %vm907, %v2314, %v2315
      %vm2320 = vcmask 236544
      %v2321 = vsel %vm2320, %v2305, %v2319
      %v2322 = vsel %vm907, %v2315, %v2316
      %v2323 = vsel %vm2320, %v2307, %v2322
      %v2324 = vsel %vm907, %v2316, %v2317
      %v2325 = vsel %vm2320, %v2309, %v2324
      %v2326 = vsel %vm907, %v2317, %v2318
      %v2327 = vsel %vm2320, %v2311, %v2326
      %v2332 = vld [vmem:[#allocation3 + $0x240] sm:$0x33]
      %v2333 = vsel %vm836, %v2321, %v2332
      %2334 = vst [vmem:[#allocation3 + $0x240] sm:$0x33] %v2333
      %v2335 = vld [vmem:[#allocation3 + $0x248] sm:$0x33]
      %v2336 = vsel %vm836, %v2323, %v2335
      %2337 = vst [vmem:[#allocation3 + $0x248] sm:$0x33] %v2336
      %v2338 = vld [vmem:[#allocation3 + $0x250] sm:$0x33]
      %v2339 = vsel %vm836, %v2325, %v2338
      %2340 = vst [vmem:[#allocation3 + $0x250] sm:$0x33] %v2339
      %v2341 = vld [vmem:[#allocation3 + $0x258] sm:$0x33]
      %v2342 = vsel %vm836, %v2327, %v2341
      %2343 = vst [vmem:[#allocation3 + $0x258] sm:$0x33] %v2342
      %v2344 = vld [vmem:[#allocation2] sm:$0xff]
      %v2345 = vld [vmem:[#allocation2 + $0x8] sm:$0xff]
      %v2346 = vld [vmem:[#allocation2 + $0x10] sm:$0x3]
      %v2350 = vcombine.high %v2344, %v2344
      %v2352 = vunpack.c.l.s4 1983009808
      %v2353 = vunpack.c.0.s8 %v2352
      %v2354 = vlaneseq
      %v2355 = vshrl.u32 %v2354, 7
      %v2356 = vsub.s32 %v2353, %v2355
      %v2357 = vrot.slane %v2344, %v2356
      %v2359 = vunpack.c.l.s4 1983009808
      %v2360 = vunpack.c.0.s8 %v2359
      %v2361 = vlaneseq
      %v2362 = vshrl.u32 %v2361, 7
      %v2363 = vsub.s32 %v2360, %v2362
      %v2364 = vrot.slane %v2350, %v2363
      %v2365 = vcombine.high %v2345, %v2345
      %v2367 = vunpack.c.l.s4 1983009808
      %v2368 = vunpack.c.0.s8 %v2367
      %v2369 = vlaneseq
      %v2370 = vshrl.u32 %v2369, 7
      %v2371 = vsub.s32 %v2368, %v2370
      %v2372 = vrot.slane %v2345, %v2371
      %v2374 = vunpack.c.l.s4 1983009808
      %v2375 = vunpack.c.0.s8 %v2374
      %v2376 = vlaneseq
      %v2377 = vshrl.u32 %v2376, 7
      %v2378 = vsub.s32 %v2375, %v2377
      %v2379 = vrot.slane %v2365, %v2378
      %v2381 = vunpack.c.l.s4 1983009808
      %v2382 = vunpack.c.0.s8 %v2381
      %v2383 = vlaneseq
      %v2384 = vshrl.u32 %v2383, 7
      %v2385 = vsub.s32 %v2382, %v2384
      %v2386 = vrot.slane %v2346, %v2385
      %2387 = vrot.lane.b32.xlu0 %v2357, 28
      %v2388 = vpop.permute.xlu0 %2387
      %2389 = vrot.lane.b32.xlu0 %v2364, 28
      %v2390 = vpop.permute.xlu0 %2389
      %2391 = vrot.lane.b32.xlu0 %v2372, 28
      %v2392 = vpop.permute.xlu0 %2391
      %2393 = vrot.lane.b32.xlu0 %v2379, 28
      %v2394 = vpop.permute.xlu0 %2393
      %2395 = vrot.lane.b32.xlu0 %v2386, 28
      %v2396 = vpop.permute.xlu0 %2395
      %v2397 = vrot.slane %v2388, 4
      %v2398 = vrot.slane %v2390, 4
      %v2399 = vrot.slane %v2392, 4
      %v2400 = vrot.slane %v2394, 4
      %v2401 = vrot.slane %v2396, 4
      %v2402 = vsel %vm907, %v2397, %v2398
      %vm2403 = vcmask 228352
      %v2404 = vsel %vm2403, %v2388, %v2402
      %v2405 = vsel %vm907, %v2398, %v2399
      %v2406 = vsel %vm2403, %v2390, %v2405
      %v2407 = vsel %vm907, %v2399, %v2400
      %v2408 = vsel %vm2403, %v2392, %v2407
      %v2409 = vsel %vm907, %v2400, %v2401
      %v2410 = vsel %vm2403, %v2394, %v2409
      %v2415 = vld [vmem:[#allocation3 + $0x260] sm:$0x33]
      %v2416 = vsel %vm836, %v2404, %v2415
      %2417 = vst [vmem:[#allocation3 + $0x260] sm:$0x33] %v2416
      %v2418 = vld [vmem:[#allocation3 + $0x268] sm:$0x33]
      %v2419 = vsel %vm836, %v2406, %v2418
      %2420 = vst [vmem:[#allocation3 + $0x268] sm:$0x33] %v2419
      %v2421 = vld [vmem:[#allocation3 + $0x270] sm:$0x33]
      %v2422 = vsel %vm836, %v2408, %v2421
      %2423 = vst [vmem:[#allocation3 + $0x270] sm:$0x33] %v2422
      %v2424 = vld [vmem:[#allocation3 + $0x278] sm:$0x33]
      %v2425 = vsel %vm836, %v2410, %v2424
      %2426 = vst [vmem:[#allocation3 + $0x278] sm:$0x33] %v2425
      %v2427 = vld [vmem:[#allocation2 + $0x2] sm:$0xff]
      %v2428 = vld [vmem:[#allocation2 + $0xa] sm:$0xff]
      %v2431 = vcombine.high %v2427, %v2427
      %v2433 = vunpack.c.l.s4 1983009808
      %v2434 = vunpack.c.0.s8 %v2433
      %v2435 = vlaneseq
      %v2436 = vshrl.u32 %v2435, 7
      %v2437 = vsub.s32 %v2434, %v2436
      %v2438 = vrot.slane %v2427, %v2437
      %v2440 = vunpack.c.l.s4 1983009808
      %v2441 = vunpack.c.0.s8 %v2440
      %v2442 = vlaneseq
      %v2443 = vshrl.u32 %v2442, 7
      %v2444 = vsub.s32 %v2441, %v2443
      %v2445 = vrot.slane %v2431, %v2444
      %v2446 = vcombine.high %v2428, %v2428
      %v2448 = vunpack.c.l.s4 1983009808
      %v2449 = vunpack.c.0.s8 %v2448
      %v2450 = vlaneseq
      %v2451 = vshrl.u32 %v2450, 7
      %v2452 = vsub.s32 %v2449, %v2451
      %v2453 = vrot.slane %v2428, %v2452
      %v2455 = vunpack.c.l.s4 1983009808
      %v2456 = vunpack.c.0.s8 %v2455
      %v2457 = vlaneseq
      %v2458 = vshrl.u32 %v2457, 7
      %v2459 = vsub.s32 %v2456, %v2458
      %v2460 = vrot.slane %v2446, %v2459
      %v2465 = vld [vmem:[#allocation3 + $0x280] sm:$0x33]
      %v2466 = vsel %vm836, %v2438, %v2465
      %2467 = vst [vmem:[#allocation3 + $0x280] sm:$0x33] %v2466
      %v2468 = vld [vmem:[#allocation3 + $0x288] sm:$0x33]
      %v2469 = vsel %vm836, %v2445, %v2468
      %2470 = vst [vmem:[#allocation3 + $0x288] sm:$0x33] %v2469
      %v2471 = vld [vmem:[#allocation3 + $0x290] sm:$0x33]
      %v2472 = vsel %vm836, %v2453, %v2471
      %2473 = vst [vmem:[#allocation3 + $0x290] sm:$0x33] %v2472
      %v2474 = vld [vmem:[#allocation3 + $0x298] sm:$0x33]
      %v2475 = vsel %vm836, %v2460, %v2474
      %2476 = vst [vmem:[#allocation3 + $0x298] sm:$0x33] %v2475
      %v2477 = vld [vmem:[#allocation2 + $0x2] sm:$0xff]
      %v2478 = vld [vmem:[#allocation2 + $0xa] sm:$0xff]
      %v2479 = vld [vmem:[#allocation2 + $0x12] sm:$0x3]
      %v2483 = vcombine.high %v2477, %v2477
      %v2485 = vunpack.c.l.s4 1983009808
      %v2486 = vunpack.c.0.s8 %v2485
      %v2487 = vlaneseq
      %v2488 = vshrl.u32 %v2487, 7
      %v2489 = vsub.s32 %v2486, %v2488
      %v2490 = vrot.slane %v2477, %v2489
      %v2492 = vunpack.c.l.s4 1983009808
      %v2493 = vunpack.c.0.s8 %v2492
      %v2494 = vlaneseq
      %v2495 = vshrl.u32 %v2494, 7
      %v2496 = vsub.s32 %v2493, %v2495
      %v2497 = vrot.slane %v2483, %v2496
      %v2498 = vcombine.high %v2478, %v2478
      %v2500 = vunpack.c.l.s4 1983009808
      %v2501 = vunpack.c.0.s8 %v2500
      %v2502 = vlaneseq
      %v2503 = vshrl.u32 %v2502, 7
      %v2504 = vsub.s32 %v2501, %v2503
      %v2505 = vrot.slane %v2478, %v2504
      %v2507 = vunpack.c.l.s4 1983009808
      %v2508 = vunpack.c.0.s8 %v2507
      %v2509 = vlaneseq
      %v2510 = vshrl.u32 %v2509, 7
      %v2511 = vsub.s32 %v2508, %v2510
      %v2512 = vrot.slane %v2498, %v2511
      %v2514 = vunpack.c.l.s4 1983009808
      %v2515 = vunpack.c.0.s8 %v2514
      %v2516 = vlaneseq
      %v2517 = vshrl.u32 %v2516, 7
      %v2518 = vsub.s32 %v2515, %v2517
      %v2519 = vrot.slane %v2479, %v2518
      %2520 = vrot.lane.b32.xlu0 %v2490, 127
      %v2521 = vpop.permute.xlu0 %2520
      %2522 = vrot.lane.b32.xlu0 %v2497, 127
      %v2523 = vpop.permute.xlu0 %2522
      %2524 = vrot.lane.b32.xlu0 %v2505, 127
      %v2525 = vpop.permute.xlu0 %2524
      %2526 = vrot.lane.b32.xlu0 %v2512, 127
      %v2527 = vpop.permute.xlu0 %2526
      %2528 = vrot.lane.b32.xlu0 %v2519, 127
      %v2529 = vpop.permute.xlu0 %2528
      %v2530 = vrot.slane %v2521, 4
      %v2531 = vrot.slane %v2523, 4
      %v2532 = vrot.slane %v2525, 4
      %v2533 = vrot.slane %v2527, 4
      %v2534 = vrot.slane %v2529, 4
      %v2535 = vsel %vm907, %v2530, %v2531
      %v2536 = vsel %vm909, %v2521, %v2535
      %v2537 = vsel %vm907, %v2531, %v2532
      %v2538 = vsel %vm909, %v2523, %v2537
      %v2539 = vsel %vm907, %v2532, %v2533
      %v2540 = vsel %vm909, %v2525, %v2539
      %v2541 = vsel %vm907, %v2533, %v2534
      %v2542 = vsel %vm909, %v2527, %v2541
      %v2547 = vld [vmem:[#allocation3 + $0x2a0] sm:$0x33]
      %v2548 = vsel %vm836, %v2536, %v2547
      %2549 = vst [vmem:[#allocation3 + $0x2a0] sm:$0x33] %v2548
      %v2550 = vld [vmem:[#allocation3 + $0x2a8] sm:$0x33]
      %v2551 = vsel %vm836, %v2538, %v2550
      %2552 = vst [vmem:[#allocation3 + $0x2a8] sm:$0x33] %v2551
      %v2553 = vld [vmem:[#allocation3 + $0x2b0] sm:$0x33]
      %v2554 = vsel %vm836, %v2540, %v2553
      %2555 = vst [vmem:[#allocation3 + $0x2b0] sm:$0x33] %v2554
      %v2556 = vld [vmem:[#allocation3 + $0x2b8] sm:$0x33]
      %v2557 = vsel %vm836, %v2542, %v2556
      %2558 = vst [vmem:[#allocation3 + $0x2b8] sm:$0x33] %v2557
      %v2559 = vld [vmem:[#allocation2 + $0x2] sm:$0xff]
      %v2560 = vld [vmem:[#allocation2 + $0xa] sm:$0xff]
      %v2561 = vld [vmem:[#allocation2 + $0x12] sm:$0x3]
      %v2565 = vcombine.high %v2559, %v2559
      %v2567 = vunpack.c.l.s4 1983009808
      %v2568 = vunpack.c.0.s8 %v2567
      %v2569 = vlaneseq
      %v2570 = vshrl.u32 %v2569, 7
      %v2571 = vsub.s32 %v2568, %v2570
      %v2572 = vrot.slane %v2559, %v2571
      %v2574 = vunpack.c.l.s4 1983009808
      %v2575 = vunpack.c.0.s8 %v2574
      %v2576 = vlaneseq
      %v2577 = vshrl.u32 %v2576, 7
      %v2578 = vsub.s32 %v2575, %v2577
      %v2579 = vrot.slane %v2565, %v2578
      %v2580 = vcombine.high %v2560, %v2560
      %v2582 = vunpack.c.l.s4 1983009808
      %v2583 = vunpack.c.0.s8 %v2582
      %v2584 = vlaneseq
      %v2585 = vshrl.u32 %v2584, 7
      %v2586 = vsub.s32 %v2583, %v2585
      %v2587 = vrot.slane %v2560, %v2586
      %v2589 = vunpack.c.l.s4 1983009808
      %v2590 = vunpack.c.0.s8 %v2589
      %v2591 = vlaneseq
      %v2592 = vshrl.u32 %v2591, 7
      %v2593 = vsub.s32 %v2590, %v2592
      %v2594 = vrot.slane %v2580, %v2593
      %v2596 = vunpack.c.l.s4 1983009808
      %v2597 = vunpack.c.0.s8 %v2596
      %v2598 = vlaneseq
      %v2599 = vshrl.u32 %v2598, 7
      %v2600 = vsub.s32 %v2597, %v2599
      %v2601 = vrot.slane %v2561, %v2600
      %2602 = vrot.lane.b32.xlu0 %v2572, 126
      %v2603 = vpop.permute.xlu0 %2602
      %2604 = vrot.lane.b32.xlu0 %v2579, 126
      %v2605 = vpop.permute.xlu0 %2604
      %2606 = vrot.lane.b32.xlu0 %v2587, 126
      %v2607 = vpop.permute.xlu0 %2606
      %2608 = vrot.lane.b32.xlu0 %v2594, 126
      %v2609 = vpop.permute.xlu0 %2608
      %2610 = vrot.lane.b32.xlu0 %v2601, 126
      %v2611 = vpop.permute.xlu0 %2610
      %v2612 = vrot.slane %v2603, 4
      %v2613 = vrot.slane %v2605, 4
      %v2614 = vrot.slane %v2607, 4
      %v2615 = vrot.slane %v2609, 4
      %v2616 = vrot.slane %v2611, 4
      %v2617 = vsel %vm907, %v2612, %v2613
      %v2618 = vsel %vm992, %v2603, %v2617
      %v2619 = vsel %vm907, %v2613, %v2614
      %v2620 = vsel %vm992, %v2605, %v2619
      %v2621 = vsel %vm907, %v2614, %v2615
      %v2622 = vsel %vm992, %v2607, %v2621
      %v2623 = vsel %vm907, %v2615, %v2616
      %v2624 = vsel %vm992, %v2609, %v2623
      %v2629 = vld [vmem:[#allocation3 + $0x2c0] sm:$0x33]
      %v2630 = vsel %vm836, %v2618, %v2629
      %2631 = vst [vmem:[#allocation3 + $0x2c0] sm:$0x33] %v2630
      %v2632 = vld [vmem:[#allocation3 + $0x2c8] sm:$0x33]
      %v2633 = vsel %vm836, %v2620, %v2632
      %2634 = vst [vmem:[#allocation3 + $0x2c8] sm:$0x33] %v2633
      %v2635 = vld [vmem:[#allocation3 + $0x2d0] sm:$0x33]
      %v2636 = vsel %vm836, %v2622, %v2635
      %2637 = vst [vmem:[#allocation3 + $0x2d0] sm:$0x33] %v2636
      %v2638 = vld [vmem:[#allocation3 + $0x2d8] sm:$0x33]
      %v2639 = vsel %vm836, %v2624, %v2638
      %2640 = vst [vmem:[#allocation3 + $0x2d8] sm:$0x33] %v2639
      %v2641 = vld [vmem:[#allocation2 + $0x2] sm:$0xff]
      %v2642 = vld [vmem:[#allocation2 + $0xa] sm:$0xff]
      %v2643 = vld [vmem:[#allocation2 + $0x12] sm:$0x3]
      %v2647 = vcombine.high %v2641, %v2641
      %v2649 = vunpack.c.l.s4 1983009808
      %v2650 = vunpack.c.0.s8 %v2649
      %v2651 = vlaneseq
      %v2652 = vshrl.u32 %v2651, 7
      %v2653 = vsub.s32 %v2650, %v2652
      %v2654 = vrot.slane %v2641, %v2653
      %v2656 = vunpack.c.l.s4 1983009808
      %v2657 = vunpack.c.0.s8 %v2656
      %v2658 = vlaneseq
      %v2659 = vshrl.u32 %v2658, 7
      %v2660 = vsub.s32 %v2657, %v2659
      %v2661 = vrot.slane %v2647, %v2660
      %v2662 = vcombine.high %v2642, %v2642
      %v2664 = vunpack.c.l.s4 1983009808
      %v2665 = vunpack.c.0.s8 %v2664
      %v2666 = vlaneseq
      %v2667 = vshrl.u32 %v2666, 7
      %v2668 = vsub.s32 %v2665, %v2667
      %v2669 = vrot.slane %v2642, %v2668
      %v2671 = vunpack.c.l.s4 1983009808
      %v2672 = vunpack.c.0.s8 %v2671
      %v2673 = vlaneseq
      %v2674 = vshrl.u32 %v2673, 7
      %v2675 = vsub.s32 %v2672, %v2674
      %v2676 = vrot.slane %v2662, %v2675
      %v2678 = vunpack.c.l.s4 1983009808
      %v2679 = vunpack.c.0.s8 %v2678
      %v2680 = vlaneseq
      %v2681 = vshrl.u32 %v2680, 7
      %v2682 = vsub.s32 %v2679, %v2681
      %v2683 = vrot.slane %v2643, %v2682
      %2684 = vrot.lane.b32.xlu0 %v2654, 125
      %v2685 = vpop.permute.xlu0 %2684
      %2686 = vrot.lane.b32.xlu0 %v2661, 125
      %v2687 = vpop.permute.xlu0 %2686
      %2688 = vrot.lane.b32.xlu0 %v2669, 125
      %v2689 = vpop.permute.xlu0 %2688
      %2690 = vrot.lane.b32.xlu0 %v2676, 125
      %v2691 = vpop.permute.xlu0 %2690
      %2692 = vrot.lane.b32.xlu0 %v2683, 125
      %v2693 = vpop.permute.xlu0 %2692
      %v2694 = vrot.slane %v2685, 4
      %v2695 = vrot.slane %v2687, 4
      %v2696 = vrot.slane %v2689, 4
      %v2697 = vrot.slane %v2691, 4
      %v2698 = vrot.slane %v2693, 4
      %v2699 = vsel %vm907, %v2694, %v2695
      %v2700 = vsel %vm1075, %v2685, %v2699
      %v2701 = vsel %vm907, %v2695, %v2696
      %v2702 = vsel %vm1075, %v2687, %v2701
      %v2703 = vsel %vm907, %v2696, %v2697
      %v2704 = vsel %vm1075, %v2689, %v2703
      %v2705 = vsel %vm907, %v2697, %v2698
      %v2706 = vsel %vm1075, %v2691, %v2705
      %v2711 = vld [vmem:[#allocation3 + $0x2e0] sm:$0x33]
      %v2712 = vsel %vm836, %v2700, %v2711
      %2713 = vst [vmem:[#allocation3 + $0x2e0] sm:$0x33] %v2712
      %v2714 = vld [vmem:[#allocation3 + $0x2e8] sm:$0x33]
      %v2715 = vsel %vm836, %v2702, %v2714
      %2716 = vst [vmem:[#allocation3 + $0x2e8] sm:$0x33] %v2715
      %v2717 = vld [vmem:[#allocation3 + $0x2f0] sm:$0x33]
      %v2718 = vsel %vm836, %v2704, %v2717
      %2719 = vst [vmem:[#allocation3 + $0x2f0] sm:$0x33] %v2718
      %v2720 = vld [vmem:[#allocation3 + $0x2f8] sm:$0x33]
      %v2721 = vsel %vm836, %v2706, %v2720
      %2722 = vst [vmem:[#allocation3 + $0x2f8] sm:$0x33] %v2721
      %v2723 = vld [vmem:[#allocation2 + $0x2] sm:$0xff]
      %v2724 = vld [vmem:[#allocation2 + $0xa] sm:$0xff]
      %v2725 = vld [vmem:[#allocation2 + $0x12] sm:$0x3]
      %v2729 = vcombine.high %v2723, %v2723
      %v2731 = vunpack.c.l.s4 1983009808
      %v2732 = vunpack.c.0.s8 %v2731
      %v2733 = vlaneseq
      %v2734 = vshrl.u32 %v2733, 7
      %v2735 = vsub.s32 %v2732, %v2734
      %v2736 = vrot.slane %v2723, %v2735
      %v2738 = vunpack.c.l.s4 1983009808
      %v2739 = vunpack.c.0.s8 %v2738
      %v2740 = vlaneseq
      %v2741 = vshrl.u32 %v2740, 7
      %v2742 = vsub.s32 %v2739, %v2741
      %v2743 = vrot.slane %v2729, %v2742
      %v2744 = vcombine.high %v2724, %v2724
      %v2746 = vunpack.c.l.s4 1983009808
      %v2747 = vunpack.c.0.s8 %v2746
      %v2748 = vlaneseq
      %v2749 = vshrl.u32 %v2748, 7
      %v2750 = vsub.s32 %v2747, %v2749
      %v2751 = vrot.slane %v2724, %v2750
      %v2753 = vunpack.c.l.s4 1983009808
      %v2754 = vunpack.c.0.s8 %v2753
      %v2755 = vlaneseq
      %v2756 = vshrl.u32 %v2755, 7
      %v2757 = vsub.s32 %v2754, %v2756
      %v2758 = vrot.slane %v2744, %v2757
      %v2760 = vunpack.c.l.s4 1983009808
      %v2761 = vunpack.c.0.s8 %v2760
      %v2762 = vlaneseq
      %v2763 = vshrl.u32 %v2762, 7
      %v2764 = vsub.s32 %v2761, %v2763
      %v2765 = vrot.slane %v2725, %v2764
      %2766 = vrot.lane.b32.xlu0 %v2736, 124
      %v2767 = vpop.permute.xlu0 %2766
      %2768 = vrot.lane.b32.xlu0 %v2743, 124
      %v2769 = vpop.permute.xlu0 %2768
      %2770 = vrot.lane.b32.xlu0 %v2751, 124
      %v2771 = vpop.permute.xlu0 %2770
      %2772 = vrot.lane.b32.xlu0 %v2758, 124
      %v2773 = vpop.permute.xlu0 %2772
      %2774 = vrot.lane.b32.xlu0 %v2765, 124
      %v2775 = vpop.permute.xlu0 %2774
      %v2776 = vrot.slane %v2767, 4
      %v2777 = vrot.slane %v2769, 4
      %v2778 = vrot.slane %v2771, 4
      %v2779 = vrot.slane %v2773, 4
      %v2780 = vrot.slane %v2775, 4
      %v2781 = vsel %vm907, %v2776, %v2777
      %v2782 = vsel %vm1158, %v2767, %v2781
      %v2783 = vsel %vm907, %v2777, %v2778
      %v2784 = vsel %vm1158, %v2769, %v2783
      %v2785 = vsel %vm907, %v2778, %v2779
      %v2786 = vsel %vm1158, %v2771, %v2785
      %v2787 = vsel %vm907, %v2779, %v2780
      %v2788 = vsel %vm1158, %v2773, %v2787
      %v2793 = vld [vmem:[#allocation3 + $0x300] sm:$0x33]
      %v2794 = vsel %vm836, %v2782, %v2793
      %2795 = vst [vmem:[#allocation3 + $0x300] sm:$0x33] %v2794
      %v2796 = vld [vmem:[#allocation3 + $0x308] sm:$0x33]
      %v2797 = vsel %vm836, %v2784, %v2796
      %2798 = vst [vmem:[#allocation3 + $0x308] sm:$0x33] %v2797
      %v2799 = vld [vmem:[#allocation3 + $0x310] sm:$0x33]
      %v2800 = vsel %vm836, %v2786, %v2799
      %2801 = vst [vmem:[#allocation3 + $0x310] sm:$0x33] %v2800
      %v2802 = vld [vmem:[#allocation3 + $0x318] sm:$0x33]
      %v2803 = vsel %vm836, %v2788, %v2802
      %2804 = vst [vmem:[#allocation3 + $0x318] sm:$0x33] %v2803
      %v2805 = vld [vmem:[%s1] sm:$0x77]
      %v2806 = vld [vmem:[#allocation3] sm:$0xff]
      %v2807 = vld [vmem:[#allocation3 + $0x8] sm:$0xff]
      %v2808 = vld [vmem:[#allocation3 + $0x10] sm:$0xff]
      %v2809 = vld [vmem:[#allocation3 + $0x18] sm:$0xff]
      %v2810 = vld [vmem:[#allocation3 + $0x20] sm:$0xff]
      %v2811 = vld [vmem:[#allocation3 + $0x28] sm:$0xff]
      %v2812 = vld [vmem:[#allocation3 + $0x30] sm:$0xff]
      %v2813 = vld [vmem:[#allocation3 + $0x38] sm:$0xff]
      %v2814 = vld [vmem:[#allocation3 + $0x40] sm:$0xff]
      %v2815 = vld [vmem:[#allocation3 + $0x48] sm:$0xff]
      %v2816 = vld [vmem:[#allocation3 + $0x50] sm:$0xff]
      %v2817 = vld [vmem:[#allocation3 + $0x58] sm:$0xff]
      %v2818 = vld [vmem:[#allocation3 + $0x60] sm:$0xff]
      %v2819 = vld [vmem:[#allocation3 + $0x68] sm:$0xff]
      %v2820 = vld [vmem:[#allocation3 + $0x70] sm:$0xff]
      %v2821 = vld [vmem:[#allocation3 + $0x78] sm:$0xff]
      %v2822 = vld [vmem:[#allocation3 + $0x80] sm:$0xff]
      %v2823 = vld [vmem:[#allocation3 + $0x88] sm:$0xff]
      %v2824 = vld [vmem:[#allocation3 + $0x90] sm:$0xff]
      %v2825 = vld [vmem:[#allocation3 + $0x98] sm:$0xff]
      %v2826 = vld [vmem:[#allocation3 + $0xa0] sm:$0xff]
      %v2827 = vld [vmem:[#allocation3 + $0xa8] sm:$0xff]
      %v2828 = vld [vmem:[#allocation3 + $0xb0] sm:$0xff]
      %v2829 = vld [vmem:[#allocation3 + $0xb8] sm:$0xff]
      %v2830 = vld [vmem:[#allocation3 + $0xc0] sm:$0xff]
      %v2831 = vld [vmem:[#allocation3 + $0xc8] sm:$0xff]
      %v2832 = vld [vmem:[#allocation3 + $0xd0] sm:$0xff]
      %v2833 = vld [vmem:[#allocation3 + $0xd8] sm:$0xff]
      %v2834 = vld [vmem:[#allocation3 + $0xe0] sm:$0xff]
      %v2835 = vld [vmem:[#allocation3 + $0xe8] sm:$0xff]
      %v2836 = vld [vmem:[#allocation3 + $0xf0] sm:$0xff]
      %v2837 = vld [vmem:[#allocation3 + $0xf8] sm:$0xff]
      %v2838 = vld [vmem:[#allocation3 + $0x100] sm:$0xff]
      %v2839 = vld [vmem:[#allocation3 + $0x108] sm:$0xff]
      %v2840 = vld [vmem:[#allocation3 + $0x110] sm:$0xff]
      %v2841 = vld [vmem:[#allocation3 + $0x118] sm:$0xff]
      %v2842 = vld [vmem:[#allocation3 + $0x120] sm:$0xff]
      %v2843 = vld [vmem:[#allocation3 + $0x128] sm:$0xff]
      %v2844 = vld [vmem:[#allocation3 + $0x130] sm:$0xff]
      %v2845 = vld [vmem:[#allocation3 + $0x138] sm:$0xff]
      %v2846 = vld [vmem:[#allocation3 + $0x140] sm:$0xff]
      %v2847 = vld [vmem:[#allocation3 + $0x148] sm:$0xff]
      %v2848 = vld [vmem:[#allocation3 + $0x150] sm:$0xff]
      %v2849 = vld [vmem:[#allocation3 + $0x158] sm:$0xff]
      %v2850 = vld [vmem:[#allocation3 + $0x160] sm:$0xff]
      %v2851 = vld [vmem:[#allocation3 + $0x168] sm:$0xff]
      %v2852 = vld [vmem:[#allocation3 + $0x170] sm:$0xff]
      %v2853 = vld [vmem:[#allocation3 + $0x178] sm:$0xff]
      %v2854 = vld [vmem:[#allocation3 + $0x180] sm:$0xff]
      %v2855 = vld [vmem:[#allocation3 + $0x188] sm:$0xff]
      %v2856 = vld [vmem:[#allocation3 + $0x190] sm:$0xff]
      %v2857 = vld [vmem:[#allocation3 + $0x198] sm:$0xff]
      %v2858 = vld [vmem:[#allocation3 + $0x1a0] sm:$0xff]
      %v2859 = vld [vmem:[#allocation3 + $0x1a8] sm:$0xff]
      %v2860 = vld [vmem:[#allocation3 + $0x1b0] sm:$0xff]
      %v2861 = vld [vmem:[#allocation3 + $0x1b8] sm:$0xff]
      %v2862 = vld [vmem:[#allocation3 + $0x1c0] sm:$0xff]
      %v2863 = vld [vmem:[#allocation3 + $0x1c8] sm:$0xff]
      %v2864 = vld [vmem:[#allocation3 + $0x1d0] sm:$0xff]
      %v2865 = vld [vmem:[#allocation3 + $0x1d8] sm:$0xff]
      %v2866 = vld [vmem:[#allocation3 + $0x1e0] sm:$0xff]
      %v2867 = vld [vmem:[#allocation3 + $0x1e8] sm:$0xff]
      %v2868 = vld [vmem:[#allocation3 + $0x1f0] sm:$0xff]
      %v2869 = vld [vmem:[#allocation3 + $0x1f8] sm:$0xff]
      %v2870 = vld [vmem:[#allocation3 + $0x200] sm:$0xff]
      %v2871 = vld [vmem:[#allocation3 + $0x208] sm:$0xff]
      %v2872 = vld [vmem:[#allocation3 + $0x210] sm:$0xff]
      %v2873 = vld [vmem:[#allocation3 + $0x218] sm:$0xff]
      %v2874 = vld [vmem:[#allocation3 + $0x220] sm:$0xff]
      %v2875 = vld [vmem:[#allocation3 + $0x228] sm:$0xff]
      %v2876 = vld [vmem:[#allocation3 + $0x230] sm:$0xff]
      %v2877 = vld [vmem:[#allocation3 + $0x238] sm:$0xff]
      %v2878 = vld [vmem:[#allocation3 + $0x240] sm:$0xff]
      %v2879 = vld [vmem:[#allocation3 + $0x248] sm:$0xff]
      %v2880 = vld [vmem:[#allocation3 + $0x250] sm:$0xff]
      %v2881 = vld [vmem:[#allocation3 + $0x258] sm:$0xff]
      %v2882 = vld [vmem:[#allocation3 + $0x260] sm:$0xff]
      %v2883 = vld [vmem:[#allocation3 + $0x268] sm:$0xff]
      %v2884 = vld [vmem:[#allocation3 + $0x270] sm:$0xff]
      %v2885 = vld [vmem:[#allocation3 + $0x278] sm:$0xff]
      %v2886 = vld [vmem:[#allocation3 + $0x280] sm:$0xff]
      %v2887 = vld [vmem:[#allocation3 + $0x288] sm:$0xff]
      %v2888 = vld [vmem:[#allocation3 + $0x290] sm:$0xff]
      %v2889 = vld [vmem:[#allocation3 + $0x298] sm:$0xff]
      %v2890 = vld [vmem:[#allocation3 + $0x2a0] sm:$0xff]
      %v2891 = vld [vmem:[#allocation3 + $0x2a8] sm:$0xff]
      %v2892 = vld [vmem:[#allocation3 + $0x2b0] sm:$0xff]
      %v2893 = vld [vmem:[#allocation3 + $0x2b8] sm:$0xff]
      %v2894 = vld [vmem:[#allocation3 + $0x2c0] sm:$0xff]
      %v2895 = vld [vmem:[#allocation3 + $0x2c8] sm:$0xff]
      %v2896 = vld [vmem:[#allocation3 + $0x2d0] sm:$0xff]
      %v2897 = vld [vmem:[#allocation3 + $0x2d8] sm:$0xff]
      %v2898 = vld [vmem:[#allocation3 + $0x2e0] sm:$0xff]
      %v2899 = vld [vmem:[#allocation3 + $0x2e8] sm:$0xff]
      %v2900 = vld [vmem:[#allocation3 + $0x2f0] sm:$0xff]
      %v2901 = vld [vmem:[#allocation3 + $0x2f8] sm:$0xff]
      %v2902 = vld [vmem:[#allocation3 + $0x300] sm:$0xff]
      %v2903 = vld [vmem:[#allocation3 + $0x308] sm:$0xff]
      %v2904 = vld [vmem:[#allocation3 + $0x310] sm:$0xff]
      %v2905 = vld [vmem:[#allocation3 + $0x318] sm:$0xff]
      %v2906 = vld [vmem:[%s2] sm:$0x3f]
      %2908 = vset.pattern.permute.xlu0 0
      %2909 = vperm.xlu0 %2908, %v2906
      %v2910 = vpop.permute.xlu0 %2909
      %v2913 = vunpack.c.l.b16 %v2805
      %v2914 = vunpack.c.h.b16 %v2805
      %v2915 = vpack.c.b16 %v2913, %v2913
      %v2916 = vpack.c.b16 %v2914, %v2914
      %v3018 = vunpack.c.l.b16 %v2806
      %v3019 = vunpack.c.h.b16 %v2806
      %v3020 = vunpack.c.l.b16 %v2807
      %v3021 = vunpack.c.h.b16 %v2807
      %v3022 = vunpack.c.l.b16 %v2808
      %v3023 = vunpack.c.h.b16 %v2808
      %v3024 = vunpack.c.l.b16 %v2809
      %v3025 = vunpack.c.h.b16 %v2809
      %v3026 = vunpack.c.l.b16 %v2810
      %v3027 = vunpack.c.h.b16 %v2810
      %v3028 = vunpack.c.l.b16 %v2811
      %v3029 = vunpack.c.h.b16 %v2811
      %v3030 = vunpack.c.l.b16 %v2812
      %v3031 = vunpack.c.h.b16 %v2812
      %v3032 = vunpack.c.l.b16 %v2813
      %v3033 = vunpack.c.h.b16 %v2813
      %v3034 = vunpack.c.l.b16 %v2814
      %v3035 = vunpack.c.h.b16 %v2814
      %v3036 = vunpack.c.l.b16 %v2815
      %v3037 = vunpack.c.h.b16 %v2815
      %v3038 = vunpack.c.l.b16 %v2816
      %v3039 = vunpack.c.h.b16 %v2816
      %v3040 = vunpack.c.l.b16 %v2817
      %v3041 = vunpack.c.h.b16 %v2817
      %v3042 = vunpack.c.l.b16 %v2818
      %v3043 = vunpack.c.h.b16 %v2818
      %v3044 = vunpack.c.l.b16 %v2819
      %v3045 = vunpack.c.h.b16 %v2819
      %v3046 = vunpack.c.l.b16 %v2820
      %v3047 = vunpack.c.h.b16 %v2820
      %v3048 = vunpack.c.l.b16 %v2821
      %v3049 = vunpack.c.h.b16 %v2821
      %v3050 = vunpack.c.l.b16 %v2822
      %v3051 = vunpack.c.h.b16 %v2822
      %v3052 = vunpack.c.l.b16 %v2823
      %v3053 = vunpack.c.h.b16 %v2823
      %v3054 = vunpack.c.l.b16 %v2824
      %v3055 = vunpack.c.h.b16 %v2824
      %v3056 = vunpack.c.l.b16 %v2825
      %v3057 = vunpack.c.h.b16 %v2825
      %v3058 = vunpack.c.l.b16 %v2826
      %v3059 = vunpack.c.h.b16 %v2826
      %v3060 = vunpack.c.l.b16 %v2827
      %v3061 = vunpack.c.h.b16 %v2827
      %v3062 = vunpack.c.l.b16 %v2828
      %v3063 = vunpack.c.h.b16 %v2828
      %v3064 = vunpack.c.l.b16 %v2829
      %v3065 = vunpack.c.h.b16 %v2829
      %v3066 = vunpack.c.l.b16 %v2830
      %v3067 = vunpack.c.h.b16 %v2830
      %v3068 = vunpack.c.l.b16 %v2831
      %v3069 = vunpack.c.h.b16 %v2831
      %v3070 = vunpack.c.l.b16 %v2832
      %v3071 = vunpack.c.h.b16 %v2832
      %v3072 = vunpack.c.l.b16 %v2833
      %v3073 = vunpack.c.h.b16 %v2833
      %v3074 = vunpack.c.l.b16 %v2834
      %v3075 = vunpack.c.h.b16 %v2834
      %v3076 = vunpack.c.l.b16 %v2835
      %v3077 = vunpack.c.h.b16 %v2835
      %v3078 = vunpack.c.l.b16 %v2836
      %v3079 = vunpack.c.h.b16 %v2836
      %v3080 = vunpack.c.l.b16 %v2837
      %v3081 = vunpack.c.h.b16 %v2837
      %v3082 = vunpack.c.l.b16 %v2838
      %v3083 = vunpack.c.h.b16 %v2838
      %v3084 = vunpack.c.l.b16 %v2839
      %v3085 = vunpack.c.h.b16 %v2839
      %v3086 = vunpack.c.l.b16 %v2840
      %v3087 = vunpack.c.h.b16 %v2840
      %v3088 = vunpack.c.l.b16 %v2841
      %v3089 = vunpack.c.h.b16 %v2841
      %v3090 = vunpack.c.l.b16 %v2842
      %v3091 = vunpack.c.h.b16 %v2842
      %v3092 = vunpack.c.l.b16 %v2843
      %v3093 = vunpack.c.h.b16 %v2843
      %v3094 = vunpack.c.l.b16 %v2844
      %v3095 = vunpack.c.h.b16 %v2844
      %v3096 = vunpack.c.l.b16 %v2845
      %v3097 = vunpack.c.h.b16 %v2845
      %v3098 = vunpack.c.l.b16 %v2846
      %v3099 = vunpack.c.h.b16 %v2846
      %v3100 = vunpack.c.l.b16 %v2847
      %v3101 = vunpack.c.h.b16 %v2847
      %v3102 = vunpack.c.l.b16 %v2848
      %v3103 = vunpack.c.h.b16 %v2848
      %v3104 = vunpack.c.l.b16 %v2849
      %v3105 = vunpack.c.h.b16 %v2849
      %v3106 = vunpack.c.l.b16 %v2850
      %v3107 = vunpack.c.h.b16 %v2850
      %v3108 = vunpack.c.l.b16 %v2851
      %v3109 = vunpack.c.h.b16 %v2851
      %v3110 = vunpack.c.l.b16 %v2852
      %v3111 = vunpack.c.h.b16 %v2852
      %v3112 = vunpack.c.l.b16 %v2853
      %v3113 = vunpack.c.h.b16 %v2853
      %v3114 = vunpack.c.l.b16 %v2854
      %v3115 = vunpack.c.h.b16 %v2854
      %v3116 = vunpack.c.l.b16 %v2855
      %v3117 = vunpack.c.h.b16 %v2855
      %v3118 = vunpack.c.l.b16 %v2856
      %v3119 = vunpack.c.h.b16 %v2856
      %v3120 = vunpack.c.l.b16 %v2857
      %v3121 = vunpack.c.h.b16 %v2857
      %v3122 = vunpack.c.l.b16 %v2858
      %v3123 = vunpack.c.h.b16 %v2858
      %v3124 = vunpack.c.l.b16 %v2859
      %v3125 = vunpack.c.h.b16 %v2859
      %v3126 = vunpack.c.l.b16 %v2860
      %v3127 = vunpack.c.h.b16 %v2860
      %v3128 = vunpack.c.l.b16 %v2861
      %v3129 = vunpack.c.h.b16 %v2861
      %v3130 = vunpack.c.l.b16 %v2862
      %v3131 = vunpack.c.h.b16 %v2862
      %v3132 = vunpack.c.l.b16 %v2863
      %v3133 = vunpack.c.h.b16 %v2863
      %v3134 = vunpack.c.l.b16 %v2864
      %v3135 = vunpack.c.h.b16 %v2864
      %v3136 = vunpack.c.l.b16 %v2865
      %v3137 = vunpack.c.h.b16 %v2865
      %v3138 = vunpack.c.l.b16 %v2866
      %v3139 = vunpack.c.h.b16 %v2866
      %v3140 = vunpack.c.l.b16 %v2867
      %v3141 = vunpack.c.h.b16 %v2867
      %v3142 = vunpack.c.l.b16 %v2868
      %v3143 = vunpack.c.h.b16 %v2868
      %v3144 = vunpack.c.l.b16 %v2869
      %v3145 = vunpack.c.h.b16 %v2869
      %v3146 = vunpack.c.l.b16 %v2870
      %v3147 = vunpack.c.h.b16 %v2870
      %v3148 = vunpack.c.l.b16 %v2871
      %v3149 = vunpack.c.h.b16 %v2871
      %v3150 = vunpack.c.l.b16 %v2872
      %v3151 = vunpack.c.h.b16 %v2872
      %v3152 = vunpack.c.l.b16 %v2873
      %v3153 = vunpack.c.h.b16 %v2873
      %v3154 = vunpack.c.l.b16 %v2874
      %v3155 = vunpack.c.h.b16 %v2874
      %v3156 = vunpack.c.l.b16 %v2875
      %v3157 = vunpack.c.h.b16 %v2875
      %v3158 = vunpack.c.l.b16 %v2876
      %v3159 = vunpack.c.h.b16 %v2876
      %v3160 = vunpack.c.l.b16 %v2877
      %v3161 = vunpack.c.h.b16 %v2877
      %v3162 = vunpack.c.l.b16 %v2878
      %v3163 = vunpack.c.h.b16 %v2878
      %v3164 = vunpack.c.l.b16 %v2879
      %v3165 = vunpack.c.h.b16 %v2879
      %v3166 = vunpack.c.l.b16 %v2880
      %v3167 = vunpack.c.h.b16 %v2880
      %v3168 = vunpack.c.l.b16 %v2881
      %v3169 = vunpack.c.h.b16 %v2881
      %v3170 = vunpack.c.l.b16 %v2882
      %v3171 = vunpack.c.h.b16 %v2882
      %v3172 = vunpack.c.l.b16 %v2883
      %v3173 = vunpack.c.h.b16 %v2883
      %v3174 = vunpack.c.l.b16 %v2884
      %v3175 = vunpack.c.h.b16 %v2884
      %v3176 = vunpack.c.l.b16 %v2885
      %v3177 = vunpack.c.h.b16 %v2885
      %v3178 = vunpack.c.l.b16 %v2886
      %v3179 = vunpack.c.h.b16 %v2886
      %v3180 = vunpack.c.l.b16 %v2887
      %v3181 = vunpack.c.h.b16 %v2887
      %v3182 = vunpack.c.l.b16 %v2888
      %v3183 = vunpack.c.h.b16 %v2888
      %v3184 = vunpack.c.l.b16 %v2889
      %v3185 = vunpack.c.h.b16 %v2889
      %v3186 = vunpack.c.l.b16 %v2890
      %v3187 = vunpack.c.h.b16 %v2890
      %v3188 = vunpack.c.l.b16 %v2891
      %v3189 = vunpack.c.h.b16 %v2891
      %v3190 = vunpack.c.l.b16 %v2892
      %v3191 = vunpack.c.h.b16 %v2892
      %v3192 = vunpack.c.l.b16 %v2893
      %v3193 = vunpack.c.h.b16 %v2893
      %v3194 = vunpack.c.l.b16 %v2894
      %v3195 = vunpack.c.h.b16 %v2894
      %v3196 = vunpack.c.l.b16 %v2895
      %v3197 = vunpack.c.h.b16 %v2895
      %v3198 = vunpack.c.l.b16 %v2896
      %v3199 = vunpack.c.h.b16 %v2896
      %v3200 = vunpack.c.l.b16 %v2897
      %v3201 = vunpack.c.h.b16 %v2897
      %v3202 = vunpack.c.l.b16 %v2898
      %v3203 = vunpack.c.h.b16 %v2898
      %v3204 = vunpack.c.l.b16 %v2899
      %v3205 = vunpack.c.h.b16 %v2899
      %v3206 = vunpack.c.l.b16 %v2900
      %v3207 = vunpack.c.h.b16 %v2900
      %v3208 = vunpack.c.l.b16 %v2901
      %v3209 = vunpack.c.h.b16 %v2901
      %v3210 = vunpack.c.l.b16 %v2902
      %v3211 = vunpack.c.h.b16 %v2902
      %v3212 = vunpack.c.l.b16 %v2903
      %v3213 = vunpack.c.h.b16 %v2903
      %v3214 = vunpack.c.l.b16 %v2904
      %v3215 = vunpack.c.h.b16 %v2904
      %v3216 = vunpack.c.l.b16 %v2905
      %v3217 = vunpack.c.h.b16 %v2905
      %v3218 = vpack.c.b16 %v3026, %v3018
      %v3219 = vpack.c.b16 %v3027, %v3019
      %v3220 = vpack.c.b16 %v3028, %v3020
      %v3221 = vpack.c.b16 %v3029, %v3021
      %v3222 = vpack.c.b16 %v3030, %v3022
      %v3223 = vpack.c.b16 %v3031, %v3023
      %v3224 = vpack.c.b16 %v3032, %v3024
      %v3225 = vpack.c.b16 %v3033, %v3025
      %v3226 = vpack.c.b16 %v3042, %v3034
      %v3227 = vpack.c.b16 %v3043, %v3035
      %v3228 = vpack.c.b16 %v3044, %v3036
      %v3229 = vpack.c.b16 %v3045, %v3037
      %v3230 = vpack.c.b16 %v3046, %v3038
      %v3231 = vpack.c.b16 %v3047, %v3039
      %v3232 = vpack.c.b16 %v3048, %v3040
      %v3233 = vpack.c.b16 %v3049, %v3041
      %v3234 = vpack.c.b16 %v3058, %v3050
      %v3235 = vpack.c.b16 %v3059, %v3051
      %v3236 = vpack.c.b16 %v3060, %v3052
      %v3237 = vpack.c.b16 %v3061, %v3053
      %v3238 = vpack.c.b16 %v3062, %v3054
      %v3239 = vpack.c.b16 %v3063, %v3055
      %v3240 = vpack.c.b16 %v3064, %v3056
      %v3241 = vpack.c.b16 %v3065, %v3057
      %v3242 = vpack.c.b16 %v3074, %v3066
      %v3243 = vpack.c.b16 %v3075, %v3067
      %v3244 = vpack.c.b16 %v3076, %v3068
      %v3245 = vpack.c.b16 %v3077, %v3069
      %v3246 = vpack.c.b16 %v3078, %v3070
      %v3247 = vpack.c.b16 %v3079, %v3071
      %v3248 = vpack.c.b16 %v3080, %v3072
      %v3249 = vpack.c.b16 %v3081, %v3073
      %v3250 = vpack.c.b16 %v3090, %v3082
      %v3251 = vpack.c.b16 %v3091, %v3083
      %v3252 = vpack.c.b16 %v3092, %v3084
      %v3253 = vpack.c.b16 %v3093, %v3085
      %v3254 = vpack.c.b16 %v3094, %v3086
      %v3255 = vpack.c.b16 %v3095, %v3087
      %v3256 = vpack.c.b16 %v3096, %v3088
      %v3257 = vpack.c.b16 %v3097, %v3089
      %v3258 = vpack.c.b16 %v3106, %v3098
      %v3259 = vpack.c.b16 %v3107, %v3099
      %v3260 = vpack.c.b16 %v3108, %v3100
      %v3261 = vpack.c.b16 %v3109, %v3101
      %v3262 = vpack.c.b16 %v3110, %v3102
      %v3263 = vpack.c.b16 %v3111, %v3103
      %v3264 = vpack.c.b16 %v3112, %v3104
      %v3265 = vpack.c.b16 %v3113, %v3105
      %v3266 = vpack.c.b16 %v3122, %v3114
      %v3267 = vpack.c.b16 %v3123, %v3115
      %v3268 = vpack.c.b16 %v3124, %v3116
      %v3269 = vpack.c.b16 %v3125, %v3117
      %v3270 = vpack.c.b16 %v3126, %v3118
      %v3271 = vpack.c.b16 %v3127, %v3119
      %v3272 = vpack.c.b16 %v3128, %v3120
      %v3273 = vpack.c.b16 %v3129, %v3121
      %v3274 = vpack.c.b16 %v3138, %v3130
      %v3275 = vpack.c.b16 %v3139, %v3131
      %v3276 = vpack.c.b16 %v3140, %v3132
      %v3277 = vpack.c.b16 %v3141, %v3133
      %v3278 = vpack.c.b16 %v3142, %v3134
      %v3279 = vpack.c.b16 %v3143, %v3135
      %v3280 = vpack.c.b16 %v3144, %v3136
      %v3281 = vpack.c.b16 %v3145, %v3137
      %v3282 = vpack.c.b16 %v3154, %v3146
      %v3283 = vpack.c.b16 %v3155, %v3147
      %v3284 = vpack.c.b16 %v3156, %v3148
      %v3285 = vpack.c.b16 %v3157, %v3149
      %v3286 = vpack.c.b16 %v3158, %v3150
      %v3287 = vpack.c.b16 %v3159, %v3151
      %v3288 = vpack.c.b16 %v3160, %v3152
      %v3289 = vpack.c.b16 %v3161, %v3153
      %v3290 = vpack.c.b16 %v3170, %v3162
      %v3291 = vpack.c.b16 %v3171, %v3163
      %v3292 = vpack.c.b16 %v3172, %v3164
      %v3293 = vpack.c.b16 %v3173, %v3165
      %v3294 = vpack.c.b16 %v3174, %v3166
      %v3295 = vpack.c.b16 %v3175, %v3167
      %v3296 = vpack.c.b16 %v3176, %v3168
      %v3297 = vpack.c.b16 %v3177, %v3169
      %v3298 = vpack.c.b16 %v3186, %v3178
      %v3299 = vpack.c.b16 %v3187, %v3179
      %v3300 = vpack.c.b16 %v3188, %v3180
      %v3301 = vpack.c.b16 %v3189, %v3181
      %v3302 = vpack.c.b16 %v3190, %v3182
      %v3303 = vpack.c.b16 %v3191, %v3183
      %v3304 = vpack.c.b16 %v3192, %v3184
      %v3305 = vpack.c.b16 %v3193, %v3185
      %v3306 = vpack.c.b16 %v3202, %v3194
      %v3307 = vpack.c.b16 %v3203, %v3195
      %v3308 = vpack.c.b16 %v3204, %v3196
      %v3309 = vpack.c.b16 %v3205, %v3197
      %v3310 = vpack.c.b16 %v3206, %v3198
      %v3311 = vpack.c.b16 %v3207, %v3199
      %v3312 = vpack.c.b16 %v3208, %v3200
      %v3313 = vpack.c.b16 %v3209, %v3201
      %v3314 = vpack.c.b16 %v3210, %v3210
      %v3315 = vpack.c.b16 %v3211, %v3211
      %v3316 = vpack.c.b16 %v3212, %v3212
      %v3317 = vpack.c.b16 %v3213, %v3213
      %v3318 = vpack.c.b16 %v3214, %v3214
      %v3319 = vpack.c.b16 %v3215, %v3215
      %v3320 = vpack.c.b16 %v3216, %v3216
      %v3321 = vpack.c.b16 %v3217, %v3217
      %vm3418 = vcmask 588800
      %v3420 = vsel %vm3418, %v2916, 0
      %vm3422 = vcmask 1043456
      %v3424 = vsel %vm3422, %v3314, 0
      %v3427 = vsel %vm3422, %v3315, 0
      %v3430 = vsel %vm3422, %v3316, 0
      %v3433 = vsel %vm3422, %v3317, 0
      %v3436 = vsel %vm3422, %v3318, 0
      %v3439 = vsel %vm3422, %v3319, 0
      %v3442 = vsel %vm3422, %v3320, 0
      %v3445 = vsel %vm3422, %v3321, 0
      %3447 = vmatprep.subr.bf16.mxu0 %v3275
      %3448 = vmatpush1.bf16.msra.mxu0 %v3274
      %3449 = vmatprep.subr.bf16.mxu0 %v3267
      %3450 = vmatpush1.bf16.msra.mxu0 %v3266
      %3451 = vmatprep.subr.bf16.mxu0 %v3259
      %3452 = vmatpush1.bf16.msra.mxu0 %v3258
      %3453 = vmatprep.subr.bf16.mxu0 %v3251
      %3454 = vmatpush1.bf16.msra.mxu0 %v3250
      %3455 = vmatprep.subr.bf16.mxu0 %v3243
      %3456 = vmatpush1.bf16.msra.mxu0 %v3242
      %3457 = vmatprep.subr.bf16.mxu0 %v3235
      %3458 = vmatpush1.bf16.msra.mxu0 %v3234
      %3459 = vmatprep.subr.bf16.mxu0 %v3227
      %3460 = vmatpush1.bf16.msra.mxu0 %v3226
      %3461 = vmatprep.subr.bf16.mxu0 %v3219
      %3462 = vmatpush1.bf16.msra.mxu0 %v3218
      %3463 = vmatprep.subr.bf16.mxu0 0
      %3464 = vmatpush2.bf16.msra.mxu0 0
      %3465 = vmatprep.subr.bf16.mxu0 0
      %3466 = vmatpush2.bf16.msra.mxu0 0
      %3467 = vmatprep.subr.bf16.mxu0 0
      %3468 = vmatpush2.bf16.msra.mxu0 0
      %3469 = vmatprep.subr.bf16.mxu0 %v3427
      %3470 = vmatpush2.bf16.msra.mxu0 %v3424
      %3471 = vmatprep.subr.bf16.mxu0 %v3307
      %3472 = vmatpush2.bf16.msra.mxu0 %v3306
      %3473 = vmatprep.subr.bf16.mxu0 %v3299
      %3474 = vmatpush2.bf16.msra.mxu0 %v3298
      %3475 = vmatprep.subr.bf16.mxu0 %v3291
      %3476 = vmatpush2.bf16.msra.mxu0 %v3290
      %3477 = vmatprep.subr.bf16.mxu0 %v3283
      %3478 = vmatpush2.bf16.msra.mxu0 %v3282
      %3479 = vmatprep.mubr.bf16.mxu0 %v3420
      %3480 = vmatmul.mubr.bf16.gmra.mxu0 %v2915
      %v3481 = vpop.f32.mrf.mxu0
      %v3482 = vadd.f32 %v2910, %v3481
      %v3483 = vpop.f32.mrf.mxu0
      %v3484 = vadd.f32 %v2910, %v3483
      %v3485 = vpop.f32.mrf.mxu0
      %v3486 = vpop.f32.mrf.mxu0
      %3487 = vdwg.mxu0
      %3488 = vmatprep.subr.bf16.mxu0 %v3277
      %3489 = vmatpush1.bf16.msra.mxu0 %v3276
      %3490 = vmatprep.subr.bf16.mxu0 %v3269
      %3491 = vmatpush1.bf16.msra.mxu0 %v3268
      %3492 = vmatprep.subr.bf16.mxu0 %v3261
      %3493 = vmatpush1.bf16.msra.mxu0 %v3260
      %3494 = vmatprep.subr.bf16.mxu0 %v3253
      %3495 = vmatpush1.bf16.msra.mxu0 %v3252
      %3496 = vmatprep.subr.bf16.mxu0 %v3245
      %3497 = vmatpush1.bf16.msra.mxu0 %v3244
      %3498 = vmatprep.subr.bf16.mxu0 %v3237
      %3499 = vmatpush1.bf16.msra.mxu0 %v3236
      %3500 = vmatprep.subr.bf16.mxu0 %v3229
      %3501 = vmatpush1.bf16.msra.mxu0 %v3228
      %3502 = vmatprep.subr.bf16.mxu0 %v3221
      %3503 = vmatpush1.bf16.msra.mxu0 %v3220
      %3504 = vmatprep.subr.bf16.mxu0 0
      %3505 = vmatpush2.bf16.msra.mxu0 0
      %3506 = vmatprep.subr.bf16.mxu0 0
      %3507 = vmatpush2.bf16.msra.mxu0 0
      %3508 = vmatprep.subr.bf16.mxu0 0
      %3509 = vmatpush2.bf16.msra.mxu0 0
      %3510 = vmatprep.subr.bf16.mxu0 %v3433
      %3511 = vmatpush2.bf16.msra.mxu0 %v3430
      %3512 = vmatprep.subr.bf16.mxu0 %v3309
      %3513 = vmatpush2.bf16.msra.mxu0 %v3308
      %3514 = vmatprep.subr.bf16.mxu0 %v3301
      %3515 = vmatpush2.bf16.msra.mxu0 %v3300
      %3516 = vmatprep.subr.bf16.mxu0 %v3293
      %3517 = vmatpush2.bf16.msra.mxu0 %v3292
      %3518 = vmatprep.subr.bf16.mxu0 %v3285
      %3519 = vmatpush2.bf16.msra.mxu0 %v3284
      %3520 = vmatprep.mubr.bf16.mxu0 %v3420
      %3521 = vmatmul.mubr.bf16.gmra.mxu0 %v2915
      %v3522 = vpop.f32.mrf.mxu0
      %v3523 = vadd.f32 %v2910, %v3522
      %v3524 = vpop.f32.mrf.mxu0
      %v3525 = vadd.f32 %v2910, %v3524
      %v3526 = vpop.f32.mrf.mxu0
      %v3527 = vpop.f32.mrf.mxu0
      %3528 = vdwg.mxu0
      %3529 = vmatprep.subr.bf16.mxu0 %v3279
      %3530 = vmatpush1.bf16.msra.mxu0 %v3278
      %3531 = vmatprep.subr.bf16.mxu0 %v3271
      %3532 = vmatpush1.bf16.msra.mxu0 %v3270
      %3533 = vmatprep.subr.bf16.mxu0 %v3263
      %3534 = vmatpush1.bf16.msra.mxu0 %v3262
      %3535 = vmatprep.subr.bf16.mxu0 %v3255
      %3536 = vmatpush1.bf16.msra.mxu0 %v3254
      %3537 = vmatprep.subr.bf16.mxu0 %v3247
      %3538 = vmatpush1.bf16.msra.mxu0 %v3246
      %3539 = vmatprep.subr.bf16.mxu0 %v3239
      %3540 = vmatpush1.bf16.msra.mxu0 %v3238
      %3541 = vmatprep.subr.bf16.mxu0 %v3231
      %3542 = vmatpush1.bf16.msra.mxu0 %v3230
      %3543 = vmatprep.subr.bf16.mxu0 %v3223
      %3544 = vmatpush1.bf16.msra.mxu0 %v3222
      %3545 = vmatprep.subr.bf16.mxu0 0
      %3546 = vmatpush2.bf16.msra.mxu0 0
      %3547 = vmatprep.subr.bf16.mxu0 0
      %3548 = vmatpush2.bf16.msra.mxu0 0
      %3549 = vmatprep.subr.bf16.mxu0 0
      %3550 = vmatpush2.bf16.msra.mxu0 0
      %3551 = vmatprep.subr.bf16.mxu0 %v3439
      %3552 = vmatpush2.bf16.msra.mxu0 %v3436
      %3553 = vmatprep.subr.bf16.mxu0 %v3311
      %3554 = vmatpush2.bf16.msra.mxu0 %v3310
      %3555 = vmatprep.subr.bf16.mxu0 %v3303
      %3556 = vmatpush2.bf16.msra.mxu0 %v3302
      %3557 = vmatprep.subr.bf16.mxu0 %v3295
      %3558 = vmatpush2.bf16.msra.mxu0 %v3294
      %3559 = vmatprep.subr.bf16.mxu0 %v3287
      %3560 = vmatpush2.bf16.msra.mxu0 %v3286
      %3561 = vmatprep.mubr.bf16.mxu0 %v3420
      %3562 = vmatmul.mubr.bf16.gmra.mxu0 %v2915
      %v3563 = vpop.f32.mrf.mxu0
      %v3564 = vadd.f32 %v2910, %v3563
      %v3565 = vpop.f32.mrf.mxu0
      %v3566 = vadd.f32 %v2910, %v3565
      %v3567 = vpop.f32.mrf.mxu0
      %v3568 = vpop.f32.mrf.mxu0
      %3569 = vdwg.mxu0
      %3570 = vmatprep.subr.bf16.mxu0 %v3281
      %3571 = vmatpush1.bf16.msra.mxu0 %v3280
      %3572 = vmatprep.subr.bf16.mxu0 %v3273
      %3573 = vmatpush1.bf16.msra.mxu0 %v3272
      %3574 = vmatprep.subr.bf16.mxu0 %v3265
      %3575 = vmatpush1.bf16.msra.mxu0 %v3264
      %3576 = vmatprep.subr.bf16.mxu0 %v3257
      %3577 = vmatpush1.bf16.msra.mxu0 %v3256
      %3578 = vmatprep.subr.bf16.mxu0 %v3249
      %3579 = vmatpush1.bf16.msra.mxu0 %v3248
      %3580 = vmatprep.subr.bf16.mxu0 %v3241
      %3581 = vmatpush1.bf16.msra.mxu0 %v3240
      %3582 = vmatprep.subr.bf16.mxu0 %v3233
      %3583 = vmatpush1.bf16.msra.mxu0 %v3232
      %3584 = vmatprep.subr.bf16.mxu0 %v3225
      %3585 = vmatpush1.bf16.msra.mxu0 %v3224
      %3586 = vmatprep.subr.bf16.mxu0 0
      %3587 = vmatpush2.bf16.msra.mxu0 0
      %3588 = vmatprep.subr.bf16.mxu0 0
      %3589 = vmatpush2.bf16.msra.mxu0 0
      %3590 = vmatprep.subr.bf16.mxu0 0
      %3591 = vmatpush2.bf16.msra.mxu0 0
      %3592 = vmatprep.subr.bf16.mxu0 %v3445
      %3593 = vmatpush2.bf16.msra.mxu0 %v3442
      %3594 = vmatprep.subr.bf16.mxu0 %v3313
      %3595 = vmatpush2.bf16.msra.mxu0 %v3312
      %3596 = vmatprep.subr.bf16.mxu0 %v3305
      %3597 = vmatpush2.bf16.msra.mxu0 %v3304
      %3598 = vmatprep.subr.bf16.mxu0 %v3297
      %3599 = vmatpush2.bf16.msra.mxu0 %v3296
      %3600 = vmatprep.subr.bf16.mxu0 %v3289
      %3601 = vmatpush2.bf16.msra.mxu0 %v3288
      %3602 = vmatprep.mubr.bf16.mxu0 %v3420
      %3603 = vmatmul.mubr.bf16.gmra.mxu0 %v2915
      %v3604 = vpop.f32.mrf.mxu0
      %v3605 = vadd.f32 %v2910, %v3604
      %v3606 = vpop.f32.mrf.mxu0
      %v3607 = vadd.f32 %v2910, %v3606
      %v3608 = vpop.f32.mrf.mxu0
      %v3609 = vpop.f32.mrf.mxu0
      %3610 = vdwg.mxu0
      %v3611 = vmax.f32 %v3482, 0.0
      %v3612 = vmax.f32 %v3484, 0.0
      %v3613 = vmax.f32 %v3523, 0.0
      %v3614 = vmax.f32 %v3525, 0.0
      %v3615 = vmax.f32 %v3564, 0.0
      %v3616 = vmax.f32 %v3566, 0.0
      %v3617 = vmax.f32 %v3605, 0.0
      %v3618 = vmax.f32 %v3607, 0.0
      %3619 = vst [vmem:[#allocation4] sm:$0x3f] %v3611
      %3620 = vst [vmem:[#allocation4 + $0x8] sm:$0x3f] %v3612
      %3621 = vst [vmem:[#allocation4 + $0x10] sm:$0x3f] %v3613
      %3622 = vst [vmem:[#allocation4 + $0x18] sm:$0x3f] %v3614
      %3623 = vst [vmem:[#allocation4 + $0x20] sm:$0x3f] %v3615
      %3624 = vst [vmem:[#allocation4 + $0x28] sm:$0x3f] %v3616
      %3625 = vst [vmem:[#allocation4 + $0x30] sm:$0x3f] %v3617
      %3626 = vst [vmem:[#allocation4 + $0x38] sm:$0x3f] %v3618
      %v3627 = vld [vmem:[#allocation4] sm:$0x3f]
      %v3628 = vld [vmem:[#allocation4 + $0x8] sm:$0x3f]
      %v3629 = vld [vmem:[#allocation4 + $0x10] sm:$0x3f]
      %v3630 = vld [vmem:[#allocation4 + $0x18] sm:$0x3f]
      %v3631 = vld [vmem:[#allocation4 + $0x20] sm:$0x3f]
      %v3632 = vld [vmem:[#allocation4 + $0x28] sm:$0x3f]
      %v3633 = vld [vmem:[#allocation4 + $0x30] sm:$0x3f]
      %v3634 = vld [vmem:[#allocation4 + $0x38] sm:$0x3f]
      %v3635 = vld [vmem:[#allocation4 + $0x40] sm:$0x3f]
      %3645 = vrot.lane.b32.xlu0 %v3627, 127
      %v3646 = vpop.permute.xlu0 %3645
      %3647 = vrot.lane.b32.xlu0 %v3628, 127
      %v3648 = vpop.permute.xlu0 %3647
      %3649 = vrot.lane.b32.xlu0 %v3629, 127
      %v3650 = vpop.permute.xlu0 %3649
      %3651 = vrot.lane.b32.xlu0 %v3630, 127
      %v3652 = vpop.permute.xlu0 %3651
      %3653 = vrot.lane.b32.xlu0 %v3631, 127
      %v3654 = vpop.permute.xlu0 %3653
      %3655 = vrot.lane.b32.xlu0 %v3632, 127
      %v3656 = vpop.permute.xlu0 %3655
      %3657 = vrot.lane.b32.xlu0 %v3633, 127
      %v3658 = vpop.permute.xlu0 %3657
      %3659 = vrot.lane.b32.xlu0 %v3634, 127
      %v3660 = vpop.permute.xlu0 %3659
      %3661 = vrot.lane.b32.xlu0 %v3635, 127
      %v3662 = vpop.permute.xlu0 %3661
      %vm3663 = vcmask 1039360
      %v3664 = vsel %vm3663, %v3646, %v3648
      %v3665 = vsel %vm3663, %v3648, %v3650
      %v3666 = vsel %vm3663, %v3650, %v3652
      %v3667 = vsel %vm3663, %v3652, %v3654
      %v3668 = vsel %vm3663, %v3654, %v3656
      %v3669 = vsel %vm3663, %v3656, %v3658
      %v3670 = vsel %vm3663, %v3658, %v3660
      %v3671 = vsel %vm3663, %v3660, %v3662
      %v3680 = vmax.f32 %v3627, %v3664
      %v3681 = vmax.f32 %v3628, %v3665
      %v3682 = vmax.f32 %v3629, %v3666
      %v3683 = vmax.f32 %v3630, %v3667
      %v3684 = vmax.f32 %v3631, %v3668
      %v3685 = vmax.f32 %v3632, %v3669
      %v3686 = vmax.f32 %v3633, %v3670
      %v3687 = vmax.f32 %v3634, %v3671
      %v3689 = vmax.f32 %v3635, %v3662
      %3699 = vrot.lane.b32.xlu0 %v3680, 96
      %v3700 = vpop.permute.xlu0 %3699
      %3701 = vrot.lane.b32.xlu0 %v3681, 96
      %v3702 = vpop.permute.xlu0 %3701
      %3703 = vrot.lane.b32.xlu0 %v3682, 96
      %v3704 = vpop.permute.xlu0 %3703
      %3705 = vrot.lane.b32.xlu0 %v3683, 96
      %v3706 = vpop.permute.xlu0 %3705
      %3707 = vrot.lane.b32.xlu0 %v3684, 96
      %v3708 = vpop.permute.xlu0 %3707
      %3709 = vrot.lane.b32.xlu0 %v3685, 96
      %v3710 = vpop.permute.xlu0 %3709
      %3711 = vrot.lane.b32.xlu0 %v3686, 96
      %v3712 = vpop.permute.xlu0 %3711
      %3713 = vrot.lane.b32.xlu0 %v3687, 96
      %v3714 = vpop.permute.xlu0 %3713
      %3715 = vrot.lane.b32.xlu0 %v3689, 96
      %v3716 = vpop.permute.xlu0 %3715
      %vm3717 = vcmask 785408
      %v3718 = vsel %vm3717, %v3700, %v3702
      %v3719 = vsel %vm3717, %v3702, %v3704
      %v3720 = vsel %vm3717, %v3704, %v3706
      %v3721 = vsel %vm3717, %v3706, %v3708
      %v3722 = vsel %vm3717, %v3708, %v3710
      %v3723 = vsel %vm3717, %v3710, %v3712
      %v3724 = vsel %vm3717, %v3712, %v3714
      %v3725 = vsel %vm3717, %v3714, %v3716
      %v3734 = vmax.f32 %v3680, %v3718
      %v3735 = vmax.f32 %v3681, %v3719
      %v3736 = vmax.f32 %v3682, %v3720
      %v3737 = vmax.f32 %v3683, %v3721
      %v3738 = vmax.f32 %v3684, %v3722
      %v3739 = vmax.f32 %v3685, %v3723
      %v3740 = vmax.f32 %v3686, %v3724
      %v3741 = vmax.f32 %v3687, %v3725
      %v3742 = vpack.c.bf16 %v3734, %v3734
      %v3743 = vpack.c.bf16 %v3735, %v3735
      %v3744 = vpack.c.bf16 %v3736, %v3736
      %v3745 = vpack.c.bf16 %v3737, %v3737
      %v3746 = vpack.c.bf16 %v3738, %v3738
      %v3747 = vpack.c.bf16 %v3739, %v3739
      %v3748 = vpack.c.bf16 %v3740, %v3740
      %v3749 = vpack.c.bf16 %v3741, %v3741
      %v3758 = vunpack.c.l.b16 %v3742
      %v3759 = vunpack.c.l.b16 %v3743
      %v3760 = vunpack.c.l.b16 %v3744
      %v3761 = vunpack.c.l.b16 %v3745
      %v3762 = vunpack.c.l.b16 %v3746
      %v3763 = vunpack.c.l.b16 %v3747
      %v3764 = vunpack.c.l.b16 %v3748
      %v3765 = vunpack.c.l.b16 %v3749
      %v3766 = vpack.c.b16 %v3759, %v3758
      %v3767 = vpack.c.b16 %v3761, %v3760
      %v3768 = vpack.c.b16 %v3763, %v3762
      %v3769 = vpack.c.b16 %v3765, %v3764
      %3774 = vst [vmem:[#allocation5] sm:$0x77] %v3766
      %3775 = vst [vmem:[#allocation5 + $0x8] sm:$0x77] %v3767
      %3776 = vst [vmem:[#allocation5 + $0x10] sm:$0x77] %v3768
      %3777 = vst [vmem:[#allocation5 + $0x18] sm:$0x77] %v3769
      %v3778 = vld [vmem:[#allocation5] sm:$0x77]
      %v3779 = vld [vmem:[#allocation5 + $0x8] sm:$0x77]
      %v3780 = vld [vmem:[#allocation5 + $0x10] sm:$0x77]
      %v3781 = vld [vmem:[#allocation5 + $0x18] sm:$0x77]
      %3782 = vst [vmem:[#allocation3] sm:$0x77] %v3778
      %3783 = vst [vmem:[#allocation3 + $0x8] sm:$0x77] %v3779
      %3784 = vst [vmem:[#allocation3 + $0x10] sm:$0x77] %v3780
      %3785 = vst [vmem:[#allocation3 + $0x18] sm:$0x77] %v3781
      %v3786 = vld [vmem:[#allocation5] sm:$0x77]
      %v3787 = vld [vmem:[#allocation5 + $0x8] sm:$0x77]
      %v3788 = vld [vmem:[#allocation5 + $0x10] sm:$0x77]
      %v3789 = vld [vmem:[#allocation5 + $0x18] sm:$0x77]
      %v3790 = vld [vmem:[#allocation5 + $0x20] sm:$0x7]
      %3796 = vrot.lane.b32.xlu0 %v3786, 126
      %v3797 = vpop.permute.xlu0 %3796
      %3798 = vrot.lane.b32.xlu0 %v3787, 126
      %v3799 = vpop.permute.xlu0 %3798
      %3800 = vrot.lane.b32.xlu0 %v3788, 126
      %v3801 = vpop.permute.xlu0 %3800
      %3802 = vrot.lane.b32.xlu0 %v3789, 126
      %v3803 = vpop.permute.xlu0 %3802
      %3804 = vrot.lane.b32.xlu0 %v3790, 126
      %v3805 = vpop.permute.xlu0 %3804
      %v3806 = vrot.slane %v3797, 4
      %v3807 = vrot.slane %v3799, 4
      %v3808 = vrot.slane %v3801, 4
      %v3809 = vrot.slane %v3803, 4
      %v3810 = vrot.slane %v3805, 4
      %v3811 = vsel %vm907, %v3806, %v3807
      %v3812 = vsel %vm992, %v3797, %v3811
      %v3813 = vsel %vm907, %v3807, %v3808
      %v3814 = vsel %vm992, %v3799, %v3813
      %v3815 = vsel %vm907, %v3808, %v3809
      %v3816 = vsel %vm992, %v3801, %v3815
      %v3817 = vsel %vm907, %v3809, %v3810
      %v3818 = vsel %vm992, %v3803, %v3817
      %3823 = vst [vmem:[#allocation3 + $0x20] sm:$0x77] %v3812
      %3824 = vst [vmem:[#allocation3 + $0x28] sm:$0x77] %v3814
      %3825 = vst [vmem:[#allocation3 + $0x30] sm:$0x77] %v3816
      %3826 = vst [vmem:[#allocation3 + $0x38] sm:$0x77] %v3818
      %v3827 = vld [vmem:[#allocation5] sm:$0x77]
      %v3828 = vld [vmem:[#allocation5 + $0x8] sm:$0x77]
      %v3829 = vld [vmem:[#allocation5 + $0x10] sm:$0x77]
      %v3830 = vld [vmem:[#allocation5 + $0x18] sm:$0x77]
      %v3831 = vld [vmem:[#allocation5 + $0x20] sm:$0x7]
      %3837 = vrot.lane.b32.xlu0 %v3827, 124
      %v3838 = vpop.permute.xlu0 %3837
      %3839 = vrot.lane.b32.xlu0 %v3828, 124
      %v3840 = vpop.permute.xlu0 %3839
      %3841 = vrot.lane.b32.xlu0 %v3829, 124
      %v3842 = vpop.permute.xlu0 %3841
      %3843 = vrot.lane.b32.xlu0 %v3830, 124
      %v3844 = vpop.permute.xlu0 %3843
      %3845 = vrot.lane.b32.xlu0 %v3831, 124
      %v3846 = vpop.permute.xlu0 %3845
      %v3847 = vrot.slane %v3838, 4
      %v3848 = vrot.slane %v3840, 4
      %v3849 = vrot.slane %v3842, 4
      %v3850 = vrot.slane %v3844, 4
      %v3851 = vrot.slane %v3846, 4
      %v3852 = vsel %vm907, %v3847, %v3848
      %v3853 = vsel %vm1158, %v3838, %v3852
      %v3854 = vsel %vm907, %v3848, %v3849
      %v3855 = vsel %vm1158, %v3840, %v3854
      %v3856 = vsel %vm907, %v3849, %v3850
      %v3857 = vsel %vm1158, %v3842, %v3856
      %v3858 = vsel %vm907, %v3850, %v3851
      %v3859 = vsel %vm1158, %v3844, %v3858
      %3864 = vst [vmem:[#allocation3 + $0x40] sm:$0x77] %v3853
      %3865 = vst [vmem:[#allocation3 + $0x48] sm:$0x77] %v3855
      %3866 = vst [vmem:[#allocation3 + $0x50] sm:$0x77] %v3857
      %3867 = vst [vmem:[#allocation3 + $0x58] sm:$0x77] %v3859
      %v3868 = vld [vmem:[#allocation5] sm:$0x77]
      %v3869 = vld [vmem:[#allocation5 + $0x8] sm:$0x77]
      %v3870 = vld [vmem:[#allocation5 + $0x10] sm:$0x77]
      %v3871 = vld [vmem:[#allocation5 + $0x18] sm:$0x77]
      %v3872 = vld [vmem:[#allocation5 + $0x20] sm:$0x7]
      %3878 = vrot.lane.b32.xlu0 %v3868, 122
      %v3879 = vpop.permute.xlu0 %3878
      %3880 = vrot.lane.b32.xlu0 %v3869, 122
      %v3881 = vpop.permute.xlu0 %3880
      %3882 = vrot.lane.b32.xlu0 %v3870, 122
      %v3883 = vpop.permute.xlu0 %3882
      %3884 = vrot.lane.b32.xlu0 %v3871, 122
      %v3885 = vpop.permute.xlu0 %3884
      %3886 = vrot.lane.b32.xlu0 %v3872, 122
      %v3887 = vpop.permute.xlu0 %3886
      %v3888 = vrot.slane %v3879, 4
      %v3889 = vrot.slane %v3881, 4
      %v3890 = vrot.slane %v3883, 4
      %v3891 = vrot.slane %v3885, 4
      %v3892 = vrot.slane %v3887, 4
      %v3893 = vsel %vm907, %v3888, %v3889
      %vm3894 = vcmask 998400
      %v3895 = vsel %vm3894, %v3879, %v3893
      %v3896 = vsel %vm907, %v3889, %v3890
      %v3897 = vsel %vm3894, %v3881, %v3896
      %v3898 = vsel %vm907, %v3890, %v3891
      %v3899 = vsel %vm3894, %v3883, %v3898
      %v3900 = vsel %vm907, %v3891, %v3892
      %v3901 = vsel %vm3894, %v3885, %v3900
      %3906 = vst [vmem:[#allocation3 + $0x60] sm:$0x77] %v3895
      %3907 = vst [vmem:[#allocation3 + $0x68] sm:$0x77] %v3897
      %3908 = vst [vmem:[#allocation3 + $0x70] sm:$0x77] %v3899
      %3909 = vst [vmem:[#allocation3 + $0x78] sm:$0x77] %v3901
      %v3910 = vld [vmem:[#allocation5] sm:$0x77]
      %v3911 = vld [vmem:[#allocation5 + $0x8] sm:$0x77]
      %v3912 = vld [vmem:[#allocation5 + $0x10] sm:$0x77]
      %v3913 = vld [vmem:[#allocation5 + $0x18] sm:$0x77]
      %v3914 = vld [vmem:[#allocation5 + $0x20] sm:$0x7]
      %3920 = vrot.lane.b32.xlu0 %v3910, 120
      %v3921 = vpop.permute.xlu0 %3920
      %3922 = vrot.lane.b32.xlu0 %v3911, 120
      %v3923 = vpop.permute.xlu0 %3922
      %3924 = vrot.lane.b32.xlu0 %v3912, 120
      %v3925 = vpop.permute.xlu0 %3924
      %3926 = vrot.lane.b32.xlu0 %v3913, 120
      %v3927 = vpop.permute.xlu0 %3926
      %3928 = vrot.lane.b32.xlu0 %v3914, 120
      %v3929 = vpop.permute.xlu0 %3928
      %v3930 = vrot.slane %v3921, 4
      %v3931 = vrot.slane %v3923, 4
      %v3932 = vrot.slane %v3925, 4
      %v3933 = vrot.slane %v3927, 4
      %v3934 = vrot.slane %v3929, 4
      %v3935 = vsel %vm907, %v3930, %v3931
      %vm3936 = vcmask 982016
      %v3937 = vsel %vm3936, %v3921, %v3935
      %v3938 = vsel %vm907, %v3931, %v3932
      %v3939 = vsel %vm3936, %v3923, %v3938
      %v3940 = vsel %vm907, %v3932, %v3933
      %v3941 = vsel %vm3936, %v3925, %v3940
      %v3942 = vsel %vm907, %v3933, %v3934
      %v3943 = vsel %vm3936, %v3927, %v3942
      %3948 = vst [vmem:[#allocation3 + $0x80] sm:$0x77] %v3937
      %3949 = vst [vmem:[#allocation3 + $0x88] sm:$0x77] %v3939
      %3950 = vst [vmem:[#allocation3 + $0x90] sm:$0x77] %v3941
      %3951 = vst [vmem:[#allocation3 + $0x98] sm:$0x77] %v3943
      %v3952 = vld [vmem:[#allocation5] sm:$0x77]
      %v3953 = vld [vmem:[#allocation5 + $0x8] sm:$0x77]
      %v3954 = vld [vmem:[#allocation5 + $0x10] sm:$0x77]
      %v3955 = vld [vmem:[#allocation5 + $0x18] sm:$0x77]
      %v3956 = vld [vmem:[#allocation5 + $0x20] sm:$0x7]
      %3962 = vrot.lane.b32.xlu0 %v3952, 64
      %v3963 = vpop.permute.xlu0 %3962
      %3964 = vrot.lane.b32.xlu0 %v3953, 64
      %v3965 = vpop.permute.xlu0 %3964
      %3966 = vrot.lane.b32.xlu0 %v3954, 64
      %v3967 = vpop.permute.xlu0 %3966
      %3968 = vrot.lane.b32.xlu0 %v3955, 64
      %v3969 = vpop.permute.xlu0 %3968
      %3970 = vrot.lane.b32.xlu0 %v3956, 64
      %v3971 = vpop.permute.xlu0 %3970
      %v3972 = vrot.slane %v3963, 4
      %v3973 = vrot.slane %v3965, 4
      %v3974 = vrot.slane %v3967, 4
      %v3975 = vrot.slane %v3969, 4
      %v3976 = vrot.slane %v3971, 4
      %v3977 = vsel %vm907, %v3972, %v3973
      %v3978 = vsel %vm1656, %v3963, %v3977
      %v3979 = vsel %vm907, %v3973, %v3974
      %v3980 = vsel %vm1656, %v3965, %v3979
      %v3981 = vsel %vm907, %v3974, %v3975
      %v3982 = vsel %vm1656, %v3967, %v3981
      %v3983 = vsel %vm907, %v3975, %v3976
      %v3984 = vsel %vm1656, %v3969, %v3983
      %3989 = vst [vmem:[#allocation3 + $0xa0] sm:$0x77] %v3978
      %3990 = vst [vmem:[#allocation3 + $0xa8] sm:$0x77] %v3980
      %3991 = vst [vmem:[#allocation3 + $0xb0] sm:$0x77] %v3982
      %3992 = vst [vmem:[#allocation3 + $0xb8] sm:$0x77] %v3984
      %v3993 = vld [vmem:[#allocation5] sm:$0x77]
      %v3994 = vld [vmem:[#allocation5 + $0x8] sm:$0x77]
      %v3995 = vld [vmem:[#allocation5 + $0x10] sm:$0x77]
      %v3996 = vld [vmem:[#allocation5 + $0x18] sm:$0x77]
      %v3997 = vld [vmem:[#allocation5 + $0x20] sm:$0x7]
      %4003 = vrot.lane.b32.xlu0 %v3993, 62
      %v4004 = vpop.permute.xlu0 %4003
      %4005 = vrot.lane.b32.xlu0 %v3994, 62
      %v4006 = vpop.permute.xlu0 %4005
      %4007 = vrot.lane.b32.xlu0 %v3995, 62
      %v4008 = vpop.permute.xlu0 %4007
      %4009 = vrot.lane.b32.xlu0 %v3996, 62
      %v4010 = vpop.permute.xlu0 %4009
      %4011 = vrot.lane.b32.xlu0 %v3997, 62
      %v4012 = vpop.permute.xlu0 %4011
      %v4013 = vrot.slane %v4004, 4
      %v4014 = vrot.slane %v4006, 4
      %v4015 = vrot.slane %v4008, 4
      %v4016 = vrot.slane %v4010, 4
      %v4017 = vrot.slane %v4012, 4
      %v4018 = vsel %vm907, %v4013, %v4014
      %v4019 = vsel %vm1822, %v4004, %v4018
      %v4020 = vsel %vm907, %v4014, %v4015
      %v4021 = vsel %vm1822, %v4006, %v4020
      %v4022 = vsel %vm907, %v4015, %v4016
      %v4023 = vsel %vm1822, %v4008, %v4022
      %v4024 = vsel %vm907, %v4016, %v4017
      %v4025 = vsel %vm1822, %v4010, %v4024
      %4030 = vst [vmem:[#allocation3 + $0xc0] sm:$0x77] %v4019
      %4031 = vst [vmem:[#allocation3 + $0xc8] sm:$0x77] %v4021
      %4032 = vst [vmem:[#allocation3 + $0xd0] sm:$0x77] %v4023
      %4033 = vst [vmem:[#allocation3 + $0xd8] sm:$0x77] %v4025
      %v4034 = vld [vmem:[#allocation5] sm:$0x77]
      %v4035 = vld [vmem:[#allocation5 + $0x8] sm:$0x77]
      %v4036 = vld [vmem:[#allocation5 + $0x10] sm:$0x77]
      %v4037 = vld [vmem:[#allocation5 + $0x18] sm:$0x77]
      %v4038 = vld [vmem:[#allocation5 + $0x20] sm:$0x7]
      %4044 = vrot.lane.b32.xlu0 %v4034, 60
      %v4045 = vpop.permute.xlu0 %4044
      %4046 = vrot.lane.b32.xlu0 %v4035, 60
      %v4047 = vpop.permute.xlu0 %4046
      %4048 = vrot.lane.b32.xlu0 %v4036, 60
      %v4049 = vpop.permute.xlu0 %4048
      %4050 = vrot.lane.b32.xlu0 %v4037, 60
      %v4051 = vpop.permute.xlu0 %4050
      %4052 = vrot.lane.b32.xlu0 %v4038, 60
      %v4053 = vpop.permute.xlu0 %4052
      %v4054 = vrot.slane %v4045, 4
      %v4055 = vrot.slane %v4047, 4
      %v4056 = vrot.slane %v4049, 4
      %v4057 = vrot.slane %v4051, 4
      %v4058 = vrot.slane %v4053, 4
      %v4059 = vsel %vm907, %v4054, %v4055
      %v4060 = vsel %vm1988, %v4045, %v4059
      %v4061 = vsel %vm907, %v4055, %v4056
      %v4062 = vsel %vm1988, %v4047, %v4061
      %v4063 = vsel %vm907, %v4056, %v4057
      %v4064 = vsel %vm1988, %v4049, %v4063
      %v4065 = vsel %vm907, %v4057, %v4058
      %v4066 = vsel %vm1988, %v4051, %v4065
      %4071 = vst [vmem:[#allocation3 + $0xe0] sm:$0x77] %v4060
      %4072 = vst [vmem:[#allocation3 + $0xe8] sm:$0x77] %v4062
      %4073 = vst [vmem:[#allocation3 + $0xf0] sm:$0x77] %v4064
      %4074 = vst [vmem:[#allocation3 + $0xf8] sm:$0x77] %v4066
      %v4075 = vld [vmem:[#allocation5] sm:$0x77]
      %v4076 = vld [vmem:[#allocation5 + $0x8] sm:$0x77]
      %v4077 = vld [vmem:[#allocation5 + $0x10] sm:$0x77]
      %v4078 = vld [vmem:[#allocation5 + $0x18] sm:$0x77]
      %v4079 = vld [vmem:[#allocation5 + $0x20] sm:$0x7]
      %4085 = vrot.lane.b32.xlu0 %v4075, 58
      %v4086 = vpop.permute.xlu0 %4085
      %4087 = vrot.lane.b32.xlu0 %v4076, 58
      %v4088 = vpop.permute.xlu0 %4087
      %4089 = vrot.lane.b32.xlu0 %v4077, 58
      %v4090 = vpop.permute.xlu0 %4089
      %4091 = vrot.lane.b32.xlu0 %v4078, 58
      %v4092 = vpop.permute.xlu0 %4091
      %4093 = vrot.lane.b32.xlu0 %v4079, 58
      %v4094 = vpop.permute.xlu0 %4093
      %v4095 = vrot.slane %v4086, 4
      %v4096 = vrot.slane %v4088, 4
      %v4097 = vrot.slane %v4090, 4
      %v4098 = vrot.slane %v4092, 4
      %v4099 = vrot.slane %v4094, 4
      %v4100 = vsel %vm907, %v4095, %v4096
      %vm4101 = vcmask 474112
      %v4102 = vsel %vm4101, %v4086, %v4100
      %v4103 = vsel %vm907, %v4096, %v4097
      %v4104 = vsel %vm4101, %v4088, %v4103
      %v4105 = vsel %vm907, %v4097, %v4098
      %v4106 = vsel %vm4101, %v4090, %v4105
      %v4107 = vsel %vm907, %v4098, %v4099
      %v4108 = vsel %vm4101, %v4092, %v4107
      %4113 = vst [vmem:[#allocation3 + $0x100] sm:$0x77] %v4102
      %4114 = vst [vmem:[#allocation3 + $0x108] sm:$0x77] %v4104
      %4115 = vst [vmem:[#allocation3 + $0x110] sm:$0x77] %v4106
      %4116 = vst [vmem:[#allocation3 + $0x118] sm:$0x77] %v4108
      %v4117 = vld [vmem:[#allocation5] sm:$0x77]
      %v4118 = vld [vmem:[#allocation5 + $0x8] sm:$0x77]
      %v4119 = vld [vmem:[#allocation5 + $0x10] sm:$0x77]
      %v4120 = vld [vmem:[#allocation5 + $0x18] sm:$0x77]
      %v4121 = vld [vmem:[#allocation5 + $0x20] sm:$0x7]
      %4127 = vrot.lane.b32.xlu0 %v4117, 56
      %v4128 = vpop.permute.xlu0 %4127
      %4129 = vrot.lane.b32.xlu0 %v4118, 56
      %v4130 = vpop.permute.xlu0 %4129
      %4131 = vrot.lane.b32.xlu0 %v4119, 56
      %v4132 = vpop.permute.xlu0 %4131
      %4133 = vrot.lane.b32.xlu0 %v4120, 56
      %v4134 = vpop.permute.xlu0 %4133
      %4135 = vrot.lane.b32.xlu0 %v4121, 56
      %v4136 = vpop.permute.xlu0 %4135
      %v4137 = vrot.slane %v4128, 4
      %v4138 = vrot.slane %v4130, 4
      %v4139 = vrot.slane %v4132, 4
      %v4140 = vrot.slane %v4134, 4
      %v4141 = vrot.slane %v4136, 4
      %v4142 = vsel %vm907, %v4137, %v4138
      %vm4143 = vcmask 457728
      %v4144 = vsel %vm4143, %v4128, %v4142
      %v4145 = vsel %vm907, %v4138, %v4139
      %v4146 = vsel %vm4143, %v4130, %v4145
      %v4147 = vsel %vm907, %v4139, %v4140
      %v4148 = vsel %vm4143, %v4132, %v4147
      %v4149 = vsel %vm907, %v4140, %v4141
      %v4150 = vsel %vm4143, %v4134, %v4149
      %4155 = vst [vmem:[#allocation3 + $0x120] sm:$0x77] %v4144
      %4156 = vst [vmem:[#allocation3 + $0x128] sm:$0x77] %v4146
      %4157 = vst [vmem:[#allocation3 + $0x130] sm:$0x77] %v4148
      %4158 = vst [vmem:[#allocation3 + $0x138] sm:$0x77] %v4150
      %v4159 = vld [vmem:[#allocation5 + $0x4] sm:$0x77]
      %v4160 = vld [vmem:[#allocation5 + $0xc] sm:$0x77]
      %v4161 = vld [vmem:[#allocation5 + $0x14] sm:$0x77]
      %v4162 = vld [vmem:[#allocation5 + $0x1c] sm:$0x77]
      %4163 = vst [vmem:[#allocation3 + $0x140] sm:$0x77] %v4159
      %4164 = vst [vmem:[#allocation3 + $0x148] sm:$0x77] %v4160
      %4165 = vst [vmem:[#allocation3 + $0x150] sm:$0x77] %v4161
      %4166 = vst [vmem:[#allocation3 + $0x158] sm:$0x77] %v4162
      %v4167 = vld [vmem:[#allocation5 + $0x4] sm:$0x77]
      %v4168 = vld [vmem:[#allocation5 + $0xc] sm:$0x77]
      %v4169 = vld [vmem:[#allocation5 + $0x14] sm:$0x77]
      %v4170 = vld [vmem:[#allocation5 + $0x1c] sm:$0x77]
      %v4171 = vld [vmem:[#allocation5 + $0x24] sm:$0x7]
      %4177 = vrot.lane.b32.xlu0 %v4167, 126
      %v4178 = vpop.permute.xlu0 %4177
      %4179 = vrot.lane.b32.xlu0 %v4168, 126
      %v4180 = vpop.permute.xlu0 %4179
      %4181 = vrot.lane.b32.xlu0 %v4169, 126
      %v4182 = vpop.permute.xlu0 %4181
      %4183 = vrot.lane.b32.xlu0 %v4170, 126
      %v4184 = vpop.permute.xlu0 %4183
      %4185 = vrot.lane.b32.xlu0 %v4171, 126
      %v4186 = vpop.permute.xlu0 %4185
      %v4187 = vrot.slane %v4178, 4
      %v4188 = vrot.slane %v4180, 4
      %v4189 = vrot.slane %v4182, 4
      %v4190 = vrot.slane %v4184, 4
      %v4191 = vrot.slane %v4186, 4
      %v4192 = vsel %vm907, %v4187, %v4188
      %v4193 = vsel %vm992, %v4178, %v4192
      %v4194 = vsel %vm907, %v4188, %v4189
      %v4195 = vsel %vm992, %v4180, %v4194
      %v4196 = vsel %vm907, %v4189, %v4190
      %v4197 = vsel %vm992, %v4182, %v4196
      %v4198 = vsel %vm907, %v4190, %v4191
      %v4199 = vsel %vm992, %v4184, %v4198
      %4204 = vst [vmem:[#allocation3 + $0x160] sm:$0x77] %v4193
      %4205 = vst [vmem:[#allocation3 + $0x168] sm:$0x77] %v4195
      %4206 = vst [vmem:[#allocation3 + $0x170] sm:$0x77] %v4197
      %4207 = vst [vmem:[#allocation3 + $0x178] sm:$0x77] %v4199
      %v4208 = vld [vmem:[#allocation5 + $0x4] sm:$0x77]
      %v4209 = vld [vmem:[#allocation5 + $0xc] sm:$0x77]
      %v4210 = vld [vmem:[#allocation5 + $0x14] sm:$0x77]
      %v4211 = vld [vmem:[#allocation5 + $0x1c] sm:$0x77]
      %v4212 = vld [vmem:[#allocation5 + $0x24] sm:$0x7]
      %4218 = vrot.lane.b32.xlu0 %v4208, 124
      %v4219 = vpop.permute.xlu0 %4218
      %4220 = vrot.lane.b32.xlu0 %v4209, 124
      %v4221 = vpop.permute.xlu0 %4220
      %4222 = vrot.lane.b32.xlu0 %v4210, 124
      %v4223 = vpop.permute.xlu0 %4222
      %4224 = vrot.lane.b32.xlu0 %v4211, 124
      %v4225 = vpop.permute.xlu0 %4224
      %4226 = vrot.lane.b32.xlu0 %v4212, 124
      %v4227 = vpop.permute.xlu0 %4226
      %v4228 = vrot.slane %v4219, 4
      %v4229 = vrot.slane %v4221, 4
      %v4230 = vrot.slane %v4223, 4
      %v4231 = vrot.slane %v4225, 4
      %v4232 = vrot.slane %v4227, 4
      %v4233 = vsel %vm907, %v4228, %v4229
      %v4234 = vsel %vm1158, %v4219, %v4233
      %v4235 = vsel %vm907, %v4229, %v4230
      %v4236 = vsel %vm1158, %v4221, %v4235
      %v4237 = vsel %vm907, %v4230, %v4231
      %v4238 = vsel %vm1158, %v4223, %v4237
      %v4239 = vsel %vm907, %v4231, %v4232
      %v4240 = vsel %vm1158, %v4225, %v4239
      %4245 = vst [vmem:[#allocation3 + $0x180] sm:$0x77] %v4234
      %4246 = vst [vmem:[#allocation3 + $0x188] sm:$0x77] %v4236
      %4247 = vst [vmem:[#allocation3 + $0x190] sm:$0x77] %v4238
      %4248 = vst [vmem:[#allocation3 + $0x198] sm:$0x77] %v4240
      %v4249 = vld [vmem:[#allocation5 + $0x4] sm:$0x77]
      %v4250 = vld [vmem:[#allocation5 + $0xc] sm:$0x77]
      %v4251 = vld [vmem:[#allocation5 + $0x14] sm:$0x77]
      %v4252 = vld [vmem:[#allocation5 + $0x1c] sm:$0x77]
      %v4253 = vld [vmem:[#allocation5 + $0x24] sm:$0x7]
      %4259 = vrot.lane.b32.xlu0 %v4249, 122
      %v4260 = vpop.permute.xlu0 %4259
      %4261 = vrot.lane.b32.xlu0 %v4250, 122
      %v4262 = vpop.permute.xlu0 %4261
      %4263 = vrot.lane.b32.xlu0 %v4251, 122
      %v4264 = vpop.permute.xlu0 %4263
      %4265 = vrot.lane.b32.xlu0 %v4252, 122
      %v4266 = vpop.permute.xlu0 %4265
      %4267 = vrot.lane.b32.xlu0 %v4253, 122
      %v4268 = vpop.permute.xlu0 %4267
      %v4269 = vrot.slane %v4260, 4
      %v4270 = vrot.slane %v4262, 4
      %v4271 = vrot.slane %v4264, 4
      %v4272 = vrot.slane %v4266, 4
      %v4273 = vrot.slane %v4268, 4
      %v4274 = vsel %vm907, %v4269, %v4270
      %v4275 = vsel %vm3894, %v4260, %v4274
      %v4276 = vsel %vm907, %v4270, %v4271
      %v4277 = vsel %vm3894, %v4262, %v4276
      %v4278 = vsel %vm907, %v4271, %v4272
      %v4279 = vsel %vm3894, %v4264, %v4278
      %v4280 = vsel %vm907, %v4272, %v4273
      %v4281 = vsel %vm3894, %v4266, %v4280
      %4286 = vst [vmem:[#allocation3 + $0x1a0] sm:$0x77] %v4275
      %4287 = vst [vmem:[#allocation3 + $0x1a8] sm:$0x77] %v4277
      %4288 = vst [vmem:[#allocation3 + $0x1b0] sm:$0x77] %v4279
      %4289 = vst [vmem:[#allocation3 + $0x1b8] sm:$0x77] %v4281
      %v4290 = vld [vmem:[#allocation5 + $0x4] sm:$0x77]
      %v4291 = vld [vmem:[#allocation5 + $0xc] sm:$0x77]
      %v4292 = vld [vmem:[#allocation5 + $0x14] sm:$0x77]
      %v4293 = vld [vmem:[#allocation5 + $0x1c] sm:$0x77]
      %v4294 = vld [vmem:[#allocation5 + $0x24] sm:$0x7]
      %4300 = vrot.lane.b32.xlu0 %v4290, 120
      %v4301 = vpop.permute.xlu0 %4300
      %4302 = vrot.lane.b32.xlu0 %v4291, 120
      %v4303 = vpop.permute.xlu0 %4302
      %4304 = vrot.lane.b32.xlu0 %v4292, 120
      %v4305 = vpop.permute.xlu0 %4304
      %4306 = vrot.lane.b32.xlu0 %v4293, 120
      %v4307 = vpop.permute.xlu0 %4306
      %4308 = vrot.lane.b32.xlu0 %v4294, 120
      %v4309 = vpop.permute.xlu0 %4308
      %v4310 = vrot.slane %v4301, 4
      %v4311 = vrot.slane %v4303, 4
      %v4312 = vrot.slane %v4305, 4
      %v4313 = vrot.slane %v4307, 4
      %v4314 = vrot.slane %v4309, 4
      %v4315 = vsel %vm907, %v4310, %v4311
      %v4316 = vsel %vm3936, %v4301, %v4315
      %v4317 = vsel %vm907, %v4311, %v4312
      %v4318 = vsel %vm3936, %v4303, %v4317
      %v4319 = vsel %vm907, %v4312, %v4313
      %v4320 = vsel %vm3936, %v4305, %v4319
      %v4321 = vsel %vm907, %v4313, %v4314
      %v4322 = vsel %vm3936, %v4307, %v4321
      %4327 = vst [vmem:[#allocation3 + $0x1c0] sm:$0x77] %v4316
      %4328 = vst [vmem:[#allocation3 + $0x1c8] sm:$0x77] %v4318
      %4329 = vst [vmem:[#allocation3 + $0x1d0] sm:$0x77] %v4320
      %4330 = vst [vmem:[#allocation3 + $0x1d8] sm:$0x77] %v4322
      %v4331 = vld [vmem:[#allocation5 + $0x4] sm:$0x77]
      %v4332 = vld [vmem:[#allocation5 + $0xc] sm:$0x77]
      %v4333 = vld [vmem:[#allocation5 + $0x14] sm:$0x77]
      %v4334 = vld [vmem:[#allocation5 + $0x1c] sm:$0x77]
      %v4335 = vld [vmem:[#allocation5 + $0x24] sm:$0x7]
      %4341 = vrot.lane.b32.xlu0 %v4331, 64
      %v4342 = vpop.permute.xlu0 %4341
      %4343 = vrot.lane.b32.xlu0 %v4332, 64
      %v4344 = vpop.permute.xlu0 %4343
      %4345 = vrot.lane.b32.xlu0 %v4333, 64
      %v4346 = vpop.permute.xlu0 %4345
      %4347 = vrot.lane.b32.xlu0 %v4334, 64
      %v4348 = vpop.permute.xlu0 %4347
      %4349 = vrot.lane.b32.xlu0 %v4335, 64
      %v4350 = vpop.permute.xlu0 %4349
      %v4351 = vrot.slane %v4342, 4
      %v4352 = vrot.slane %v4344, 4
      %v4353 = vrot.slane %v4346, 4
      %v4354 = vrot.slane %v4348, 4
      %v4355 = vrot.slane %v4350, 4
      %v4356 = vsel %vm907, %v4351, %v4352
      %v4357 = vsel %vm1656, %v4342, %v4356
      %v4358 = vsel %vm907, %v4352, %v4353
      %v4359 = vsel %vm1656, %v4344, %v4358
      %v4360 = vsel %vm907, %v4353, %v4354
      %v4361 = vsel %vm1656, %v4346, %v4360
      %v4362 = vsel %vm907, %v4354, %v4355
      %v4363 = vsel %vm1656, %v4348, %v4362
      %4368 = vst [vmem:[#allocation3 + $0x1e0] sm:$0x77] %v4357
      %4369 = vst [vmem:[#allocation3 + $0x1e8] sm:$0x77] %v4359
      %4370 = vst [vmem:[#allocation3 + $0x1f0] sm:$0x77] %v4361
      %4371 = vst [vmem:[#allocation3 + $0x1f8] sm:$0x77] %v4363
      %v4372 = vld [vmem:[#allocation5 + $0x4] sm:$0x77]
      %v4373 = vld [vmem:[#allocation5 + $0xc] sm:$0x77]
      %v4374 = vld [vmem:[#allocation5 + $0x14] sm:$0x77]
      %v4375 = vld [vmem:[#allocation5 + $0x1c] sm:$0x77]
      %v4376 = vld [vmem:[#allocation5 + $0x24] sm:$0x7]
      %4382 = vrot.lane.b32.xlu0 %v4372, 62
      %v4383 = vpop.permute.xlu0 %4382
      %4384 = vrot.lane.b32.xlu0 %v4373, 62
      %v4385 = vpop.permute.xlu0 %4384
      %4386 = vrot.lane.b32.xlu0 %v4374, 62
      %v4387 = vpop.permute.xlu0 %4386
      %4388 = vrot.lane.b32.xlu0 %v4375, 62
      %v4389 = vpop.permute.xlu0 %4388
      %4390 = vrot.lane.b32.xlu0 %v4376, 62
      %v4391 = vpop.permute.xlu0 %4390
      %v4392 = vrot.slane %v4383, 4
      %v4393 = vrot.slane %v4385, 4
      %v4394 = vrot.slane %v4387, 4
      %v4395 = vrot.slane %v4389, 4
      %v4396 = vrot.slane %v4391, 4
      %v4397 = vsel %vm907, %v4392, %v4393
      %v4398 = vsel %vm1822, %v4383, %v4397
      %v4399 = vsel %vm907, %v4393, %v4394
      %v4400 = vsel %vm1822, %v4385, %v4399
      %v4401 = vsel %vm907, %v4394, %v4395
      %v4402 = vsel %vm1822, %v4387, %v4401
      %v4403 = vsel %vm907, %v4395, %v4396
      %v4404 = vsel %vm1822, %v4389, %v4403
      %4409 = vst [vmem:[#allocation3 + $0x200] sm:$0x77] %v4398
      %4410 = vst [vmem:[#allocation3 + $0x208] sm:$0x77] %v4400
      %4411 = vst [vmem:[#allocation3 + $0x210] sm:$0x77] %v4402
      %4412 = vst [vmem:[#allocation3 + $0x218] sm:$0x77] %v4404
      %v4413 = vld [vmem:[#allocation5 + $0x4] sm:$0x77]
      %v4414 = vld [vmem:[#allocation5 + $0xc] sm:$0x77]
      %v4415 = vld [vmem:[#allocation5 + $0x14] sm:$0x77]
      %v4416 = vld [vmem:[#allocation5 + $0x1c] sm:$0x77]
      %v4417 = vld [vmem:[#allocation5 + $0x24] sm:$0x7]
      %4423 = vrot.lane.b32.xlu0 %v4413, 60
      %v4424 = vpop.permute.xlu0 %4423
      %4425 = vrot.lane.b32.xlu0 %v4414, 60
      %v4426 = vpop.permute.xlu0 %4425
      %4427 = vrot.lane.b32.xlu0 %v4415, 60
      %v4428 = vpop.permute.xlu0 %4427
      %4429 = vrot.lane.b32.xlu0 %v4416, 60
      %v4430 = vpop.permute.xlu0 %4429
      %4431 = vrot.lane.b32.xlu0 %v4417, 60
      %v4432 = vpop.permute.xlu0 %4431
      %v4433 = vrot.slane %v4424, 4
      %v4434 = vrot.slane %v4426, 4
      %v4435 = vrot.slane %v4428, 4
      %v4436 = vrot.slane %v4430, 4
      %v4437 = vrot.slane %v4432, 4
      %v4438 = vsel %vm907, %v4433, %v4434
      %v4439 = vsel %vm1988, %v4424, %v4438
      %v4440 = vsel %vm907, %v4434, %v4435
      %v4441 = vsel %vm1988, %v4426, %v4440
      %v4442 = vsel %vm907, %v4435, %v4436
      %v4443 = vsel %vm1988, %v4428, %v4442
      %v4444 = vsel %vm907, %v4436, %v4437
      %v4445 = vsel %vm1988, %v4430, %v4444
      %4450 = vst [vmem:[#allocation3 + $0x220] sm:$0x77] %v4439
      %4451 = vst [vmem:[#allocation3 + $0x228] sm:$0x77] %v4441
      %4452 = vst [vmem:[#allocation3 + $0x230] sm:$0x77] %v4443
      %4453 = vst [vmem:[#allocation3 + $0x238] sm:$0x77] %v4445
      %v4454 = vld [vmem:[#allocation5 + $0x4] sm:$0x77]
      %v4455 = vld [vmem:[#allocation5 + $0xc] sm:$0x77]
      %v4456 = vld [vmem:[#allocation5 + $0x14] sm:$0x77]
      %v4457 = vld [vmem:[#allocation5 + $0x1c] sm:$0x77]
      %v4458 = vld [vmem:[#allocation5 + $0x24] sm:$0x7]
      %4464 = vrot.lane.b32.xlu0 %v4454, 58
      %v4465 = vpop.permute.xlu0 %4464
      %4466 = vrot.lane.b32.xlu0 %v4455, 58
      %v4467 = vpop.permute.xlu0 %4466
      %4468 = vrot.lane.b32.xlu0 %v4456, 58
      %v4469 = vpop.permute.xlu0 %4468
      %4470 = vrot.lane.b32.xlu0 %v4457, 58
      %v4471 = vpop.permute.xlu0 %4470
      %4472 = vrot.lane.b32.xlu0 %v4458, 58
      %v4473 = vpop.permute.xlu0 %4472
      %v4474 = vrot.slane %v4465, 4
      %v4475 = vrot.slane %v4467, 4
      %v4476 = vrot.slane %v4469, 4
      %v4477 = vrot.slane %v4471, 4
      %v4478 = vrot.slane %v4473, 4
      %v4479 = vsel %vm907, %v4474, %v4475
      %v4480 = vsel %vm4101, %v4465, %v4479
      %v4481 = vsel %vm907, %v4475, %v4476
      %v4482 = vsel %vm4101, %v4467, %v4481
      %v4483 = vsel %vm907, %v4476, %v4477
      %v4484 = vsel %vm4101, %v4469, %v4483
      %v4485 = vsel %vm907, %v4477, %v4478
      %v4486 = vsel %vm4101, %v4471, %v4485
      %4491 = vst [vmem:[#allocation3 + $0x240] sm:$0x77] %v4480
      %4492 = vst [vmem:[#allocation3 + $0x248] sm:$0x77] %v4482
      %4493 = vst [vmem:[#allocation3 + $0x250] sm:$0x77] %v4484
      %4494 = vst [vmem:[#allocation3 + $0x258] sm:$0x77] %v4486
      %v4495 = vld [vmem:[#allocation5 + $0x4] sm:$0x77]
      %v4496 = vld [vmem:[#allocation5 + $0xc] sm:$0x77]
      %v4497 = vld [vmem:[#allocation5 + $0x14] sm:$0x77]
      %v4498 = vld [vmem:[#allocation5 + $0x1c] sm:$0x77]
      %v4499 = vld [vmem:[#allocation5 + $0x24] sm:$0x7]
      %4505 = vrot.lane.b32.xlu0 %v4495, 56
      %v4506 = vpop.permute.xlu0 %4505
      %4507 = vrot.lane.b32.xlu0 %v4496, 56
      %v4508 = vpop.permute.xlu0 %4507
      %4509 = vrot.lane.b32.xlu0 %v4497, 56
      %v4510 = vpop.permute.xlu0 %4509
      %4511 = vrot.lane.b32.xlu0 %v4498, 56
      %v4512 = vpop.permute.xlu0 %4511
      %4513 = vrot.lane.b32.xlu0 %v4499, 56
      %v4514 = vpop.permute.xlu0 %4513
      %v4515 = vrot.slane %v4506, 4
      %v4516 = vrot.slane %v4508, 4
      %v4517 = vrot.slane %v4510, 4
      %v4518 = vrot.slane %v4512, 4
      %v4519 = vrot.slane %v4514, 4
      %v4520 = vsel %vm907, %v4515, %v4516
      %v4521 = vsel %vm4143, %v4506, %v4520
      %v4522 = vsel %vm907, %v4516, %v4517
      %v4523 = vsel %vm4143, %v4508, %v4522
      %v4524 = vsel %vm907, %v4517, %v4518
      %v4525 = vsel %vm4143, %v4510, %v4524
      %v4526 = vsel %vm907, %v4518, %v4519
      %v4527 = vsel %vm4143, %v4512, %v4526
      %4532 = vst [vmem:[#allocation3 + $0x260] sm:$0x77] %v4521
      %4533 = vst [vmem:[#allocation3 + $0x268] sm:$0x77] %v4523
      %4534 = vst [vmem:[#allocation3 + $0x270] sm:$0x77] %v4525
      %4535 = vst [vmem:[#allocation3 + $0x278] sm:$0x77] %v4527
      %v4536 = vld [vmem:[#allocation5 + $0x8] sm:$0x77]
      %v4537 = vld [vmem:[#allocation5 + $0x10] sm:$0x77]
      %v4538 = vld [vmem:[#allocation5 + $0x18] sm:$0x77]
      %v4539 = vld [vmem:[#allocation5 + $0x20] sm:$0x77]
      %4540 = vst [vmem:[#allocation3 + $0x280] sm:$0x77] %v4536
      %4541 = vst [vmem:[#allocation3 + $0x288] sm:$0x77] %v4537
      %4542 = vst [vmem:[#allocation3 + $0x290] sm:$0x77] %v4538
      %4543 = vst [vmem:[#allocation3 + $0x298] sm:$0x77] %v4539
      %v4544 = vld [vmem:[#allocation5 + $0x8] sm:$0x77]
      %v4545 = vld [vmem:[#allocation5 + $0x10] sm:$0x77]
      %v4546 = vld [vmem:[#allocation5 + $0x18] sm:$0x77]
      %v4547 = vld [vmem:[#allocation5 + $0x20] sm:$0x77]
      %v4548 = vld [vmem:[#allocation5 + $0x28] sm:$0x7]
      %4554 = vrot.lane.b32.xlu0 %v4544, 126
      %v4555 = vpop.permute.xlu0 %4554
      %4556 = vrot.lane.b32.xlu0 %v4545, 126
      %v4557 = vpop.permute.xlu0 %4556
      %4558 = vrot.lane.b32.xlu0 %v4546, 126
      %v4559 = vpop.permute.xlu0 %4558
      %4560 = vrot.lane.b32.xlu0 %v4547, 126
      %v4561 = vpop.permute.xlu0 %4560
      %4562 = vrot.lane.b32.xlu0 %v4548, 126
      %v4563 = vpop.permute.xlu0 %4562
      %v4564 = vrot.slane %v4555, 4
      %v4565 = vrot.slane %v4557, 4
      %v4566 = vrot.slane %v4559, 4
      %v4567 = vrot.slane %v4561, 4
      %v4568 = vrot.slane %v4563, 4
      %v4569 = vsel %vm907, %v4564, %v4565
      %v4570 = vsel %vm992, %v4555, %v4569
      %v4571 = vsel %vm907, %v4565, %v4566
      %v4572 = vsel %vm992, %v4557, %v4571
      %v4573 = vsel %vm907, %v4566, %v4567
      %v4574 = vsel %vm992, %v4559, %v4573
      %v4575 = vsel %vm907, %v4567, %v4568
      %v4576 = vsel %vm992, %v4561, %v4575
      %4581 = vst [vmem:[#allocation3 + $0x2a0] sm:$0x77] %v4570
      %4582 = vst [vmem:[#allocation3 + $0x2a8] sm:$0x77] %v4572
      %4583 = vst [vmem:[#allocation3 + $0x2b0] sm:$0x77] %v4574
      %4584 = vst [vmem:[#allocation3 + $0x2b8] sm:$0x77] %v4576
      %v4585 = vld [vmem:[#allocation5 + $0x8] sm:$0x77]
      %v4586 = vld [vmem:[#allocation5 + $0x10] sm:$0x77]
      %v4587 = vld [vmem:[#allocation5 + $0x18] sm:$0x77]
      %v4588 = vld [vmem:[#allocation5 + $0x20] sm:$0x77]
      %v4589 = vld [vmem:[#allocation5 + $0x28] sm:$0x7]
      %4595 = vrot.lane.b32.xlu0 %v4585, 124
      %v4596 = vpop.permute.xlu0 %4595
      %4597 = vrot.lane.b32.xlu0 %v4586, 124
      %v4598 = vpop.permute.xlu0 %4597
      %4599 = vrot.lane.b32.xlu0 %v4587, 124
      %v4600 = vpop.permute.xlu0 %4599
      %4601 = vrot.lane.b32.xlu0 %v4588, 124
      %v4602 = vpop.permute.xlu0 %4601
      %4603 = vrot.lane.b32.xlu0 %v4589, 124
      %v4604 = vpop.permute.xlu0 %4603
      %v4605 = vrot.slane %v4596, 4
      %v4606 = vrot.slane %v4598, 4
      %v4607 = vrot.slane %v4600, 4
      %v4608 = vrot.slane %v4602, 4
      %v4609 = vrot.slane %v4604, 4
      %v4610 = vsel %vm907, %v4605, %v4606
      %v4611 = vsel %vm1158, %v4596, %v4610
      %v4612 = vsel %vm907, %v4606, %v4607
      %v4613 = vsel %vm1158, %v4598, %v4612
      %v4614 = vsel %vm907, %v4607, %v4608
      %v4615 = vsel %vm1158, %v4600, %v4614
      %v4616 = vsel %vm907, %v4608, %v4609
      %v4617 = vsel %vm1158, %v4602, %v4616
      %4622 = vst [vmem:[#allocation3 + $0x2c0] sm:$0x77] %v4611
      %4623 = vst [vmem:[#allocation3 + $0x2c8] sm:$0x77] %v4613
      %4624 = vst [vmem:[#allocation3 + $0x2d0] sm:$0x77] %v4615
      %4625 = vst [vmem:[#allocation3 + $0x2d8] sm:$0x77] %v4617
      %v4626 = vld [vmem:[#allocation5 + $0x8] sm:$0x77]
      %v4627 = vld [vmem:[#allocation5 + $0x10] sm:$0x77]
      %v4628 = vld [vmem:[#allocation5 + $0x18] sm:$0x77]
      %v4629 = vld [vmem:[#allocation5 + $0x20] sm:$0x77]
      %v4630 = vld [vmem:[#allocation5 + $0x28] sm:$0x7]
      %4636 = vrot.lane.b32.xlu0 %v4626, 122
      %v4637 = vpop.permute.xlu0 %4636
      %4638 = vrot.lane.b32.xlu0 %v4627, 122
      %v4639 = vpop.permute.xlu0 %4638
      %4640 = vrot.lane.b32.xlu0 %v4628, 122
      %v4641 = vpop.permute.xlu0 %4640
      %4642 = vrot.lane.b32.xlu0 %v4629, 122
      %v4643 = vpop.permute.xlu0 %4642
      %4644 = vrot.lane.b32.xlu0 %v4630, 122
      %v4645 = vpop.permute.xlu0 %4644
      %v4646 = vrot.slane %v4637, 4
      %v4647 = vrot.slane %v4639, 4
      %v4648 = vrot.slane %v4641, 4
      %v4649 = vrot.slane %v4643, 4
      %v4650 = vrot.slane %v4645, 4
      %v4651 = vsel %vm907, %v4646, %v4647
      %v4652 = vsel %vm3894, %v4637, %v4651
      %v4653 = vsel %vm907, %v4647, %v4648
      %v4654 = vsel %vm3894, %v4639, %v4653
      %v4655 = vsel %vm907, %v4648, %v4649
      %v4656 = vsel %vm3894, %v4641, %v4655
      %v4657 = vsel %vm907, %v4649, %v4650
      %v4658 = vsel %vm3894, %v4643, %v4657
      %4663 = vst [vmem:[#allocation3 + $0x2e0] sm:$0x77] %v4652
      %4664 = vst [vmem:[#allocation3 + $0x2e8] sm:$0x77] %v4654
      %4665 = vst [vmem:[#allocation3 + $0x2f0] sm:$0x77] %v4656
      %4666 = vst [vmem:[#allocation3 + $0x2f8] sm:$0x77] %v4658
      %v4667 = vld [vmem:[#allocation5 + $0x8] sm:$0x77]
      %v4668 = vld [vmem:[#allocation5 + $0x10] sm:$0x77]
      %v4669 = vld [vmem:[#allocation5 + $0x18] sm:$0x77]
      %v4670 = vld [vmem:[#allocation5 + $0x20] sm:$0x77]
      %v4671 = vld [vmem:[#allocation5 + $0x28] sm:$0x7]
      %4677 = vrot.lane.b32.xlu0 %v4667, 120
      %v4678 = vpop.permute.xlu0 %4677
      %4679 = vrot.lane.b32.xlu0 %v4668, 120
      %v4680 = vpop.permute.xlu0 %4679
      %4681 = vrot.lane.b32.xlu0 %v4669, 120
      %v4682 = vpop.permute.xlu0 %4681
      %4683 = vrot.lane.b32.xlu0 %v4670, 120
      %v4684 = vpop.permute.xlu0 %4683
      %4685 = vrot.lane.b32.xlu0 %v4671, 120
      %v4686 = vpop.permute.xlu0 %4685
      %v4687 = vrot.slane %v4678, 4
      %v4688 = vrot.slane %v4680, 4
      %v4689 = vrot.slane %v4682, 4
      %v4690 = vrot.slane %v4684, 4
      %v4691 = vrot.slane %v4686, 4
      %v4692 = vsel %vm907, %v4687, %v4688
      %v4693 = vsel %vm3936, %v4678, %v4692
      %v4694 = vsel %vm907, %v4688, %v4689
      %v4695 = vsel %vm3936, %v4680, %v4694
      %v4696 = vsel %vm907, %v4689, %v4690
      %v4697 = vsel %vm3936, %v4682, %v4696
      %v4698 = vsel %vm907, %v4690, %v4691
      %v4699 = vsel %vm3936, %v4684, %v4698
      %4704 = vst [vmem:[#allocation3 + $0x300] sm:$0x77] %v4693
      %4705 = vst [vmem:[#allocation3 + $0x308] sm:$0x77] %v4695
      %4706 = vst [vmem:[#allocation3 + $0x310] sm:$0x77] %v4697
      %4707 = vst [vmem:[#allocation3 + $0x318] sm:$0x77] %v4699
      %v4708 = vld [vmem:[%s3] sm:$0xff]
      %v4709 = vld [vmem:[%s3 + $0x8] sm:$0xff]
      %v4710 = vld [vmem:[#allocation3] sm:$0xff]
      %v4711 = vld [vmem:[#allocation3 + $0x8] sm:$0xff]
      %v4712 = vld [vmem:[#allocation3 + $0x10] sm:$0xff]
      %v4713 = vld [vmem:[#allocation3 + $0x18] sm:$0xff]
      %v4714 = vld [vmem:[#allocation3 + $0x20] sm:$0xff]
      %v4715 = vld [vmem:[#allocation3 + $0x28] sm:$0xff]
      %v4716 = vld [vmem:[#allocation3 + $0x30] sm:$0xff]
      %v4717 = vld [vmem:[#allocation3 + $0x38] sm:$0xff]
      %v4718 = vld [vmem:[#allocation3 + $0x40] sm:$0xff]
      %v4719 = vld [vmem:[#allocation3 + $0x48] sm:$0xff]
      %v4720 = vld [vmem:[#allocation3 + $0x50] sm:$0xff]
      %v4721 = vld [vmem:[#allocation3 + $0x58] sm:$0xff]
      %v4722 = vld [vmem:[#allocation3 + $0x60] sm:$0xff]
      %v4723 = vld [vmem:[#allocation3 + $0x68] sm:$0xff]
      %v4724 = vld [vmem:[#allocation3 + $0x70] sm:$0xff]
      %v4725 = vld [vmem:[#allocation3 + $0x78] sm:$0xff]
      %v4726 = vld [vmem:[#allocation3 + $0x80] sm:$0xff]
      %v4727 = vld [vmem:[#allocation3 + $0x88] sm:$0xff]
      %v4728 = vld [vmem:[#allocation3 + $0x90] sm:$0xff]
      %v4729 = vld [vmem:[#allocation3 + $0x98] sm:$0xff]
      %v4730 = vld [vmem:[#allocation3 + $0xa0] sm:$0xff]
      %v4731 = vld [vmem:[#allocation3 + $0xa8] sm:$0xff]
      %v4732 = vld [vmem:[#allocation3 + $0xb0] sm:$0xff]
      %v4733 = vld [vmem:[#allocation3 + $0xb8] sm:$0xff]
      %v4734 = vld [vmem:[#allocation3 + $0xc0] sm:$0xff]
      %v4735 = vld [vmem:[#allocation3 + $0xc8] sm:$0xff]
      %v4736 = vld [vmem:[#allocation3 + $0xd0] sm:$0xff]
      %v4737 = vld [vmem:[#allocation3 + $0xd8] sm:$0xff]
      %v4738 = vld [vmem:[#allocation3 + $0xe0] sm:$0xff]
      %v4739 = vld [vmem:[#allocation3 + $0xe8] sm:$0xff]
      %v4740 = vld [vmem:[#allocation3 + $0xf0] sm:$0xff]
      %v4741 = vld [vmem:[#allocation3 + $0xf8] sm:$0xff]
      %v4742 = vld [vmem:[#allocation3 + $0x100] sm:$0xff]
      %v4743 = vld [vmem:[#allocation3 + $0x108] sm:$0xff]
      %v4744 = vld [vmem:[#allocation3 + $0x110] sm:$0xff]
      %v4745 = vld [vmem:[#allocation3 + $0x118] sm:$0xff]
      %v4746 = vld [vmem:[#allocation3 + $0x120] sm:$0xff]
      %v4747 = vld [vmem:[#allocation3 + $0x128] sm:$0xff]
      %v4748 = vld [vmem:[#allocation3 + $0x130] sm:$0xff]
      %v4749 = vld [vmem:[#allocation3 + $0x138] sm:$0xff]
      %v4750 = vld [vmem:[#allocation3 + $0x140] sm:$0xff]
      %v4751 = vld [vmem:[#allocation3 + $0x148] sm:$0xff]
      %v4752 = vld [vmem:[#allocation3 + $0x150] sm:$0xff]
      %v4753 = vld [vmem:[#allocation3 + $0x158] sm:$0xff]
      %v4754 = vld [vmem:[#allocation3 + $0x160] sm:$0xff]
      %v4755 = vld [vmem:[#allocation3 + $0x168] sm:$0xff]
      %v4756 = vld [vmem:[#allocation3 + $0x170] sm:$0xff]
      %v4757 = vld [vmem:[#allocation3 + $0x178] sm:$0xff]
      %v4758 = vld [vmem:[#allocation3 + $0x180] sm:$0xff]
      %v4759 = vld [vmem:[#allocation3 + $0x188] sm:$0xff]
      %v4760 = vld [vmem:[#allocation3 + $0x190] sm:$0xff]
      %v4761 = vld [vmem:[#allocation3 + $0x198] sm:$0xff]
      %v4762 = vld [vmem:[#allocation3 + $0x1a0] sm:$0xff]
      %v4763 = vld [vmem:[#allocation3 + $0x1a8] sm:$0xff]
      %v4764 = vld [vmem:[#allocation3 + $0x1b0] sm:$0xff]
      %v4765 = vld [vmem:[#allocation3 + $0x1b8] sm:$0xff]
      %v4766 = vld [vmem:[#allocation3 + $0x1c0] sm:$0xff]
      %v4767 = vld [vmem:[#allocation3 + $0x1c8] sm:$0xff]
      %v4768 = vld [vmem:[#allocation3 + $0x1d0] sm:$0xff]
      %v4769 = vld [vmem:[#allocation3 + $0x1d8] sm:$0xff]
      %v4770 = vld [vmem:[#allocation3 + $0x1e0] sm:$0xff]
      %v4771 = vld [vmem:[#allocation3 + $0x1e8] sm:$0xff]
      %v4772 = vld [vmem:[#allocation3 + $0x1f0] sm:$0xff]
      %v4773 = vld [vmem:[#allocation3 + $0x1f8] sm:$0xff]
      %v4774 = vld [vmem:[#allocation3 + $0x200] sm:$0xff]
      %v4775 = vld [vmem:[#allocation3 + $0x208] sm:$0xff]
      %v4776 = vld [vmem:[#allocation3 + $0x210] sm:$0xff]
      %v4777 = vld [vmem:[#allocation3 + $0x218] sm:$0xff]
      %v4778 = vld [vmem:[#allocation3 + $0x220] sm:$0xff]
      %v4779 = vld [vmem:[#allocation3 + $0x228] sm:$0xff]
      %v4780 = vld [vmem:[#allocation3 + $0x230] sm:$0xff]
      %v4781 = vld [vmem:[#allocation3 + $0x238] sm:$0xff]
      %v4782 = vld [vmem:[#allocation3 + $0x240] sm:$0xff]
      %v4783 = vld [vmem:[#allocation3 + $0x248] sm:$0xff]
      %v4784 = vld [vmem:[#allocation3 + $0x250] sm:$0xff]
      %v4785 = vld [vmem:[#allocation3 + $0x258] sm:$0xff]
      %v4786 = vld [vmem:[#allocation3 + $0x260] sm:$0xff]
      %v4787 = vld [vmem:[#allocation3 + $0x268] sm:$0xff]
      %v4788 = vld [vmem:[#allocation3 + $0x270] sm:$0xff]
      %v4789 = vld [vmem:[#allocation3 + $0x278] sm:$0xff]
      %v4790 = vld [vmem:[#allocation3 + $0x280] sm:$0xff]
      %v4791 = vld [vmem:[#allocation3 + $0x288] sm:$0xff]
      %v4792 = vld [vmem:[#allocation3 + $0x290] sm:$0xff]
      %v4793 = vld [vmem:[#allocation3 + $0x298] sm:$0xff]
      %v4794 = vld [vmem:[#allocation3 + $0x2a0] sm:$0xff]
      %v4795 = vld [vmem:[#allocation3 + $0x2a8] sm:$0xff]
      %v4796 = vld [vmem:[#allocation3 + $0x2b0] sm:$0xff]
      %v4797 = vld [vmem:[#allocation3 + $0x2b8] sm:$0xff]
      %v4798 = vld [vmem:[#allocation3 + $0x2c0] sm:$0xff]
      %v4799 = vld [vmem:[#allocation3 + $0x2c8] sm:$0xff]
      %v4800 = vld [vmem:[#allocation3 + $0x2d0] sm:$0xff]
      %v4801 = vld [vmem:[#allocation3 + $0x2d8] sm:$0xff]
      %v4802 = vld [vmem:[#allocation3 + $0x2e0] sm:$0xff]
      %v4803 = vld [vmem:[#allocation3 + $0x2e8] sm:$0xff]
      %v4804 = vld [vmem:[#allocation3 + $0x2f0] sm:$0xff]
      %v4805 = vld [vmem:[#allocation3 + $0x2f8] sm:$0xff]
      %v4806 = vld [vmem:[#allocation3 + $0x300] sm:$0xff]
      %v4807 = vld [vmem:[#allocation3 + $0x308] sm:$0xff]
      %v4808 = vld [vmem:[#allocation3 + $0x310] sm:$0xff]
      %v4809 = vld [vmem:[#allocation3 + $0x318] sm:$0xff]
      %v4810 = vld [vmem:[%s4] sm:$0xff]
      %v4811 = vld [vmem:[%s4 + $0x8] sm:$0xff]
      %4813 = vset.pattern.permute.xlu0 0
      %4814 = vperm.xlu0 %4813, %v4810
      %v4815 = vpop.permute.xlu0 %4814
      %4818 = vset.pattern.permute.xlu0 0
      %4819 = vperm.xlu0 %4818, %v4811
      %v4820 = vpop.permute.xlu0 %4819
      %v4824 = vunpack.c.l.b16 %v4708
      %v4825 = vunpack.c.h.b16 %v4708
      %v4826 = vunpack.c.l.b16 %v4709
      %v4827 = vunpack.c.h.b16 %v4709
      %v4828 = vpack.c.b16 %v4826, %v4824
      %v4829 = vpack.c.b16 %v4827, %v4825
      %v4931 = vunpack.c.l.b16 %v4710
      %v4932 = vunpack.c.h.b16 %v4710
      %v4933 = vunpack.c.l.b16 %v4711
      %v4934 = vunpack.c.h.b16 %v4711
      %v4935 = vunpack.c.l.b16 %v4712
      %v4936 = vunpack.c.h.b16 %v4712
      %v4937 = vunpack.c.l.b16 %v4713
      %v4938 = vunpack.c.h.b16 %v4713
      %v4939 = vunpack.c.l.b16 %v4714
      %v4940 = vunpack.c.h.b16 %v4714
      %v4941 = vunpack.c.l.b16 %v4715
      %v4942 = vunpack.c.h.b16 %v4715
      %v4943 = vunpack.c.l.b16 %v4716
      %v4944 = vunpack.c.h.b16 %v4716
      %v4945 = vunpack.c.l.b16 %v4717
      %v4946 = vunpack.c.h.b16 %v4717
      %v4947 = vunpack.c.l.b16 %v4718
      %v4948 = vunpack.c.h.b16 %v4718
      %v4949 = vunpack.c.l.b16 %v4719
      %v4950 = vunpack.c.h.b16 %v4719
      %v4951 = vunpack.c.l.b16 %v4720
      %v4952 = vunpack.c.h.b16 %v4720
      %v4953 = vunpack.c.l.b16 %v4721
      %v4954 = vunpack.c.h.b16 %v4721
      %v4955 = vunpack.c.l.b16 %v4722
      %v4956 = vunpack.c.h.b16 %v4722
      %v4957 = vunpack.c.l.b16 %v4723
      %v4958 = vunpack.c.h.b16 %v4723
      %v4959 = vunpack.c.l.b16 %v4724
      %v4960 = vunpack.c.h.b16 %v4724
      %v4961 = vunpack.c.l.b16 %v4725
      %v4962 = vunpack.c.h.b16 %v4725
      %v4963 = vunpack.c.l.b16 %v4726
      %v4964 = vunpack.c.h.b16 %v4726
      %v4965 = vunpack.c.l.b16 %v4727
      %v4966 = vunpack.c.h.b16 %v4727
      %v4967 = vunpack.c.l.b16 %v4728
      %v4968 = vunpack.c.h.b16 %v4728
      %v4969 = vunpack.c.l.b16 %v4729
      %v4970 = vunpack.c.h.b16 %v4729
      %v4971 = vunpack.c.l.b16 %v4730
      %v4972 = vunpack.c.h.b16 %v4730
      %v4973 = vunpack.c.l.b16 %v4731
      %v4974 = vunpack.c.h.b16 %v4731
      %v4975 = vunpack.c.l.b16 %v4732
      %v4976 = vunpack.c.h.b16 %v4732
      %v4977 = vunpack.c.l.b16 %v4733
      %v4978 = vunpack.c.h.b16 %v4733
      %v4979 = vunpack.c.l.b16 %v4734
      %v4980 = vunpack.c.h.b16 %v4734
      %v4981 = vunpack.c.l.b16 %v4735
      %v4982 = vunpack.c.h.b16 %v4735
      %v4983 = vunpack.c.l.b16 %v4736
      %v4984 = vunpack.c.h.b16 %v4736
      %v4985 = vunpack.c.l.b16 %v4737
      %v4986 = vunpack.c.h.b16 %v4737
      %v4987 = vunpack.c.l.b16 %v4738
      %v4988 = vunpack.c.h.b16 %v4738
      %v4989 = vunpack.c.l.b16 %v4739
      %v4990 = vunpack.c.h.b16 %v4739
      %v4991 = vunpack.c.l.b16 %v4740
      %v4992 = vunpack.c.h.b16 %v4740
      %v4993 = vunpack.c.l.b16 %v4741
      %v4994 = vunpack.c.h.b16 %v4741
      %v4995 = vunpack.c.l.b16 %v4742
      %v4996 = vunpack.c.h.b16 %v4742
      %v4997 = vunpack.c.l.b16 %v4743
      %v4998 = vunpack.c.h.b16 %v4743
      %v4999 = vunpack.c.l.b16 %v4744
      %v5000 = vunpack.c.h.b16 %v4744
      %v5001 = vunpack.c.l.b16 %v4745
      %v5002 = vunpack.c.h.b16 %v4745
      %v5003 = vunpack.c.l.b16 %v4746
      %v5004 = vunpack.c.h.b16 %v4746
      %v5005 = vunpack.c.l.b16 %v4747
      %v5006 = vunpack.c.h.b16 %v4747
      %v5007 = vunpack.c.l.b16 %v4748
      %v5008 = vunpack.c.h.b16 %v4748
      %v5009 = vunpack.c.l.b16 %v4749
      %v5010 = vunpack.c.h.b16 %v4749
      %v5011 = vunpack.c.l.b16 %v4750
      %v5012 = vunpack.c.h.b16 %v4750
      %v5013 = vunpack.c.l.b16 %v4751
      %v5014 = vunpack.c.h.b16 %v4751
      %v5015 = vunpack.c.l.b16 %v4752
      %v5016 = vunpack.c.h.b16 %v4752
      %v5017 = vunpack.c.l.b16 %v4753
      %v5018 = vunpack.c.h.b16 %v4753
      %v5019 = vunpack.c.l.b16 %v4754
      %v5020 = vunpack.c.h.b16 %v4754
      %v5021 = vunpack.c.l.b16 %v4755
      %v5022 = vunpack.c.h.b16 %v4755
      %v5023 = vunpack.c.l.b16 %v4756
      %v5024 = vunpack.c.h.b16 %v4756
      %v5025 = vunpack.c.l.b16 %v4757
      %v5026 = vunpack.c.h.b16 %v4757
      %v5027 = vunpack.c.l.b16 %v4758
      %v5028 = vunpack.c.h.b16 %v4758
      %v5029 = vunpack.c.l.b16 %v4759
      %v5030 = vunpack.c.h.b16 %v4759
      %v5031 = vunpack.c.l.b16 %v4760
      %v5032 = vunpack.c.h.b16 %v4760
      %v5033 = vunpack.c.l.b16 %v4761
      %v5034 = vunpack.c.h.b16 %v4761
      %v5035 = vunpack.c.l.b16 %v4762
      %v5036 = vunpack.c.h.b16 %v4762
      %v5037 = vunpack.c.l.b16 %v4763
      %v5038 = vunpack.c.h.b16 %v4763
      %v5039 = vunpack.c.l.b16 %v4764
      %v5040 = vunpack.c.h.b16 %v4764
      %v5041 = vunpack.c.l.b16 %v4765
      %v5042 = vunpack.c.h.b16 %v4765
      %v5043 = vunpack.c.l.b16 %v4766
      %v5044 = vunpack.c.h.b16 %v4766
      %v5045 = vunpack.c.l.b16 %v4767
      %v5046 = vunpack.c.h.b16 %v4767
      %v5047 = vunpack.c.l.b16 %v4768
      %v5048 = vunpack.c.h.b16 %v4768
      %v5049 = vunpack.c.l.b16 %v4769
      %v5050 = vunpack.c.h.b16 %v4769
      %v5051 = vunpack.c.l.b16 %v4770
      %v5052 = vunpack.c.h.b16 %v4770
      %v5053 = vunpack.c.l.b16 %v4771
      %v5054 = vunpack.c.h.b16 %v4771
      %v5055 = vunpack.c.l.b16 %v4772
      %v5056 = vunpack.c.h.b16 %v4772
      %v5057 = vunpack.c.l.b16 %v4773
      %v5058 = vunpack.c.h.b16 %v4773
      %v5059 = vunpack.c.l.b16 %v4774
      %v5060 = vunpack.c.h.b16 %v4774
      %v5061 = vunpack.c.l.b16 %v4775
      %v5062 = vunpack.c.h.b16 %v4775
      %v5063 = vunpack.c.l.b16 %v4776
      %v5064 = vunpack.c.h.b16 %v4776
      %v5065 = vunpack.c.l.b16 %v4777
      %v5066 = vunpack.c.h.b16 %v4777
      %v5067 = vunpack.c.l.b16 %v4778
      %v5068 = vunpack.c.h.b16 %v4778
      %v5069 = vunpack.c.l.b16 %v4779
      %v5070 = vunpack.c.h.b16 %v4779
      %v5071 = vunpack.c.l.b16 %v4780
      %v5072 = vunpack.c.h.b16 %v4780
      %v5073 = vunpack.c.l.b16 %v4781
      %v5074 = vunpack.c.h.b16 %v4781
      %v5075 = vunpack.c.l.b16 %v4782
      %v5076 = vunpack.c.h.b16 %v4782
      %v5077 = vunpack.c.l.b16 %v4783
      %v5078 = vunpack.c.h.b16 %v4783
      %v5079 = vunpack.c.l.b16 %v4784
      %v5080 = vunpack.c.h.b16 %v4784
      %v5081 = vunpack.c.l.b16 %v4785
      %v5082 = vunpack.c.h.b16 %v4785
      %v5083 = vunpack.c.l.b16 %v4786
      %v5084 = vunpack.c.h.b16 %v4786
      %v5085 = vunpack.c.l.b16 %v4787
      %v5086 = vunpack.c.h.b16 %v4787
      %v5087 = vunpack.c.l.b16 %v4788
      %v5088 = vunpack.c.h.b16 %v4788
      %v5089 = vunpack.c.l.b16 %v4789
      %v5090 = vunpack.c.h.b16 %v4789
      %v5091 = vunpack.c.l.b16 %v4790
      %v5092 = vunpack.c.h.b16 %v4790
      %v5093 = vunpack.c.l.b16 %v4791
      %v5094 = vunpack.c.h.b16 %v4791
      %v5095 = vunpack.c.l.b16 %v4792
      %v5096 = vunpack.c.h.b16 %v4792
      %v5097 = vunpack.c.l.b16 %v4793
      %v5098 = vunpack.c.h.b16 %v4793
      %v5099 = vunpack.c.l.b16 %v4794
      %v5100 = vunpack.c.h.b16 %v4794
      %v5101 = vunpack.c.l.b16 %v4795
      %v5102 = vunpack.c.h.b16 %v4795
      %v5103 = vunpack.c.l.b16 %v4796
      %v5104 = vunpack.c.h.b16 %v4796
      %v5105 = vunpack.c.l.b16 %v4797
      %v5106 = vunpack.c.h.b16 %v4797
      %v5107 = vunpack.c.l.b16 %v4798
      %v5108 = vunpack.c.h.b16 %v4798
      %v5109 = vunpack.c.l.b16 %v4799
      %v5110 = vunpack.c.h.b16 %v4799
      %v5111 = vunpack.c.l.b16 %v4800
      %v5112 = vunpack.c.h.b16 %v4800
      %v5113 = vunpack.c.l.b16 %v4801
      %v5114 = vunpack.c.h.b16 %v4801
      %v5115 = vunpack.c.l.b16 %v4802
      %v5116 = vunpack.c.h.b16 %v4802
      %v5117 = vunpack.c.l.b16 %v4803
      %v5118 = vunpack.c.h.b16 %v4803
      %v5119 = vunpack.c.l.b16 %v4804
      %v5120 = vunpack.c.h.b16 %v4804
      %v5121 = vunpack.c.l.b16 %v4805
      %v5122 = vunpack.c.h.b16 %v4805
      %v5123 = vunpack.c.l.b16 %v4806
      %v5124 = vunpack.c.h.b16 %v4806
      %v5125 = vunpack.c.l.b16 %v4807
      %v5126 = vunpack.c.h.b16 %v4807
      %v5127 = vunpack.c.l.b16 %v4808
      %v5128 = vunpack.c.h.b16 %v4808
      %v5129 = vunpack.c.l.b16 %v4809
      %v5130 = vunpack.c.h.b16 %v4809
      %v5131 = vpack.c.b16 %v4939, %v4931
      %v5132 = vpack.c.b16 %v4940, %v4932
      %v5133 = vpack.c.b16 %v4941, %v4933
      %v5134 = vpack.c.b16 %v4942, %v4934
      %v5135 = vpack.c.b16 %v4943, %v4935
      %v5136 = vpack.c.b16 %v4944, %v4936
      %v5137 = vpack.c.b16 %v4945, %v4937
      %v5138 = vpack.c.b16 %v4946, %v4938
      %v5139 = vpack.c.b16 %v4955, %v4947
      %v5140 = vpack.c.b16 %v4956, %v4948
      %v5141 = vpack.c.b16 %v4957, %v4949
      %v5142 = vpack.c.b16 %v4958, %v4950
      %v5143 = vpack.c.b16 %v4959, %v4951
      %v5144 = vpack.c.b16 %v4960, %v4952
      %v5145 = vpack.c.b16 %v4961, %v4953
      %v5146 = vpack.c.b16 %v4962, %v4954
      %v5147 = vpack.c.b16 %v4971, %v4963
      %v5148 = vpack.c.b16 %v4972, %v4964
      %v5149 = vpack.c.b16 %v4973, %v4965
      %v5150 = vpack.c.b16 %v4974, %v4966
      %v5151 = vpack.c.b16 %v4975, %v4967
      %v5152 = vpack.c.b16 %v4976, %v4968
      %v5153 = vpack.c.b16 %v4977, %v4969
      %v5154 = vpack.c.b16 %v4978, %v4970
      %v5155 = vpack.c.b16 %v4987, %v4979
      %v5156 = vpack.c.b16 %v4988, %v4980
      %v5157 = vpack.c.b16 %v4989, %v4981
      %v5158 = vpack.c.b16 %v4990, %v4982
      %v5159 = vpack.c.b16 %v4991, %v4983
      %v5160 = vpack.c.b16 %v4992, %v4984
      %v5161 = vpack.c.b16 %v4993, %v4985
      %v5162 = vpack.c.b16 %v4994, %v4986
      %v5163 = vpack.c.b16 %v5003, %v4995
      %v5164 = vpack.c.b16 %v5004, %v4996
      %v5165 = vpack.c.b16 %v5005, %v4997
      %v5166 = vpack.c.b16 %v5006, %v4998
      %v5167 = vpack.c.b16 %v5007, %v4999
      %v5168 = vpack.c.b16 %v5008, %v5000
      %v5169 = vpack.c.b16 %v5009, %v5001
      %v5170 = vpack.c.b16 %v5010, %v5002
      %v5171 = vpack.c.b16 %v5019, %v5011
      %v5172 = vpack.c.b16 %v5020, %v5012
      %v5173 = vpack.c.b16 %v5021, %v5013
      %v5174 = vpack.c.b16 %v5022, %v5014
      %v5175 = vpack.c.b16 %v5023, %v5015
      %v5176 = vpack.c.b16 %v5024, %v5016
      %v5177 = vpack.c.b16 %v5025, %v5017
      %v5178 = vpack.c.b16 %v5026, %v5018
      %v5179 = vpack.c.b16 %v5035, %v5027
      %v5180 = vpack.c.b16 %v5036, %v5028
      %v5181 = vpack.c.b16 %v5037, %v5029
      %v5182 = vpack.c.b16 %v5038, %v5030
      %v5183 = vpack.c.b16 %v5039, %v5031
      %v5184 = vpack.c.b16 %v5040, %v5032
      %v5185 = vpack.c.b16 %v5041, %v5033
      %v5186 = vpack.c.b16 %v5042, %v5034
      %v5187 = vpack.c.b16 %v5051, %v5043
      %v5188 = vpack.c.b16 %v5052, %v5044
      %v5189 = vpack.c.b16 %v5053, %v5045
      %v5190 = vpack.c.b16 %v5054, %v5046
      %v5191 = vpack.c.b16 %v5055, %v5047
      %v5192 = vpack.c.b16 %v5056, %v5048
      %v5193 = vpack.c.b16 %v5057, %v5049
      %v5194 = vpack.c.b16 %v5058, %v5050
      %v5195 = vpack.c.b16 %v5067, %v5059
      %v5196 = vpack.c.b16 %v5068, %v5060
      %v5197 = vpack.c.b16 %v5069, %v5061
      %v5198 = vpack.c.b16 %v5070, %v5062
      %v5199 = vpack.c.b16 %v5071, %v5063
      %v5200 = vpack.c.b16 %v5072, %v5064
      %v5201 = vpack.c.b16 %v5073, %v5065
      %v5202 = vpack.c.b16 %v5074, %v5066
      %v5203 = vpack.c.b16 %v5083, %v5075
      %v5204 = vpack.c.b16 %v5084, %v5076
      %v5205 = vpack.c.b16 %v5085, %v5077
      %v5206 = vpack.c.b16 %v5086, %v5078
      %v5207 = vpack.c.b16 %v5087, %v5079
      %v5208 = vpack.c.b16 %v5088, %v5080
      %v5209 = vpack.c.b16 %v5089, %v5081
      %v5210 = vpack.c.b16 %v5090, %v5082
      %v5211 = vpack.c.b16 %v5099, %v5091
      %v5212 = vpack.c.b16 %v5100, %v5092
      %v5213 = vpack.c.b16 %v5101, %v5093
      %v5214 = vpack.c.b16 %v5102, %v5094
      %v5215 = vpack.c.b16 %v5103, %v5095
      %v5216 = vpack.c.b16 %v5104, %v5096
      %v5217 = vpack.c.b16 %v5105, %v5097
      %v5218 = vpack.c.b16 %v5106, %v5098
      %v5219 = vpack.c.b16 %v5115, %v5107
      %v5220 = vpack.c.b16 %v5116, %v5108
      %v5221 = vpack.c.b16 %v5117, %v5109
      %v5222 = vpack.c.b16 %v5118, %v5110
      %v5223 = vpack.c.b16 %v5119, %v5111
      %v5224 = vpack.c.b16 %v5120, %v5112
      %v5225 = vpack.c.b16 %v5121, %v5113
      %v5226 = vpack.c.b16 %v5122, %v5114
      %v5227 = vpack.c.b16 %v5123, %v5123
      %v5228 = vpack.c.b16 %v5124, %v5124
      %v5229 = vpack.c.b16 %v5125, %v5125
      %v5230 = vpack.c.b16 %v5126, %v5126
      %v5231 = vpack.c.b16 %v5127, %v5127
      %v5232 = vpack.c.b16 %v5128, %v5128
      %v5233 = vpack.c.b16 %v5129, %v5129
      %v5234 = vpack.c.b16 %v5130, %v5130
      %v5332 = vsel %vm3418, %v4829, 0
      %v5335 = vsel %vm3422, %v5227, 0
      %v5338 = vsel %vm3422, %v5228, 0
      %v5341 = vsel %vm3422, %v5229, 0
      %v5344 = vsel %vm3422, %v5230, 0
      %v5347 = vsel %vm3422, %v5231, 0
      %v5350 = vsel %vm3422, %v5232, 0
      %v5353 = vsel %vm3422, %v5233, 0
      %v5356 = vsel %vm3422, %v5234, 0
      %5358 = vmatprep.subr.bf16.mxu0 %v5188
      %5359 = vmatpush1.bf16.msra.mxu0 %v5187
      %5360 = vmatprep.subr.bf16.mxu0 %v5180
      %5361 = vmatpush1.bf16.msra.mxu0 %v5179
      %5362 = vmatprep.subr.bf16.mxu0 %v5172
      %5363 = vmatpush1.bf16.msra.mxu0 %v5171
      %5364 = vmatprep.subr.bf16.mxu0 %v5164
      %5365 = vmatpush1.bf16.msra.mxu0 %v5163
      %5366 = vmatprep.subr.bf16.mxu0 %v5156
      %5367 = vmatpush1.bf16.msra.mxu0 %v5155
      %5368 = vmatprep.subr.bf16.mxu0 %v5148
      %5369 = vmatpush1.bf16.msra.mxu0 %v5147
      %5370 = vmatprep.subr.bf16.mxu0 %v5140
      %5371 = vmatpush1.bf16.msra.mxu0 %v5139
      %5372 = vmatprep.subr.bf16.mxu0 %v5132
      %5373 = vmatpush1.bf16.msra.mxu0 %v5131
      %5374 = vmatprep.subr.bf16.mxu0 0
      %5375 = vmatpush2.bf16.msra.mxu0 0
      %5376 = vmatprep.subr.bf16.mxu0 0
      %5377 = vmatpush2.bf16.msra.mxu0 0
      %5378 = vmatprep.subr.bf16.mxu0 0
      %5379 = vmatpush2.bf16.msra.mxu0 0
      %5380 = vmatprep.subr.bf16.mxu0 %v5338
      %5381 = vmatpush2.bf16.msra.mxu0 %v5335
      %5382 = vmatprep.subr.bf16.mxu0 %v5220
      %5383 = vmatpush2.bf16.msra.mxu0 %v5219
      %5384 = vmatprep.subr.bf16.mxu0 %v5212
      %5385 = vmatpush2.bf16.msra.mxu0 %v5211
      %5386 = vmatprep.subr.bf16.mxu0 %v5204
      %5387 = vmatpush2.bf16.msra.mxu0 %v5203
      %5388 = vmatprep.subr.bf16.mxu0 %v5196
      %5389 = vmatpush2.bf16.msra.mxu0 %v5195
      %5390 = vmatprep.mubr.bf16.mxu0 %v5332
      %5391 = vmatmul.mubr.bf16.gmra.mxu0 %v4828
      %v5392 = vpop.f32.mrf.mxu0
      %v5393 = vadd.f32 %v4815, %v5392
      %v5394 = vpop.f32.mrf.mxu0
      %v5395 = vadd.f32 %v4815, %v5394
      %v5396 = vpop.f32.mrf.mxu0
      %v5397 = vadd.f32 %v4820, %v5396
      %v5398 = vpop.f32.mrf.mxu0
      %v5399 = vadd.f32 %v4820, %v5398
      %5400 = vdwg.mxu0
      %5401 = vmatprep.subr.bf16.mxu0 %v5190
      %5402 = vmatpush1.bf16.msra.mxu0 %v5189
      %5403 = vmatprep.subr.bf16.mxu0 %v5182
      %5404 = vmatpush1.bf16.msra.mxu0 %v5181
      %5405 = vmatprep.subr.bf16.mxu0 %v5174
      %5406 = vmatpush1.bf16.msra.mxu0 %v5173
      %5407 = vmatprep.subr.bf16.mxu0 %v5166
      %5408 = vmatpush1.bf16.msra.mxu0 %v5165
      %5409 = vmatprep.subr.bf16.mxu0 %v5158
      %5410 = vmatpush1.bf16.msra.mxu0 %v5157
      %5411 = vmatprep.subr.bf16.mxu0 %v5150
      %5412 = vmatpush1.bf16.msra.mxu0 %v5149
      %5413 = vmatprep.subr.bf16.mxu0 %v5142
      %5414 = vmatpush1.bf16.msra.mxu0 %v5141
      %5415 = vmatprep.subr.bf16.mxu0 %v5134
      %5416 = vmatpush1.bf16.msra.mxu0 %v5133
      %5417 = vmatprep.subr.bf16.mxu0 0
      %5418 = vmatpush2.bf16.msra.mxu0 0
      %5419 = vmatprep.subr.bf16.mxu0 0
      %5420 = vmatpush2.bf16.msra.mxu0 0
      %5421 = vmatprep.subr.bf16.mxu0 0
      %5422 = vmatpush2.bf16.msra.mxu0 0
      %5423 = vmatprep.subr.bf16.mxu0 %v5344
      %5424 = vmatpush2.bf16.msra.mxu0 %v5341
      %5425 = vmatprep.subr.bf16.mxu0 %v5222
      %5426 = vmatpush2.bf16.msra.mxu0 %v5221
      %5427 = vmatprep.subr.bf16.mxu0 %v5214
      %5428 = vmatpush2.bf16.msra.mxu0 %v5213
      %5429 = vmatprep.subr.bf16.mxu0 %v5206
      %5430 = vmatpush2.bf16.msra.mxu0 %v5205
      %5431 = vmatprep.subr.bf16.mxu0 %v5198
      %5432 = vmatpush2.bf16.msra.mxu0 %v5197
      %5433 = vmatprep.mubr.bf16.mxu0 %v5332
      %5434 = vmatmul.mubr.bf16.gmra.mxu0 %v4828
      %v5435 = vpop.f32.mrf.mxu0
      %v5436 = vadd.f32 %v4815, %v5435
      %v5437 = vpop.f32.mrf.mxu0
      %v5438 = vadd.f32 %v4815, %v5437
      %v5439 = vpop.f32.mrf.mxu0
      %v5440 = vadd.f32 %v4820, %v5439
      %v5441 = vpop.f32.mrf.mxu0
      %v5442 = vadd.f32 %v4820, %v5441
      %5443 = vdwg.mxu0
      %5444 = vmatprep.subr.bf16.mxu0 %v5192
      %5445 = vmatpush1.bf16.msra.mxu0 %v5191
      %5446 = vmatprep.subr.bf16.mxu0 %v5184
      %5447 = vmatpush1.bf16.msra.mxu0 %v5183
      %5448 = vmatprep.subr.bf16.mxu0 %v5176
      %5449 = vmatpush1.bf16.msra.mxu0 %v5175
      %5450 = vmatprep.subr.bf16.mxu0 %v5168
      %5451 = vmatpush1.bf16.msra.mxu0 %v5167
      %5452 = vmatprep.subr.bf16.mxu0 %v5160
      %5453 = vmatpush1.bf16.msra.mxu0 %v5159
      %5454 = vmatprep.subr.bf16.mxu0 %v5152
      %5455 = vmatpush1.bf16.msra.mxu0 %v5151
      %5456 = vmatprep.subr.bf16.mxu0 %v5144
      %5457 = vmatpush1.bf16.msra.mxu0 %v5143
      %5458 = vmatprep.subr.bf16.mxu0 %v5136
      %5459 = vmatpush1.bf16.msra.mxu0 %v5135
      %5460 = vmatprep.subr.bf16.mxu0 0
      %5461 = vmatpush2.bf16.msra.mxu0 0
      %5462 = vmatprep.subr.bf16.mxu0 0
      %5463 = vmatpush2.bf16.msra.mxu0 0
      %5464 = vmatprep.subr.bf16.mxu0 0
      %5465 = vmatpush2.bf16.msra.mxu0 0
      %5466 = vmatprep.subr.bf16.mxu0 %v5350
      %5467 = vmatpush2.bf16.msra.mxu0 %v5347
      %5468 = vmatprep.subr.bf16.mxu0 %v5224
      %5469 = vmatpush2.bf16.msra.mxu0 %v5223
      %5470 = vmatprep.subr.bf16.mxu0 %v5216
      %5471 = vmatpush2.bf16.msra.mxu0 %v5215
      %5472 = vmatprep.subr.bf16.mxu0 %v5208
      %5473 = vmatpush2.bf16.msra.mxu0 %v5207
      %5474 = vmatprep.subr.bf16.mxu0 %v5200
      %5475 = vmatpush2.bf16.msra.mxu0 %v5199
      %5476 = vmatprep.mubr.bf16.mxu0 %v5332
      %5477 = vmatmul.mubr.bf16.gmra.mxu0 %v4828
      %v5478 = vpop.f32.mrf.mxu0
      %v5479 = vadd.f32 %v4815, %v5478
      %v5480 = vpop.f32.mrf.mxu0
      %v5481 = vadd.f32 %v4815, %v5480
      %v5482 = vpop.f32.mrf.mxu0
      %v5483 = vadd.f32 %v4820, %v5482
      %v5484 = vpop.f32.mrf.mxu0
      %v5485 = vadd.f32 %v4820, %v5484
      %5486 = vdwg.mxu0
      %5487 = vmatprep.subr.bf16.mxu0 %v5194
      %5488 = vmatpush1.bf16.msra.mxu0 %v5193
      %5489 = vmatprep.subr.bf16.mxu0 %v5186
      %5490 = vmatpush1.bf16.msra.mxu0 %v5185
      %5491 = vmatprep.subr.bf16.mxu0 %v5178
      %5492 = vmatpush1.bf16.msra.mxu0 %v5177
      %5493 = vmatprep.subr.bf16.mxu0 %v5170
      %5494 = vmatpush1.bf16.msra.mxu0 %v5169
      %5495 = vmatprep.subr.bf16.mxu0 %v5162
      %5496 = vmatpush1.bf16.msra.mxu0 %v5161
      %5497 = vmatprep.subr.bf16.mxu0 %v5154
      %5498 = vmatpush1.bf16.msra.mxu0 %v5153
      %5499 = vmatprep.subr.bf16.mxu0 %v5146
      %5500 = vmatpush1.bf16.msra.mxu0 %v5145
      %5501 = vmatprep.subr.bf16.mxu0 %v5138
      %5502 = vmatpush1.bf16.msra.mxu0 %v5137
      %5503 = vmatprep.subr.bf16.mxu0 0
      %5504 = vmatpush2.bf16.msra.mxu0 0
      %5505 = vmatprep.subr.bf16.mxu0 0
      %5506 = vmatpush2.bf16.msra.mxu0 0
      %5507 = vmatprep.subr.bf16.mxu0 0
      %5508 = vmatpush2.bf16.msra.mxu0 0
      %5509 = vmatprep.subr.bf16.mxu0 %v5356
      %5510 = vmatpush2.bf16.msra.mxu0 %v5353
      %5511 = vmatprep.subr.bf16.mxu0 %v5226
      %5512 = vmatpush2.bf16.msra.mxu0 %v5225
      %5513 = vmatprep.subr.bf16.mxu0 %v5218
      %5514 = vmatpush2.bf16.msra.mxu0 %v5217
      %5515 = vmatprep.subr.bf16.mxu0 %v5210
      %5516 = vmatpush2.bf16.msra.mxu0 %v5209
      %5517 = vmatprep.subr.bf16.mxu0 %v5202
      %5518 = vmatpush2.bf16.msra.mxu0 %v5201
      %5519 = vmatprep.mubr.bf16.mxu0 %v5332
      %5520 = vmatmul.mubr.bf16.gmra.mxu0 %v4828
      %v5521 = vpop.f32.mrf.mxu0
      %v5522 = vadd.f32 %v4815, %v5521
      %v5523 = vpop.f32.mrf.mxu0
      %v5524 = vadd.f32 %v4815, %v5523
      %v5525 = vpop.f32.mrf.mxu0
      %v5526 = vadd.f32 %v4820, %v5525
      %v5527 = vpop.f32.mrf.mxu0
      %v5528 = vadd.f32 %v4820, %v5527
      %5529 = vdwg.mxu0
      %v5530 = vmax.f32 %v5393, 0.0
      %v5531 = vmax.f32 %v5395, 0.0
      %v5532 = vmax.f32 %v5436, 0.0
      %v5533 = vmax.f32 %v5438, 0.0
      %v5534 = vmax.f32 %v5479, 0.0
      %v5535 = vmax.f32 %v5481, 0.0
      %v5536 = vmax.f32 %v5522, 0.0
      %v5537 = vmax.f32 %v5524, 0.0
      %v5538 = vmax.f32 %v5397, 0.0
      %v5539 = vmax.f32 %v5399, 0.0
      %v5540 = vmax.f32 %v5440, 0.0
      %v5541 = vmax.f32 %v5442, 0.0
      %v5542 = vmax.f32 %v5483, 0.0
      %v5543 = vmax.f32 %v5485, 0.0
      %v5544 = vmax.f32 %v5526, 0.0
      %v5545 = vmax.f32 %v5528, 0.0
      %5546 = vst [vmem:[#allocation6] sm:$0xff] %v5530
      %5547 = vst [vmem:[#allocation6 + $0x8] sm:$0xff] %v5531
      %5548 = vst [vmem:[#allocation6 + $0x10] sm:$0xff] %v5532
      %5549 = vst [vmem:[#allocation6 + $0x18] sm:$0xff] %v5533
      %5550 = vst [vmem:[#allocation6 + $0x20] sm:$0xff] %v5534
      %5551 = vst [vmem:[#allocation6 + $0x28] sm:$0xff] %v5535
      %5552 = vst [vmem:[#allocation6 + $0x30] sm:$0xff] %v5536
      %5553 = vst [vmem:[#allocation6 + $0x38] sm:$0xff] %v5537
      %5554 = vst [vmem:[#allocation6 + $0x58] sm:$0xff] %v5538
      %5555 = vst [vmem:[#allocation6 + $0x60] sm:$0xff] %v5539
      %5556 = vst [vmem:[#allocation6 + $0x68] sm:$0xff] %v5540
      %5557 = vst [vmem:[#allocation6 + $0x70] sm:$0xff] %v5541
      %5558 = vst [vmem:[#allocation6 + $0x78] sm:$0xff] %v5542
      %5559 = vst [vmem:[#allocation6 + $0x80] sm:$0xff] %v5543
      %5560 = vst [vmem:[#allocation6 + $0x88] sm:$0xff] %v5544
      %5561 = vst [vmem:[#allocation6 + $0x90] sm:$0xff] %v5545
      %v5562 = vld [vmem:[#allocation6] sm:$0xff]
      %v5563 = vld [vmem:[#allocation6 + $0x8] sm:$0xff]
      %v5564 = vld [vmem:[#allocation6 + $0x10] sm:$0xff]
      %v5565 = vld [vmem:[#allocation6 + $0x18] sm:$0xff]
      %v5566 = vld [vmem:[#allocation6 + $0x20] sm:$0xff]
      %v5567 = vld [vmem:[#allocation6 + $0x28] sm:$0xff]
      %v5568 = vld [vmem:[#allocation6 + $0x30] sm:$0xff]
      %v5569 = vld [vmem:[#allocation6 + $0x38] sm:$0xff]
      %v5570 = vld [vmem:[#allocation6 + $0x58] sm:$0xff]
      %v5571 = vld [vmem:[#allocation6 + $0x60] sm:$0xff]
      %v5572 = vld [vmem:[#allocation6 + $0x68] sm:$0xff]
      %v5573 = vld [vmem:[#allocation6 + $0x70] sm:$0xff]
      %v5574 = vld [vmem:[#allocation6 + $0x78] sm:$0xff]
      %v5575 = vld [vmem:[#allocation6 + $0x80] sm:$0xff]
      %v5576 = vld [vmem:[#allocation6 + $0x88] sm:$0xff]
      %v5577 = vld [vmem:[#allocation6 + $0x90] sm:$0xff]
      %v5578 = vld [vmem:[#allocation6 + $0x40] sm:$0xff]
      %v5579 = vld [vmem:[#allocation6 + $0x98] sm:$0xff]
      %5598 = vrot.lane.b32.xlu0 %v5562, 126
      %v5599 = vpop.permute.xlu0 %5598
      %5600 = vrot.lane.b32.xlu0 %v5563, 126
      %v5601 = vpop.permute.xlu0 %5600
      %5602 = vrot.lane.b32.xlu0 %v5564, 126
      %v5603 = vpop.permute.xlu0 %5602
      %5604 = vrot.lane.b32.xlu0 %v5565, 126
      %v5605 = vpop.permute.xlu0 %5604
      %5606 = vrot.lane.b32.xlu0 %v5566, 126
      %v5607 = vpop.permute.xlu0 %5606
      %5608 = vrot.lane.b32.xlu0 %v5567, 126
      %v5609 = vpop.permute.xlu0 %5608
      %5610 = vrot.lane.b32.xlu0 %v5568, 126
      %v5611 = vpop.permute.xlu0 %5610
      %5612 = vrot.lane.b32.xlu0 %v5569, 126
      %v5613 = vpop.permute.xlu0 %5612
      %5614 = vrot.lane.b32.xlu0 %v5578, 126
      %v5615 = vpop.permute.xlu0 %5614
      %5616 = vrot.lane.b32.xlu0 %v5570, 126
      %v5617 = vpop.permute.xlu0 %5616
      %5618 = vrot.lane.b32.xlu0 %v5571, 126
      %v5619 = vpop.permute.xlu0 %5618
      %5620 = vrot.lane.b32.xlu0 %v5572, 126
      %v5621 = vpop.permute.xlu0 %5620
      %5622 = vrot.lane.b32.xlu0 %v5573, 126
      %v5623 = vpop.permute.xlu0 %5622
      %5624 = vrot.lane.b32.xlu0 %v5574, 126
      %v5625 = vpop.permute.xlu0 %5624
      %5626 = vrot.lane.b32.xlu0 %v5575, 126
      %v5627 = vpop.permute.xlu0 %5626
      %5628 = vrot.lane.b32.xlu0 %v5576, 126
      %v5629 = vpop.permute.xlu0 %5628
      %5630 = vrot.lane.b32.xlu0 %v5577, 126
      %v5631 = vpop.permute.xlu0 %5630
      %5632 = vrot.lane.b32.xlu0 %v5579, 126
      %v5633 = vpop.permute.xlu0 %5632
      %vm5634 = vcmask 1031168
      %v5635 = vsel %vm5634, %v5599, %v5601
      %v5636 = vsel %vm5634, %v5601, %v5603
      %v5637 = vsel %vm5634, %v5603, %v5605
      %v5638 = vsel %vm5634, %v5605, %v5607
      %v5639 = vsel %vm5634, %v5607, %v5609
      %v5640 = vsel %vm5634, %v5609, %v5611
      %v5641 = vsel %vm5634, %v5611, %v5613
      %v5642 = vsel %vm5634, %v5613, %v5615
      %v5643 = vsel %vm5634, %v5617, %v5619
      %v5644 = vsel %vm5634, %v5619, %v5621
      %v5645 = vsel %vm5634, %v5621, %v5623
      %v5646 = vsel %vm5634, %v5623, %v5625
      %v5647 = vsel %vm5634, %v5625, %v5627
      %v5648 = vsel %vm5634, %v5627, %v5629
      %v5649 = vsel %vm5634, %v5629, %v5631
      %v5650 = vsel %vm5634, %v5631, %v5633
      %v5667 = vmax.f32 %v5562, %v5635
      %v5668 = vmax.f32 %v5563, %v5636
      %v5669 = vmax.f32 %v5564, %v5637
      %v5670 = vmax.f32 %v5565, %v5638
      %v5671 = vmax.f32 %v5566, %v5639
      %v5672 = vmax.f32 %v5567, %v5640
      %v5673 = vmax.f32 %v5568, %v5641
      %v5674 = vmax.f32 %v5569, %v5642
      %v5675 = vmax.f32 %v5570, %v5643
      %v5676 = vmax.f32 %v5571, %v5644
      %v5677 = vmax.f32 %v5572, %v5645
      %v5678 = vmax.f32 %v5573, %v5646
      %v5679 = vmax.f32 %v5574, %v5647
      %v5680 = vmax.f32 %v5575, %v5648
      %v5681 = vmax.f32 %v5576, %v5649
      %v5682 = vmax.f32 %v5577, %v5650
      %v5685 = vmax.f32 %v5578, %v5615
      %v5686 = vmax.f32 %v5579, %v5633
      %5705 = vrot.lane.b32.xlu0 %v5667, 64
      %v5706 = vpop.permute.xlu0 %5705
      %5707 = vrot.lane.b32.xlu0 %v5668, 64
      %v5708 = vpop.permute.xlu0 %5707
      %5709 = vrot.lane.b32.xlu0 %v5669, 64
      %v5710 = vpop.permute.xlu0 %5709
      %5711 = vrot.lane.b32.xlu0 %v5670, 64
      %v5712 = vpop.permute.xlu0 %5711
      %5713 = vrot.lane.b32.xlu0 %v5671, 64
      %v5714 = vpop.permute.xlu0 %5713
      %5715 = vrot.lane.b32.xlu0 %v5672, 64
      %v5716 = vpop.permute.xlu0 %5715
      %5717 = vrot.lane.b32.xlu0 %v5673, 64
      %v5718 = vpop.permute.xlu0 %5717
      %5719 = vrot.lane.b32.xlu0 %v5674, 64
      %v5720 = vpop.permute.xlu0 %5719
      %5721 = vrot.lane.b32.xlu0 %v5685, 64
      %v5722 = vpop.permute.xlu0 %5721
      %5723 = vrot.lane.b32.xlu0 %v5675, 64
      %v5724 = vpop.permute.xlu0 %5723
      %5725 = vrot.lane.b32.xlu0 %v5676, 64
      %v5726 = vpop.permute.xlu0 %5725
      %5727 = vrot.lane.b32.xlu0 %v5677, 64
      %v5728 = vpop.permute.xlu0 %5727
      %5729 = vrot.lane.b32.xlu0 %v5678, 64
      %v5730 = vpop.permute.xlu0 %5729
      %5731 = vrot.lane.b32.xlu0 %v5679, 64
      %v5732 = vpop.permute.xlu0 %5731
      %5733 = vrot.lane.b32.xlu0 %v5680, 64
      %v5734 = vpop.permute.xlu0 %5733
      %5735 = vrot.lane.b32.xlu0 %v5681, 64
      %v5736 = vpop.permute.xlu0 %5735
      %5737 = vrot.lane.b32.xlu0 %v5682, 64
      %v5738 = vpop.permute.xlu0 %5737
      %5739 = vrot.lane.b32.xlu0 %v5686, 64
      %v5740 = vpop.permute.xlu0 %5739
      %vm5741 = vcmask 523264
      %v5742 = vsel %vm5741, %v5706, %v5708
      %v5743 = vsel %vm5741, %v5708, %v5710
      %v5744 = vsel %vm5741, %v5710, %v5712
      %v5745 = vsel %vm5741, %v5712, %v5714
      %v5746 = vsel %vm5741, %v5714, %v5716
      %v5747 = vsel %vm5741, %v5716, %v5718
      %v5748 = vsel %vm5741, %v5718, %v5720
      %v5749 = vsel %vm5741, %v5720, %v5722
      %v5750 = vsel %vm5741, %v5724, %v5726
      %v5751 = vsel %vm5741, %v5726, %v5728
      %v5752 = vsel %vm5741, %v5728, %v5730
      %v5753 = vsel %vm5741, %v5730, %v5732
      %v5754 = vsel %vm5741, %v5732, %v5734
      %v5755 = vsel %vm5741, %v5734, %v5736
      %v5756 = vsel %vm5741, %v5736, %v5738
      %v5757 = vsel %vm5741, %v5738, %v5740
      %v5774 = vmax.f32 %v5667, %v5742
      %v5775 = vmax.f32 %v5668, %v5743
      %v5776 = vmax.f32 %v5669, %v5744
      %v5777 = vmax.f32 %v5670, %v5745
      %v5778 = vmax.f32 %v5671, %v5746
      %v5779 = vmax.f32 %v5672, %v5747
      %v5780 = vmax.f32 %v5673, %v5748
      %v5781 = vmax.f32 %v5674, %v5749
      %v5782 = vmax.f32 %v5675, %v5750
      %v5783 = vmax.f32 %v5676, %v5751
      %v5784 = vmax.f32 %v5677, %v5752
      %v5785 = vmax.f32 %v5678, %v5753
      %v5786 = vmax.f32 %v5679, %v5754
      %v5787 = vmax.f32 %v5680, %v5755
      %v5788 = vmax.f32 %v5681, %v5756
      %v5789 = vmax.f32 %v5682, %v5757
      %v5790 = vpack.c.bf16 %v5782, %v5774
      %v5791 = vpack.c.bf16 %v5783, %v5775
      %v5792 = vpack.c.bf16 %v5784, %v5776
      %v5793 = vpack.c.bf16 %v5785, %v5777
      %v5794 = vpack.c.bf16 %v5786, %v5778
      %v5795 = vpack.c.bf16 %v5787, %v5779
      %v5796 = vpack.c.bf16 %v5788, %v5780
      %v5797 = vpack.c.bf16 %v5789, %v5781
      %v5806 = vunpack.c.l.b16 %v5790
      %v5807 = vunpack.c.l.b16 %v5791
      %v5808 = vunpack.c.l.b16 %v5792
      %v5809 = vunpack.c.l.b16 %v5793
      %v5810 = vunpack.c.l.b16 %v5794
      %v5811 = vunpack.c.l.b16 %v5795
      %v5812 = vunpack.c.l.b16 %v5796
      %v5813 = vunpack.c.l.b16 %v5797
      %v5814 = vunpack.c.h.b16 %v5790
      %v5815 = vunpack.c.h.b16 %v5791
      %v5816 = vunpack.c.h.b16 %v5792
      %v5817 = vunpack.c.h.b16 %v5793
      %v5818 = vunpack.c.h.b16 %v5794
      %v5819 = vunpack.c.h.b16 %v5795
      %v5820 = vunpack.c.h.b16 %v5796
      %v5821 = vunpack.c.h.b16 %v5797
      %v5822 = vpack.c.b16 %v5807, %v5806
      %v5823 = vpack.c.b16 %v5809, %v5808
      %v5824 = vpack.c.b16 %v5811, %v5810
      %v5825 = vpack.c.b16 %v5813, %v5812
      %v5826 = vpack.c.b16 %v5815, %v5814
      %v5827 = vpack.c.b16 %v5817, %v5816
      %v5828 = vpack.c.b16 %v5819, %v5818
      %v5829 = vpack.c.b16 %v5821, %v5820
      %5838 = vst [vmem:[#allocation7] sm:$0xff] %v5822
      %5839 = vst [vmem:[#allocation7 + $0x8] sm:$0xff] %v5823
      %5840 = vst [vmem:[#allocation7 + $0x10] sm:$0xff] %v5824
      %5841 = vst [vmem:[#allocation7 + $0x18] sm:$0xff] %v5825
      %5842 = vst [vmem:[#allocation7 + $0x20] sm:$0xff] %v5826
      %5843 = vst [vmem:[#allocation7 + $0x28] sm:$0xff] %v5827
      %5844 = vst [vmem:[#allocation7 + $0x30] sm:$0xff] %v5828
      %5845 = vst [vmem:[#allocation7 + $0x38] sm:$0xff] %v5829
      %v5846 = vld [vmem:[#allocation7] sm:$0xf]
      %v5847 = vld [vmem:[#allocation7 + $0x20] sm:$0xf]
      %vm5848 = vcmask 3072
      %5849 = vst.msk [vmem:[#allocation8] sm:$0xf] %vm5848, %v5846
      %5850 = vst.msk [vmem:[#allocation8 + $0x4] sm:$0xf] %vm5848, %v5847
      %v5851 = vld [vmem:[#allocation7] sm:$0xf]
      %v5852 = vld [vmem:[#allocation7 + $0x20] sm:$0xf]
      %5855 = vrot.lane.b32.xlu0 %v5851, 124
      %v5856 = vpop.permute.xlu0 %5855
      %5857 = vrot.lane.b32.xlu0 %v5852, 124
      %v5858 = vpop.permute.xlu0 %5857
      %5861 = vst.msk [vmem:[#allocation8 + $0x8] sm:$0xf] %vm5848, %v5856
      %5862 = vst.msk [vmem:[#allocation8 + $0xc] sm:$0xf] %vm5848, %v5858
      %v5863 = vld [vmem:[#allocation7] sm:$0xf]
      %v5864 = vld [vmem:[#allocation7 + $0x20] sm:$0xf]
      %5867 = vrot.lane.b32.xlu0 %v5863, 120
      %v5868 = vpop.permute.xlu0 %5867
      %5869 = vrot.lane.b32.xlu0 %v5864, 120
      %v5870 = vpop.permute.xlu0 %5869
      %5873 = vst.msk [vmem:[#allocation8 + $0x10] sm:$0xf] %vm5848, %v5868
      %5874 = vst.msk [vmem:[#allocation8 + $0x14] sm:$0xf] %vm5848, %v5870
      %v5875 = vld [vmem:[#allocation7] sm:$0xf]
      %v5876 = vld [vmem:[#allocation7 + $0x20] sm:$0xf]
      %5879 = vrot.lane.b32.xlu0 %v5875, 116
      %v5880 = vpop.permute.xlu0 %5879
      %5881 = vrot.lane.b32.xlu0 %v5876, 116
      %v5882 = vpop.permute.xlu0 %5881
      %5885 = vst.msk [vmem:[#allocation8 + $0x18] sm:$0xf] %vm5848, %v5880
      %5886 = vst.msk [vmem:[#allocation8 + $0x1c] sm:$0xf] %vm5848, %v5882
      %v5887 = vld [vmem:[#allocation7] sm:$0xf]
      %v5888 = vld [vmem:[#allocation7 + $0x20] sm:$0xf]
      %5891 = vrot.lane.b32.xlu0 %v5887, 112
      %v5892 = vpop.permute.xlu0 %5891
      %5893 = vrot.lane.b32.xlu0 %v5888, 112
      %v5894 = vpop.permute.xlu0 %5893
      %5897 = vst.msk [vmem:[#allocation8 + $0x20] sm:$0xf] %vm5848, %v5892
      %5898 = vst.msk [vmem:[#allocation8 + $0x24] sm:$0xf] %vm5848, %v5894
      %v5899 = vld [vmem:[#allocation7 + $0x4] sm:$0xf]
      %v5900 = vld [vmem:[#allocation7 + $0x24] sm:$0xf]
      %5901 = vst.msk [vmem:[#allocation8 + $0x28] sm:$0xf] %vm5848, %v5899
      %5902 = vst.msk [vmem:[#allocation8 + $0x2c] sm:$0xf] %vm5848, %v5900
      %v5903 = vld [vmem:[#allocation7 + $0x4] sm:$0xf]
      %v5904 = vld [vmem:[#allocation7 + $0x24] sm:$0xf]
      %5907 = vrot.lane.b32.xlu0 %v5903, 124
      %v5908 = vpop.permute.xlu0 %5907
      %5909 = vrot.lane.b32.xlu0 %v5904, 124
      %v5910 = vpop.permute.xlu0 %5909
      %5913 = vst.msk [vmem:[#allocation8 + $0x30] sm:$0xf] %vm5848, %v5908
      %5914 = vst.msk [vmem:[#allocation8 + $0x34] sm:$0xf] %vm5848, %v5910
      %v5915 = vld [vmem:[#allocation7 + $0x4] sm:$0xf]
      %v5916 = vld [vmem:[#allocation7 + $0x24] sm:$0xf]
      %5919 = vrot.lane.b32.xlu0 %v5915, 120
      %v5920 = vpop.permute.xlu0 %5919
      %5921 = vrot.lane.b32.xlu0 %v5916, 120
      %v5922 = vpop.permute.xlu0 %5921
      %5925 = vst.msk [vmem:[#allocation8 + $0x38] sm:$0xf] %vm5848, %v5920
      %5926 = vst.msk [vmem:[#allocation8 + $0x3c] sm:$0xf] %vm5848, %v5922
      %v5927 = vld [vmem:[#allocation7 + $0x4] sm:$0xf]
      %v5928 = vld [vmem:[#allocation7 + $0x24] sm:$0xf]
      %5931 = vrot.lane.b32.xlu0 %v5927, 116
      %v5932 = vpop.permute.xlu0 %5931
      %5933 = vrot.lane.b32.xlu0 %v5928, 116
      %v5934 = vpop.permute.xlu0 %5933
      %5937 = vst.msk [vmem:[#allocation8 + $0x40] sm:$0xf] %vm5848, %v5932
      %5938 = vst.msk [vmem:[#allocation8 + $0x44] sm:$0xf] %vm5848, %v5934
      %v5939 = vld [vmem:[#allocation7 + $0x4] sm:$0xf]
      %v5940 = vld [vmem:[#allocation7 + $0x24] sm:$0xf]
      %5943 = vrot.lane.b32.xlu0 %v5939, 112
      %v5944 = vpop.permute.xlu0 %5943
      %5945 = vrot.lane.b32.xlu0 %v5940, 112
      %v5946 = vpop.permute.xlu0 %5945
      %5949 = vst.msk [vmem:[#allocation8 + $0x48] sm:$0xf] %vm5848, %v5944
      %5950 = vst.msk [vmem:[#allocation8 + $0x4c] sm:$0xf] %vm5848, %v5946
      %v5951 = vld [vmem:[#allocation7 + $0x8] sm:$0xf]
      %v5952 = vld [vmem:[#allocation7 + $0x28] sm:$0xf]
      %5953 = vst.msk [vmem:[#allocation8 + $0x50] sm:$0xf] %vm5848, %v5951
      %5954 = vst.msk [vmem:[#allocation8 + $0x54] sm:$0xf] %vm5848, %v5952
      %v5955 = vld [vmem:[#allocation7 + $0x8] sm:$0xf]
      %v5956 = vld [vmem:[#allocation7 + $0x28] sm:$0xf]
      %5959 = vrot.lane.b32.xlu0 %v5955, 124
      %v5960 = vpop.permute.xlu0 %5959
      %5961 = vrot.lane.b32.xlu0 %v5956, 124
      %v5962 = vpop.permute.xlu0 %5961
      %5965 = vst.msk [vmem:[#allocation8 + $0x58] sm:$0xf] %vm5848, %v5960
      %5966 = vst.msk [vmem:[#allocation8 + $0x5c] sm:$0xf] %vm5848, %v5962
      %v5967 = vld [vmem:[#allocation7 + $0x8] sm:$0xf]
      %v5968 = vld [vmem:[#allocation7 + $0x28] sm:$0xf]
      %5971 = vrot.lane.b32.xlu0 %v5967, 120
      %v5972 = vpop.permute.xlu0 %5971
      %5973 = vrot.lane.b32.xlu0 %v5968, 120
      %v5974 = vpop.permute.xlu0 %5973
      %5977 = vst.msk [vmem:[#allocation8 + $0x60] sm:$0xf] %vm5848, %v5972
      %5978 = vst.msk [vmem:[#allocation8 + $0x64] sm:$0xf] %vm5848, %v5974
      %v5979 = vld [vmem:[#allocation7 + $0x8] sm:$0xf]
      %v5980 = vld [vmem:[#allocation7 + $0x28] sm:$0xf]
      %5983 = vrot.lane.b32.xlu0 %v5979, 116
      %v5984 = vpop.permute.xlu0 %5983
      %5985 = vrot.lane.b32.xlu0 %v5980, 116
      %v5986 = vpop.permute.xlu0 %5985
      %5989 = vst.msk [vmem:[#allocation8 + $0x68] sm:$0xf] %vm5848, %v5984
      %5990 = vst.msk [vmem:[#allocation8 + $0x6c] sm:$0xf] %vm5848, %v5986
      %v5991 = vld [vmem:[#allocation7 + $0x8] sm:$0xf]
      %v5992 = vld [vmem:[#allocation7 + $0x28] sm:$0xf]
      %5995 = vrot.lane.b32.xlu0 %v5991, 112
      %v5996 = vpop.permute.xlu0 %5995
      %5997 = vrot.lane.b32.xlu0 %v5992, 112
      %v5998 = vpop.permute.xlu0 %5997
      %6001 = vst.msk [vmem:[#allocation8 + $0x70] sm:$0xf] %vm5848, %v5996
      %6002 = vst.msk [vmem:[#allocation8 + $0x74] sm:$0xf] %vm5848, %v5998
      %v6003 = vld [vmem:[#allocation7 + $0xc] sm:$0xf]
      %v6004 = vld [vmem:[#allocation7 + $0x2c] sm:$0xf]
      %6005 = vst.msk [vmem:[#allocation8 + $0x78] sm:$0xf] %vm5848, %v6003
      %6006 = vst.msk [vmem:[#allocation8 + $0x7c] sm:$0xf] %vm5848, %v6004
      %v6007 = vld [vmem:[#allocation7 + $0xc] sm:$0xf]
      %v6008 = vld [vmem:[#allocation7 + $0x2c] sm:$0xf]
      %6011 = vrot.lane.b32.xlu0 %v6007, 124
      %v6012 = vpop.permute.xlu0 %6011
      %6013 = vrot.lane.b32.xlu0 %v6008, 124
      %v6014 = vpop.permute.xlu0 %6013
      %6017 = vst.msk [vmem:[#allocation8 + $0x80] sm:$0xf] %vm5848, %v6012
      %6018 = vst.msk [vmem:[#allocation8 + $0x84] sm:$0xf] %vm5848, %v6014
      %v6019 = vld [vmem:[#allocation7 + $0xc] sm:$0xf]
      %v6020 = vld [vmem:[#allocation7 + $0x2c] sm:$0xf]
      %6023 = vrot.lane.b32.xlu0 %v6019, 120
      %v6024 = vpop.permute.xlu0 %6023
      %6025 = vrot.lane.b32.xlu0 %v6020, 120
      %v6026 = vpop.permute.xlu0 %6025
      %6029 = vst.msk [vmem:[#allocation8 + $0x88] sm:$0xf] %vm5848, %v6024
      %6030 = vst.msk [vmem:[#allocation8 + $0x8c] sm:$0xf] %vm5848, %v6026
      %v6031 = vld [vmem:[#allocation7 + $0xc] sm:$0xf]
      %v6032 = vld [vmem:[#allocation7 + $0x2c] sm:$0xf]
      %6035 = vrot.lane.b32.xlu0 %v6031, 116
      %v6036 = vpop.permute.xlu0 %6035
      %6037 = vrot.lane.b32.xlu0 %v6032, 116
      %v6038 = vpop.permute.xlu0 %6037
      %6041 = vst.msk [vmem:[#allocation8 + $0x90] sm:$0xf] %vm5848, %v6036
      %6042 = vst.msk [vmem:[#allocation8 + $0x94] sm:$0xf] %vm5848, %v6038
      %v6043 = vld [vmem:[#allocation7 + $0xc] sm:$0xf]
      %v6044 = vld [vmem:[#allocation7 + $0x2c] sm:$0xf]
      %6047 = vrot.lane.b32.xlu0 %v6043, 112
      %v6048 = vpop.permute.xlu0 %6047
      %6049 = vrot.lane.b32.xlu0 %v6044, 112
      %v6050 = vpop.permute.xlu0 %6049
      %6053 = vst.msk [vmem:[#allocation8 + $0x98] sm:$0xf] %vm5848, %v6048
      %6054 = vst.msk [vmem:[#allocation8 + $0x9c] sm:$0xf] %vm5848, %v6050
      %v6055 = vld [vmem:[#allocation7 + $0x10] sm:$0xf]
      %v6056 = vld [vmem:[#allocation7 + $0x30] sm:$0xf]
      %6057 = vst.msk [vmem:[#allocation8 + $0xa0] sm:$0xf] %vm5848, %v6055
      %6058 = vst.msk [vmem:[#allocation8 + $0xa4] sm:$0xf] %vm5848, %v6056
      %v6059 = vld [vmem:[#allocation7 + $0x10] sm:$0xf]
      %v6060 = vld [vmem:[#allocation7 + $0x30] sm:$0xf]
      %6063 = vrot.lane.b32.xlu0 %v6059, 124
      %v6064 = vpop.permute.xlu0 %6063
      %6065 = vrot.lane.b32.xlu0 %v6060, 124
      %v6066 = vpop.permute.xlu0 %6065
      %6069 = vst.msk [vmem:[#allocation8 + $0xa8] sm:$0xf] %vm5848, %v6064
      %6070 = vst.msk [vmem:[#allocation8 + $0xac] sm:$0xf] %vm5848, %v6066
      %v6071 = vld [vmem:[#allocation7 + $0x10] sm:$0xf]
      %v6072 = vld [vmem:[#allocation7 + $0x30] sm:$0xf]
      %6075 = vrot.lane.b32.xlu0 %v6071, 120
      %v6076 = vpop.permute.xlu0 %6075
      %6077 = vrot.lane.b32.xlu0 %v6072, 120
      %v6078 = vpop.permute.xlu0 %6077
      %6081 = vst.msk [vmem:[#allocation8 + $0xb0] sm:$0xf] %vm5848, %v6076
      %6082 = vst.msk [vmem:[#allocation8 + $0xb4] sm:$0xf] %vm5848, %v6078
      %v6083 = vld [vmem:[#allocation7 + $0x10] sm:$0xf]
      %v6084 = vld [vmem:[#allocation7 + $0x30] sm:$0xf]
      %6087 = vrot.lane.b32.xlu0 %v6083, 116
      %v6088 = vpop.permute.xlu0 %6087
      %6089 = vrot.lane.b32.xlu0 %v6084, 116
      %v6090 = vpop.permute.xlu0 %6089
      %6093 = vst.msk [vmem:[#allocation8 + $0xb8] sm:$0xf] %vm5848, %v6088
      %6094 = vst.msk [vmem:[#allocation8 + $0xbc] sm:$0xf] %vm5848, %v6090
      %v6095 = vld [vmem:[#allocation7 + $0x10] sm:$0xf]
      %v6096 = vld [vmem:[#allocation7 + $0x30] sm:$0xf]
      %6099 = vrot.lane.b32.xlu0 %v6095, 112
      %v6100 = vpop.permute.xlu0 %6099
      %6101 = vrot.lane.b32.xlu0 %v6096, 112
      %v6102 = vpop.permute.xlu0 %6101
      %6105 = vst.msk [vmem:[#allocation8 + $0xc0] sm:$0xf] %vm5848, %v6100
      %6106 = vst.msk [vmem:[#allocation8 + $0xc4] sm:$0xf] %vm5848, %v6102
      %v6107 = vld [vmem:[%s5] sm:$0xff]
      %v6108 = vld [vmem:[%s5 + $0x8] sm:$0xff]
      %v6109 = vld [vmem:[%s5 + $0x10] sm:$0xff]
      %v6110 = vld [vmem:[%s5 + $0x18] sm:$0xff]
      %v6111 = vld [vmem:[%s5 + $0x20] sm:$0xff]
      %v6112 = vld [vmem:[%s5 + $0x28] sm:$0xff]
      %v6113 = vld [vmem:[%s5 + $0x30] sm:$0xff]
      %v6114 = vld [vmem:[%s5 + $0x38] sm:$0xff]
      %v6115 = vld [vmem:[%s5 + $0x40] sm:$0xff]
      %v6116 = vld [vmem:[%s5 + $0x48] sm:$0xff]
      %v6117 = vld [vmem:[%s5 + $0x50] sm:$0xff]
      %v6118 = vld [vmem:[%s5 + $0x58] sm:$0xff]
      %v6119 = vld [vmem:[%s5 + $0x60] sm:$0xff]
      %v6120 = vld [vmem:[%s5 + $0x68] sm:$0xff]
      %v6121 = vld [vmem:[%s5 + $0x70] sm:$0xff]
      %v6122 = vld [vmem:[%s5 + $0x78] sm:$0xff]
      %v6123 = vld [vmem:[%s5 + $0x80] sm:$0xff]
      %v6124 = vld [vmem:[%s5 + $0x88] sm:$0xff]
      %v6125 = vld [vmem:[%s5 + $0x90] sm:$0xff]
      %v6126 = vld [vmem:[%s5 + $0x98] sm:$0xff]
      %v6127 = vld [vmem:[%s5 + $0xa0] sm:$0xff]
      %v6128 = vld [vmem:[%s5 + $0xa8] sm:$0xff]
      %v6129 = vld [vmem:[%s5 + $0xb0] sm:$0xff]
      %v6130 = vld [vmem:[%s5 + $0xb8] sm:$0xff]
      %v6131 = vld [vmem:[%s5 + $0xc0] sm:$0xff]
      %v6132 = vld [vmem:[%s5 + $0xc8] sm:$0xff]
      %v6133 = vld [vmem:[%s5 + $0xd0] sm:$0xff]
      %v6134 = vld [vmem:[%s5 + $0xd8] sm:$0xff]
      %v6135 = vld [vmem:[%s5 + $0xe0] sm:$0xff]
      %v6136 = vld [vmem:[%s5 + $0xe8] sm:$0xff]
      %v6137 = vld [vmem:[#allocation8] sm:$0xf]
      %v6138 = vld [vmem:[#allocation8 + $0x4] sm:$0xf]
      %v6139 = vld [vmem:[#allocation8 + $0x8] sm:$0xf]
      %v6140 = vld [vmem:[#allocation8 + $0xc] sm:$0xf]
      %v6141 = vld [vmem:[#allocation8 + $0x10] sm:$0xf]
      %v6142 = vld [vmem:[#allocation8 + $0x14] sm:$0xf]
      %v6143 = vld [vmem:[#allocation8 + $0x18] sm:$0xf]
      %v6144 = vld [vmem:[#allocation8 + $0x1c] sm:$0xf]
      %v6145 = vld [vmem:[#allocation8 + $0x20] sm:$0xf]
      %v6146 = vld [vmem:[#allocation8 + $0x24] sm:$0xf]
      %v6147 = vld [vmem:[#allocation8 + $0x28] sm:$0xf]
      %v6148 = vld [vmem:[#allocation8 + $0x2c] sm:$0xf]
      %v6149 = vld [vmem:[#allocation8 + $0x30] sm:$0xf]
      %v6150 = vld [vmem:[#allocation8 + $0x34] sm:$0xf]
      %v6151 = vld [vmem:[#allocation8 + $0x38] sm:$0xf]
      %v6152 = vld [vmem:[#allocation8 + $0x3c] sm:$0xf]
      %v6153 = vld [vmem:[#allocation8 + $0x40] sm:$0xf]
      %v6154 = vld [vmem:[#allocation8 + $0x44] sm:$0xf]
      %v6155 = vld [vmem:[#allocation8 + $0x48] sm:$0xf]
      %v6156 = vld [vmem:[#allocation8 + $0x4c] sm:$0xf]
      %v6157 = vld [vmem:[#allocation8 + $0x50] sm:$0xf]
      %v6158 = vld [vmem:[#allocation8 + $0x54] sm:$0xf]
      %v6159 = vld [vmem:[#allocation8 + $0x58] sm:$0xf]
      %v6160 = vld [vmem:[#allocation8 + $0x5c] sm:$0xf]
      %v6161 = vld [vmem:[#allocation8 + $0x60] sm:$0xf]
      %v6162 = vld [vmem:[#allocation8 + $0x64] sm:$0xf]
      %v6163 = vld [vmem:[#allocation8 + $0x68] sm:$0xf]
      %v6164 = vld [vmem:[#allocation8 + $0x6c] sm:$0xf]
      %v6165 = vld [vmem:[#allocation8 + $0x70] sm:$0xf]
      %v6166 = vld [vmem:[#allocation8 + $0x74] sm:$0xf]
      %v6167 = vld [vmem:[#allocation8 + $0x78] sm:$0xf]
      %v6168 = vld [vmem:[#allocation8 + $0x7c] sm:$0xf]
      %v6169 = vld [vmem:[#allocation8 + $0x80] sm:$0xf]
      %v6170 = vld [vmem:[#allocation8 + $0x84] sm:$0xf]
      %v6171 = vld [vmem:[#allocation8 + $0x88] sm:$0xf]
      %v6172 = vld [vmem:[#allocation8 + $0x8c] sm:$0xf]
      %v6173 = vld [vmem:[#allocation8 + $0x90] sm:$0xf]
      %v6174 = vld [vmem:[#allocation8 + $0x94] sm:$0xf]
      %v6175 = vld [vmem:[#allocation8 + $0x98] sm:$0xf]
      %v6176 = vld [vmem:[#allocation8 + $0x9c] sm:$0xf]
      %v6177 = vld [vmem:[#allocation8 + $0xa0] sm:$0xf]
      %v6178 = vld [vmem:[#allocation8 + $0xa4] sm:$0xf]
      %v6179 = vld [vmem:[#allocation8 + $0xa8] sm:$0xf]
      %v6180 = vld [vmem:[#allocation8 + $0xac] sm:$0xf]
      %v6181 = vld [vmem:[#allocation8 + $0xb0] sm:$0xf]
      %v6182 = vld [vmem:[#allocation8 + $0xb4] sm:$0xf]
      %v6183 = vld [vmem:[#allocation8 + $0xb8] sm:$0xf]
      %v6184 = vld [vmem:[#allocation8 + $0xbc] sm:$0xf]
      %v6185 = vld [vmem:[#allocation8 + $0xc0] sm:$0xf]
      %v6186 = vld [vmem:[#allocation8 + $0xc4] sm:$0xf]
      %v6187 = vld [vmem:[%s6] sm:$0xff]
      %v6188 = vld [vmem:[%s6 + $0x8] sm:$0xff]
      %v6189 = vld [vmem:[%s6 + $0x10] sm:$0xff]
      %v6190 = vld [vmem:[%s6 + $0x18] sm:$0xff]
      %v6191 = vld [vmem:[%s6 + $0x20] sm:$0xff]
      %v6192 = vld [vmem:[%s6 + $0x28] sm:$0xff]
      %v6193 = vld [vmem:[%s6 + $0x30] sm:$0xff]
      %v6194 = vld [vmem:[%s6 + $0x38] sm:$0xff]
      %v6195 = vld [vmem:[%s6 + $0x40] sm:$0xff]
      %v6196 = vld [vmem:[%s6 + $0x48] sm:$0xff]
      %v6197 = vld [vmem:[%s6 + $0x50] sm:$0xff]
      %v6198 = vld [vmem:[%s6 + $0x58] sm:$0xff]
      %v6199 = vld [vmem:[%s6 + $0x60] sm:$0xff]
      %v6200 = vld [vmem:[%s6 + $0x68] sm:$0xff]
      %v6201 = vld [vmem:[%s6 + $0x70] sm:$0xff]
      %v6232 = vunpack.c.l.b16 %v6107
      %v6233 = vunpack.c.h.b16 %v6107
      %v6234 = vunpack.c.l.b16 %v6108
      %v6235 = vunpack.c.h.b16 %v6108
      %v6236 = vunpack.c.l.b16 %v6109
      %v6237 = vunpack.c.h.b16 %v6109
      %v6238 = vunpack.c.l.b16 %v6110
      %v6239 = vunpack.c.h.b16 %v6110
      %v6240 = vunpack.c.l.b16 %v6111
      %v6241 = vunpack.c.h.b16 %v6111
      %v6242 = vunpack.c.l.b16 %v6112
      %v6243 = vunpack.c.h.b16 %v6112
      %v6244 = vunpack.c.l.b16 %v6113
      %v6245 = vunpack.c.h.b16 %v6113
      %v6246 = vunpack.c.l.b16 %v6114
      %v6247 = vunpack.c.h.b16 %v6114
      %v6248 = vunpack.c.l.b16 %v6115
      %v6249 = vunpack.c.h.b16 %v6115
      %v6250 = vunpack.c.l.b16 %v6116
      %v6251 = vunpack.c.h.b16 %v6116
      %v6252 = vunpack.c.l.b16 %v6117
      %v6253 = vunpack.c.h.b16 %v6117
      %v6254 = vunpack.c.l.b16 %v6118
      %v6255 = vunpack.c.h.b16 %v6118
      %v6256 = vunpack.c.l.b16 %v6119
      %v6257 = vunpack.c.h.b16 %v6119
      %v6258 = vunpack.c.l.b16 %v6120
      %v6259 = vunpack.c.h.b16 %v6120
      %v6260 = vunpack.c.l.b16 %v6121
      %v6261 = vunpack.c.h.b16 %v6121
      %v6262 = vunpack.c.l.b16 %v6122
      %v6263 = vunpack.c.h.b16 %v6122
      %v6264 = vunpack.c.l.b16 %v6123
      %v6265 = vunpack.c.h.b16 %v6123
      %v6266 = vunpack.c.l.b16 %v6124
      %v6267 = vunpack.c.h.b16 %v6124
      %v6268 = vunpack.c.l.b16 %v6125
      %v6269 = vunpack.c.h.b16 %v6125
      %v6270 = vunpack.c.l.b16 %v6126
      %v6271 = vunpack.c.h.b16 %v6126
      %v6272 = vunpack.c.l.b16 %v6127
      %v6273 = vunpack.c.h.b16 %v6127
      %v6274 = vunpack.c.l.b16 %v6128
      %v6275 = vunpack.c.h.b16 %v6128
      %v6276 = vunpack.c.l.b16 %v6129
      %v6277 = vunpack.c.h.b16 %v6129
      %v6278 = vunpack.c.l.b16 %v6130
      %v6279 = vunpack.c.h.b16 %v6130
      %v6280 = vunpack.c.l.b16 %v6131
      %v6281 = vunpack.c.h.b16 %v6131
      %v6282 = vunpack.c.l.b16 %v6132
      %v6283 = vunpack.c.h.b16 %v6132
      %v6284 = vunpack.c.l.b16 %v6133
      %v6285 = vunpack.c.h.b16 %v6133
      %v6286 = vunpack.c.l.b16 %v6134
      %v6287 = vunpack.c.h.b16 %v6134
      %v6288 = vunpack.c.l.b16 %v6135
      %v6289 = vunpack.c.h.b16 %v6135
      %v6290 = vunpack.c.l.b16 %v6136
      %v6291 = vunpack.c.h.b16 %v6136
      %v6292 = vpack.c.b16 %v6236, %v6232
      %v6293 = vpack.c.b16 %v6237, %v6233
      %v6294 = vpack.c.b16 %v6238, %v6234
      %v6295 = vpack.c.b16 %v6239, %v6235
      %v6296 = vpack.c.b16 %v6244, %v6240
      %v6297 = vpack.c.b16 %v6245, %v6241
      %v6298 = vpack.c.b16 %v6246, %v6242
      %v6299 = vpack.c.b16 %v6247, %v6243
      %v6300 = vpack.c.b16 %v6252, %v6248
      %v6301 = vpack.c.b16 %v6253, %v6249
      %v6302 = vpack.c.b16 %v6254, %v6250
      %v6303 = vpack.c.b16 %v6255, %v6251
      %v6304 = vpack.c.b16 %v6260, %v6256
      %v6305 = vpack.c.b16 %v6261, %v6257
      %v6306 = vpack.c.b16 %v6262, %v6258
      %v6307 = vpack.c.b16 %v6263, %v6259
      %v6308 = vpack.c.b16 %v6268, %v6264
      %v6309 = vpack.c.b16 %v6269, %v6265
      %v6310 = vpack.c.b16 %v6270, %v6266
      %v6311 = vpack.c.b16 %v6271, %v6267
      %v6312 = vpack.c.b16 %v6276, %v6272
      %v6313 = vpack.c.b16 %v6277, %v6273
      %v6314 = vpack.c.b16 %v6278, %v6274
      %v6315 = vpack.c.b16 %v6279, %v6275
      %v6316 = vpack.c.b16 %v6284, %v6280
      %v6317 = vpack.c.b16 %v6285, %v6281
      %v6318 = vpack.c.b16 %v6286, %v6282
      %v6319 = vpack.c.b16 %v6287, %v6283
      %v6320 = vpack.c.b16 %v6288, %v6288
      %v6321 = vpack.c.b16 %v6289, %v6289
      %v6322 = vpack.c.b16 %v6290, %v6290
      %v6323 = vpack.c.b16 %v6291, %v6291
      %v6398 = vunpack.c.l.b16 %v6137
      %v6399 = vunpack.c.l.b16 %v6138
      %v6400 = vunpack.c.l.b16 %v6139
      %v6401 = vunpack.c.l.b16 %v6140
      %v6402 = vunpack.c.l.b16 %v6141
      %v6403 = vunpack.c.l.b16 %v6142
      %v6404 = vunpack.c.l.b16 %v6143
      %v6405 = vunpack.c.l.b16 %v6144
      %v6406 = vunpack.c.l.b16 %v6145
      %v6407 = vunpack.c.l.b16 %v6146
      %v6408 = vunpack.c.l.b16 %v6147
      %v6409 = vunpack.c.l.b16 %v6148
      %v6410 = vunpack.c.l.b16 %v6149
      %v6411 = vunpack.c.l.b16 %v6150
      %v6412 = vunpack.c.l.b16 %v6151
      %v6413 = vunpack.c.l.b16 %v6152
      %v6414 = vunpack.c.l.b16 %v6153
      %v6415 = vunpack.c.l.b16 %v6154
      %v6416 = vunpack.c.l.b16 %v6155
      %v6417 = vunpack.c.l.b16 %v6156
      %v6418 = vunpack.c.l.b16 %v6157
      %v6419 = vunpack.c.l.b16 %v6158
      %v6420 = vunpack.c.l.b16 %v6159
      %v6421 = vunpack.c.l.b16 %v6160
      %v6422 = vunpack.c.l.b16 %v6161
      %v6423 = vunpack.c.l.b16 %v6162
      %v6424 = vunpack.c.l.b16 %v6163
      %v6425 = vunpack.c.l.b16 %v6164
      %v6426 = vunpack.c.l.b16 %v6165
      %v6427 = vunpack.c.l.b16 %v6166
      %v6428 = vunpack.c.l.b16 %v6167
      %v6429 = vunpack.c.l.b16 %v6168
      %v6430 = vunpack.c.l.b16 %v6169
      %v6431 = vunpack.c.l.b16 %v6170
      %v6432 = vunpack.c.l.b16 %v6171
      %v6433 = vunpack.c.l.b16 %v6172
      %v6434 = vunpack.c.l.b16 %v6173
      %v6435 = vunpack.c.l.b16 %v6174
      %v6436 = vunpack.c.l.b16 %v6175
      %v6437 = vunpack.c.l.b16 %v6176
      %v6438 = vunpack.c.l.b16 %v6177
      %v6439 = vunpack.c.l.b16 %v6178
      %v6440 = vunpack.c.l.b16 %v6179
      %v6441 = vunpack.c.l.b16 %v6180
      %v6442 = vunpack.c.l.b16 %v6181
      %v6443 = vunpack.c.l.b16 %v6182
      %v6444 = vunpack.c.l.b16 %v6183
      %v6445 = vunpack.c.l.b16 %v6184
      %v6446 = vunpack.c.l.b16 %v6185
      %v6447 = vunpack.c.l.b16 %v6186
      %v6448 = vpack.c.b16 %v6399, %v6398
      %v6449 = vpack.c.b16 %v6401, %v6400
      %v6450 = vpack.c.b16 %v6403, %v6402
      %v6451 = vpack.c.b16 %v6405, %v6404
      %v6452 = vpack.c.b16 %v6407, %v6406
      %v6453 = vpack.c.b16 %v6409, %v6408
      %v6454 = vpack.c.b16 %v6411, %v6410
      %v6455 = vpack.c.b16 %v6413, %v6412
      %v6456 = vpack.c.b16 %v6415, %v6414
      %v6457 = vpack.c.b16 %v6417, %v6416
      %v6458 = vpack.c.b16 %v6419, %v6418
      %v6459 = vpack.c.b16 %v6421, %v6420
      %v6460 = vpack.c.b16 %v6423, %v6422
      %v6461 = vpack.c.b16 %v6425, %v6424
      %v6462 = vpack.c.b16 %v6427, %v6426
      %v6463 = vpack.c.b16 %v6429, %v6428
      %v6464 = vpack.c.b16 %v6431, %v6430
      %v6465 = vpack.c.b16 %v6433, %v6432
      %v6466 = vpack.c.b16 %v6435, %v6434
      %v6467 = vpack.c.b16 %v6437, %v6436
      %v6468 = vpack.c.b16 %v6439, %v6438
      %v6469 = vpack.c.b16 %v6441, %v6440
      %v6470 = vpack.c.b16 %v6443, %v6442
      %v6471 = vpack.c.b16 %v6445, %v6444
      %v6472 = vpack.c.b16 %v6447, %v6446
      %vm6498 = vcmask 130048
      %v6500 = vsel %vm6498, %v6295, 0
      %v6503 = vsel %vm6498, %v6299, 0
      %v6506 = vsel %vm6498, %v6303, 0
      %v6509 = vsel %vm6498, %v6307, 0
      %v6512 = vsel %vm6498, %v6311, 0
      %v6515 = vsel %vm6498, %v6315, 0
      %v6518 = vsel %vm6498, %v6319, 0
      %v6521 = vsel %vm6498, %v6323, 0
      %6523 = vmatprep.subr.bf16.mxu0 0
      %6524 = vmatpush1.bf16.msra.mxu0 %v6455
      %6525 = vmatprep.subr.bf16.mxu0 0
      %6526 = vmatpush1.bf16.msra.mxu0 %v6454
      %6527 = vmatprep.subr.bf16.mxu0 0
      %6528 = vmatpush1.bf16.msra.mxu0 %v6453
      %6529 = vmatprep.subr.bf16.mxu0 0
      %6530 = vmatpush1.bf16.msra.mxu0 %v6452
      %6531 = vmatprep.subr.bf16.mxu0 0
      %6532 = vmatpush1.bf16.msra.mxu0 %v6451
      %6533 = vmatprep.subr.bf16.mxu0 0
      %6534 = vmatpush1.bf16.msra.mxu0 %v6450
      %6535 = vmatprep.subr.bf16.mxu0 0
      %6536 = vmatpush1.bf16.msra.mxu0 %v6449
      %6537 = vmatprep.subr.bf16.mxu0 0
      %6538 = vmatpush1.bf16.msra.mxu0 %v6448
      %6539 = vmatprep.subr.bf16.mxu0 0
      %6540 = vmatpush2.bf16.msra.mxu0 %v6463
      %6541 = vmatprep.subr.bf16.mxu0 0
      %6542 = vmatpush2.bf16.msra.mxu0 %v6462
      %6543 = vmatprep.subr.bf16.mxu0 0
      %6544 = vmatpush2.bf16.msra.mxu0 %v6461
      %6545 = vmatprep.subr.bf16.mxu0 0
      %6546 = vmatpush2.bf16.msra.mxu0 %v6460
      %6547 = vmatprep.subr.bf16.mxu0 0
      %6548 = vmatpush2.bf16.msra.mxu0 %v6459
      %6549 = vmatprep.subr.bf16.mxu0 0
      %6550 = vmatpush2.bf16.msra.mxu0 %v6458
      %6551 = vmatprep.subr.bf16.mxu0 0
      %6552 = vmatpush2.bf16.msra.mxu0 %v6457
      %6553 = vmatprep.subr.bf16.mxu0 0
      %6554 = vmatpush2.bf16.msra.mxu0 %v6456
      %6555 = vmatprep.mubr.bf16.mxu0 %v6293
      %6556 = vmatmul.mubr.bf16.gmra.mxu0 %v6292
      %v6557 = vpop.f32.mrf.mxu0
      %v6558 = vadd.f32 %v6187, %v6557
      %v6559 = vpop.f32.mrf.mxu0
      %v6560 = vpop.f32.mrf.mxu0
      %v6561 = vadd.f32 %v6188, %v6560
      %v6562 = vpop.f32.mrf.mxu0
      %6563 = vmatprep.mubr.bf16.mxu0 %v6297
      %6564 = vmatmul.mubr.bf16.gmra.mxu0 %v6296
      %v6565 = vpop.f32.mrf.mxu0
      %v6566 = vadd.f32 %v6189, %v6565
      %v6567 = vpop.f32.mrf.mxu0
      %v6568 = vpop.f32.mrf.mxu0
      %v6569 = vadd.f32 %v6190, %v6568
      %v6570 = vpop.f32.mrf.mxu0
      %6571 = vmatprep.mubr.bf16.mxu0 %v6301
      %6572 = vmatmul.mubr.bf16.gmra.mxu0 %v6300
      %v6573 = vpop.f32.mrf.mxu0
      %v6574 = vadd.f32 %v6191, %v6573
      %v6575 = vpop.f32.mrf.mxu0
      %v6576 = vpop.f32.mrf.mxu0
      %v6577 = vadd.f32 %v6192, %v6576
      %v6578 = vpop.f32.mrf.mxu0
      %6579 = vmatprep.mubr.bf16.mxu0 %v6305
      %6580 = vmatmul.mubr.bf16.gmra.mxu0 %v6304
      %v6581 = vpop.f32.mrf.mxu0
      %v6582 = vadd.f32 %v6193, %v6581
      %v6583 = vpop.f32.mrf.mxu0
      %v6584 = vpop.f32.mrf.mxu0
      %v6585 = vadd.f32 %v6194, %v6584
      %v6586 = vpop.f32.mrf.mxu0
      %6587 = vmatprep.mubr.bf16.mxu0 %v6309
      %6588 = vmatmul.mubr.bf16.gmra.mxu0 %v6308
      %v6589 = vpop.f32.mrf.mxu0
      %v6590 = vadd.f32 %v6195, %v6589
      %v6591 = vpop.f32.mrf.mxu0
      %v6592 = vpop.f32.mrf.mxu0
      %v6593 = vadd.f32 %v6196, %v6592
      %v6594 = vpop.f32.mrf.mxu0
      %6595 = vmatprep.mubr.bf16.mxu0 %v6313
      %6596 = vmatmul.mubr.bf16.gmra.mxu0 %v6312
      %v6597 = vpop.f32.mrf.mxu0
      %v6598 = vadd.f32 %v6197, %v6597
      %v6599 = vpop.f32.mrf.mxu0
      %v6600 = vpop.f32.mrf.mxu0
      %v6601 = vadd.f32 %v6198, %v6600
      %v6602 = vpop.f32.mrf.mxu0
      %6603 = vmatprep.mubr.bf16.mxu0 %v6317
      %6604 = vmatmul.mubr.bf16.gmra.mxu0 %v6316
      %v6605 = vpop.f32.mrf.mxu0
      %v6606 = vadd.f32 %v6199, %v6605
      %v6607 = vpop.f32.mrf.mxu0
      %v6608 = vpop.f32.mrf.mxu0
      %v6609 = vadd.f32 %v6200, %v6608
      %v6610 = vpop.f32.mrf.mxu0
      %6611 = vmatprep.mubr.bf16.mxu0 %v6321
      %6612 = vmatmul.mubr.bf16.gmra.mxu0 %v6320
      %v6613 = vpop.f32.mrf.mxu0
      %v6614 = vadd.f32 %v6201, %v6613
      %v6615 = vpop.f32.mrf.mxu0
      %v6616 = vpop.f32.mrf.mxu0
      %v6617 = vpop.f32.mrf.mxu0
      %6618 = vdwg.mxu0
      %6619 = vmatprep.subr.bf16.mxu0 0
      %6620 = vmatpush1.bf16.msra.mxu0 %v6471
      %6621 = vmatprep.subr.bf16.mxu0 0
      %6622 = vmatpush1.bf16.msra.mxu0 %v6470
      %6623 = vmatprep.subr.bf16.mxu0 0
      %6624 = vmatpush1.bf16.msra.mxu0 %v6469
      %6625 = vmatprep.subr.bf16.mxu0 0
      %6626 = vmatpush1.bf16.msra.mxu0 %v6468
      %6627 = vmatprep.subr.bf16.mxu0 0
      %6628 = vmatpush1.bf16.msra.mxu0 %v6467
      %6629 = vmatprep.subr.bf16.mxu0 0
      %6630 = vmatpush1.bf16.msra.mxu0 %v6466
      %6631 = vmatprep.subr.bf16.mxu0 0
      %6632 = vmatpush1.bf16.msra.mxu0 %v6465
      %6633 = vmatprep.subr.bf16.mxu0 0
      %6634 = vmatpush1.bf16.msra.mxu0 %v6464
      %6635 = vmatprep.subr.bf16.mxu0 0
      %6636 = vmatpush2.bf16.msra.mxu0 0
      %6637 = vmatprep.subr.bf16.mxu0 0
      %6638 = vmatpush2.bf16.msra.mxu0 0
      %6639 = vmatprep.subr.bf16.mxu0 0
      %6640 = vmatpush2.bf16.msra.mxu0 0
      %6641 = vmatprep.subr.bf16.mxu0 0
      %6642 = vmatpush2.bf16.msra.mxu0 0
      %6643 = vmatprep.subr.bf16.mxu0 0
      %6644 = vmatpush2.bf16.msra.mxu0 0
      %6645 = vmatprep.subr.bf16.mxu0 0
      %6646 = vmatpush2.bf16.msra.mxu0 0
      %6647 = vmatprep.subr.bf16.mxu0 0
      %6648 = vmatpush2.bf16.msra.mxu0 0
      %6649 = vmatprep.subr.bf16.mxu0 0
      %6650 = vmatpush2.bf16.msra.mxu0 %v6472
      %6651 = vmatprep.mubr.bf16.mxu0 %v6500
      %6652 = vmatmul.mubr.bf16.gmra.mxu0 %v6294
      %v6653 = vpop.f32.mrf.mxu0
      %v6654 = vadd.f32 %v6558, %v6653
      %v6655 = vpop.f32.mrf.mxu0
      %v6656 = vpop.f32.mrf.mxu0
      %v6657 = vadd.f32 %v6561, %v6656
      %v6658 = vpop.f32.mrf.mxu0
      %6659 = vmatprep.mubr.bf16.mxu0 %v6503
      %6660 = vmatmul.mubr.bf16.gmra.mxu0 %v6298
      %v6661 = vpop.f32.mrf.mxu0
      %v6662 = vadd.f32 %v6566, %v6661
      %v6663 = vpop.f32.mrf.mxu0
      %v6664 = vpop.f32.mrf.mxu0
      %v6665 = vadd.f32 %v6569, %v6664
      %v6666 = vpop.f32.mrf.mxu0
      %6667 = vmatprep.mubr.bf16.mxu0 %v6506
      %6668 = vmatmul.mubr.bf16.gmra.mxu0 %v6302
      %v6669 = vpop.f32.mrf.mxu0
      %v6670 = vadd.f32 %v6574, %v6669
      %v6671 = vpop.f32.mrf.mxu0
      %v6672 = vpop.f32.mrf.mxu0
      %v6673 = vadd.f32 %v6577, %v6672
      %v6674 = vpop.f32.mrf.mxu0
      %6675 = vmatprep.mubr.bf16.mxu0 %v6509
      %6676 = vmatmul.mubr.bf16.gmra.mxu0 %v6306
      %v6677 = vpop.f32.mrf.mxu0
      %v6678 = vadd.f32 %v6582, %v6677
      %v6679 = vpop.f32.mrf.mxu0
      %v6680 = vpop.f32.mrf.mxu0
      %v6681 = vadd.f32 %v6585, %v6680
      %v6682 = vpop.f32.mrf.mxu0
      %6683 = vmatprep.mubr.bf16.mxu0 %v6512
      %6684 = vmatmul.mubr.bf16.gmra.mxu0 %v6310
      %v6685 = vpop.f32.mrf.mxu0
      %v6686 = vadd.f32 %v6590, %v6685
      %v6687 = vpop.f32.mrf.mxu0
      %v6688 = vpop.f32.mrf.mxu0
      %v6689 = vadd.f32 %v6593, %v6688
      %v6690 = vpop.f32.mrf.mxu0
      %6691 = vmatprep.mubr.bf16.mxu0 %v6515
      %6692 = vmatmul.mubr.bf16.gmra.mxu0 %v6314
      %v6693 = vpop.f32.mrf.mxu0
      %v6694 = vadd.f32 %v6598, %v6693
      %v6695 = vpop.f32.mrf.mxu0
      %v6696 = vpop.f32.mrf.mxu0
      %v6697 = vadd.f32 %v6601, %v6696
      %v6698 = vpop.f32.mrf.mxu0
      %6699 = vmatprep.mubr.bf16.mxu0 %v6518
      %6700 = vmatmul.mubr.bf16.gmra.mxu0 %v6318
      %v6701 = vpop.f32.mrf.mxu0
      %v6702 = vadd.f32 %v6606, %v6701
      %v6703 = vpop.f32.mrf.mxu0
      %v6704 = vpop.f32.mrf.mxu0
      %v6705 = vadd.f32 %v6609, %v6704
      %v6706 = vpop.f32.mrf.mxu0
      %6707 = vmatprep.mubr.bf16.mxu0 %v6521
      %6708 = vmatmul.mubr.bf16.gmra.mxu0 %v6322
      %v6709 = vpop.f32.mrf.mxu0
      %v6710 = vadd.f32 %v6614, %v6709
      %v6711 = vpop.f32.mrf.mxu0
      %v6712 = vpop.f32.mrf.mxu0
      %v6713 = vpop.f32.mrf.mxu0
      %6714 = vdwg.mxu0
      %v6715 = vmax.f32 %v6654, 0.0
      %v6716 = vmax.f32 %v6657, 0.0
      %v6717 = vmax.f32 %v6662, 0.0
      %v6718 = vmax.f32 %v6665, 0.0
      %v6719 = vmax.f32 %v6670, 0.0
      %v6720 = vmax.f32 %v6673, 0.0
      %v6721 = vmax.f32 %v6678, 0.0
      %v6722 = vmax.f32 %v6681, 0.0
      %v6723 = vmax.f32 %v6686, 0.0
      %v6724 = vmax.f32 %v6689, 0.0
      %v6725 = vmax.f32 %v6694, 0.0
      %v6726 = vmax.f32 %v6697, 0.0
      %v6727 = vmax.f32 %v6702, 0.0
      %v6728 = vmax.f32 %v6705, 0.0
      %v6729 = vmax.f32 %v6710, 0.0
      %v6730 = vpack.c.bf16 %v6716, %v6715
      %v6731 = vpack.c.bf16 %v6718, %v6717
      %v6732 = vpack.c.bf16 %v6720, %v6719
      %v6733 = vpack.c.bf16 %v6722, %v6721
      %v6734 = vpack.c.bf16 %v6724, %v6723
      %v6735 = vpack.c.bf16 %v6726, %v6725
      %v6736 = vpack.c.bf16 %v6728, %v6727
      %v6737 = vpack.c.bf16 %v6729, %v6729
      %v6738 = vld [vmem:[%s7] sm:$0xf]
      %v6739 = vld [vmem:[%s7 + $0x4] sm:$0xf]
      %v6740 = vld [vmem:[%s7 + $0x8] sm:$0xf]
      %v6741 = vld [vmem:[%s7 + $0xc] sm:$0xf]
      %v6742 = vld [vmem:[%s7 + $0x10] sm:$0xf]
      %v6743 = vld [vmem:[%s7 + $0x14] sm:$0xf]
      %v6744 = vld [vmem:[%s7 + $0x18] sm:$0xf]
      %v6745 = vld [vmem:[%s7 + $0x1c] sm:$0xf]
      %v6746 = vld [vmem:[%s7 + $0x20] sm:$0xf]
      %v6747 = vld [vmem:[%s7 + $0x24] sm:$0xf]
      %v6748 = vld [vmem:[%s7 + $0x28] sm:$0x3]
      %v6749 = vld [vmem:[%s8] sm:$0xff]
      %v6750 = vld [vmem:[%s8 + $0x8] sm:$0xff]
      %v6751 = vld [vmem:[%s8 + $0x10] sm:$0xff]
      %v6752 = vld [vmem:[%s8 + $0x18] sm:$0xff]
      %v6753 = vld [vmem:[%s8 + $0x20] sm:$0xff]
      %v6754 = vld [vmem:[%s8 + $0x28] sm:$0xff]
      %v6755 = vld [vmem:[%s8 + $0x30] sm:$0xff]
      %v6756 = vld [vmem:[%s8 + $0x38] sm:$0xff]
      %v6757 = vld [vmem:[%s8 + $0x40] sm:$0xff]
      %v6758 = vld [vmem:[%s8 + $0x48] sm:$0xff]
      %v6759 = vld [vmem:[%s8 + $0x50] sm:$0xf]
      %v6771 = vunpack.c.l.b16 %v6738
      %v6772 = vunpack.c.l.b16 %v6739
      %v6773 = vunpack.c.l.b16 %v6740
      %v6774 = vunpack.c.l.b16 %v6741
      %v6775 = vunpack.c.l.b16 %v6742
      %v6776 = vunpack.c.l.b16 %v6743
      %v6777 = vunpack.c.l.b16 %v6744
      %v6778 = vunpack.c.l.b16 %v6745
      %v6779 = vunpack.c.l.b16 %v6746
      %v6780 = vunpack.c.l.b16 %v6747
      %v6781 = vunpack.c.l.b16 %v6748
      %v6782 = vpack.c.b16 %v6772, %v6771
      %v6783 = vpack.c.b16 %v6774, %v6773
      %v6784 = vpack.c.b16 %v6776, %v6775
      %v6785 = vpack.c.b16 %v6778, %v6777
      %v6786 = vpack.c.b16 %v6780, %v6779
      %v6787 = vpack.c.b16 %v6781, %v6781
      %vm6788 = vcmask 982016
      %v6790 = vsel %vm6788, %v6782, 0
      %v6793 = vsel %vm6788, %v6783, 0
      %v6796 = vsel %vm6788, %v6784, 0
      %v6799 = vsel %vm6788, %v6785, 0
      %v6802 = vsel %vm6788, %v6786, 0
      %v6805 = vsel %vm6788, %v6787, 0
      %v6808 = vsel %vm3422, %v6737, 0
      %6810 = vmatprep.subr.bf16.mxu0 0
      %6811 = vmatpush1.bf16.msra.mxu0 %v6808
      %6812 = vmatprep.subr.bf16.mxu0 0
      %6813 = vmatpush1.bf16.msra.mxu0 %v6736
      %6814 = vmatprep.subr.bf16.mxu0 0
      %6815 = vmatpush1.bf16.msra.mxu0 %v6735
      %6816 = vmatprep.subr.bf16.mxu0 0
      %6817 = vmatpush1.bf16.msra.mxu0 %v6734
      %6818 = vmatprep.subr.bf16.mxu0 0
      %6819 = vmatpush1.bf16.msra.mxu0 %v6733
      %6820 = vmatprep.subr.bf16.mxu0 0
      %6821 = vmatpush1.bf16.msra.mxu0 %v6732
      %6822 = vmatprep.subr.bf16.mxu0 0
      %6823 = vmatpush1.bf16.msra.mxu0 %v6731
      %6824 = vmatprep.subr.bf16.mxu0 0
      %6825 = vmatpush1.bf16.msra.mxu0 %v6730
      %6826 = vmatprep.subr.bf16.mxu0 0
      %6827 = vmatpush2.bf16.msra.mxu0 0
      %6828 = vmatprep.subr.bf16.mxu0 0
      %6829 = vmatpush2.bf16.msra.mxu0 0
      %6830 = vmatprep.subr.bf16.mxu0 0
      %6831 = vmatpush2.bf16.msra.mxu0 0
      %6832 = vmatprep.subr.bf16.mxu0 0
      %6833 = vmatpush2.bf16.msra.mxu0 0
      %6834 = vmatprep.subr.bf16.mxu0 0
      %6835 = vmatpush2.bf16.msra.mxu0 0
      %6836 = vmatprep.subr.bf16.mxu0 0
      %6837 = vmatpush2.bf16.msra.mxu0 0
      %6838 = vmatprep.subr.bf16.mxu0 0
      %6839 = vmatpush2.bf16.msra.mxu0 0
      %6840 = vmatprep.subr.bf16.mxu0 0
      %6841 = vmatpush2.bf16.msra.mxu0 0
      %6842 = vmatprep.mubr.bf16.mxu0 0
      %6843 = vmatmul.mubr.bf16.gmra.mxu0 %v6790
      %v6844 = vpop.f32.mrf.mxu0
      %v6845 = vadd.f32 %v6749, %v6844
      %v6846 = vpop.f32.mrf.mxu0
      %v6847 = vpop.f32.mrf.mxu0
      %v6848 = vadd.f32 %v6750, %v6847
      %v6849 = vpop.f32.mrf.mxu0
      %6850 = vmatprep.mubr.bf16.mxu0 0
      %6851 = vmatmul.mubr.bf16.gmra.mxu0 %v6793
      %v6852 = vpop.f32.mrf.mxu0
      %v6853 = vadd.f32 %v6751, %v6852
      %v6854 = vpop.f32.mrf.mxu0
      %v6855 = vpop.f32.mrf.mxu0
      %v6856 = vadd.f32 %v6752, %v6855
      %v6857 = vpop.f32.mrf.mxu0
      %6858 = vmatprep.mubr.bf16.mxu0 0
      %6859 = vmatmul.mubr.bf16.gmra.mxu0 %v6796
      %v6860 = vpop.f32.mrf.mxu0
      %v6861 = vadd.f32 %v6753, %v6860
      %v6862 = vpop.f32.mrf.mxu0
      %v6863 = vpop.f32.mrf.mxu0
      %v6864 = vadd.f32 %v6754, %v6863
      %v6865 = vpop.f32.mrf.mxu0
      %6866 = vmatprep.mubr.bf16.mxu0 0
      %6867 = vmatmul.mubr.bf16.gmra.mxu0 %v6799
      %v6868 = vpop.f32.mrf.mxu0
      %v6869 = vadd.f32 %v6755, %v6868
      %v6870 = vpop.f32.mrf.mxu0
      %v6871 = vpop.f32.mrf.mxu0
      %v6872 = vadd.f32 %v6756, %v6871
      %v6873 = vpop.f32.mrf.mxu0
      %6874 = vmatprep.mubr.bf16.mxu0 0
      %6875 = vmatmul.mubr.bf16.gmra.mxu0 %v6802
      %v6876 = vpop.f32.mrf.mxu0
      %v6877 = vadd.f32 %v6757, %v6876
      %v6878 = vpop.f32.mrf.mxu0
      %v6879 = vpop.f32.mrf.mxu0
      %v6880 = vadd.f32 %v6758, %v6879
      %v6881 = vpop.f32.mrf.mxu0
      %6882 = vmatprep.mubr.bf16.mxu0 0
      %6883 = vmatmul.mubr.bf16.gmra.mxu0 %v6805
      %v6884 = vpop.f32.mrf.mxu0
      %v6885 = vadd.f32 %v6759, %v6884
      %v6886 = vpop.f32.mrf.mxu0
      %v6887 = vpop.f32.mrf.mxu0
      %v6888 = vpop.f32.mrf.mxu0
      %6889 = vdwg.mxu0
      %v6890 = vmax.f32 %v6845, 0.0
      %v6891 = vmax.f32 %v6848, 0.0
      %v6892 = vmax.f32 %v6853, 0.0
      %v6893 = vmax.f32 %v6856, 0.0
      %v6894 = vmax.f32 %v6861, 0.0
      %v6895 = vmax.f32 %v6864, 0.0
      %v6896 = vmax.f32 %v6869, 0.0
      %v6897 = vmax.f32 %v6872, 0.0
      %v6898 = vmax.f32 %v6877, 0.0
      %v6899 = vmax.f32 %v6880, 0.0
      %v6900 = vmax.f32 %v6885, 0.0
      %v6901 = vpack.c.bf16 %v6891, %v6890
      %v6902 = vpack.c.bf16 %v6893, %v6892
      %v6903 = vpack.c.bf16 %v6895, %v6894
      %v6904 = vpack.c.bf16 %v6897, %v6896
      %v6905 = vpack.c.bf16 %v6899, %v6898
      %v6906 = vpack.c.bf16 %v6900, %v6900
      %v6907 = vld [vmem:[%s9] sm:$0xf]
      %v6908 = vld [vmem:[%s9 + $0x4] sm:$0x1]
      %v6909 = vld [vmem:[%s10] sm:$0xff]
      %v6910 = vld [vmem:[%s10 + $0x8] sm:$0x3]
      %v6913 = vunpack.c.l.b16 %v6907
      %v6914 = vunpack.c.l.b16 %v6908
      %v6915 = vpack.c.b16 %v6914, %v6913
      %vm6916 = vcmask 687104
      %v6918 = vsel %vm6916, %v6915, 0
      %vm6920 = vcmask 1041408
      %v6922 = vsel %vm6920, %v6906, 0
      %6924 = vmatprep.subr.bf16.mxu0 0
      %6925 = vmatpush1.bf16.msra.mxu0 0
      %6926 = vmatprep.subr.bf16.mxu0 0
      %6927 = vmatpush1.bf16.msra.mxu0 0
      %6928 = vmatprep.subr.bf16.mxu0 0
      %6929 = vmatpush1.bf16.msra.mxu0 %v6922
      %6930 = vmatprep.subr.bf16.mxu0 0
      %6931 = vmatpush1.bf16.msra.mxu0 %v6905
      %6932 = vmatprep.subr.bf16.mxu0 0
      %6933 = vmatpush1.bf16.msra.mxu0 %v6904
      %6934 = vmatprep.subr.bf16.mxu0 0
      %6935 = vmatpush1.bf16.msra.mxu0 %v6903
      %6936 = vmatprep.subr.bf16.mxu0 0
      %6937 = vmatpush1.bf16.msra.mxu0 %v6902
      %6938 = vmatprep.subr.bf16.mxu0 0
      %6939 = vmatpush1.bf16.msra.mxu0 %v6901
      %6940 = vmatprep.subr.bf16.mxu0 0
      %6941 = vmatpush2.bf16.msra.mxu0 0
      %6942 = vmatprep.subr.bf16.mxu0 0
      %6943 = vmatpush2.bf16.msra.mxu0 0
      %6944 = vmatprep.subr.bf16.mxu0 0
      %6945 = vmatpush2.bf16.msra.mxu0 0
      %6946 = vmatprep.subr.bf16.mxu0 0
      %6947 = vmatpush2.bf16.msra.mxu0 0
      %6948 = vmatprep.subr.bf16.mxu0 0
      %6949 = vmatpush2.bf16.msra.mxu0 0
      %6950 = vmatprep.subr.bf16.mxu0 0
      %6951 = vmatpush2.bf16.msra.mxu0 0
      %6952 = vmatprep.subr.bf16.mxu0 0
      %6953 = vmatpush2.bf16.msra.mxu0 0
      %6954 = vmatprep.subr.bf16.mxu0 0
      %6955 = vmatpush2.bf16.msra.mxu0 0
      %6956 = vmatprep.mubr.bf16.mxu0 0
      %6957 = vmatmul.mubr.bf16.gmra.mxu0 %v6918
      %v6958 = vpop.f32.mrf.mxu0
      %v6959 = vadd.f32 %v6909, %v6958
      %v6960 = vpop.f32.mrf.mxu0
      %v6961 = vpop.f32.mrf.mxu0
      %v6962 = vadd.f32 %v6910, %v6961
      %v6963 = vpop.f32.mrf.mxu0
      %6964 = vdwg.mxu0
      %vm6965 = vcmask 7168
      %6966 = vst.msk [vmem:[%s386] sm:$0xff] %vm6965, %v6959
      %vm6967 = vcmask 1024
      %6968 = vst.msk [vmem:[%s386 + $0x8] sm:$0x3] %vm6967, %v6962
      %p6969 = scmp.lt.s32.totalorder %s22, 1
      %s6970 = scalar_select %p6969, %s22, 1
      %s6971 = smul.addr %s6970, 2
      %s6972 = smul.addr %s6971, 8
      %s6973 = scalar_lea.vmem %s11, %s6972
      // Predicated region
      $region65: #{lenet_pallas_forward.1} parent=63 // pred_check
        %p6974 = pneg %p276
      $region66: #{lenet_pallas_forward.1} parent=63 // pred_check_branch
        %6976 = sbr.rel (%p6974) target = $region68
      $region67: #{lenet_pallas_forward.1} parent=63 // pred_region
        _
      $region68: #{lenet_pallas_forward.1} parent=63 // pred_fallthru
        _
    $region64: #{lenet_pallas_forward.1} parent=5 // pred_fallthru
      _
    %p6977 = scmp.le.s32.totalorder 2, %s17
    // Predicated region
    $region69: #{lenet_pallas_forward.1} parent=5 // pred_check
      %p6978 = pneg %p6977
    $region70: #{lenet_pallas_forward.1} parent=5 // pred_check_branch
      %6980 = sbr.rel (%p6978) target = $region72
    $region71: #{lenet_pallas_forward.1} parent=5 // pred_region
      %s6981 = ssub.s32 %s17, 2
      // Predicated region
      $region73: #{lenet_pallas_forward.1} parent=71 // pred_check
        %p6982 = pneg %p282
      $region74: #{lenet_pallas_forward.1} parent=71 // pred_check_branch
        %6984 = sbr.rel (%p6982) target = $region76
      $region75: #{lenet_pallas_forward.1} parent=71 // pred_region
        %p6985 = scmp.lt.s32.totalorder %s23, 1
        %s6986 = scalar_select %p6985, %s23, 1
        %s6987 = smul.addr %s6986, 2
        %s6988 = smul.addr %s6987, 8
        %s6989 = scalar_lea.vmem %s11, %s6988
      $region76: #{lenet_pallas_forward.1} parent=71 // pred_fallthru
        _
    $region72: #{lenet_pallas_forward.1} parent=5 // pred_fallthru
      _
  $region6: #{lenet_pallas_forward.1} parent=0 // loop_footer
    %s21 = sadd.s32 1, %s17
  $region7: #{lenet_pallas_forward.1} parent=0 // loop_footer_branch
    %16 = sbr.rel target = $region3
  $region8: #{lenet_pallas_forward.1} parent=0 // loop_exit
    _

</llo_original>
